<compile_context>
chip_gen: v6e
topology: v6e:2x2x1
jax: 0.10.0
libtpu: 0.0.40
codegen_flags: <defaults>
</compile_context>

<pallas_src>
import functools

import jax
import jax.numpy as jnp
from jax.experimental import pallas as pl
from jax.experimental.pallas import tpu as pltpu

# Small stand-ins for the module-level constants (codebook_size=512, embedding_dim=256).
CODEBOOK_SIZE = 16
EMBEDDING_DIM = 8


def _round_up(x, m):
    return ((x + m - 1) // m) * m


def _pick_tile(dim, cap, align):
    """Largest multiple of `align` that is <= cap and divides `dim` (dim % align == 0)."""
    start = min(cap, dim)
    start -= start % align
    start = max(start, align)
    for t in range(start, align - 1, -align):
        if dim % t == 0:
            return t
    return align


# ----------------------------------------------------------------------------
# Tiled matmul kernel with fused bias + activation (relu / sigmoid / none).
# bf16 operands feed the MXU; accumulation is f32 in a VMEM scratch.
# ----------------------------------------------------------------------------
def _matmul_kernel(a_ref, b_ref, bias_ref, o_ref, acc_ref, *, activation):
    @pl.when(pl.program_id(2) == 0)
    def _():
        acc_ref[...] = jnp.zeros_like(acc_ref)

    acc_ref[...] += jnp.dot(a_ref[...], b_ref[...],
                            preferred_element_type=jnp.float32)

    @pl.when(pl.program_id(2) == pl.num_programs(2) - 1)
    def _():
        out = acc_ref[...] + bias_ref[...]
        if activation == "relu":
            out = jnp.maximum(out, 0.0)
        elif activation == "sigmoid":
            out = jax.nn.sigmoid(out)
        o_ref[...] = out.astype(o_ref.dtype)


def matmul_bias_act(a, b, bias, activation="none", out_dtype=jnp.float32,
                    tm_cap=256, tn_cap=2048, tk_cap=1024):
    """act(a @ b + bias).  a: (M, K), b: (K, N), bias: (N,).  MXU runs in bf16."""
    M, K = a.shape
    K2, N = b.shape
    assert K == K2

    Mp = _round_up(M, 8)
    Np = _round_up(N, 128)
    tm = _pick_tile(Mp, tm_cap, 8)
    tn = _pick_tile(Np, tn_cap, 128)
    if K % 128 == 0:
        tk = _pick_tile(K, tk_cap, 128)
    else:
        tk = K  # full-K block: allowed because it equals the full array dim (e.g. K=64)

    a_p = a.astype(jnp.bfloat16)          # no-op when the activation is already bf16
    b_p = b.astype(jnp.bfloat16)          # weights are stored in bf16
    bias_p = bias.astype(jnp.float32)
    if Mp != M:
        a_p = jnp.pad(a_p, ((0, Mp - M), (0, 0)))
    if Np != N:
        b_p = jnp.pad(b_p, ((0, 0), (0, Np - N)))
        bias_p = jnp.pad(bias_p, (0, Np - N))
    bias_p = bias_p.reshape(1, Np)

    grid = (Mp // tm, Np // tn, K // tk)
    out = pl.pallas_call(
        functools.partial(_matmul_kernel, activation=activation),
        out_shape=jax.ShapeDtypeStruct((Mp, Np), out_dtype),
        grid_spec=pltpu.PrefetchScalarGridSpec(
            num_scalar_prefetch=0,
            grid=grid,
            in_specs=[
                pl.BlockSpec((tm, tk), lambda i, j, k: (i, k)),
                pl.BlockSpec((tk, tn), lambda i, j, k: (k, j)),
                pl.BlockSpec((1, tn), lambda i, j, k: (0, j)),
            ],
            out_specs=pl.BlockSpec((tm, tn), lambda i, j, k: (i, j)),
            scratch_shapes=[pltpu.VMEM((tm, tn), jnp.float32)],
        ),
        compiler_params=pltpu.CompilerParams(
            dimension_semantics=("parallel", "parallel", "arbitrary"),
            vmem_limit_bytes=32 * 1024 * 1024),
    )(a_p, b_p, bias_p)
    if Mp != M or Np != N:
        out = out[:M, :N]
    return out


# ----------------------------------------------------------------------------
# Parameter init (deterministic, synthetic).  Weights stored bf16 (MXU operands),
# biases f32 (added to the f32 accumulator).
# ----------------------------------------------------------------------------
def init_params(key, codebook_size, embedding_dim):
    ke = codebook_size * embedding_dim
    keys = jax.random.split(key, 8)

    def norm(k, shape, fan_in, dtype=jnp.bfloat16):
        return (jax.random.normal(k, shape, jnp.float32) /
                jnp.sqrt(jnp.float32(fan_in))).astype(dtype)

    p = {}
    # fc_layers: Linear(ke, 1024), Linear(1024, 128*8*8*8) -- stored as (in, out).
    p["w_fc1"] = norm(keys[0], (ke, 1024), ke)
    p["b_fc1"] = norm(keys[1], (1024,), 1.0, jnp.float32)
    p["w_fc2"] = norm(keys[2], (1024, 128 * 8 * 8 * 8), 1024)
    p["b_fc2"] = norm(keys[3], (128 * 8 * 8 * 8,), 1.0, jnp.float32)
    # ConvTranspose3d(128, 64, 2, 2): torch weight (128, 64, 2, 2, 2) -> (128, 64*8),
    # columns ordered (c_out, kd, kh, kw).
    p["w_dc1"] = norm(keys[4], (128, 64, 2, 2, 2), 128).reshape(128, 64 * 8)
    p["b_dc1"] = norm(keys[5], (64,), 1.0, jnp.float32)
    # ConvTranspose3d(64, 3, 2, 2): torch weight (64, 3, 2, 2, 2) -> (64, 3*8).
    p["w_dc2"] = norm(keys[6], (64, 3, 2, 2, 2), 64).reshape(64, 3 * 8)
    p["b_dc2"] = norm(keys[7], (3,), 1.0, jnp.float32)
    return p


# ----------------------------------------------------------------------------
# Decoder forward pass (matches the PyTorch module's semantics).
# ----------------------------------------------------------------------------
def decoder_forward(x, params):
    """x: (B, codebook_size*embedding_dim) -> (B, 3, 32, 32, 32)."""
    B = x.shape[0]

    # fc_layers: Linear + ReLU, Linear + ReLU (bf16 activations between layers).
    d1 = matmul_bias_act(x, params["w_fc1"], params["b_fc1"], "relu",
                         out_dtype=jnp.bfloat16)                       # (B, 1024)
    d2 = matmul_bias_act(d1, params["w_fc2"], params["b_fc2"], "relu",
                         out_dtype=jnp.bfloat16)                       # (B, 65536)

    # x.view(B, 128, 8, 8, 8), then channels-last rows for the per-voxel deconv matmul.
    v_cl = jnp.transpose(d2.reshape(B, 128, 8, 8, 8),
                         (0, 2, 3, 4, 1)).reshape(B * 8 * 8 * 8, 128)

    # ConvTranspose3d(128, 64, k=2, s=2) + ReLU  ==  per-voxel matmul (128 -> 64*8).
    t1 = matmul_bias_act(v_cl, params["w_dc1"], jnp.repeat(params["b_dc1"], 8),
                         "relu", out_dtype=jnp.bfloat16)               # (B*512, 512)
    # Scatter each 2x2x2 output block and go straight to channels-last (B,16,16,16,64).
    t1_cl = (t1.reshape(B, 8, 8, 8, 64, 2, 2, 2)
               .transpose(0, 1, 5, 2, 6, 3, 7, 4)
               .reshape(B * 16 * 16 * 16, 64))

    # ConvTranspose3d(64, 3, k=2, s=2) + Sigmoid  ==  per-voxel matmul (64 -> 3*8).
    t2 = matmul_bias_act(t1_cl, params["w_dc2"], jnp.repeat(params["b_dc2"], 8),
                         "sigmoid", out_dtype=jnp.float32)             # (B*4096, 24)
    out = (t2.reshape(B, 16, 16, 16, 3, 2, 2, 2)
             .transpose(0, 4, 1, 5, 2, 6, 3, 7)
             .reshape(B, 3, 32, 32, 32))
    return out


if __name__ == "__main__":
    key = jax.random.PRNGKey(0)
    kx, kp = jax.random.split(key)
    B = 2
    x = jax.random.uniform(kx, (B, CODEBOOK_SIZE * EMBEDDING_DIM), jnp.float32)
    params = init_params(kp, CODEBOOK_SIZE, EMBEDDING_DIM)

    fwd = jax.jit(decoder_forward)
    out = jax.block_until_ready(fwd(x, params))

    assert out.shape == (B, 3, 32, 32, 32), out.shape
    assert bool(jnp.all(jnp.isfinite(out)))
    assert bool(jnp.all((out >= 0.0) & (out <= 1.0)))
    print("KERNEL_OK")
</pallas_src>

<mosaic_0001>
module attributes {stable_mosaic.version = 11 : i64} {
  func.func @_matmul_kernel(%arg0: i32, %arg1: i32, %arg2: i32, %arg3: memref<8x1024xbf16, #tpu.memory_space<vmem>>, %arg4: memref<1024x2048xbf16, #tpu.memory_space<vmem>>, %arg5: memref<1x2048xf32, #tpu.memory_space<vmem>>, %arg6: memref<8x2048xbf16, #tpu.memory_space<vmem>>, %arg7: memref<8x2048xf32, #tpu.memory_space<vmem>>) attributes {dimension_semantics = [#tpu.dimension_semantics<parallel>, #tpu.dimension_semantics<parallel>, #tpu.dimension_semantics<arbitrary>], iteration_bounds = array<i64: 1, 32, 1>, scalar_prefetch = 0 : i64, scratch_operands = 1 : i64, tpu.core_type = #tpu.core_type<tc>, window_params = [{transform_indices = @transform_0, window_bounds = array<i64: 8, 1024>}, {transform_indices = @transform_1, window_bounds = array<i64: 1024, 2048>}, {transform_indices = @transform_2, window_bounds = array<i64: 1, 2048>}, {transform_indices = @transform_3, window_bounds = array<i64: 8, 2048>}]} {
    %c0_i32 = arith.constant 0 : i32
    %0 = arith.cmpi eq, %arg2, %c0_i32 : i32
    %1 = arith.extui %0 : i1 to i32
    %c0_i32_0 = arith.constant 0 : i32
    %2 = arith.cmpi ne, %1, %c0_i32_0 : i32
    scf.if %2 {
      %cst_10 = arith.constant 0.000000e+00 : f32
      %12 = vector.broadcast %cst_10 : f32 to vector<8x2048xf32>
      %c0_11 = arith.constant 0 : index
      %c0_12 = arith.constant 0 : index
      %13 = vector.load %arg7[%c0_11, %c0_12] : memref<8x2048xf32, #tpu.memory_space<vmem>>, vector<8x2048xf32>
      tpu.vector_store %arg7[%c0_11, %c0_12], %12 {strides = array<i32>} : memref<8x2048xf32, #tpu.memory_space<vmem>>, vector<8x2048xf32>,
    } else {
    }
    %c0 = arith.constant 0 : index
    %c0_1 = arith.constant 0 : index
    %3 = vector.load %arg7[%c0, %c0_1] : memref<8x2048xf32, #tpu.memory_space<vmem>>, vector<8x2048xf32>
    %c0_2 = arith.constant 0 : index
    %c0_3 = arith.constant 0 : index
    %4 = vector.load %arg3[%c0_2, %c0_3] : memref<8x1024xbf16, #tpu.memory_space<vmem>>, vector<8x1024xbf16>
    %c0_4 = arith.constant 0 : index
    %c0_5 = arith.constant 0 : index
    %5 = vector.load %arg4[%c0_4, %c0_5] : memref<1024x2048xbf16, #tpu.memory_space<vmem>>, vector<1024x2048xbf16>
    %cst = arith.constant dense<0.000000e+00> : vector<8x2048xf32>
    %6 = tpu.matmul %4, %5, %cst {dimension_numbers = #tpu.dot_dimension_numbers<[1], [0], [0], [1], [0, 0, 1, 1], [], []>} : vector<8x1024xbf16>, vector<1024x2048xbf16>, vector<8x2048xf32> -> vector<8x2048xf32>
    %7 = arith.addf %3, %6 : vector<8x2048xf32>
    %c0_6 = arith.constant 0 : index
    %c0_7 = arith.constant 0 : index
    %8 = vector.load %arg7[%c0_6, %c0_7] : memref<8x2048xf32, #tpu.memory_space<vmem>>, vector<8x2048xf32>
    tpu.vector_store %arg7[%c0_6, %c0_7], %7 {strides = array<i32>} : memref<8x2048xf32, #tpu.memory_space<vmem>>, vector<8x2048xf32>,
    %c0_i32_8 = arith.constant 0 : i32
    %9 = arith.cmpi eq, %arg2, %c0_i32_8 : i32
    %10 = arith.extui %9 : i1 to i32
    %c0_i32_9 = arith.constant 0 : i32
    %11 = arith.cmpi ne, %10, %c0_i32_9 : i32
    scf.if %11 {
      %c0_10 = arith.constant 0 : index
      %c0_11 = arith.constant 0 : index
      %12 = vector.load %arg7[%c0_10, %c0_11] : memref<8x2048xf32, #tpu.memory_space<vmem>>, vector<8x2048xf32>
      %c0_12 = arith.constant 0 : index
      %c0_13 = arith.constant 0 : index
      %13 = vector.load %arg5[%c0_12, %c0_13] : memref<1x2048xf32, #tpu.memory_space<vmem>>, vector<1x2048xf32>
      %14 = vector.broadcast %13 : vector<1x2048xf32> to vector<8x2048xf32>
      %15 = arith.addf %12, %14 : vector<8x2048xf32>
      %cst_14 = arith.constant 0.000000e+00 : f32
      %16 = vector.broadcast %cst_14 : f32 to vector<8x2048xf32>
      %17 = arith.maximumf %15, %16 : vector<8x2048xf32>
      %18 = arith.truncf %17 : vector<8x2048xf32> to vector<8x2048xbf16>
      %c0_15 = arith.constant 0 : index
      %c0_16 = arith.constant 0 : index
      %19 = vector.load %arg6[%c0_15, %c0_16] : memref<8x2048xbf16, #tpu.memory_space<vmem>>, vector<8x2048xbf16>
      tpu.vector_store %arg6[%c0_15, %c0_16], %18 {strides = array<i32>} : memref<8x2048xbf16, #tpu.memory_space<vmem>>, vector<8x2048xbf16>,
    } else {
    }
    return
  }
  func.func @transform_0(%arg0: i32, %arg1: i32, %arg2: i32) -> (i32, i32) {
    %c0_i32 = arith.constant 0 : i32
    return %arg0, %arg2 : i32, i32
  }
  func.func @transform_1(%arg0: i32, %arg1: i32, %arg2: i32) -> (i32, i32) {
    %c0_i32 = arith.constant 0 : i32
    return %arg2, %arg1 : i32, i32
  }
  func.func @transform_2(%arg0: i32, %arg1: i32, %arg2: i32) -> (i32, i32) {
    %c0_i32 = arith.constant 0 : i32
    %c0_i32_0 = arith.constant 0 : i32
    return %c0_i32, %arg1 : i32, i32
  }
  func.func @transform_3(%arg0: i32, %arg1: i32, %arg2: i32) -> (i32, i32) {
    %c0_i32 = arith.constant 0 : i32
    return %arg0, %arg1 : i32, i32
  }
}

module attributes {stable_mosaic.version = 11 : i64} {
  func.func @_matmul_kernel(%arg0: i32, %arg1: i32, %arg2: i32, %arg3: memref<8x128xbf16, #tpu.memory_space<vmem>>, %arg4: memref<128x1024xbf16, #tpu.memory_space<vmem>>, %arg5: memref<1x1024xf32, #tpu.memory_space<vmem>>, %arg6: memref<8x1024xbf16, #tpu.memory_space<vmem>>, %arg7: memref<8x1024xf32, #tpu.memory_space<vmem>>) attributes {dimension_semantics = [#tpu.dimension_semantics<parallel>, #tpu.dimension_semantics<parallel>, #tpu.dimension_semantics<arbitrary>], iteration_bounds = array<i64: 1, 1, 1>, scalar_prefetch = 0 : i64, scratch_operands = 1 : i64, tpu.core_type = #tpu.core_type<tc>, window_params = [{transform_indices = @transform_0, window_bounds = array<i64: 8, 128>}, {transform_indices = @transform_1, window_bounds = array<i64: 128, 1024>}, {transform_indices = @transform_2, window_bounds = array<i64: 1, 1024>}, {transform_indices = @transform_3, window_bounds = array<i64: 8, 1024>}]} {
    %c0_i32 = arith.constant 0 : i32
    %0 = arith.cmpi eq, %arg2, %c0_i32 : i32
    %1 = arith.extui %0 : i1 to i32
    %c0_i32_0 = arith.constant 0 : i32
    %2 = arith.cmpi ne, %1, %c0_i32_0 : i32
    scf.if %2 {
      %cst_10 = arith.constant 0.000000e+00 : f32
      %12 = vector.broadcast %cst_10 : f32 to vector<8x1024xf32>
      %c0_11 = arith.constant 0 : index
      %c0_12 = arith.constant 0 : index
      %13 = vector.load %arg7[%c0_11, %c0_12] : memref<8x1024xf32, #tpu.memory_space<vmem>>, vector<8x1024xf32>
      tpu.vector_store %arg7[%c0_11, %c0_12], %12 {strides = array<i32>} : memref<8x1024xf32, #tpu.memory_space<vmem>>, vector<8x1024xf32>,
    } else {
    }
    %c0 = arith.constant 0 : index
    %c0_1 = arith.constant 0 : index
    %3 = vector.load %arg7[%c0, %c0_1] : memref<8x1024xf32, #tpu.memory_space<vmem>>, vector<8x1024xf32>
    %c0_2 = arith.constant 0 : index
    %c0_3 = arith.constant 0 : index
    %4 = vector.load %arg3[%c0_2, %c0_3] : memref<8x128xbf16, #tpu.memory_space<vmem>>, vector<8x128xbf16>
    %c0_4 = arith.constant 0 : index
    %c0_5 = arith.constant 0 : index
    %5 = vector.load %arg4[%c0_4, %c0_5] : memref<128x1024xbf16, #tpu.memory_space<vmem>>, vector<128x1024xbf16>
    %cst = arith.constant dense<0.000000e+00> : vector<8x1024xf32>
    %6 = tpu.matmul %4, %5, %cst {dimension_numbers = #tpu.dot_dimension_numbers<[1], [0], [0], [1], [0, 0, 1, 1], [], []>} : vector<8x128xbf16>, vector<128x1024xbf16>, vector<8x1024xf32> -> vector<8x1024xf32>
    %7 = arith.addf %3, %6 : vector<8x1024xf32>
    %c0_6 = arith.constant 0 : index
    %c0_7 = arith.constant 0 : index
    %8 = vector.load %arg7[%c0_6, %c0_7] : memref<8x1024xf32, #tpu.memory_space<vmem>>, vector<8x1024xf32>
    tpu.vector_store %arg7[%c0_6, %c0_7], %7 {strides = array<i32>} : memref<8x1024xf32, #tpu.memory_space<vmem>>, vector<8x1024xf32>,
    %c0_i32_8 = arith.constant 0 : i32
    %9 = arith.cmpi eq, %arg2, %c0_i32_8 : i32
    %10 = arith.extui %9 : i1 to i32
    %c0_i32_9 = arith.constant 0 : i32
    %11 = arith.cmpi ne, %10, %c0_i32_9 : i32
    scf.if %11 {
      %c0_10 = arith.constant 0 : index
      %c0_11 = arith.constant 0 : index
      %12 = vector.load %arg7[%c0_10, %c0_11] : memref<8x1024xf32, #tpu.memory_space<vmem>>, vector<8x1024xf32>
      %c0_12 = arith.constant 0 : index
      %c0_13 = arith.constant 0 : index
      %13 = vector.load %arg5[%c0_12, %c0_13] : memref<1x1024xf32, #tpu.memory_space<vmem>>, vector<1x1024xf32>
      %14 = vector.broadcast %13 : vector<1x1024xf32> to vector<8x1024xf32>
      %15 = arith.addf %12, %14 : vector<8x1024xf32>
      %cst_14 = arith.constant 0.000000e+00 : f32
      %16 = vector.broadcast %cst_14 : f32 to vector<8x1024xf32>
      %17 = arith.maximumf %15, %16 : vector<8x1024xf32>
      %18 = arith.truncf %17 : vector<8x1024xf32> to vector<8x1024xbf16>
      %c0_15 = arith.constant 0 : index
      %c0_16 = arith.constant 0 : index
      %19 = vector.load %arg6[%c0_15, %c0_16] : memref<8x1024xbf16, #tpu.memory_space<vmem>>, vector<8x1024xbf16>
      tpu.vector_store %arg6[%c0_15, %c0_16], %18 {strides = array<i32>} : memref<8x1024xbf16, #tpu.memory_space<vmem>>, vector<8x1024xbf16>,
    } else {
    }
    return
  }
  func.func @transform_0(%arg0: i32, %arg1: i32, %arg2: i32) -> (i32, i32) {
    %c0_i32 = arith.constant 0 : i32
    return %arg0, %arg2 : i32, i32
  }
  func.func @transform_1(%arg0: i32, %arg1: i32, %arg2: i32) -> (i32, i32) {
    %c0_i32 = arith.constant 0 : i32
    return %arg2, %arg1 : i32, i32
  }
  func.func @transform_2(%arg0: i32, %arg1: i32, %arg2: i32) -> (i32, i32) {
    %c0_i32 = arith.constant 0 : i32
    %c0_i32_0 = arith.constant 0 : i32
    return %c0_i32, %arg1 : i32, i32
  }
  func.func @transform_3(%arg0: i32, %arg1: i32, %arg2: i32) -> (i32, i32) {
    %c0_i32 = arith.constant 0 : i32
    return %arg0, %arg1 : i32, i32
  }
}

module attributes {stable_mosaic.version = 11 : i64} {
  func.func @_matmul_kernel(%arg0: i32, %arg1: i32, %arg2: i32, %arg3: memref<256x128xbf16, #tpu.memory_space<vmem>>, %arg4: memref<128x512xbf16, #tpu.memory_space<vmem>>, %arg5: memref<1x512xf32, #tpu.memory_space<vmem>>, %arg6: memref<256x512xbf16, #tpu.memory_space<vmem>>, %arg7: memref<256x512xf32, #tpu.memory_space<vmem>>) attributes {dimension_semantics = [#tpu.dimension_semantics<parallel>, #tpu.dimension_semantics<parallel>, #tpu.dimension_semantics<arbitrary>], iteration_bounds = array<i64: 4, 1, 1>, scalar_prefetch = 0 : i64, scratch_operands = 1 : i64, tpu.core_type = #tpu.core_type<tc>, window_params = [{transform_indices = @transform_0, window_bounds = array<i64: 256, 128>}, {transform_indices = @transform_1, window_bounds = array<i64: 128, 512>}, {transform_indices = @transform_2, window_bounds = array<i64: 1, 512>}, {transform_indices = @transform_3, window_bounds = array<i64: 256, 512>}]} {
    %c0_i32 = arith.constant 0 : i32
    %0 = arith.cmpi eq, %arg2, %c0_i32 : i32
    %1 = arith.extui %0 : i1 to i32
    %c0_i32_0 = arith.constant 0 : i32
    %2 = arith.cmpi ne, %1, %c0_i32_0 : i32
    scf.if %2 {
      %cst_10 = arith.constant 0.000000e+00 : f32
      %12 = vector.broadcast %cst_10 : f32 to vector<256x512xf32>
      %c0_11 = arith.constant 0 : index
      %c0_12 = arith.constant 0 : index
      %13 = vector.load %arg7[%c0_11, %c0_12] : memref<256x512xf32, #tpu.memory_space<vmem>>, vector<256x512xf32>
      tpu.vector_store %arg7[%c0_11, %c0_12], %12 {strides = array<i32>} : memref<256x512xf32, #tpu.memory_space<vmem>>, vector<256x512xf32>,
    } else {
    }
    %c0 = arith.constant 0 : index
    %c0_1 = arith.constant 0 : index
    %3 = vector.load %arg7[%c0, %c0_1] : memref<256x512xf32, #tpu.memory_space<vmem>>, vector<256x512xf32>
    %c0_2 = arith.constant 0 : index
    %c0_3 = arith.constant 0 : index
    %4 = vector.load %arg3[%c0_2, %c0_3] : memref<256x128xbf16, #tpu.memory_space<vmem>>, vector<256x128xbf16>
    %c0_4 = arith.constant 0 : index
    %c0_5 = arith.constant 0 : index
    %5 = vector.load %arg4[%c0_4, %c0_5] : memref<128x512xbf16, #tpu.memory_space<vmem>>, vector<128x512xbf16>
    %cst = arith.constant dense<0.000000e+00> : vector<256x512xf32>
    %6 = tpu.matmul %4, %5, %cst {dimension_numbers = #tpu.dot_dimension_numbers<[1], [0], [0], [1], [0, 0, 1, 1], [], []>} : vector<256x128xbf16>, vector<128x512xbf16>, vector<256x512xf32> -> vector<256x512xf32>
    %7 = arith.addf %3, %6 : vector<256x512xf32>
    %c0_6 = arith.constant 0 : index
    %c0_7 = arith.constant 0 : index
    %8 = vector.load %arg7[%c0_6, %c0_7] : memref<256x512xf32, #tpu.memory_space<vmem>>, vector<256x512xf32>
    tpu.vector_store %arg7[%c0_6, %c0_7], %7 {strides = array<i32>} : memref<256x512xf32, #tpu.memory_space<vmem>>, vector<256x512xf32>,
    %c0_i32_8 = arith.constant 0 : i32
    %9 = arith.cmpi eq, %arg2, %c0_i32_8 : i32
    %10 = arith.extui %9 : i1 to i32
    %c0_i32_9 = arith.constant 0 : i32
    %11 = arith.cmpi ne, %10, %c0_i32_9 : i32
    scf.if %11 {
      %c0_10 = arith.constant 0 : index
      %c0_11 = arith.constant 0 : index
      %12 = vector.load %arg7[%c0_10, %c0_11] : memref<256x512xf32, #tpu.memory_space<vmem>>, vector<256x512xf32>
      %c0_12 = arith.constant 0 : index
      %c0_13 = arith.constant 0 : index
      %13 = vector.load %arg5[%c0_12, %c0_13] : memref<1x512xf32, #tpu.memory_space<vmem>>, vector<1x512xf32>
      %14 = vector.broadcast %13 : vector<1x512xf32> to vector<256x512xf32>
      %15 = arith.addf %12, %14 : vector<256x512xf32>
      %cst_14 = arith.constant 0.000000e+00 : f32
      %16 = vector.broadcast %cst_14 : f32 to vector<256x512xf32>
      %17 = arith.maximumf %15, %16 : vector<256x512xf32>
      %18 = arith.truncf %17 : vector<256x512xf32> to vector<256x512xbf16>
      %c0_15 = arith.constant 0 : index
      %c0_16 = arith.constant 0 : index
      %19 = vector.load %arg6[%c0_15, %c0_16] : memref<256x512xbf16, #tpu.memory_space<vmem>>, vector<256x512xbf16>
      tpu.vector_store %arg6[%c0_15, %c0_16], %18 {strides = array<i32>} : memref<256x512xbf16, #tpu.memory_space<vmem>>, vector<256x512xbf16>,
    } else {
    }
    return
  }
  func.func @transform_0(%arg0: i32, %arg1: i32, %arg2: i32) -> (i32, i32) {
    %c0_i32 = arith.constant 0 : i32
    return %arg0, %arg2 : i32, i32
  }
  func.func @transform_1(%arg0: i32, %arg1: i32, %arg2: i32) -> (i32, i32) {
    %c0_i32 = arith.constant 0 : i32
    return %arg2, %arg1 : i32, i32
  }
  func.func @transform_2(%arg0: i32, %arg1: i32, %arg2: i32) -> (i32, i32) {
    %c0_i32 = arith.constant 0 : i32
    %c0_i32_0 = arith.constant 0 : i32
    return %c0_i32, %arg1 : i32, i32
  }
  func.func @transform_3(%arg0: i32, %arg1: i32, %arg2: i32) -> (i32, i32) {
    %c0_i32 = arith.constant 0 : i32
    return %arg0, %arg1 : i32, i32
  }
}

module attributes {stable_mosaic.version = 11 : i64} {
  func.func @_matmul_kernel(%arg0: i32, %arg1: i32, %arg2: i32, %arg3: memref<256x64xbf16, #tpu.memory_space<vmem>>, %arg4: memref<64x128xbf16, #tpu.memory_space<vmem>>, %arg5: memref<1x128xf32, #tpu.memory_space<vmem>>, %arg6: memref<256x128xf32, #tpu.memory_space<vmem>>, %arg7: memref<256x128xf32, #tpu.memory_space<vmem>>) attributes {dimension_semantics = [#tpu.dimension_semantics<parallel>, #tpu.dimension_semantics<parallel>, #tpu.dimension_semantics<arbitrary>], iteration_bounds = array<i64: 32, 1, 1>, scalar_prefetch = 0 : i64, scratch_operands = 1 : i64, tpu.core_type = #tpu.core_type<tc>, window_params = [{transform_indices = @transform_0, window_bounds = array<i64: 256, 64>}, {transform_indices = @transform_1, window_bounds = array<i64: 64, 128>}, {transform_indices = @transform_2, window_bounds = array<i64: 1, 128>}, {transform_indices = @transform_3, window_bounds = array<i64: 256, 128>}]} {
    %c0_i32 = arith.constant 0 : i32
    %0 = arith.cmpi eq, %arg2, %c0_i32 : i32
    %1 = arith.extui %0 : i1 to i32
    %c0_i32_0 = arith.constant 0 : i32
    %2 = arith.cmpi ne, %1, %c0_i32_0 : i32
    scf.if %2 {
      %cst_10 = arith.constant 0.000000e+00 : f32
      %12 = vector.broadcast %cst_10 : f32 to vector<256x128xf32>
      %c0_11 = arith.constant 0 : index
      %c0_12 = arith.constant 0 : index
      %13 = vector.load %arg7[%c0_11, %c0_12] : memref<256x128xf32, #tpu.memory_space<vmem>>, vector<256x128xf32>
      tpu.vector_store %arg7[%c0_11, %c0_12], %12 {strides = array<i32>} : memref<256x128xf32, #tpu.memory_space<vmem>>, vector<256x128xf32>,
    } else {
    }
    %c0 = arith.constant 0 : index
    %c0_1 = arith.constant 0 : index
    %3 = vector.load %arg7[%c0, %c0_1] : memref<256x128xf32, #tpu.memory_space<vmem>>, vector<256x128xf32>
    %c0_2 = arith.constant 0 : index
    %c0_3 = arith.constant 0 : index
    %4 = vector.load %arg3[%c0_2, %c0_3] : memref<256x64xbf16, #tpu.memory_space<vmem>>, vector<256x64xbf16>
    %c0_4 = arith.constant 0 : index
    %c0_5 = arith.constant 0 : index
    %5 = vector.load %arg4[%c0_4, %c0_5] : memref<64x128xbf16, #tpu.memory_space<vmem>>, vector<64x128xbf16>
    %cst = arith.constant dense<0.000000e+00> : vector<256x128xf32>
    %6 = tpu.matmul %4, %5, %cst {dimension_numbers = #tpu.dot_dimension_numbers<[1], [0], [0], [1], [0, 0, 1, 1], [], []>} : vector<256x64xbf16>, vector<64x128xbf16>, vector<256x128xf32> -> vector<256x128xf32>
    %7 = arith.addf %3, %6 : vector<256x128xf32>
    %c0_6 = arith.constant 0 : index
    %c0_7 = arith.constant 0 : index
    %8 = vector.load %arg7[%c0_6, %c0_7] : memref<256x128xf32, #tpu.memory_space<vmem>>, vector<256x128xf32>
    tpu.vector_store %arg7[%c0_6, %c0_7], %7 {strides = array<i32>} : memref<256x128xf32, #tpu.memory_space<vmem>>, vector<256x128xf32>,
    %c0_i32_8 = arith.constant 0 : i32
    %9 = arith.cmpi eq, %arg2, %c0_i32_8 : i32
    %10 = arith.extui %9 : i1 to i32
    %c0_i32_9 = arith.constant 0 : i32
    %11 = arith.cmpi ne, %10, %c0_i32_9 : i32
    scf.if %11 {
      %c0_10 = arith.constant 0 : index
      %c0_11 = arith.constant 0 : index
      %12 = vector.load %arg7[%c0_10, %c0_11] : memref<256x128xf32, #tpu.memory_space<vmem>>, vector<256x128xf32>
      %c0_12 = arith.constant 0 : index
      %c0_13 = arith.constant 0 : index
      %13 = vector.load %arg5[%c0_12, %c0_13] : memref<1x128xf32, #tpu.memory_space<vmem>>, vector<1x128xf32>
      %14 = vector.broadcast %13 : vector<1x128xf32> to vector<256x128xf32>
      %15 = arith.addf %12, %14 : vector<256x128xf32>
      %16 = arith.negf %15 : vector<256x128xf32>
      %17 = math.exp %16 : vector<256x128xf32>
      %cst_14 = arith.constant 1.000000e+00 : f32
      %18 = vector.broadcast %cst_14 : f32 to vector<256x128xf32>
      %19 = arith.addf %18, %17 : vector<256x128xf32>
      %20 = arith.divf %18, %19 : vector<256x128xf32>
      %c0_15 = arith.constant 0 : index
      %c0_16 = arith.constant 0 : index
      %21 = vector.load %arg6[%c0_15, %c0_16] : memref<256x128xf32, #tpu.memory_space<vmem>>, vector<256x128xf32>
      tpu.vector_store %arg6[%c0_15, %c0_16], %20 {strides = array<i32>} : memref<256x128xf32, #tpu.memory_space<vmem>>, vector<256x128xf32>,
    } else {
    }
    return
  }
  func.func @transform_0(%arg0: i32, %arg1: i32, %arg2: i32) -> (i32, i32) {
    %c0_i32 = arith.constant 0 : i32
    return %arg0, %arg2 : i32, i32
  }
  func.func @transform_1(%arg0: i32, %arg1: i32, %arg2: i32) -> (i32, i32) {
    %c0_i32 = arith.constant 0 : i32
    return %arg2, %arg1 : i32, i32
  }
  func.func @transform_2(%arg0: i32, %arg1: i32, %arg2: i32) -> (i32, i32) {
    %c0_i32 = arith.constant 0 : i32
    %c0_i32_0 = arith.constant 0 : i32
    return %c0_i32, %arg1 : i32, i32
  }
  func.func @transform_3(%arg0: i32, %arg1: i32, %arg2: i32) -> (i32, i32) {
    %c0_i32 = arith.constant 0 : i32
    return %arg0, %arg1 : i32, i32
  }
}

</mosaic_0001>

<llo_original>
// kernel: decoder_forward.4
$region0: #{decoder_forward.4}
  #allocation0 [shape = 'u32[]', space=smem, size = 0x4, offset = 0x4, fixed_abs, tag = 'smem constant byte address 0x4 - core index']
  #allocation1 [shape = 'u32[144,128]{1,0:T(1,128)}', space=vmem, size = 0x12000, scoped, tag = 'internal scratch']
  #allocation2 [shape = 'f32[8,1024]{1,0:T(8,128)}', space=vmem, size = 0x8000, scoped, tag = 'scratch operand']
  %s0 = inlined_call_operand.vmem [shape: bf16[8,128], index: 0, kind: input, shape index: {}]
  %s1 = inlined_call_operand.hbm [shape: bf16[128,1024], index: 1, kind: input, shape index: {}]
  %s2 = inlined_call_operand.hbm [shape: f32[1,1024], index: 2, kind: input, shape index: {}]
  %s3 = inlined_call_operand.vmem [shape: bf16[8,1024], index: 3, kind: output, shape index: {}]
  %s4 = sld [smem:[#allocation0]]
  $region38: #{decoder_forward.4} parent=0
    _
  %s6 = ssub.s32 1, %s4
  %s7 = scalar_select 0, %s6, %s4
  $region1: #{decoder_forward.4} parent=0
    #allocation3 [shape = 'u8[262144]{0}', space=vmem, size = 0x40000, scoped, tag = 'input window, operand 1, single buffered']
    #allocation4 [shape = 's32[1]{0}', space=sflag, size = 0x4, scoped, tag = 'scoped memory for decoder_forward.4']
    #allocation5 [shape = 'u8[4096]{0}', space=vmem, size = 0x1000, scoped, tag = 'input window, operand 2, single buffered']
    #allocation6 [shape = 's32[1]{0}', space=sflag, size = 0x4, scoped, tag = 'scoped memory for decoder_forward.4']
    %8 = vsyncpa [#allocation4], 0
    %9 = vsyncpa [#allocation6], 0
    // Predicated region
    $region2: #{decoder_forward.4} parent=1 // pred_check
      _
    $region3: #{decoder_forward.4} parent=1 // pred_check_branch
      %11 = sbr.rel (0) target = $region5
    $region4: #{decoder_forward.4} parent=1 // pred_region
      _
    $region5: #{decoder_forward.4} parent=1 // pred_fallthru
      _
    // Predicated region
    $region6: #{decoder_forward.4} parent=1 // pred_check
      _
    $region7: #{decoder_forward.4} parent=1 // pred_check_branch
      %13 = sbr.rel (0) target = $region9
    $region8: #{decoder_forward.4} parent=1 // pred_region
      %s15 = ssub.s32 8192, 8192
      %16 = vsyncadd [#allocation4], %s15
      %s17 = sshll.u32 [#allocation3], 4
      %s18 = int_to_ptr.vmem [resolvable:$true] %s17
      %23 = dma.hbm_to_vmem [thread:$0]  %s1, 8192, %s18, [#allocation4], 512, 512, 32
    $region9: #{decoder_forward.4} parent=1 // pred_fallthru
      _
    // Predicated region
    $region10: #{decoder_forward.4} parent=1 // pred_check
      _
    $region11: #{decoder_forward.4} parent=1 // pred_check_branch
      %25 = sbr.rel (0) target = $region13
    $region12: #{decoder_forward.4} parent=1 // pred_region
      %s27 = ssub.s32 128, 128
      %28 = vsyncadd [#allocation6], %s27
      %s30 = sshll.u32 [#allocation5], 4
      %s31 = int_to_ptr.vmem [resolvable:$true] %s30
      %33 = dma.hbm_to_vmem [thread:$0]  %s2, 128, %s31, [#allocation6]
    $region13: #{decoder_forward.4} parent=1 // pred_fallthru
      _
    // Predicated region
    $region14: #{decoder_forward.4} parent=1 // pred_check
      _
    $region15: #{decoder_forward.4} parent=1 // pred_check_branch
      %35 = sbr.rel (0) target = $region17
    $region16: #{decoder_forward.4} parent=1 // pred_region
      %36 = dma.done [#allocation4], 8192
    $region17: #{decoder_forward.4} parent=1 // pred_fallthru
      _
    // Predicated region
    $region18: #{decoder_forward.4} parent=1 // pred_check
      _
    $region19: #{decoder_forward.4} parent=1 // pred_check_branch
      %38 = sbr.rel (0) target = $region21
    $region20: #{decoder_forward.4} parent=1 // pred_region
      %39 = dma.done [#allocation6], 128
    $region21: #{decoder_forward.4} parent=1 // pred_fallthru
      _
    %p41 = scmp.eq.s32.totalorder 0, 0
    // Predicated region
    $region22: #{decoder_forward.4} parent=1 // pred_check
      %p42 = pneg %p41
    $region23: #{decoder_forward.4} parent=1 // pred_check_branch
      %44 = sbr.rel (%p42) target = $region25
    $region24: #{decoder_forward.4} parent=1 // pred_region
      %45 = vst [vmem:[#allocation2] sm:$0xff] 0.0
      %46 = vst [vmem:[#allocation2 + $0x8] sm:$0xff] 0.0
      %47 = vst [vmem:[#allocation2 + $0x10] sm:$0xff] 0.0
      %48 = vst [vmem:[#allocation2 + $0x18] sm:$0xff] 0.0
      %49 = vst [vmem:[#allocation2 + $0x20] sm:$0xff] 0.0
      %50 = vst [vmem:[#allocation2 + $0x28] sm:$0xff] 0.0
      %51 = vst [vmem:[#allocation2 + $0x30] sm:$0xff] 0.0
      %52 = vst [vmem:[#allocation2 + $0x38] sm:$0xff] 0.0
    $region25: #{decoder_forward.4} parent=1 // pred_fallthru
      _
    %v53 = vld [vmem:[#allocation2] sm:$0xff]
    %v54 = vld [vmem:[#allocation2 + $0x8] sm:$0xff]
    %v55 = vld [vmem:[#allocation2 + $0x10] sm:$0xff]
    %v56 = vld [vmem:[#allocation2 + $0x18] sm:$0xff]
    %v57 = vld [vmem:[#allocation2 + $0x20] sm:$0xff]
    %v58 = vld [vmem:[#allocation2 + $0x28] sm:$0xff]
    %v59 = vld [vmem:[#allocation2 + $0x30] sm:$0xff]
    %v60 = vld [vmem:[#allocation2 + $0x38] sm:$0xff]
    %v61 = vld [vmem:[%s0] sm:$0xf]
    %v62 = vld [vmem:[#allocation3] sm:$0xff]
    %v63 = vld [vmem:[#allocation3 + $0x8] sm:$0xff]
    %v64 = vld [vmem:[#allocation3 + $0x10] sm:$0xff]
    %v65 = vld [vmem:[#allocation3 + $0x18] sm:$0xff]
    %v66 = vld [vmem:[#allocation3 + $0x20] sm:$0xff]
    %v67 = vld [vmem:[#allocation3 + $0x28] sm:$0xff]
    %v68 = vld [vmem:[#allocation3 + $0x30] sm:$0xff]
    %v69 = vld [vmem:[#allocation3 + $0x38] sm:$0xff]
    %v70 = vld [vmem:[#allocation3 + $0x40] sm:$0xff]
    %v71 = vld [vmem:[#allocation3 + $0x48] sm:$0xff]
    %v72 = vld [vmem:[#allocation3 + $0x50] sm:$0xff]
    %v73 = vld [vmem:[#allocation3 + $0x58] sm:$0xff]
    %v74 = vld [vmem:[#allocation3 + $0x60] sm:$0xff]
    %v75 = vld [vmem:[#allocation3 + $0x68] sm:$0xff]
    %v76 = vld [vmem:[#allocation3 + $0x70] sm:$0xff]
    %v77 = vld [vmem:[#allocation3 + $0x78] sm:$0xff]
    %v78 = vld [vmem:[#allocation3 + $0x80] sm:$0xff]
    %v79 = vld [vmem:[#allocation3 + $0x88] sm:$0xff]
    %v80 = vld [vmem:[#allocation3 + $0x90] sm:$0xff]
    %v81 = vld [vmem:[#allocation3 + $0x98] sm:$0xff]
    %v82 = vld [vmem:[#allocation3 + $0xa0] sm:$0xff]
    %v83 = vld [vmem:[#allocation3 + $0xa8] sm:$0xff]
    %v84 = vld [vmem:[#allocation3 + $0xb0] sm:$0xff]
    %v85 = vld [vmem:[#allocation3 + $0xb8] sm:$0xff]
    %v86 = vld [vmem:[#allocation3 + $0xc0] sm:$0xff]
    %v87 = vld [vmem:[#allocation3 + $0xc8] sm:$0xff]
    %v88 = vld [vmem:[#allocation3 + $0xd0] sm:$0xff]
    %v89 = vld [vmem:[#allocation3 + $0xd8] sm:$0xff]
    %v90 = vld [vmem:[#allocation3 + $0xe0] sm:$0xff]
    %v91 = vld [vmem:[#allocation3 + $0xe8] sm:$0xff]
    %v92 = vld [vmem:[#allocation3 + $0xf0] sm:$0xff]
    %v93 = vld [vmem:[#allocation3 + $0xf8] sm:$0xff]
    %v94 = vld [vmem:[#allocation3 + $0x100] sm:$0xff]
    %v95 = vld [vmem:[#allocation3 + $0x108] sm:$0xff]
    %v96 = vld [vmem:[#allocation3 + $0x110] sm:$0xff]
    %v97 = vld [vmem:[#allocation3 + $0x118] sm:$0xff]
    %v98 = vld [vmem:[#allocation3 + $0x120] sm:$0xff]
    %v99 = vld [vmem:[#allocation3 + $0x128] sm:$0xff]
    %v100 = vld [vmem:[#allocation3 + $0x130] sm:$0xff]
    %v101 = vld [vmem:[#allocation3 + $0x138] sm:$0xff]
    %v102 = vld [vmem:[#allocation3 + $0x140] sm:$0xff]
    %v103 = vld [vmem:[#allocation3 + $0x148] sm:$0xff]
    %v104 = vld [vmem:[#allocation3 + $0x150] sm:$0xff]
    %v105 = vld [vmem:[#allocation3 + $0x158] sm:$0xff]
    %v106 = vld [vmem:[#allocation3 + $0x160] sm:$0xff]
    %v107 = vld [vmem:[#allocation3 + $0x168] sm:$0xff]
    %v108 = vld [vmem:[#allocation3 + $0x170] sm:$0xff]
    %v109 = vld [vmem:[#allocation3 + $0x178] sm:$0xff]
    %v110 = vld [vmem:[#allocation3 + $0x180] sm:$0xff]
    %v111 = vld [vmem:[#allocation3 + $0x188] sm:$0xff]
    %v112 = vld [vmem:[#allocation3 + $0x190] sm:$0xff]
    %v113 = vld [vmem:[#allocation3 + $0x198] sm:$0xff]
    %v114 = vld [vmem:[#allocation3 + $0x1a0] sm:$0xff]
    %v115 = vld [vmem:[#allocation3 + $0x1a8] sm:$0xff]
    %v116 = vld [vmem:[#allocation3 + $0x1b0] sm:$0xff]
    %v117 = vld [vmem:[#allocation3 + $0x1b8] sm:$0xff]
    %v118 = vld [vmem:[#allocation3 + $0x1c0] sm:$0xff]
    %v119 = vld [vmem:[#allocation3 + $0x1c8] sm:$0xff]
    %v120 = vld [vmem:[#allocation3 + $0x1d0] sm:$0xff]
    %v121 = vld [vmem:[#allocation3 + $0x1d8] sm:$0xff]
    %v122 = vld [vmem:[#allocation3 + $0x1e0] sm:$0xff]
    %v123 = vld [vmem:[#allocation3 + $0x1e8] sm:$0xff]
    %v124 = vld [vmem:[#allocation3 + $0x1f0] sm:$0xff]
    %v125 = vld [vmem:[#allocation3 + $0x1f8] sm:$0xff]
    %v190 = vunpack.c.l.b16 %v62
    %v191 = vunpack.c.h.b16 %v62
    %v192 = vunpack.c.l.b16 %v63
    %v193 = vunpack.c.h.b16 %v63
    %v194 = vunpack.c.l.b16 %v64
    %v195 = vunpack.c.h.b16 %v64
    %v196 = vunpack.c.l.b16 %v65
    %v197 = vunpack.c.h.b16 %v65
    %v198 = vunpack.c.l.b16 %v66
    %v199 = vunpack.c.h.b16 %v66
    %v200 = vunpack.c.l.b16 %v67
    %v201 = vunpack.c.h.b16 %v67
    %v202 = vunpack.c.l.b16 %v68
    %v203 = vunpack.c.h.b16 %v68
    %v204 = vunpack.c.l.b16 %v69
    %v205 = vunpack.c.h.b16 %v69
    %v206 = vunpack.c.l.b16 %v70
    %v207 = vunpack.c.h.b16 %v70
    %v208 = vunpack.c.l.b16 %v71
    %v209 = vunpack.c.h.b16 %v71
    %v210 = vunpack.c.l.b16 %v72
    %v211 = vunpack.c.h.b16 %v72
    %v212 = vunpack.c.l.b16 %v73
    %v213 = vunpack.c.h.b16 %v73
    %v214 = vunpack.c.l.b16 %v74
    %v215 = vunpack.c.h.b16 %v74
    %v216 = vunpack.c.l.b16 %v75
    %v217 = vunpack.c.h.b16 %v75
    %v218 = vunpack.c.l.b16 %v76
    %v219 = vunpack.c.h.b16 %v76
    %v220 = vunpack.c.l.b16 %v77
    %v221 = vunpack.c.h.b16 %v77
    %v222 = vunpack.c.l.b16 %v78
    %v223 = vunpack.c.h.b16 %v78
    %v224 = vunpack.c.l.b16 %v79
    %v225 = vunpack.c.h.b16 %v79
    %v226 = vunpack.c.l.b16 %v80
    %v227 = vunpack.c.h.b16 %v80
    %v228 = vunpack.c.l.b16 %v81
    %v229 = vunpack.c.h.b16 %v81
    %v230 = vunpack.c.l.b16 %v82
    %v231 = vunpack.c.h.b16 %v82
    %v232 = vunpack.c.l.b16 %v83
    %v233 = vunpack.c.h.b16 %v83
    %v234 = vunpack.c.l.b16 %v84
    %v235 = vunpack.c.h.b16 %v84
    %v236 = vunpack.c.l.b16 %v85
    %v237 = vunpack.c.h.b16 %v85
    %v238 = vunpack.c.l.b16 %v86
    %v239 = vunpack.c.h.b16 %v86
    %v240 = vunpack.c.l.b16 %v87
    %v241 = vunpack.c.h.b16 %v87
    %v242 = vunpack.c.l.b16 %v88
    %v243 = vunpack.c.h.b16 %v88
    %v244 = vunpack.c.l.b16 %v89
    %v245 = vunpack.c.h.b16 %v89
    %v246 = vunpack.c.l.b16 %v90
    %v247 = vunpack.c.h.b16 %v90
    %v248 = vunpack.c.l.b16 %v91
    %v249 = vunpack.c.h.b16 %v91
    %v250 = vunpack.c.l.b16 %v92
    %v251 = vunpack.c.h.b16 %v92
    %v252 = vunpack.c.l.b16 %v93
    %v253 = vunpack.c.h.b16 %v93
    %v254 = vunpack.c.l.b16 %v94
    %v255 = vunpack.c.h.b16 %v94
    %v256 = vunpack.c.l.b16 %v95
    %v257 = vunpack.c.h.b16 %v95
    %v258 = vunpack.c.l.b16 %v96
    %v259 = vunpack.c.h.b16 %v96
    %v260 = vunpack.c.l.b16 %v97
    %v261 = vunpack.c.h.b16 %v97
    %v262 = vunpack.c.l.b16 %v98
    %v263 = vunpack.c.h.b16 %v98
    %v264 = vunpack.c.l.b16 %v99
    %v265 = vunpack.c.h.b16 %v99
    %v266 = vunpack.c.l.b16 %v100
    %v267 = vunpack.c.h.b16 %v100
    %v268 = vunpack.c.l.b16 %v101
    %v269 = vunpack.c.h.b16 %v101
    %v270 = vunpack.c.l.b16 %v102
    %v271 = vunpack.c.h.b16 %v102
    %v272 = vunpack.c.l.b16 %v103
    %v273 = vunpack.c.h.b16 %v103
    %v274 = vunpack.c.l.b16 %v104
    %v275 = vunpack.c.h.b16 %v104
    %v276 = vunpack.c.l.b16 %v105
    %v277 = vunpack.c.h.b16 %v105
    %v278 = vunpack.c.l.b16 %v106
    %v279 = vunpack.c.h.b16 %v106
    %v280 = vunpack.c.l.b16 %v107
    %v281 = vunpack.c.h.b16 %v107
    %v282 = vunpack.c.l.b16 %v108
    %v283 = vunpack.c.h.b16 %v108
    %v284 = vunpack.c.l.b16 %v109
    %v285 = vunpack.c.h.b16 %v109
    %v286 = vunpack.c.l.b16 %v110
    %v287 = vunpack.c.h.b16 %v110
    %v288 = vunpack.c.l.b16 %v111
    %v289 = vunpack.c.h.b16 %v111
    %v290 = vunpack.c.l.b16 %v112
    %v291 = vunpack.c.h.b16 %v112
    %v292 = vunpack.c.l.b16 %v113
    %v293 = vunpack.c.h.b16 %v113
    %v294 = vunpack.c.l.b16 %v114
    %v295 = vunpack.c.h.b16 %v114
    %v296 = vunpack.c.l.b16 %v115
    %v297 = vunpack.c.h.b16 %v115
    %v298 = vunpack.c.l.b16 %v116
    %v299 = vunpack.c.h.b16 %v116
    %v300 = vunpack.c.l.b16 %v117
    %v301 = vunpack.c.h.b16 %v117
    %v302 = vunpack.c.l.b16 %v118
    %v303 = vunpack.c.h.b16 %v118
    %v304 = vunpack.c.l.b16 %v119
    %v305 = vunpack.c.h.b16 %v119
    %v306 = vunpack.c.l.b16 %v120
    %v307 = vunpack.c.h.b16 %v120
    %v308 = vunpack.c.l.b16 %v121
    %v309 = vunpack.c.h.b16 %v121
    %v310 = vunpack.c.l.b16 %v122
    %v311 = vunpack.c.h.b16 %v122
    %v312 = vunpack.c.l.b16 %v123
    %v313 = vunpack.c.h.b16 %v123
    %v314 = vunpack.c.l.b16 %v124
    %v315 = vunpack.c.h.b16 %v124
    %v316 = vunpack.c.l.b16 %v125
    %v317 = vunpack.c.h.b16 %v125
    %v318 = vpack.c.b16 %v198, %v190
    %v319 = vpack.c.b16 %v199, %v191
    %v320 = vpack.c.b16 %v200, %v192
    %v321 = vpack.c.b16 %v201, %v193
    %v322 = vpack.c.b16 %v202, %v194
    %v323 = vpack.c.b16 %v203, %v195
    %v324 = vpack.c.b16 %v204, %v196
    %v325 = vpack.c.b16 %v205, %v197
    %v326 = vpack.c.b16 %v214, %v206
    %v327 = vpack.c.b16 %v215, %v207
    %v328 = vpack.c.b16 %v216, %v208
    %v329 = vpack.c.b16 %v217, %v209
    %v330 = vpack.c.b16 %v218, %v210
    %v331 = vpack.c.b16 %v219, %v211
    %v332 = vpack.c.b16 %v220, %v212
    %v333 = vpack.c.b16 %v221, %v213
    %v334 = vpack.c.b16 %v230, %v222
    %v335 = vpack.c.b16 %v231, %v223
    %v336 = vpack.c.b16 %v232, %v224
    %v337 = vpack.c.b16 %v233, %v225
    %v338 = vpack.c.b16 %v234, %v226
    %v339 = vpack.c.b16 %v235, %v227
    %v340 = vpack.c.b16 %v236, %v228
    %v341 = vpack.c.b16 %v237, %v229
    %v342 = vpack.c.b16 %v246, %v238
    %v343 = vpack.c.b16 %v247, %v239
    %v344 = vpack.c.b16 %v248, %v240
    %v345 = vpack.c.b16 %v249, %v241
    %v346 = vpack.c.b16 %v250, %v242
    %v347 = vpack.c.b16 %v251, %v243
    %v348 = vpack.c.b16 %v252, %v244
    %v349 = vpack.c.b16 %v253, %v245
    %v350 = vpack.c.b16 %v262, %v254
    %v351 = vpack.c.b16 %v263, %v255
    %v352 = vpack.c.b16 %v264, %v256
    %v353 = vpack.c.b16 %v265, %v257
    %v354 = vpack.c.b16 %v266, %v258
    %v355 = vpack.c.b16 %v267, %v259
    %v356 = vpack.c.b16 %v268, %v260
    %v357 = vpack.c.b16 %v269, %v261
    %v358 = vpack.c.b16 %v278, %v270
    %v359 = vpack.c.b16 %v279, %v271
    %v360 = vpack.c.b16 %v280, %v272
    %v361 = vpack.c.b16 %v281, %v273
    %v362 = vpack.c.b16 %v282, %v274
    %v363 = vpack.c.b16 %v283, %v275
    %v364 = vpack.c.b16 %v284, %v276
    %v365 = vpack.c.b16 %v285, %v277
    %v366 = vpack.c.b16 %v294, %v286
    %v367 = vpack.c.b16 %v295, %v287
    %v368 = vpack.c.b16 %v296, %v288
    %v369 = vpack.c.b16 %v297, %v289
    %v370 = vpack.c.b16 %v298, %v290
    %v371 = vpack.c.b16 %v299, %v291
    %v372 = vpack.c.b16 %v300, %v292
    %v373 = vpack.c.b16 %v301, %v293
    %v374 = vpack.c.b16 %v310, %v302
    %v375 = vpack.c.b16 %v311, %v303
    %v376 = vpack.c.b16 %v312, %v304
    %v377 = vpack.c.b16 %v313, %v305
    %v378 = vpack.c.b16 %v314, %v306
    %v379 = vpack.c.b16 %v315, %v307
    %v380 = vpack.c.b16 %v316, %v308
    %v381 = vpack.c.b16 %v317, %v309
    %446 = vmatprep.subr.bf16.mxu0 %v375
    %447 = vmatpush1.bf16.msra.mxu0 %v374
    %448 = vmatprep.subr.bf16.mxu0 %v367
    %449 = vmatpush1.bf16.msra.mxu0 %v366
    %450 = vmatprep.subr.bf16.mxu0 %v359
    %451 = vmatpush1.bf16.msra.mxu0 %v358
    %452 = vmatprep.subr.bf16.mxu0 %v351
    %453 = vmatpush1.bf16.msra.mxu0 %v350
    %454 = vmatprep.subr.bf16.mxu0 %v343
    %455 = vmatpush1.bf16.msra.mxu0 %v342
    %456 = vmatprep.subr.bf16.mxu0 %v335
    %457 = vmatpush1.bf16.msra.mxu0 %v334
    %458 = vmatprep.subr.bf16.mxu0 %v327
    %459 = vmatpush1.bf16.msra.mxu0 %v326
    %460 = vmatprep.subr.bf16.mxu0 %v319
    %461 = vmatpush1.bf16.msra.mxu0 %v318
    %462 = vmatprep.subr.bf16.mxu0 0
    %463 = vmatpush2.bf16.msra.mxu0 0
    %464 = vmatprep.subr.bf16.mxu0 0
    %465 = vmatpush2.bf16.msra.mxu0 0
    %466 = vmatprep.subr.bf16.mxu0 0
    %467 = vmatpush2.bf16.msra.mxu0 0
    %468 = vmatprep.subr.bf16.mxu0 0
    %469 = vmatpush2.bf16.msra.mxu0 0
    %470 = vmatprep.subr.bf16.mxu0 0
    %471 = vmatpush2.bf16.msra.mxu0 0
    %472 = vmatprep.subr.bf16.mxu0 0
    %473 = vmatpush2.bf16.msra.mxu0 0
    %474 = vmatprep.subr.bf16.mxu0 0
    %475 = vmatpush2.bf16.msra.mxu0 0
    %476 = vmatprep.subr.bf16.mxu0 0
    %477 = vmatpush2.bf16.msra.mxu0 0
    %478 = vmatprep.mubr.bf16.mxu0 0
    %479 = vmatmul.mubr.bf16.gmra.mxu0 %v61
    %v480 = vpop.f32.mrf.mxu0
    %v481 = vadd.f32 0.0, %v480
    %v482 = vpop.f32.mrf.mxu0
    %v483 = vadd.f32 0.0, %v482
    %v484 = vpop.f32.mrf.mxu0
    %v485 = vpop.f32.mrf.mxu0
    %486 = vdwg.mxu0
    %487 = vmatprep.subr.bf16.mxu0 %v377
    %488 = vmatpush1.bf16.msra.mxu0 %v376
    %489 = vmatprep.subr.bf16.mxu0 %v369
    %490 = vmatpush1.bf16.msra.mxu0 %v368
    %491 = vmatprep.subr.bf16.mxu0 %v361
    %492 = vmatpush1.bf16.msra.mxu0 %v360
    %493 = vmatprep.subr.bf16.mxu0 %v353
    %494 = vmatpush1.bf16.msra.mxu0 %v352
    %495 = vmatprep.subr.bf16.mxu0 %v345
    %496 = vmatpush1.bf16.msra.mxu0 %v344
    %497 = vmatprep.subr.bf16.mxu0 %v337
    %498 = vmatpush1.bf16.msra.mxu0 %v336
    %499 = vmatprep.subr.bf16.mxu0 %v329
    %500 = vmatpush1.bf16.msra.mxu0 %v328
    %501 = vmatprep.subr.bf16.mxu0 %v321
    %502 = vmatpush1.bf16.msra.mxu0 %v320
    %503 = vmatprep.subr.bf16.mxu0 0
    %504 = vmatpush2.bf16.msra.mxu0 0
    %505 = vmatprep.subr.bf16.mxu0 0
    %506 = vmatpush2.bf16.msra.mxu0 0
    %507 = vmatprep.subr.bf16.mxu0 0
    %508 = vmatpush2.bf16.msra.mxu0 0
    %509 = vmatprep.subr.bf16.mxu0 0
    %510 = vmatpush2.bf16.msra.mxu0 0
    %511 = vmatprep.subr.bf16.mxu0 0
    %512 = vmatpush2.bf16.msra.mxu0 0
    %513 = vmatprep.subr.bf16.mxu0 0
    %514 = vmatpush2.bf16.msra.mxu0 0
    %515 = vmatprep.subr.bf16.mxu0 0
    %516 = vmatpush2.bf16.msra.mxu0 0
    %517 = vmatprep.subr.bf16.mxu0 0
    %518 = vmatpush2.bf16.msra.mxu0 0
    %519 = vmatprep.mubr.bf16.mxu0 0
    %520 = vmatmul.mubr.bf16.gmra.mxu0 %v61
    %v521 = vpop.f32.mrf.mxu0
    %v522 = vadd.f32 0.0, %v521
    %v523 = vpop.f32.mrf.mxu0
    %v524 = vadd.f32 0.0, %v523
    %v525 = vpop.f32.mrf.mxu0
    %v526 = vpop.f32.mrf.mxu0
    %527 = vdwg.mxu0
    %528 = vmatprep.subr.bf16.mxu0 %v379
    %529 = vmatpush1.bf16.msra.mxu0 %v378
    %530 = vmatprep.subr.bf16.mxu0 %v371
    %531 = vmatpush1.bf16.msra.mxu0 %v370
    %532 = vmatprep.subr.bf16.mxu0 %v363
    %533 = vmatpush1.bf16.msra.mxu0 %v362
    %534 = vmatprep.subr.bf16.mxu0 %v355
    %535 = vmatpush1.bf16.msra.mxu0 %v354
    %536 = vmatprep.subr.bf16.mxu0 %v347
    %537 = vmatpush1.bf16.msra.mxu0 %v346
    %538 = vmatprep.subr.bf16.mxu0 %v339
    %539 = vmatpush1.bf16.msra.mxu0 %v338
    %540 = vmatprep.subr.bf16.mxu0 %v331
    %541 = vmatpush1.bf16.msra.mxu0 %v330
    %542 = vmatprep.subr.bf16.mxu0 %v323
    %543 = vmatpush1.bf16.msra.mxu0 %v322
    %544 = vmatprep.subr.bf16.mxu0 0
    %545 = vmatpush2.bf16.msra.mxu0 0
    %546 = vmatprep.subr.bf16.mxu0 0
    %547 = vmatpush2.bf16.msra.mxu0 0
    %548 = vmatprep.subr.bf16.mxu0 0
    %549 = vmatpush2.bf16.msra.mxu0 0
    %550 = vmatprep.subr.bf16.mxu0 0
    %551 = vmatpush2.bf16.msra.mxu0 0
    %552 = vmatprep.subr.bf16.mxu0 0
    %553 = vmatpush2.bf16.msra.mxu0 0
    %554 = vmatprep.subr.bf16.mxu0 0
    %555 = vmatpush2.bf16.msra.mxu0 0
    %556 = vmatprep.subr.bf16.mxu0 0
    %557 = vmatpush2.bf16.msra.mxu0 0
    %558 = vmatprep.subr.bf16.mxu0 0
    %559 = vmatpush2.bf16.msra.mxu0 0
    %560 = vmatprep.mubr.bf16.mxu0 0
    %561 = vmatmul.mubr.bf16.gmra.mxu0 %v61
    %v562 = vpop.f32.mrf.mxu0
    %v563 = vadd.f32 0.0, %v562
    %v564 = vpop.f32.mrf.mxu0
    %v565 = vadd.f32 0.0, %v564
    %v566 = vpop.f32.mrf.mxu0
    %v567 = vpop.f32.mrf.mxu0
    %568 = vdwg.mxu0
    %569 = vmatprep.subr.bf16.mxu0 %v381
    %570 = vmatpush1.bf16.msra.mxu0 %v380
    %571 = vmatprep.subr.bf16.mxu0 %v373
    %572 = vmatpush1.bf16.msra.mxu0 %v372
    %573 = vmatprep.subr.bf16.mxu0 %v365
    %574 = vmatpush1.bf16.msra.mxu0 %v364
    %575 = vmatprep.subr.bf16.mxu0 %v357
    %576 = vmatpush1.bf16.msra.mxu0 %v356
    %577 = vmatprep.subr.bf16.mxu0 %v349
    %578 = vmatpush1.bf16.msra.mxu0 %v348
    %579 = vmatprep.subr.bf16.mxu0 %v341
    %580 = vmatpush1.bf16.msra.mxu0 %v340
    %581 = vmatprep.subr.bf16.mxu0 %v333
    %582 = vmatpush1.bf16.msra.mxu0 %v332
    %583 = vmatprep.subr.bf16.mxu0 %v325
    %584 = vmatpush1.bf16.msra.mxu0 %v324
    %585 = vmatprep.subr.bf16.mxu0 0
    %586 = vmatpush2.bf16.msra.mxu0 0
    %587 = vmatprep.subr.bf16.mxu0 0
    %588 = vmatpush2.bf16.msra.mxu0 0
    %589 = vmatprep.subr.bf16.mxu0 0
    %590 = vmatpush2.bf16.msra.mxu0 0
    %591 = vmatprep.subr.bf16.mxu0 0
    %592 = vmatpush2.bf16.msra.mxu0 0
    %593 = vmatprep.subr.bf16.mxu0 0
    %594 = vmatpush2.bf16.msra.mxu0 0
    %595 = vmatprep.subr.bf16.mxu0 0
    %596 = vmatpush2.bf16.msra.mxu0 0
    %597 = vmatprep.subr.bf16.mxu0 0
    %598 = vmatpush2.bf16.msra.mxu0 0
    %599 = vmatprep.subr.bf16.mxu0 0
    %600 = vmatpush2.bf16.msra.mxu0 0
    %601 = vmatprep.mubr.bf16.mxu0 0
    %602 = vmatmul.mubr.bf16.gmra.mxu0 %v61
    %v603 = vpop.f32.mrf.mxu0
    %v604 = vadd.f32 0.0, %v603
    %v605 = vpop.f32.mrf.mxu0
    %v606 = vadd.f32 0.0, %v605
    %v607 = vpop.f32.mrf.mxu0
    %v608 = vpop.f32.mrf.mxu0
    %609 = vdwg.mxu0
    %v610 = vadd.f32 %v53, %v481
    %v611 = vadd.f32 %v54, %v483
    %v612 = vadd.f32 %v55, %v522
    %v613 = vadd.f32 %v56, %v524
    %v614 = vadd.f32 %v57, %v563
    %v615 = vadd.f32 %v58, %v565
    %v616 = vadd.f32 %v59, %v604
    %v617 = vadd.f32 %v60, %v606
    %618 = vst [vmem:[#allocation2] sm:$0xff] %v610
    %619 = vst [vmem:[#allocation2 + $0x8] sm:$0xff] %v611
    %620 = vst [vmem:[#allocation2 + $0x10] sm:$0xff] %v612
    %621 = vst [vmem:[#allocation2 + $0x18] sm:$0xff] %v613
    %622 = vst [vmem:[#allocation2 + $0x20] sm:$0xff] %v614
    %623 = vst [vmem:[#allocation2 + $0x28] sm:$0xff] %v615
    %624 = vst [vmem:[#allocation2 + $0x30] sm:$0xff] %v616
    %625 = vst [vmem:[#allocation2 + $0x38] sm:$0xff] %v617
    // Predicated region
    $region26: #{decoder_forward.4} parent=1 // pred_check
      %p626 = pneg %p41
    $region27: #{decoder_forward.4} parent=1 // pred_check_branch
      %628 = sbr.rel (%p626) target = $region29
    $region28: #{decoder_forward.4} parent=1 // pred_region
      %v629 = vld [vmem:[#allocation2] sm:$0xff]
      %v630 = vld [vmem:[#allocation2 + $0x8] sm:$0xff]
      %v631 = vld [vmem:[#allocation2 + $0x10] sm:$0xff]
      %v632 = vld [vmem:[#allocation2 + $0x18] sm:$0xff]
      %v633 = vld [vmem:[#allocation2 + $0x20] sm:$0xff]
      %v634 = vld [vmem:[#allocation2 + $0x28] sm:$0xff]
      %v635 = vld [vmem:[#allocation2 + $0x30] sm:$0xff]
      %v636 = vld [vmem:[#allocation2 + $0x38] sm:$0xff]
      %v637 = vld [vmem:[#allocation5] sm:$0xff]
      %v639 = vlaneseq
      %v640 = vshrl.u32 %v639, 7
      %v641 = vsub.s32 0, %v640
      %v642 = vrot.slane %v637, %v641
      %v643 = vlaneseq
      %v644 = vshrl.u32 %v643, 7
      %v645 = vsub.s32 1, %v644
      %v646 = vrot.slane %v637, %v645
      %v647 = vlaneseq
      %v648 = vshrl.u32 %v647, 7
      %v649 = vsub.s32 2, %v648
      %v650 = vrot.slane %v637, %v649
      %v651 = vlaneseq
      %v652 = vshrl.u32 %v651, 7
      %v653 = vsub.s32 3, %v652
      %v654 = vrot.slane %v637, %v653
      %v655 = vlaneseq
      %v656 = vshrl.u32 %v655, 7
      %v657 = vsub.s32 4, %v656
      %v658 = vrot.slane %v637, %v657
      %v659 = vlaneseq
      %v660 = vshrl.u32 %v659, 7
      %v661 = vsub.s32 5, %v660
      %v662 = vrot.slane %v637, %v661
      %v663 = vlaneseq
      %v664 = vshrl.u32 %v663, 7
      %v665 = vsub.s32 6, %v664
      %v666 = vrot.slane %v637, %v665
      %v667 = vlaneseq
      %v668 = vshrl.u32 %v667, 7
      %v669 = vsub.s32 7, %v668
      %v670 = vrot.slane %v637, %v669
      %v679 = vadd.f32 %v629, %v642
      %v680 = vadd.f32 %v630, %v646
      %v681 = vadd.f32 %v631, %v650
      %v682 = vadd.f32 %v632, %v654
      %v683 = vadd.f32 %v633, %v658
      %v684 = vadd.f32 %v634, %v662
      %v685 = vadd.f32 %v635, %v666
      %v686 = vadd.f32 %v636, %v670
      %v687 = vmax.f32 %v679, 0.0
      %v688 = vmax.f32 %v680, 0.0
      %v689 = vmax.f32 %v681, 0.0
      %v690 = vmax.f32 %v682, 0.0
      %v691 = vmax.f32 %v683, 0.0
      %v692 = vmax.f32 %v684, 0.0
      %v693 = vmax.f32 %v685, 0.0
      %v694 = vmax.f32 %v686, 0.0
      %v695 = vpack.c.bf16 %v687, %v687
      %v696 = vpack.c.bf16 %v688, %v688
      %v697 = vpack.c.bf16 %v689, %v689
      %v698 = vpack.c.bf16 %v690, %v690
      %v699 = vpack.c.bf16 %v691, %v691
      %v700 = vpack.c.bf16 %v692, %v692
      %v701 = vpack.c.bf16 %v693, %v693
      %v702 = vpack.c.bf16 %v694, %v694
      %v711 = vunpack.c.l.b16 %v695
      %v712 = vunpack.c.l.b16 %v696
      %v713 = vunpack.c.l.b16 %v697
      %v714 = vunpack.c.l.b16 %v698
      %v715 = vunpack.c.l.b16 %v699
      %v716 = vunpack.c.l.b16 %v700
      %v717 = vunpack.c.l.b16 %v701
      %v718 = vunpack.c.l.b16 %v702
      %v719 = vpack.c.b16 %v712, %v711
      %v720 = vpack.c.b16 %v714, %v713
      %v721 = vpack.c.b16 %v716, %v715
      %v722 = vpack.c.b16 %v718, %v717
      %727 = vst [vmem:[%s3] sm:$0xff] %v719
      %728 = vst [vmem:[%s3 + $0x8] sm:$0xff] %v720
      %729 = vst [vmem:[%s3 + $0x10] sm:$0xff] %v721
      %730 = vst [vmem:[%s3 + $0x18] sm:$0xff] %v722
    $region29: #{decoder_forward.4} parent=1 // pred_fallthru
      _
    // Predicated region
    $region30: #{decoder_forward.4} parent=1 // pred_check
      _
    $region31: #{decoder_forward.4} parent=1 // pred_check_branch
      %732 = sbr.rel (0) target = $region33
    $region32: #{decoder_forward.4} parent=1 // pred_region
      _
    $region33: #{decoder_forward.4} parent=1 // pred_fallthru
      _
    // Predicated region
    $region34: #{decoder_forward.4} parent=1 // pred_check
      _
    $region35: #{decoder_forward.4} parent=1 // pred_check_branch
      %734 = sbr.rel (0) target = $region37
    $region36: #{decoder_forward.4} parent=1 // pred_region
      _
    $region37: #{decoder_forward.4} parent=1 // pred_fallthru
      _
    %735 = vsyncpa [#allocation4], 1
    %736 = vsyncpa [#allocation6], 1

// kernel: decoder_forward.6
$region0: #{decoder_forward.6}
  #allocation0 [shape = 'u32[]', space=smem, size = 0x4, offset = 0x4, fixed_abs, tag = 'smem constant byte address 0x4 - core index']
  #allocation1 [shape = 'u32[144,128]{1,0:T(1,128)}', space=vmem, size = 0x12000, scoped, tag = 'internal scratch']
  #allocation2 [shape = 'f32[256,512]{1,0:T(8,128)}', space=vmem, size = 0x80000, scoped, tag = 'scratch operand']
  %s0 = inlined_call_operand.vmem [shape: bf16[1024,128], index: 0, kind: input, shape index: {}]
  %s1 = inlined_call_operand.vmem [shape: bf16[128,512], index: 1, kind: input, shape index: {}]
  %s2 = inlined_call_operand.vmem [shape: f32[1,512], index: 2, kind: input, shape index: {}]
  %s3 = inlined_call_operand.vmem [shape: bf16[1024,512], index: 3, kind: output, shape index: {}]
  %s4 = sld [smem:[#allocation0]]
  $region53: #{decoder_forward.6} parent=0
    _
  %s6 = ssub.s32 1, %s4
  %s7 = scalar_select 0, %s6, %s4
  loop: start=0, step=1, limit=6
  $region2: #{decoder_forward.6} parent=0 // loop_pre_header
    _
  $region3: #{decoder_forward.6} parent=0 // loop_header
    %s9 = sphi 0, %s13
    %p10 = scmp.ge.s32.totalorder %s9, 6
    %s16 = sphi 0, %s35
    %s17 = sphi 0, %s31
    %s18 = sphi 0, %s27
    %s19 = sphi 0, %s16
    %s20 = sphi 0, %s17
    %s21 = sphi 0, %s18
    %s22 = sphi 0, %s19
    %s23 = sphi 0, %s20
    %s24 = sphi 0, %s21
    %s40 = sphi 0, %s42
    %s43 = sphi 0, %s40
    %s44 = sphi 0, %s43
    %s60 = sphi 0, %s44
    %s68 = sphi 0, %s70
    %s71 = sphi 0, %s68
    %s72 = sphi 0, %s71
    %s88 = sphi 0, %s72
    %s94 = sphi 0, %s96
    %s97 = sphi 0, %s94
    %s98 = sphi 0, %s97
    %s114 = sphi 0, %s98
    %s122 = sphi 0, %s124
    %s125 = sphi 0, %s122
    %s126 = sphi 0, %s125
    %s142 = sphi 0, %s126
  $region4: #{decoder_forward.6} parent=0 // loop_header_branch
    %12 = sbr.rel (%p10) target = $region8
  $region5: #{decoder_forward.6} parent=0 // loop_body
    %s14 = ssub.s32 %s9, 1
    %s15 = ssub.s32 %s9, 2
    %s25 = sadd.s32 1, %s18
    %p26 = scmp.ge.s32.totalorder %s25, 1
    %s27 = scalar_select %p26, 0, %s25
    %s28 = sadd.s32 1, %s17
    %s29 = scalar_select %p26, %s28, %s17
    %p30 = scmp.ge.s32.totalorder %s29, 1
    %s31 = scalar_select %p30, 0, %s29
    %s32 = sadd.s32 1, %s16
    %s33 = scalar_select %p30, %s32, %s16
    %p34 = scmp.ge.s32.totalorder %s33, 4
    %s35 = scalar_select %p34, 0, %s33
    %s36 = ssub.s32 %s16, %s35
    %s37 = ssub.s32 %s18, %s27
    %s38 = sor.u32 %s36, %s37
    %p39 = scmp.eq.s32.totalorder %s38, 0
    %s41 = sadd.s32 %s40, 1
    %s42 = scalar_select %p39, %s40, %s41
    %p45 = pneg %p39
    %p46 = scmp.eq.s32.totalorder %s9, 3
    %p47 = por %p45, %p46
    %p48 = scmp.ne.s32.totalorder %s40, %s43
    %p49 = scmp.eq.s32.totalorder %s9, 0
    %p50 = por %p48, %p49
    %p51 = scmp.ne.s32.totalorder %s40, %s43
    %p52 = scmp.eq.s32.totalorder %s14, 3
    %p53 = por %p51, %p52
    %p54 = scmp.ne.s32.totalorder %s43, %s44
    %p55 = scmp.eq.s32.totalorder %s14, 0
    %p56 = por %p54, %p55
    %p57 = scmp.ne.s32.totalorder %s43, %s44
    %p58 = scmp.eq.s32.totalorder %s15, 3
    %p59 = por %p57, %p58
    %p61 = scmp.ne.s32.totalorder %s44, %s60
    %p62 = scmp.eq.s32.totalorder %s15, 0
    %p63 = por %p61, %p62
    %s64 = ssub.s32 %s18, %s27
    %s65 = ssub.s32 %s17, %s31
    %s66 = sor.u32 %s64, %s65
    %p67 = scmp.eq.s32.totalorder %s66, 0
    %s69 = sadd.s32 %s68, 1
    %s70 = scalar_select %p67, %s68, %s69
    %p73 = pneg %p67
    %p74 = scmp.eq.s32.totalorder %s9, 3
    %p75 = por %p73, %p74
    %p76 = scmp.ne.s32.totalorder %s68, %s71
    %p77 = scmp.eq.s32.totalorder %s9, 0
    %p78 = por %p76, %p77
    %p79 = scmp.ne.s32.totalorder %s68, %s71
    %p80 = scmp.eq.s32.totalorder %s14, 3
    %p81 = por %p79, %p80
    %p82 = scmp.ne.s32.totalorder %s71, %s72
    %p83 = scmp.eq.s32.totalorder %s14, 0
    %p84 = por %p82, %p83
    %p85 = scmp.ne.s32.totalorder %s71, %s72
    %p86 = scmp.eq.s32.totalorder %s15, 3
    %p87 = por %p85, %p86
    %p89 = scmp.ne.s32.totalorder %s72, %s88
    %p90 = scmp.eq.s32.totalorder %s15, 0
    %p91 = por %p89, %p90
    %s92 = ssub.s32 %s17, %s31
    %p93 = scmp.eq.s32.totalorder %s92, 0
    %s95 = sadd.s32 %s94, 1
    %s96 = scalar_select %p93, %s94, %s95
    %p99 = pneg %p93
    %p100 = scmp.eq.s32.totalorder %s9, 3
    %p101 = por %p99, %p100
    %p102 = scmp.ne.s32.totalorder %s94, %s97
    %p103 = scmp.eq.s32.totalorder %s9, 0
    %p104 = por %p102, %p103
    %p105 = scmp.ne.s32.totalorder %s94, %s97
    %p106 = scmp.eq.s32.totalorder %s14, 3
    %p107 = por %p105, %p106
    %p108 = scmp.ne.s32.totalorder %s97, %s98
    %p109 = scmp.eq.s32.totalorder %s14, 0
    %p110 = por %p108, %p109
    %p111 = scmp.ne.s32.totalorder %s97, %s98
    %p112 = scmp.eq.s32.totalorder %s15, 3
    %p113 = por %p111, %p112
    %p115 = scmp.ne.s32.totalorder %s98, %s114
    %p116 = scmp.eq.s32.totalorder %s15, 0
    %p117 = por %p115, %p116
    %s118 = ssub.s32 %s16, %s35
    %s119 = ssub.s32 %s17, %s31
    %s120 = sor.u32 %s118, %s119
    %p121 = scmp.eq.s32.totalorder %s120, 0
    %s123 = sadd.s32 %s122, 1
    %s124 = scalar_select %p121, %s122, %s123
    %p127 = pneg %p121
    %p128 = scmp.eq.s32.totalorder %s9, 3
    %p129 = por %p127, %p128
    %p130 = scmp.ne.s32.totalorder %s122, %s125
    %p131 = scmp.eq.s32.totalorder %s9, 0
    %p132 = por %p130, %p131
    %p133 = scmp.ne.s32.totalorder %s122, %s125
    %p134 = scmp.eq.s32.totalorder %s14, 3
    %p135 = por %p133, %p134
    %p136 = scmp.ne.s32.totalorder %s125, %s126
    %p137 = scmp.eq.s32.totalorder %s14, 0
    %p138 = por %p136, %p137
    %p139 = scmp.ne.s32.totalorder %s125, %s126
    %p140 = scmp.eq.s32.totalorder %s15, 3
    %p141 = por %p139, %p140
    %p143 = scmp.ne.s32.totalorder %s126, %s142
    %p144 = scmp.eq.s32.totalorder %s15, 0
    %p145 = por %p143, %p144
    %p146 = scmp.le.s32.totalorder 1, %s9
    %p147 = scmp.lt.s32.totalorder %s9, 5
    %p148 = pnand %p146, %p147
    %p149 = pneg %p148
    // Predicated region
    $region9: #{decoder_forward.6} parent=5 // pred_check
      _
    $region10: #{decoder_forward.6} parent=5 // pred_check_branch
      %151 = sbr.rel (%p148) target = $region12
    $region11: #{decoder_forward.6} parent=5 // pred_region
      %s152 = ssub.s32 %s9, 1
      // Predicated region
      $region13: #{decoder_forward.6} parent=11 // pred_check
        %p153 = pneg %p84
      $region14: #{decoder_forward.6} parent=11 // pred_check_branch
        %155 = sbr.rel (%p153) target = $region16
      $region15: #{decoder_forward.6} parent=11 // pred_region
        %s156 = smul.u32 16, %s21
        %s157 = smul.u32 4, %s20
        %p158 = scmp.lt.s32.totalorder %s156, 15
        %s159 = scalar_select %p158, %s156, 15
        %p160 = scmp.lt.s32.totalorder %s157, 3
        %s161 = scalar_select %p160, %s157, 3
        %s162 = smul.addr %s159, 4
        %s163 = sadd.s32 %s161, %s162
        %s164 = smul.addr %s163, 4
        %s165 = scalar_lea.vmem %s1, %s164
        %s166 = smul.u32 16, %s21
        %s167 = smul.u32 4, %s20
      $region16: #{decoder_forward.6} parent=11 // pred_fallthru
        _
      // Predicated region
      $region17: #{decoder_forward.6} parent=11 // pred_check
        %p168 = pneg %p110
      $region18: #{decoder_forward.6} parent=11 // pred_check_branch
        %170 = sbr.rel (%p168) target = $region20
      $region19: #{decoder_forward.6} parent=11 // pred_region
        %s171 = smul.u32 4, %s20
        %p172 = scmp.lt.s32.totalorder %s171, 3
        %s173 = scalar_select %p172, %s171, 3
        %s174 = scalar_lea.vmem %s2, %s173
        %s175 = smul.u32 4, %s20
      $region20: #{decoder_forward.6} parent=11 // pred_fallthru
        _
    $region12: #{decoder_forward.6} parent=5 // pred_fallthru
      _
    %p176 = scmp.lt.s32.totalorder %s9, 4
    // Predicated region
    $region21: #{decoder_forward.6} parent=5 // pred_check
      %p177 = pneg %p176
    $region22: #{decoder_forward.6} parent=5 // pred_check_branch
      %179 = sbr.rel (%p177) target = $region24
    $region23: #{decoder_forward.6} parent=5 // pred_region
      // Predicated region
      $region25: #{decoder_forward.6} parent=23 // pred_check
        %p180 = pneg %p50
      $region26: #{decoder_forward.6} parent=23 // pred_check_branch
        %182 = sbr.rel (%p180) target = $region28
      $region27: #{decoder_forward.6} parent=23 // pred_region
        %s183 = smul.u32 32, %s16
        %p184 = scmp.lt.s32.totalorder %s183, 127
        %s185 = scalar_select %p184, %s183, 127
        %p186 = scmp.lt.s32.totalorder %s18, 0
        %s187 = scalar_select %p186, %s18, 0
        %s188 = sadd.s32 %s187, %s185
        %s189 = smul.addr %s188, 4
        %s190 = scalar_lea.vmem %s0, %s189
        %s191 = smul.u32 32, %s16
      $region28: #{decoder_forward.6} parent=23 // pred_fallthru
        _
    $region24: #{decoder_forward.6} parent=5 // pred_fallthru
      _
    %p192 = scmp.le.s32.totalorder 1, %s9
    %p193 = scmp.lt.s32.totalorder %s9, 5
    %p194 = pnand %p192, %p193
    %p195 = pneg %p194
    // Predicated region
    $region29: #{decoder_forward.6} parent=5 // pred_check
      _
    $region30: #{decoder_forward.6} parent=5 // pred_check_branch
      %197 = sbr.rel (%p194) target = $region32
    $region31: #{decoder_forward.6} parent=5 // pred_region
      %s198 = ssub.s32 %s9, 1
      %s199 = smul.u32 32, %s19
      %p200 = scmp.lt.s32.totalorder %s199, 127
      %s201 = scalar_select %p200, %s199, 127
      %p202 = scmp.lt.s32.totalorder %s21, 0
      %s203 = scalar_select %p202, %s21, 0
      %s204 = sadd.s32 %s203, %s201
      %s205 = smul.addr %s204, 4
      %s206 = scalar_lea.vmem %s0, %s205
      %p207 = pneg %p56
      %p208 = pneg %p53
      %s209 = smul.u32 16, %s21
      %s210 = smul.u32 4, %s20
      %p211 = scmp.lt.s32.totalorder %s209, 15
      %s212 = scalar_select %p211, %s209, 15
      %p213 = scmp.lt.s32.totalorder %s210, 3
      %s214 = scalar_select %p213, %s210, 3
      %s215 = smul.addr %s212, 4
      %s216 = sadd.s32 %s214, %s215
      %s217 = smul.addr %s216, 4
      %s218 = scalar_lea.vmem %s1, %s217
      %p219 = pneg %p84
      %p220 = pneg %p81
      %s221 = smul.u32 4, %s20
      %p222 = scmp.lt.s32.totalorder %s221, 3
      %s223 = scalar_select %p222, %s221, 3
      %s224 = scalar_lea.vmem %s2, %s223
      %p225 = pneg %p110
      %p226 = pneg %p107
      %p227 = pneg %p138
      %p228 = pneg %p135
      %s229 = smul.u32 32, %s19
      %s230 = smul.u32 4, %s20
      %p231 = scmp.lt.s32.totalorder %s229, 127
      %s232 = scalar_select %p231, %s229, 127
      %p233 = scmp.lt.s32.totalorder %s230, 3
      %s234 = scalar_select %p233, %s230, 3
      %s235 = smul.addr %s232, 4
      %s236 = sadd.s32 %s234, %s235
      %s237 = smul.addr %s236, 4
      %s238 = scalar_lea.vmem %s3, %s237
      %s239 = smul.u32 32, %s19
      %p240 = scmp.lt.s32.totalorder %s239, 127
      %s241 = scalar_select %p240, %s239, 127
      %p242 = scmp.lt.s32.totalorder %s21, 0
      %s243 = scalar_select %p242, %s21, 0
      %s244 = sadd.s32 %s243, %s241
      %s245 = smul.addr %s244, 4
      %s246 = scalar_lea.vmem %s0, %s245
      %s247 = smul.u32 32, %s19
      %s248 = smul.u32 16, %s21
      %s249 = smul.u32 4, %s20
      %p250 = scmp.lt.s32.totalorder %s248, 15
      %s251 = scalar_select %p250, %s248, 15
      %p252 = scmp.lt.s32.totalorder %s249, 3
      %s253 = scalar_select %p252, %s249, 3
      %s254 = smul.addr %s251, 4
      %s255 = sadd.s32 %s253, %s254
      %s256 = smul.addr %s255, 4
      %s257 = scalar_lea.vmem %s1, %s256
      %s258 = smul.u32 16, %s21
      %s259 = smul.u32 4, %s20
      %s260 = smul.u32 4, %s20
      %p261 = scmp.lt.s32.totalorder %s260, 3
      %s262 = scalar_select %p261, %s260, 3
      %s263 = scalar_lea.vmem %s2, %s262
      %s264 = smul.u32 4, %s20
      %s265 = smul.u32 32, %s19
      %s266 = smul.u32 4, %s20
      %p267 = scmp.lt.s32.totalorder %s265, 127
      %s268 = scalar_select %p267, %s265, 127
      %p269 = scmp.lt.s32.totalorder %s266, 3
      %s270 = scalar_select %p269, %s266, 3
      %s271 = smul.addr %s268, 4
      %s272 = sadd.s32 %s270, %s271
      %s273 = smul.addr %s272, 4
      %s274 = scalar_lea.vmem %s3, %s273
      %s275 = smul.u32 32, %s19
      %s276 = smul.u32 4, %s20
      %p278 = scmp.eq.s32.totalorder %s21, 0
      // Predicated region
      $region33: #{decoder_forward.6} parent=31 // pred_check
        %p279 = pneg %p278
      $region34: #{decoder_forward.6} parent=31 // pred_check_branch
        %281 = sbr.rel (%p279) target = $region36
      $region35: #{decoder_forward.6} parent=31 // pred_region
        %282 = vst [vmem:[#allocation2] sm:$0xff] 0.0
        %283 = vst [vmem:[#allocation2 + $0x8] sm:$0xff] 0.0
        %284 = vst [vmem:[#allocation2 + $0x10] sm:$0xff] 0.0
        %285 = vst [vmem:[#allocation2 + $0x18] sm:$0xff] 0.0
        %286 = vst [vmem:[#allocation2 + $0x20] sm:$0xff] 0.0
        %287 = vst [vmem:[#allocation2 + $0x28] sm:$0xff] 0.0
        %288 = vst [vmem:[#allocation2 + $0x30] sm:$0xff] 0.0
        %289 = vst [vmem:[#allocation2 + $0x38] sm:$0xff] 0.0
        %290 = vst [vmem:[#allocation2 + $0x40] sm:$0xff] 0.0
        %291 = vst [vmem:[#allocation2 + $0x48] sm:$0xff] 0.0
        %292 = vst [vmem:[#allocation2 + $0x50] sm:$0xff] 0.0
        %293 = vst [vmem:[#allocation2 + $0x58] sm:$0xff] 0.0
        %294 = vst [vmem:[#allocation2 + $0x60] sm:$0xff] 0.0
        %295 = vst [vmem:[#allocation2 + $0x68] sm:$0xff] 0.0
        %296 = vst [vmem:[#allocation2 + $0x70] sm:$0xff] 0.0
        %297 = vst [vmem:[#allocation2 + $0x78] sm:$0xff] 0.0
        %298 = vst [vmem:[#allocation2 + $0x80] sm:$0xff] 0.0
        %299 = vst [vmem:[#allocation2 + $0x88] sm:$0xff] 0.0
        %300 = vst [vmem:[#allocation2 + $0x90] sm:$0xff] 0.0
        %301 = vst [vmem:[#allocation2 + $0x98] sm:$0xff] 0.0
        %302 = vst [vmem:[#allocation2 + $0xa0] sm:$0xff] 0.0
        %303 = vst [vmem:[#allocation2 + $0xa8] sm:$0xff] 0.0
        %304 = vst [vmem:[#allocation2 + $0xb0] sm:$0xff] 0.0
        %305 = vst [vmem:[#allocation2 + $0xb8] sm:$0xff] 0.0
        %306 = vst [vmem:[#allocation2 + $0xc0] sm:$0xff] 0.0
        %307 = vst [vmem:[#allocation2 + $0xc8] sm:$0xff] 0.0
        %308 = vst [vmem:[#allocation2 + $0xd0] sm:$0xff] 0.0
        %309 = vst [vmem:[#allocation2 + $0xd8] sm:$0xff] 0.0
        %310 = vst [vmem:[#allocation2 + $0xe0] sm:$0xff] 0.0
        %311 = vst [vmem:[#allocation2 + $0xe8] sm:$0xff] 0.0
        %312 = vst [vmem:[#allocation2 + $0xf0] sm:$0xff] 0.0
        %313 = vst [vmem:[#allocation2 + $0xf8] sm:$0xff] 0.0
        %314 = vst [vmem:[#allocation2 + $0x100] sm:$0xff] 0.0
        %315 = vst [vmem:[#allocation2 + $0x108] sm:$0xff] 0.0
        %316 = vst [vmem:[#allocation2 + $0x110] sm:$0xff] 0.0
        %317 = vst [vmem:[#allocation2 + $0x118] sm:$0xff] 0.0
        %318 = vst [vmem:[#allocation2 + $0x120] sm:$0xff] 0.0
        %319 = vst [vmem:[#allocation2 + $0x128] sm:$0xff] 0.0
        %320 = vst [vmem:[#allocation2 + $0x130] sm:$0xff] 0.0
        %321 = vst [vmem:[#allocation2 + $0x138] sm:$0xff] 0.0
        %322 = vst [vmem:[#allocation2 + $0x140] sm:$0xff] 0.0
        %323 = vst [vmem:[#allocation2 + $0x148] sm:$0xff] 0.0
        %324 = vst [vmem:[#allocation2 + $0x150] sm:$0xff] 0.0
        %325 = vst [vmem:[#allocation2 + $0x158] sm:$0xff] 0.0
        %326 = vst [vmem:[#allocation2 + $0x160] sm:$0xff] 0.0
        %327 = vst [vmem:[#allocation2 + $0x168] sm:$0xff] 0.0
        %328 = vst [vmem:[#allocation2 + $0x170] sm:$0xff] 0.0
        %329 = vst [vmem:[#allocation2 + $0x178] sm:$0xff] 0.0
        %330 = vst [vmem:[#allocation2 + $0x180] sm:$0xff] 0.0
        %331 = vst [vmem:[#allocation2 + $0x188] sm:$0xff] 0.0
        %332 = vst [vmem:[#allocation2 + $0x190] sm:$0xff] 0.0
        %333 = vst [vmem:[#allocation2 + $0x198] sm:$0xff] 0.0
        %334 = vst [vmem:[#allocation2 + $0x1a0] sm:$0xff] 0.0
        %335 = vst [vmem:[#allocation2 + $0x1a8] sm:$0xff] 0.0
        %336 = vst [vmem:[#allocation2 + $0x1b0] sm:$0xff] 0.0
        %337 = vst [vmem:[#allocation2 + $0x1b8] sm:$0xff] 0.0
        %338 = vst [vmem:[#allocation2 + $0x1c0] sm:$0xff] 0.0
        %339 = vst [vmem:[#allocation2 + $0x1c8] sm:$0xff] 0.0
        %340 = vst [vmem:[#allocation2 + $0x1d0] sm:$0xff] 0.0
        %341 = vst [vmem:[#allocation2 + $0x1d8] sm:$0xff] 0.0
        %342 = vst [vmem:[#allocation2 + $0x1e0] sm:$0xff] 0.0
        %343 = vst [vmem:[#allocation2 + $0x1e8] sm:$0xff] 0.0
        %344 = vst [vmem:[#allocation2 + $0x1f0] sm:$0xff] 0.0
        %345 = vst [vmem:[#allocation2 + $0x1f8] sm:$0xff] 0.0
        %346 = vst [vmem:[#allocation2 + $0x200] sm:$0xff] 0.0
        %347 = vst [vmem:[#allocation2 + $0x208] sm:$0xff] 0.0
        %348 = vst [vmem:[#allocation2 + $0x210] sm:$0xff] 0.0
        %349 = vst [vmem:[#allocation2 + $0x218] sm:$0xff] 0.0
        %350 = vst [vmem:[#allocation2 + $0x220] sm:$0xff] 0.0
        %351 = vst [vmem:[#allocation2 + $0x228] sm:$0xff] 0.0
        %352 = vst [vmem:[#allocation2 + $0x230] sm:$0xff] 0.0
        %353 = vst [vmem:[#allocation2 + $0x238] sm:$0xff] 0.0
        %354 = vst [vmem:[#allocation2 + $0x240] sm:$0xff] 0.0
        %355 = vst [vmem:[#allocation2 + $0x248] sm:$0xff] 0.0
        %356 = vst [vmem:[#allocation2 + $0x250] sm:$0xff] 0.0
        %357 = vst [vmem:[#allocation2 + $0x258] sm:$0xff] 0.0
        %358 = vst [vmem:[#allocation2 + $0x260] sm:$0xff] 0.0
        %359 = vst [vmem:[#allocation2 + $0x268] sm:$0xff] 0.0
        %360 = vst [vmem:[#allocation2 + $0x270] sm:$0xff] 0.0
        %361 = vst [vmem:[#allocation2 + $0x278] sm:$0xff] 0.0
        %362 = vst [vmem:[#allocation2 + $0x280] sm:$0xff] 0.0
        %363 = vst [vmem:[#allocation2 + $0x288] sm:$0xff] 0.0
        %364 = vst [vmem:[#allocation2 + $0x290] sm:$0xff] 0.0
        %365 = vst [vmem:[#allocation2 + $0x298] sm:$0xff] 0.0
        %366 = vst [vmem:[#allocation2 + $0x2a0] sm:$0xff] 0.0
        %367 = vst [vmem:[#allocation2 + $0x2a8] sm:$0xff] 0.0
        %368 = vst [vmem:[#allocation2 + $0x2b0] sm:$0xff] 0.0
        %369 = vst [vmem:[#allocation2 + $0x2b8] sm:$0xff] 0.0
        %370 = vst [vmem:[#allocation2 + $0x2c0] sm:$0xff] 0.0
        %371 = vst [vmem:[#allocation2 + $0x2c8] sm:$0xff] 0.0
        %372 = vst [vmem:[#allocation2 + $0x2d0] sm:$0xff] 0.0
        %373 = vst [vmem:[#allocation2 + $0x2d8] sm:$0xff] 0.0
        %374 = vst [vmem:[#allocation2 + $0x2e0] sm:$0xff] 0.0
        %375 = vst [vmem:[#allocation2 + $0x2e8] sm:$0xff] 0.0
        %376 = vst [vmem:[#allocation2 + $0x2f0] sm:$0xff] 0.0
        %377 = vst [vmem:[#allocation2 + $0x2f8] sm:$0xff] 0.0
        %378 = vst [vmem:[#allocation2 + $0x300] sm:$0xff] 0.0
        %379 = vst [vmem:[#allocation2 + $0x308] sm:$0xff] 0.0
        %380 = vst [vmem:[#allocation2 + $0x310] sm:$0xff] 0.0
        %381 = vst [vmem:[#allocation2 + $0x318] sm:$0xff] 0.0
        %382 = vst [vmem:[#allocation2 + $0x320] sm:$0xff] 0.0
        %383 = vst [vmem:[#allocation2 + $0x328] sm:$0xff] 0.0
        %384 = vst [vmem:[#allocation2 + $0x330] sm:$0xff] 0.0
        %385 = vst [vmem:[#allocation2 + $0x338] sm:$0xff] 0.0
        %386 = vst [vmem:[#allocation2 + $0x340] sm:$0xff] 0.0
        %387 = vst [vmem:[#allocation2 + $0x348] sm:$0xff] 0.0
        %388 = vst [vmem:[#allocation2 + $0x350] sm:$0xff] 0.0
        %389 = vst [vmem:[#allocation2 + $0x358] sm:$0xff] 0.0
        %390 = vst [vmem:[#allocation2 + $0x360] sm:$0xff] 0.0
        %391 = vst [vmem:[#allocation2 + $0x368] sm:$0xff] 0.0
        %392 = vst [vmem:[#allocation2 + $0x370] sm:$0xff] 0.0
        %393 = vst [vmem:[#allocation2 + $0x378] sm:$0xff] 0.0
        %394 = vst [vmem:[#allocation2 + $0x380] sm:$0xff] 0.0
        %395 = vst [vmem:[#allocation2 + $0x388] sm:$0xff] 0.0
        %396 = vst [vmem:[#allocation2 + $0x390] sm:$0xff] 0.0
        %397 = vst [vmem:[#allocation2 + $0x398] sm:$0xff] 0.0
        %398 = vst [vmem:[#allocation2 + $0x3a0] sm:$0xff] 0.0
        %399 = vst [vmem:[#allocation2 + $0x3a8] sm:$0xff] 0.0
        %400 = vst [vmem:[#allocation2 + $0x3b0] sm:$0xff] 0.0
        %401 = vst [vmem:[#allocation2 + $0x3b8] sm:$0xff] 0.0
        %402 = vst [vmem:[#allocation2 + $0x3c0] sm:$0xff] 0.0
        %403 = vst [vmem:[#allocation2 + $0x3c8] sm:$0xff] 0.0
        %404 = vst [vmem:[#allocation2 + $0x3d0] sm:$0xff] 0.0
        %405 = vst [vmem:[#allocation2 + $0x3d8] sm:$0xff] 0.0
        %406 = vst [vmem:[#allocation2 + $0x3e0] sm:$0xff] 0.0
        %407 = vst [vmem:[#allocation2 + $0x3e8] sm:$0xff] 0.0
        %408 = vst [vmem:[#allocation2 + $0x3f0] sm:$0xff] 0.0
        %409 = vst [vmem:[#allocation2 + $0x3f8] sm:$0xff] 0.0
      $region36: #{decoder_forward.6} parent=31 // pred_fallthru
        _
      %v410 = vld [vmem:[#allocation2] sm:$0xff]
      %v411 = vld [vmem:[#allocation2 + $0x8] sm:$0xff]
      %v412 = vld [vmem:[#allocation2 + $0x10] sm:$0xff]
      %v413 = vld [vmem:[#allocation2 + $0x18] sm:$0xff]
      %v414 = vld [vmem:[#allocation2 + $0x20] sm:$0xff]
      %v415 = vld [vmem:[#allocation2 + $0x28] sm:$0xff]
      %v416 = vld [vmem:[#allocation2 + $0x30] sm:$0xff]
      %v417 = vld [vmem:[#allocation2 + $0x38] sm:$0xff]
      %v418 = vld [vmem:[#allocation2 + $0x40] sm:$0xff]
      %v419 = vld [vmem:[#allocation2 + $0x48] sm:$0xff]
      %v420 = vld [vmem:[#allocation2 + $0x50] sm:$0xff]
      %v421 = vld [vmem:[#allocation2 + $0x58] sm:$0xff]
      %v422 = vld [vmem:[#allocation2 + $0x60] sm:$0xff]
      %v423 = vld [vmem:[#allocation2 + $0x68] sm:$0xff]
      %v424 = vld [vmem:[#allocation2 + $0x70] sm:$0xff]
      %v425 = vld [vmem:[#allocation2 + $0x78] sm:$0xff]
      %v426 = vld [vmem:[#allocation2 + $0x80] sm:$0xff]
      %v427 = vld [vmem:[#allocation2 + $0x88] sm:$0xff]
      %v428 = vld [vmem:[#allocation2 + $0x90] sm:$0xff]
      %v429 = vld [vmem:[#allocation2 + $0x98] sm:$0xff]
      %v430 = vld [vmem:[#allocation2 + $0xa0] sm:$0xff]
      %v431 = vld [vmem:[#allocation2 + $0xa8] sm:$0xff]
      %v432 = vld [vmem:[#allocation2 + $0xb0] sm:$0xff]
      %v433 = vld [vmem:[#allocation2 + $0xb8] sm:$0xff]
      %v434 = vld [vmem:[#allocation2 + $0xc0] sm:$0xff]
      %v435 = vld [vmem:[#allocation2 + $0xc8] sm:$0xff]
      %v436 = vld [vmem:[#allocation2 + $0xd0] sm:$0xff]
      %v437 = vld [vmem:[#allocation2 + $0xd8] sm:$0xff]
      %v438 = vld [vmem:[#allocation2 + $0xe0] sm:$0xff]
      %v439 = vld [vmem:[#allocation2 + $0xe8] sm:$0xff]
      %v440 = vld [vmem:[#allocation2 + $0xf0] sm:$0xff]
      %v441 = vld [vmem:[#allocation2 + $0xf8] sm:$0xff]
      %v442 = vld [vmem:[#allocation2 + $0x100] sm:$0xff]
      %v443 = vld [vmem:[#allocation2 + $0x108] sm:$0xff]
      %v444 = vld [vmem:[#allocation2 + $0x110] sm:$0xff]
      %v445 = vld [vmem:[#allocation2 + $0x118] sm:$0xff]
      %v446 = vld [vmem:[#allocation2 + $0x120] sm:$0xff]
      %v447 = vld [vmem:[#allocation2 + $0x128] sm:$0xff]
      %v448 = vld [vmem:[#allocation2 + $0x130] sm:$0xff]
      %v449 = vld [vmem:[#allocation2 + $0x138] sm:$0xff]
      %v450 = vld [vmem:[#allocation2 + $0x140] sm:$0xff]
      %v451 = vld [vmem:[#allocation2 + $0x148] sm:$0xff]
      %v452 = vld [vmem:[#allocation2 + $0x150] sm:$0xff]
      %v453 = vld [vmem:[#allocation2 + $0x158] sm:$0xff]
      %v454 = vld [vmem:[#allocation2 + $0x160] sm:$0xff]
      %v455 = vld [vmem:[#allocation2 + $0x168] sm:$0xff]
      %v456 = vld [vmem:[#allocation2 + $0x170] sm:$0xff]
      %v457 = vld [vmem:[#allocation2 + $0x178] sm:$0xff]
      %v458 = vld [vmem:[#allocation2 + $0x180] sm:$0xff]
      %v459 = vld [vmem:[#allocation2 + $0x188] sm:$0xff]
      %v460 = vld [vmem:[#allocation2 + $0x190] sm:$0xff]
      %v461 = vld [vmem:[#allocation2 + $0x198] sm:$0xff]
      %v462 = vld [vmem:[#allocation2 + $0x1a0] sm:$0xff]
      %v463 = vld [vmem:[#allocation2 + $0x1a8] sm:$0xff]
      %v464 = vld [vmem:[#allocation2 + $0x1b0] sm:$0xff]
      %v465 = vld [vmem:[#allocation2 + $0x1b8] sm:$0xff]
      %v466 = vld [vmem:[#allocation2 + $0x1c0] sm:$0xff]
      %v467 = vld [vmem:[#allocation2 + $0x1c8] sm:$0xff]
      %v468 = vld [vmem:[#allocation2 + $0x1d0] sm:$0xff]
      %v469 = vld [vmem:[#allocation2 + $0x1d8] sm:$0xff]
      %v470 = vld [vmem:[#allocation2 + $0x1e0] sm:$0xff]
      %v471 = vld [vmem:[#allocation2 + $0x1e8] sm:$0xff]
      %v472 = vld [vmem:[#allocation2 + $0x1f0] sm:$0xff]
      %v473 = vld [vmem:[#allocation2 + $0x1f8] sm:$0xff]
      %v474 = vld [vmem:[#allocation2 + $0x200] sm:$0xff]
      %v475 = vld [vmem:[#allocation2 + $0x208] sm:$0xff]
      %v476 = vld [vmem:[#allocation2 + $0x210] sm:$0xff]
      %v477 = vld [vmem:[#allocation2 + $0x218] sm:$0xff]
      %v478 = vld [vmem:[#allocation2 + $0x220] sm:$0xff]
      %v479 = vld [vmem:[#allocation2 + $0x228] sm:$0xff]
      %v480 = vld [vmem:[#allocation2 + $0x230] sm:$0xff]
      %v481 = vld [vmem:[#allocation2 + $0x238] sm:$0xff]
      %v482 = vld [vmem:[#allocation2 + $0x240] sm:$0xff]
      %v483 = vld [vmem:[#allocation2 + $0x248] sm:$0xff]
      %v484 = vld [vmem:[#allocation2 + $0x250] sm:$0xff]
      %v485 = vld [vmem:[#allocation2 + $0x258] sm:$0xff]
      %v486 = vld [vmem:[#allocation2 + $0x260] sm:$0xff]
      %v487 = vld [vmem:[#allocation2 + $0x268] sm:$0xff]
      %v488 = vld [vmem:[#allocation2 + $0x270] sm:$0xff]
      %v489 = vld [vmem:[#allocation2 + $0x278] sm:$0xff]
      %v490 = vld [vmem:[#allocation2 + $0x280] sm:$0xff]
      %v491 = vld [vmem:[#allocation2 + $0x288] sm:$0xff]
      %v492 = vld [vmem:[#allocation2 + $0x290] sm:$0xff]
      %v493 = vld [vmem:[#allocation2 + $0x298] sm:$0xff]
      %v494 = vld [vmem:[#allocation2 + $0x2a0] sm:$0xff]
      %v495 = vld [vmem:[#allocation2 + $0x2a8] sm:$0xff]
      %v496 = vld [vmem:[#allocation2 + $0x2b0] sm:$0xff]
      %v497 = vld [vmem:[#allocation2 + $0x2b8] sm:$0xff]
      %v498 = vld [vmem:[#allocation2 + $0x2c0] sm:$0xff]
      %v499 = vld [vmem:[#allocation2 + $0x2c8] sm:$0xff]
      %v500 = vld [vmem:[#allocation2 + $0x2d0] sm:$0xff]
      %v501 = vld [vmem:[#allocation2 + $0x2d8] sm:$0xff]
      %v502 = vld [vmem:[#allocation2 + $0x2e0] sm:$0xff]
      %v503 = vld [vmem:[#allocation2 + $0x2e8] sm:$0xff]
      %v504 = vld [vmem:[#allocation2 + $0x2f0] sm:$0xff]
      %v505 = vld [vmem:[#allocation2 + $0x2f8] sm:$0xff]
      %v506 = vld [vmem:[#allocation2 + $0x300] sm:$0xff]
      %v507 = vld [vmem:[#allocation2 + $0x308] sm:$0xff]
      %v508 = vld [vmem:[#allocation2 + $0x310] sm:$0xff]
      %v509 = vld [vmem:[#allocation2 + $0x318] sm:$0xff]
      %v510 = vld [vmem:[#allocation2 + $0x320] sm:$0xff]
      %v511 = vld [vmem:[#allocation2 + $0x328] sm:$0xff]
      %v512 = vld [vmem:[#allocation2 + $0x330] sm:$0xff]
      %v513 = vld [vmem:[#allocation2 + $0x338] sm:$0xff]
      %v514 = vld [vmem:[#allocation2 + $0x340] sm:$0xff]
      %v515 = vld [vmem:[#allocation2 + $0x348] sm:$0xff]
      %v516 = vld [vmem:[#allocation2 + $0x350] sm:$0xff]
      %v517 = vld [vmem:[#allocation2 + $0x358] sm:$0xff]
      %v518 = vld [vmem:[#allocation2 + $0x360] sm:$0xff]
      %v519 = vld [vmem:[#allocation2 + $0x368] sm:$0xff]
      %v520 = vld [vmem:[#allocation2 + $0x370] sm:$0xff]
      %v521 = vld [vmem:[#allocation2 + $0x378] sm:$0xff]
      %v522 = vld [vmem:[#allocation2 + $0x380] sm:$0xff]
      %v523 = vld [vmem:[#allocation2 + $0x388] sm:$0xff]
      %v524 = vld [vmem:[#allocation2 + $0x390] sm:$0xff]
      %v525 = vld [vmem:[#allocation2 + $0x398] sm:$0xff]
      %v526 = vld [vmem:[#allocation2 + $0x3a0] sm:$0xff]
      %v527 = vld [vmem:[#allocation2 + $0x3a8] sm:$0xff]
      %v528 = vld [vmem:[#allocation2 + $0x3b0] sm:$0xff]
      %v529 = vld [vmem:[#allocation2 + $0x3b8] sm:$0xff]
      %v530 = vld [vmem:[#allocation2 + $0x3c0] sm:$0xff]
      %v531 = vld [vmem:[#allocation2 + $0x3c8] sm:$0xff]
      %v532 = vld [vmem:[#allocation2 + $0x3d0] sm:$0xff]
      %v533 = vld [vmem:[#allocation2 + $0x3d8] sm:$0xff]
      %v534 = vld [vmem:[#allocation2 + $0x3e0] sm:$0xff]
      %v535 = vld [vmem:[#allocation2 + $0x3e8] sm:$0xff]
      %v536 = vld [vmem:[#allocation2 + $0x3f0] sm:$0xff]
      %v537 = vld [vmem:[#allocation2 + $0x3f8] sm:$0xff]
      %v538 = vld [vmem:[%s246] sm:$0xf]
      %v539 = vld [vmem:[%s246 + $0x4] sm:$0xf]
      %v540 = vld [vmem:[%s246 + $0x8] sm:$0xf]
      %v541 = vld [vmem:[%s246 + $0xc] sm:$0xf]
      %v542 = vld [vmem:[%s246 + $0x10] sm:$0xf]
      %v543 = vld [vmem:[%s246 + $0x14] sm:$0xf]
      %v544 = vld [vmem:[%s246 + $0x18] sm:$0xf]
      %v545 = vld [vmem:[%s246 + $0x1c] sm:$0xf]
      %v546 = vld [vmem:[%s246 + $0x20] sm:$0xf]
      %v547 = vld [vmem:[%s246 + $0x24] sm:$0xf]
      %v548 = vld [vmem:[%s246 + $0x28] sm:$0xf]
      %v549 = vld [vmem:[%s246 + $0x2c] sm:$0xf]
      %v550 = vld [vmem:[%s246 + $0x30] sm:$0xf]
      %v551 = vld [vmem:[%s246 + $0x34] sm:$0xf]
      %v552 = vld [vmem:[%s246 + $0x38] sm:$0xf]
      %v553 = vld [vmem:[%s246 + $0x3c] sm:$0xf]
      %v554 = vld [vmem:[%s246 + $0x40] sm:$0xf]
      %v555 = vld [vmem:[%s246 + $0x44] sm:$0xf]
      %v556 = vld [vmem:[%s246 + $0x48] sm:$0xf]
      %v557 = vld [vmem:[%s246 + $0x4c] sm:$0xf]
      %v558 = vld [vmem:[%s246 + $0x50] sm:$0xf]
      %v559 = vld [vmem:[%s246 + $0x54] sm:$0xf]
      %v560 = vld [vmem:[%s246 + $0x58] sm:$0xf]
      %v561 = vld [vmem:[%s246 + $0x5c] sm:$0xf]
      %v562 = vld [vmem:[%s246 + $0x60] sm:$0xf]
      %v563 = vld [vmem:[%s246 + $0x64] sm:$0xf]
      %v564 = vld [vmem:[%s246 + $0x68] sm:$0xf]
      %v565 = vld [vmem:[%s246 + $0x6c] sm:$0xf]
      %v566 = vld [vmem:[%s246 + $0x70] sm:$0xf]
      %v567 = vld [vmem:[%s246 + $0x74] sm:$0xf]
      %v568 = vld [vmem:[%s246 + $0x78] sm:$0xf]
      %v569 = vld [vmem:[%s246 + $0x7c] sm:$0xf]
      %v570 = vld [vmem:[%s257] sm:$0xff]
      %v571 = vld [vmem:[%s257 + $0x8] sm:$0xff]
      %v572 = vld [vmem:[%s257 + $0x10] sm:$0xff]
      %v573 = vld [vmem:[%s257 + $0x18] sm:$0xff]
      %v574 = vld [vmem:[%s257 + $0x20] sm:$0xff]
      %v575 = vld [vmem:[%s257 + $0x28] sm:$0xff]
      %v576 = vld [vmem:[%s257 + $0x30] sm:$0xff]
      %v577 = vld [vmem:[%s257 + $0x38] sm:$0xff]
      %v578 = vld [vmem:[%s257 + $0x40] sm:$0xff]
      %v579 = vld [vmem:[%s257 + $0x48] sm:$0xff]
      %v580 = vld [vmem:[%s257 + $0x50] sm:$0xff]
      %v581 = vld [vmem:[%s257 + $0x58] sm:$0xff]
      %v582 = vld [vmem:[%s257 + $0x60] sm:$0xff]
      %v583 = vld [vmem:[%s257 + $0x68] sm:$0xff]
      %v584 = vld [vmem:[%s257 + $0x70] sm:$0xff]
      %v585 = vld [vmem:[%s257 + $0x78] sm:$0xff]
      %v586 = vld [vmem:[%s257 + $0x80] sm:$0xff]
      %v587 = vld [vmem:[%s257 + $0x88] sm:$0xff]
      %v588 = vld [vmem:[%s257 + $0x90] sm:$0xff]
      %v589 = vld [vmem:[%s257 + $0x98] sm:$0xff]
      %v590 = vld [vmem:[%s257 + $0xa0] sm:$0xff]
      %v591 = vld [vmem:[%s257 + $0xa8] sm:$0xff]
      %v592 = vld [vmem:[%s257 + $0xb0] sm:$0xff]
      %v593 = vld [vmem:[%s257 + $0xb8] sm:$0xff]
      %v594 = vld [vmem:[%s257 + $0xc0] sm:$0xff]
      %v595 = vld [vmem:[%s257 + $0xc8] sm:$0xff]
      %v596 = vld [vmem:[%s257 + $0xd0] sm:$0xff]
      %v597 = vld [vmem:[%s257 + $0xd8] sm:$0xff]
      %v598 = vld [vmem:[%s257 + $0xe0] sm:$0xff]
      %v599 = vld [vmem:[%s257 + $0xe8] sm:$0xff]
      %v600 = vld [vmem:[%s257 + $0xf0] sm:$0xff]
      %v601 = vld [vmem:[%s257 + $0xf8] sm:$0xff]
      %v634 = vunpack.c.l.b16 %v538
      %v635 = vunpack.c.l.b16 %v539
      %v636 = vunpack.c.l.b16 %v540
      %v637 = vunpack.c.l.b16 %v541
      %v638 = vunpack.c.l.b16 %v542
      %v639 = vunpack.c.l.b16 %v543
      %v640 = vunpack.c.l.b16 %v544
      %v641 = vunpack.c.l.b16 %v545
      %v642 = vunpack.c.l.b16 %v546
      %v643 = vunpack.c.l.b16 %v547
      %v644 = vunpack.c.l.b16 %v548
      %v645 = vunpack.c.l.b16 %v549
      %v646 = vunpack.c.l.b16 %v550
      %v647 = vunpack.c.l.b16 %v551
      %v648 = vunpack.c.l.b16 %v552
      %v649 = vunpack.c.l.b16 %v553
      %v650 = vunpack.c.l.b16 %v554
      %v651 = vunpack.c.l.b16 %v555
      %v652 = vunpack.c.l.b16 %v556
      %v653 = vunpack.c.l.b16 %v557
      %v654 = vunpack.c.l.b16 %v558
      %v655 = vunpack.c.l.b16 %v559
      %v656 = vunpack.c.l.b16 %v560
      %v657 = vunpack.c.l.b16 %v561
      %v658 = vunpack.c.l.b16 %v562
      %v659 = vunpack.c.l.b16 %v563
      %v660 = vunpack.c.l.b16 %v564
      %v661 = vunpack.c.l.b16 %v565
      %v662 = vunpack.c.l.b16 %v566
      %v663 = vunpack.c.l.b16 %v567
      %v664 = vunpack.c.l.b16 %v568
      %v665 = vunpack.c.l.b16 %v569
      %v666 = vpack.c.b16 %v635, %v634
      %v667 = vpack.c.b16 %v637, %v636
      %v668 = vpack.c.b16 %v639, %v638
      %v669 = vpack.c.b16 %v641, %v640
      %v670 = vpack.c.b16 %v643, %v642
      %v671 = vpack.c.b16 %v645, %v644
      %v672 = vpack.c.b16 %v647, %v646
      %v673 = vpack.c.b16 %v649, %v648
      %v674 = vpack.c.b16 %v651, %v650
      %v675 = vpack.c.b16 %v653, %v652
      %v676 = vpack.c.b16 %v655, %v654
      %v677 = vpack.c.b16 %v657, %v656
      %v678 = vpack.c.b16 %v659, %v658
      %v679 = vpack.c.b16 %v661, %v660
      %v680 = vpack.c.b16 %v663, %v662
      %v681 = vpack.c.b16 %v665, %v664
      %v730 = vunpack.c.l.b16 %v570
      %v731 = vunpack.c.h.b16 %v570
      %v732 = vunpack.c.l.b16 %v571
      %v733 = vunpack.c.h.b16 %v571
      %v734 = vunpack.c.l.b16 %v572
      %v735 = vunpack.c.h.b16 %v572
      %v736 = vunpack.c.l.b16 %v573
      %v737 = vunpack.c.h.b16 %v573
      %v738 = vunpack.c.l.b16 %v574
      %v739 = vunpack.c.h.b16 %v574
      %v740 = vunpack.c.l.b16 %v575
      %v741 = vunpack.c.h.b16 %v575
      %v742 = vunpack.c.l.b16 %v576
      %v743 = vunpack.c.h.b16 %v576
      %v744 = vunpack.c.l.b16 %v577
      %v745 = vunpack.c.h.b16 %v577
      %v746 = vunpack.c.l.b16 %v578
      %v747 = vunpack.c.h.b16 %v578
      %v748 = vunpack.c.l.b16 %v579
      %v749 = vunpack.c.h.b16 %v579
      %v750 = vunpack.c.l.b16 %v580
      %v751 = vunpack.c.h.b16 %v580
      %v752 = vunpack.c.l.b16 %v581
      %v753 = vunpack.c.h.b16 %v581
      %v754 = vunpack.c.l.b16 %v582
      %v755 = vunpack.c.h.b16 %v582
      %v756 = vunpack.c.l.b16 %v583
      %v757 = vunpack.c.h.b16 %v583
      %v758 = vunpack.c.l.b16 %v584
      %v759 = vunpack.c.h.b16 %v584
      %v760 = vunpack.c.l.b16 %v585
      %v761 = vunpack.c.h.b16 %v585
      %v762 = vunpack.c.l.b16 %v586
      %v763 = vunpack.c.h.b16 %v586
      %v764 = vunpack.c.l.b16 %v587
      %v765 = vunpack.c.h.b16 %v587
      %v766 = vunpack.c.l.b16 %v588
      %v767 = vunpack.c.h.b16 %v588
      %v768 = vunpack.c.l.b16 %v589
      %v769 = vunpack.c.h.b16 %v589
      %v770 = vunpack.c.l.b16 %v590
      %v771 = vunpack.c.h.b16 %v590
      %v772 = vunpack.c.l.b16 %v591
      %v773 = vunpack.c.h.b16 %v591
      %v774 = vunpack.c.l.b16 %v592
      %v775 = vunpack.c.h.b16 %v592
      %v776 = vunpack.c.l.b16 %v593
      %v777 = vunpack.c.h.b16 %v593
      %v778 = vunpack.c.l.b16 %v594
      %v779 = vunpack.c.h.b16 %v594
      %v780 = vunpack.c.l.b16 %v595
      %v781 = vunpack.c.h.b16 %v595
      %v782 = vunpack.c.l.b16 %v596
      %v783 = vunpack.c.h.b16 %v596
      %v784 = vunpack.c.l.b16 %v597
      %v785 = vunpack.c.h.b16 %v597
      %v786 = vunpack.c.l.b16 %v598
      %v787 = vunpack.c.h.b16 %v598
      %v788 = vunpack.c.l.b16 %v599
      %v789 = vunpack.c.h.b16 %v599
      %v790 = vunpack.c.l.b16 %v600
      %v791 = vunpack.c.h.b16 %v600
      %v792 = vunpack.c.l.b16 %v601
      %v793 = vunpack.c.h.b16 %v601
      %v794 = vpack.c.b16 %v734, %v730
      %v795 = vpack.c.b16 %v735, %v731
      %v796 = vpack.c.b16 %v736, %v732
      %v797 = vpack.c.b16 %v737, %v733
      %v798 = vpack.c.b16 %v742, %v738
      %v799 = vpack.c.b16 %v743, %v739
      %v800 = vpack.c.b16 %v744, %v740
      %v801 = vpack.c.b16 %v745, %v741
      %v802 = vpack.c.b16 %v750, %v746
      %v803 = vpack.c.b16 %v751, %v747
      %v804 = vpack.c.b16 %v752, %v748
      %v805 = vpack.c.b16 %v753, %v749
      %v806 = vpack.c.b16 %v758, %v754
      %v807 = vpack.c.b16 %v759, %v755
      %v808 = vpack.c.b16 %v760, %v756
      %v809 = vpack.c.b16 %v761, %v757
      %v810 = vpack.c.b16 %v766, %v762
      %v811 = vpack.c.b16 %v767, %v763
      %v812 = vpack.c.b16 %v768, %v764
      %v813 = vpack.c.b16 %v769, %v765
      %v814 = vpack.c.b16 %v774, %v770
      %v815 = vpack.c.b16 %v775, %v771
      %v816 = vpack.c.b16 %v776, %v772
      %v817 = vpack.c.b16 %v777, %v773
      %v818 = vpack.c.b16 %v782, %v778
      %v819 = vpack.c.b16 %v783, %v779
      %v820 = vpack.c.b16 %v784, %v780
      %v821 = vpack.c.b16 %v785, %v781
      %v822 = vpack.c.b16 %v790, %v786
      %v823 = vpack.c.b16 %v791, %v787
      %v824 = vpack.c.b16 %v792, %v788
      %v825 = vpack.c.b16 %v793, %v789
      %858 = vmatprep.subr.bf16.mxu0 %v823
      %859 = vmatpush1.bf16.msra.mxu0 %v822
      %860 = vmatprep.subr.bf16.mxu0 %v819
      %861 = vmatpush1.bf16.msra.mxu0 %v818
      %862 = vmatprep.subr.bf16.mxu0 %v815
      %863 = vmatpush1.bf16.msra.mxu0 %v814
      %864 = vmatprep.subr.bf16.mxu0 %v811
      %865 = vmatpush1.bf16.msra.mxu0 %v810
      %866 = vmatprep.subr.bf16.mxu0 %v807
      %867 = vmatpush1.bf16.msra.mxu0 %v806
      %868 = vmatprep.subr.bf16.mxu0 %v803
      %869 = vmatpush1.bf16.msra.mxu0 %v802
      %870 = vmatprep.subr.bf16.mxu0 %v799
      %871 = vmatpush1.bf16.msra.mxu0 %v798
      %872 = vmatprep.subr.bf16.mxu0 %v795
      %873 = vmatpush1.bf16.msra.mxu0 %v794
      %874 = vmatprep.subr.bf16.mxu0 0
      %875 = vmatpush2.bf16.msra.mxu0 0
      %876 = vmatprep.subr.bf16.mxu0 0
      %877 = vmatpush2.bf16.msra.mxu0 0
      %878 = vmatprep.subr.bf16.mxu0 0
      %879 = vmatpush2.bf16.msra.mxu0 0
      %880 = vmatprep.subr.bf16.mxu0 0
      %881 = vmatpush2.bf16.msra.mxu0 0
      %882 = vmatprep.subr.bf16.mxu0 0
      %883 = vmatpush2.bf16.msra.mxu0 0
      %884 = vmatprep.subr.bf16.mxu0 0
      %885 = vmatpush2.bf16.msra.mxu0 0
      %886 = vmatprep.subr.bf16.mxu0 0
      %887 = vmatpush2.bf16.msra.mxu0 0
      %888 = vmatprep.subr.bf16.mxu0 0
      %889 = vmatpush2.bf16.msra.mxu0 0
      %890 = vmatprep.mubr.bf16.mxu0 0
      %891 = vmatmul.mubr.bf16.gmra.mxu0 %v666
      %v892 = vpop.f32.mrf.mxu0
      %v893 = vadd.f32 0.0, %v892
      %v894 = vpop.f32.mrf.mxu0
      %v895 = vadd.f32 0.0, %v894
      %v896 = vpop.f32.mrf.mxu0
      %v897 = vadd.f32 0.0, %v896
      %v898 = vpop.f32.mrf.mxu0
      %v899 = vadd.f32 0.0, %v898
      %900 = vmatprep.mubr.bf16.mxu0 0
      %901 = vmatmul.mubr.bf16.gmra.mxu0 %v667
      %v902 = vpop.f32.mrf.mxu0
      %v903 = vadd.f32 0.0, %v902
      %v904 = vpop.f32.mrf.mxu0
      %v905 = vadd.f32 0.0, %v904
      %v906 = vpop.f32.mrf.mxu0
      %v907 = vadd.f32 0.0, %v906
      %v908 = vpop.f32.mrf.mxu0
      %v909 = vadd.f32 0.0, %v908
      %910 = vmatprep.mubr.bf16.mxu0 0
      %911 = vmatmul.mubr.bf16.gmra.mxu0 %v668
      %v912 = vpop.f32.mrf.mxu0
      %v913 = vadd.f32 0.0, %v912
      %v914 = vpop.f32.mrf.mxu0
      %v915 = vadd.f32 0.0, %v914
      %v916 = vpop.f32.mrf.mxu0
      %v917 = vadd.f32 0.0, %v916
      %v918 = vpop.f32.mrf.mxu0
      %v919 = vadd.f32 0.0, %v918
      %920 = vmatprep.mubr.bf16.mxu0 0
      %921 = vmatmul.mubr.bf16.gmra.mxu0 %v669
      %v922 = vpop.f32.mrf.mxu0
      %v923 = vadd.f32 0.0, %v922
      %v924 = vpop.f32.mrf.mxu0
      %v925 = vadd.f32 0.0, %v924
      %v926 = vpop.f32.mrf.mxu0
      %v927 = vadd.f32 0.0, %v926
      %v928 = vpop.f32.mrf.mxu0
      %v929 = vadd.f32 0.0, %v928
      %930 = vmatprep.mubr.bf16.mxu0 0
      %931 = vmatmul.mubr.bf16.gmra.mxu0 %v670
      %v932 = vpop.f32.mrf.mxu0
      %v933 = vadd.f32 0.0, %v932
      %v934 = vpop.f32.mrf.mxu0
      %v935 = vadd.f32 0.0, %v934
      %v936 = vpop.f32.mrf.mxu0
      %v937 = vadd.f32 0.0, %v936
      %v938 = vpop.f32.mrf.mxu0
      %v939 = vadd.f32 0.0, %v938
      %940 = vmatprep.mubr.bf16.mxu0 0
      %941 = vmatmul.mubr.bf16.gmra.mxu0 %v671
      %v942 = vpop.f32.mrf.mxu0
      %v943 = vadd.f32 0.0, %v942
      %v944 = vpop.f32.mrf.mxu0
      %v945 = vadd.f32 0.0, %v944
      %v946 = vpop.f32.mrf.mxu0
      %v947 = vadd.f32 0.0, %v946
      %v948 = vpop.f32.mrf.mxu0
      %v949 = vadd.f32 0.0, %v948
      %950 = vmatprep.mubr.bf16.mxu0 0
      %951 = vmatmul.mubr.bf16.gmra.mxu0 %v672
      %v952 = vpop.f32.mrf.mxu0
      %v953 = vadd.f32 0.0, %v952
      %v954 = vpop.f32.mrf.mxu0
      %v955 = vadd.f32 0.0, %v954
      %v956 = vpop.f32.mrf.mxu0
      %v957 = vadd.f32 0.0, %v956
      %v958 = vpop.f32.mrf.mxu0
      %v959 = vadd.f32 0.0, %v958
      %960 = vmatprep.mubr.bf16.mxu0 0
      %961 = vmatmul.mubr.bf16.gmra.mxu0 %v673
      %v962 = vpop.f32.mrf.mxu0
      %v963 = vadd.f32 0.0, %v962
      %v964 = vpop.f32.mrf.mxu0
      %v965 = vadd.f32 0.0, %v964
      %v966 = vpop.f32.mrf.mxu0
      %v967 = vadd.f32 0.0, %v966
      %v968 = vpop.f32.mrf.mxu0
      %v969 = vadd.f32 0.0, %v968
      %970 = vmatprep.mubr.bf16.mxu0 0
      %971 = vmatmul.mubr.bf16.gmra.mxu0 %v674
      %v972 = vpop.f32.mrf.mxu0
      %v973 = vadd.f32 0.0, %v972
      %v974 = vpop.f32.mrf.mxu0
      %v975 = vadd.f32 0.0, %v974
      %v976 = vpop.f32.mrf.mxu0
      %v977 = vadd.f32 0.0, %v976
      %v978 = vpop.f32.mrf.mxu0
      %v979 = vadd.f32 0.0, %v978
      %980 = vmatprep.mubr.bf16.mxu0 0
      %981 = vmatmul.mubr.bf16.gmra.mxu0 %v675
      %v982 = vpop.f32.mrf.mxu0
      %v983 = vadd.f32 0.0, %v982
      %v984 = vpop.f32.mrf.mxu0
      %v985 = vadd.f32 0.0, %v984
      %v986 = vpop.f32.mrf.mxu0
      %v987 = vadd.f32 0.0, %v986
      %v988 = vpop.f32.mrf.mxu0
      %v989 = vadd.f32 0.0, %v988
      %990 = vmatprep.mubr.bf16.mxu0 0
      %991 = vmatmul.mubr.bf16.gmra.mxu0 %v676
      %v992 = vpop.f32.mrf.mxu0
      %v993 = vadd.f32 0.0, %v992
      %v994 = vpop.f32.mrf.mxu0
      %v995 = vadd.f32 0.0, %v994
      %v996 = vpop.f32.mrf.mxu0
      %v997 = vadd.f32 0.0, %v996
      %v998 = vpop.f32.mrf.mxu0
      %v999 = vadd.f32 0.0, %v998
      %1000 = vmatprep.mubr.bf16.mxu0 0
      %1001 = vmatmul.mubr.bf16.gmra.mxu0 %v677
      %v1002 = vpop.f32.mrf.mxu0
      %v1003 = vadd.f32 0.0, %v1002
      %v1004 = vpop.f32.mrf.mxu0
      %v1005 = vadd.f32 0.0, %v1004
      %v1006 = vpop.f32.mrf.mxu0
      %v1007 = vadd.f32 0.0, %v1006
      %v1008 = vpop.f32.mrf.mxu0
      %v1009 = vadd.f32 0.0, %v1008
      %1010 = vmatprep.mubr.bf16.mxu0 0
      %1011 = vmatmul.mubr.bf16.gmra.mxu0 %v678
      %v1012 = vpop.f32.mrf.mxu0
      %v1013 = vadd.f32 0.0, %v1012
      %v1014 = vpop.f32.mrf.mxu0
      %v1015 = vadd.f32 0.0, %v1014
      %v1016 = vpop.f32.mrf.mxu0
      %v1017 = vadd.f32 0.0, %v1016
      %v1018 = vpop.f32.mrf.mxu0
      %v1019 = vadd.f32 0.0, %v1018
      %1020 = vmatprep.mubr.bf16.mxu0 0
      %1021 = vmatmul.mubr.bf16.gmra.mxu0 %v679
      %v1022 = vpop.f32.mrf.mxu0
      %v1023 = vadd.f32 0.0, %v1022
      %v1024 = vpop.f32.mrf.mxu0
      %v1025 = vadd.f32 0.0, %v1024
      %v1026 = vpop.f32.mrf.mxu0
      %v1027 = vadd.f32 0.0, %v1026
      %v1028 = vpop.f32.mrf.mxu0
      %v1029 = vadd.f32 0.0, %v1028
      %1030 = vmatprep.mubr.bf16.mxu0 0
      %1031 = vmatmul.mubr.bf16.gmra.mxu0 %v680
      %v1032 = vpop.f32.mrf.mxu0
      %v1033 = vadd.f32 0.0, %v1032
      %v1034 = vpop.f32.mrf.mxu0
      %v1035 = vadd.f32 0.0, %v1034
      %v1036 = vpop.f32.mrf.mxu0
      %v1037 = vadd.f32 0.0, %v1036
      %v1038 = vpop.f32.mrf.mxu0
      %v1039 = vadd.f32 0.0, %v1038
      %1040 = vmatprep.mubr.bf16.mxu0 0
      %1041 = vmatmul.mubr.bf16.gmra.mxu0 %v681
      %v1042 = vpop.f32.mrf.mxu0
      %v1043 = vadd.f32 0.0, %v1042
      %v1044 = vpop.f32.mrf.mxu0
      %v1045 = vadd.f32 0.0, %v1044
      %v1046 = vpop.f32.mrf.mxu0
      %v1047 = vadd.f32 0.0, %v1046
      %v1048 = vpop.f32.mrf.mxu0
      %v1049 = vadd.f32 0.0, %v1048
      %1050 = vdwg.mxu0
      %1051 = vmatprep.subr.bf16.mxu0 %v825
      %1052 = vmatpush1.bf16.msra.mxu0 %v824
      %1053 = vmatprep.subr.bf16.mxu0 %v821
      %1054 = vmatpush1.bf16.msra.mxu0 %v820
      %1055 = vmatprep.subr.bf16.mxu0 %v817
      %1056 = vmatpush1.bf16.msra.mxu0 %v816
      %1057 = vmatprep.subr.bf16.mxu0 %v813
      %1058 = vmatpush1.bf16.msra.mxu0 %v812
      %1059 = vmatprep.subr.bf16.mxu0 %v809
      %1060 = vmatpush1.bf16.msra.mxu0 %v808
      %1061 = vmatprep.subr.bf16.mxu0 %v805
      %1062 = vmatpush1.bf16.msra.mxu0 %v804
      %1063 = vmatprep.subr.bf16.mxu0 %v801
      %1064 = vmatpush1.bf16.msra.mxu0 %v800
      %1065 = vmatprep.subr.bf16.mxu0 %v797
      %1066 = vmatpush1.bf16.msra.mxu0 %v796
      %1067 = vmatprep.subr.bf16.mxu0 0
      %1068 = vmatpush2.bf16.msra.mxu0 0
      %1069 = vmatprep.subr.bf16.mxu0 0
      %1070 = vmatpush2.bf16.msra.mxu0 0
      %1071 = vmatprep.subr.bf16.mxu0 0
      %1072 = vmatpush2.bf16.msra.mxu0 0
      %1073 = vmatprep.subr.bf16.mxu0 0
      %1074 = vmatpush2.bf16.msra.mxu0 0
      %1075 = vmatprep.subr.bf16.mxu0 0
      %1076 = vmatpush2.bf16.msra.mxu0 0
      %1077 = vmatprep.subr.bf16.mxu0 0
      %1078 = vmatpush2.bf16.msra.mxu0 0
      %1079 = vmatprep.subr.bf16.mxu0 0
      %1080 = vmatpush2.bf16.msra.mxu0 0
      %1081 = vmatprep.subr.bf16.mxu0 0
      %1082 = vmatpush2.bf16.msra.mxu0 0
      %1083 = vmatprep.mubr.bf16.mxu0 0
      %1084 = vmatmul.mubr.bf16.gmra.mxu0 %v666
      %v1085 = vpop.f32.mrf.mxu0
      %v1086 = vadd.f32 0.0, %v1085
      %v1087 = vpop.f32.mrf.mxu0
      %v1088 = vadd.f32 0.0, %v1087
      %v1089 = vpop.f32.mrf.mxu0
      %v1090 = vadd.f32 0.0, %v1089
      %v1091 = vpop.f32.mrf.mxu0
      %v1092 = vadd.f32 0.0, %v1091
      %1093 = vmatprep.mubr.bf16.mxu0 0
      %1094 = vmatmul.mubr.bf16.gmra.mxu0 %v667
      %v1095 = vpop.f32.mrf.mxu0
      %v1096 = vadd.f32 0.0, %v1095
      %v1097 = vpop.f32.mrf.mxu0
      %v1098 = vadd.f32 0.0, %v1097
      %v1099 = vpop.f32.mrf.mxu0
      %v1100 = vadd.f32 0.0, %v1099
      %v1101 = vpop.f32.mrf.mxu0
      %v1102 = vadd.f32 0.0, %v1101
      %1103 = vmatprep.mubr.bf16.mxu0 0
      %1104 = vmatmul.mubr.bf16.gmra.mxu0 %v668
      %v1105 = vpop.f32.mrf.mxu0
      %v1106 = vadd.f32 0.0, %v1105
      %v1107 = vpop.f32.mrf.mxu0
      %v1108 = vadd.f32 0.0, %v1107
      %v1109 = vpop.f32.mrf.mxu0
      %v1110 = vadd.f32 0.0, %v1109
      %v1111 = vpop.f32.mrf.mxu0
      %v1112 = vadd.f32 0.0, %v1111
      %1113 = vmatprep.mubr.bf16.mxu0 0
      %1114 = vmatmul.mubr.bf16.gmra.mxu0 %v669
      %v1115 = vpop.f32.mrf.mxu0
      %v1116 = vadd.f32 0.0, %v1115
      %v1117 = vpop.f32.mrf.mxu0
      %v1118 = vadd.f32 0.0, %v1117
      %v1119 = vpop.f32.mrf.mxu0
      %v1120 = vadd.f32 0.0, %v1119
      %v1121 = vpop.f32.mrf.mxu0
      %v1122 = vadd.f32 0.0, %v1121
      %1123 = vmatprep.mubr.bf16.mxu0 0
      %1124 = vmatmul.mubr.bf16.gmra.mxu0 %v670
      %v1125 = vpop.f32.mrf.mxu0
      %v1126 = vadd.f32 0.0, %v1125
      %v1127 = vpop.f32.mrf.mxu0
      %v1128 = vadd.f32 0.0, %v1127
      %v1129 = vpop.f32.mrf.mxu0
      %v1130 = vadd.f32 0.0, %v1129
      %v1131 = vpop.f32.mrf.mxu0
      %v1132 = vadd.f32 0.0, %v1131
      %1133 = vmatprep.mubr.bf16.mxu0 0
      %1134 = vmatmul.mubr.bf16.gmra.mxu0 %v671
      %v1135 = vpop.f32.mrf.mxu0
      %v1136 = vadd.f32 0.0, %v1135
      %v1137 = vpop.f32.mrf.mxu0
      %v1138 = vadd.f32 0.0, %v1137
      %v1139 = vpop.f32.mrf.mxu0
      %v1140 = vadd.f32 0.0, %v1139
      %v1141 = vpop.f32.mrf.mxu0
      %v1142 = vadd.f32 0.0, %v1141
      %1143 = vmatprep.mubr.bf16.mxu0 0
      %1144 = vmatmul.mubr.bf16.gmra.mxu0 %v672
      %v1145 = vpop.f32.mrf.mxu0
      %v1146 = vadd.f32 0.0, %v1145
      %v1147 = vpop.f32.mrf.mxu0
      %v1148 = vadd.f32 0.0, %v1147
      %v1149 = vpop.f32.mrf.mxu0
      %v1150 = vadd.f32 0.0, %v1149
      %v1151 = vpop.f32.mrf.mxu0
      %v1152 = vadd.f32 0.0, %v1151
      %1153 = vmatprep.mubr.bf16.mxu0 0
      %1154 = vmatmul.mubr.bf16.gmra.mxu0 %v673
      %v1155 = vpop.f32.mrf.mxu0
      %v1156 = vadd.f32 0.0, %v1155
      %v1157 = vpop.f32.mrf.mxu0
      %v1158 = vadd.f32 0.0, %v1157
      %v1159 = vpop.f32.mrf.mxu0
      %v1160 = vadd.f32 0.0, %v1159
      %v1161 = vpop.f32.mrf.mxu0
      %v1162 = vadd.f32 0.0, %v1161
      %1163 = vmatprep.mubr.bf16.mxu0 0
      %1164 = vmatmul.mubr.bf16.gmra.mxu0 %v674
      %v1165 = vpop.f32.mrf.mxu0
      %v1166 = vadd.f32 0.0, %v1165
      %v1167 = vpop.f32.mrf.mxu0
      %v1168 = vadd.f32 0.0, %v1167
      %v1169 = vpop.f32.mrf.mxu0
      %v1170 = vadd.f32 0.0, %v1169
      %v1171 = vpop.f32.mrf.mxu0
      %v1172 = vadd.f32 0.0, %v1171
      %1173 = vmatprep.mubr.bf16.mxu0 0
      %1174 = vmatmul.mubr.bf16.gmra.mxu0 %v675
      %v1175 = vpop.f32.mrf.mxu0
      %v1176 = vadd.f32 0.0, %v1175
      %v1177 = vpop.f32.mrf.mxu0
      %v1178 = vadd.f32 0.0, %v1177
      %v1179 = vpop.f32.mrf.mxu0
      %v1180 = vadd.f32 0.0, %v1179
      %v1181 = vpop.f32.mrf.mxu0
      %v1182 = vadd.f32 0.0, %v1181
      %1183 = vmatprep.mubr.bf16.mxu0 0
      %1184 = vmatmul.mubr.bf16.gmra.mxu0 %v676
      %v1185 = vpop.f32.mrf.mxu0
      %v1186 = vadd.f32 0.0, %v1185
      %v1187 = vpop.f32.mrf.mxu0
      %v1188 = vadd.f32 0.0, %v1187
      %v1189 = vpop.f32.mrf.mxu0
      %v1190 = vadd.f32 0.0, %v1189
      %v1191 = vpop.f32.mrf.mxu0
      %v1192 = vadd.f32 0.0, %v1191
      %1193 = vmatprep.mubr.bf16.mxu0 0
      %1194 = vmatmul.mubr.bf16.gmra.mxu0 %v677
      %v1195 = vpop.f32.mrf.mxu0
      %v1196 = vadd.f32 0.0, %v1195
      %v1197 = vpop.f32.mrf.mxu0
      %v1198 = vadd.f32 0.0, %v1197
      %v1199 = vpop.f32.mrf.mxu0
      %v1200 = vadd.f32 0.0, %v1199
      %v1201 = vpop.f32.mrf.mxu0
      %v1202 = vadd.f32 0.0, %v1201
      %1203 = vmatprep.mubr.bf16.mxu0 0
      %1204 = vmatmul.mubr.bf16.gmra.mxu0 %v678
      %v1205 = vpop.f32.mrf.mxu0
      %v1206 = vadd.f32 0.0, %v1205
      %v1207 = vpop.f32.mrf.mxu0
      %v1208 = vadd.f32 0.0, %v1207
      %v1209 = vpop.f32.mrf.mxu0
      %v1210 = vadd.f32 0.0, %v1209
      %v1211 = vpop.f32.mrf.mxu0
      %v1212 = vadd.f32 0.0, %v1211
      %1213 = vmatprep.mubr.bf16.mxu0 0
      %1214 = vmatmul.mubr.bf16.gmra.mxu0 %v679
      %v1215 = vpop.f32.mrf.mxu0
      %v1216 = vadd.f32 0.0, %v1215
      %v1217 = vpop.f32.mrf.mxu0
      %v1218 = vadd.f32 0.0, %v1217
      %v1219 = vpop.f32.mrf.mxu0
      %v1220 = vadd.f32 0.0, %v1219
      %v1221 = vpop.f32.mrf.mxu0
      %v1222 = vadd.f32 0.0, %v1221
      %1223 = vmatprep.mubr.bf16.mxu0 0
      %1224 = vmatmul.mubr.bf16.gmra.mxu0 %v680
      %v1225 = vpop.f32.mrf.mxu0
      %v1226 = vadd.f32 0.0, %v1225
      %v1227 = vpop.f32.mrf.mxu0
      %v1228 = vadd.f32 0.0, %v1227
      %v1229 = vpop.f32.mrf.mxu0
      %v1230 = vadd.f32 0.0, %v1229
      %v1231 = vpop.f32.mrf.mxu0
      %v1232 = vadd.f32 0.0, %v1231
      %1233 = vmatprep.mubr.bf16.mxu0 0
      %1234 = vmatmul.mubr.bf16.gmra.mxu0 %v681
      %v1235 = vpop.f32.mrf.mxu0
      %v1236 = vadd.f32 0.0, %v1235
      %v1237 = vpop.f32.mrf.mxu0
      %v1238 = vadd.f32 0.0, %v1237
      %v1239 = vpop.f32.mrf.mxu0
      %v1240 = vadd.f32 0.0, %v1239
      %v1241 = vpop.f32.mrf.mxu0
      %v1242 = vadd.f32 0.0, %v1241
      %1243 = vdwg.mxu0
      %v1244 = vadd.f32 %v410, %v893
      %v1245 = vadd.f32 %v411, %v895
      %v1246 = vadd.f32 %v412, %v1086
      %v1247 = vadd.f32 %v413, %v1088
      %v1248 = vadd.f32 %v414, %v897
      %v1249 = vadd.f32 %v415, %v899
      %v1250 = vadd.f32 %v416, %v1090
      %v1251 = vadd.f32 %v417, %v1092
      %v1252 = vadd.f32 %v418, %v903
      %v1253 = vadd.f32 %v419, %v905
      %v1254 = vadd.f32 %v420, %v1096
      %v1255 = vadd.f32 %v421, %v1098
      %v1256 = vadd.f32 %v422, %v907
      %v1257 = vadd.f32 %v423, %v909
      %v1258 = vadd.f32 %v424, %v1100
      %v1259 = vadd.f32 %v425, %v1102
      %v1260 = vadd.f32 %v426, %v913
      %v1261 = vadd.f32 %v427, %v915
      %v1262 = vadd.f32 %v428, %v1106
      %v1263 = vadd.f32 %v429, %v1108
      %v1264 = vadd.f32 %v430, %v917
      %v1265 = vadd.f32 %v431, %v919
      %v1266 = vadd.f32 %v432, %v1110
      %v1267 = vadd.f32 %v433, %v1112
      %v1268 = vadd.f32 %v434, %v923
      %v1269 = vadd.f32 %v435, %v925
      %v1270 = vadd.f32 %v436, %v1116
      %v1271 = vadd.f32 %v437, %v1118
      %v1272 = vadd.f32 %v438, %v927
      %v1273 = vadd.f32 %v439, %v929
      %v1274 = vadd.f32 %v440, %v1120
      %v1275 = vadd.f32 %v441, %v1122
      %v1276 = vadd.f32 %v442, %v933
      %v1277 = vadd.f32 %v443, %v935
      %v1278 = vadd.f32 %v444, %v1126
      %v1279 = vadd.f32 %v445, %v1128
      %v1280 = vadd.f32 %v446, %v937
      %v1281 = vadd.f32 %v447, %v939
      %v1282 = vadd.f32 %v448, %v1130
      %v1283 = vadd.f32 %v449, %v1132
      %v1284 = vadd.f32 %v450, %v943
      %v1285 = vadd.f32 %v451, %v945
      %v1286 = vadd.f32 %v452, %v1136
      %v1287 = vadd.f32 %v453, %v1138
      %v1288 = vadd.f32 %v454, %v947
      %v1289 = vadd.f32 %v455, %v949
      %v1290 = vadd.f32 %v456, %v1140
      %v1291 = vadd.f32 %v457, %v1142
      %v1292 = vadd.f32 %v458, %v953
      %v1293 = vadd.f32 %v459, %v955
      %v1294 = vadd.f32 %v460, %v1146
      %v1295 = vadd.f32 %v461, %v1148
      %v1296 = vadd.f32 %v462, %v957
      %v1297 = vadd.f32 %v463, %v959
      %v1298 = vadd.f32 %v464, %v1150
      %v1299 = vadd.f32 %v465, %v1152
      %v1300 = vadd.f32 %v466, %v963
      %v1301 = vadd.f32 %v467, %v965
      %v1302 = vadd.f32 %v468, %v1156
      %v1303 = vadd.f32 %v469, %v1158
      %v1304 = vadd.f32 %v470, %v967
      %v1305 = vadd.f32 %v471, %v969
      %v1306 = vadd.f32 %v472, %v1160
      %v1307 = vadd.f32 %v473, %v1162
      %v1308 = vadd.f32 %v474, %v973
      %v1309 = vadd.f32 %v475, %v975
      %v1310 = vadd.f32 %v476, %v1166
      %v1311 = vadd.f32 %v477, %v1168
      %v1312 = vadd.f32 %v478, %v977
      %v1313 = vadd.f32 %v479, %v979
      %v1314 = vadd.f32 %v480, %v1170
      %v1315 = vadd.f32 %v481, %v1172
      %v1316 = vadd.f32 %v482, %v983
      %v1317 = vadd.f32 %v483, %v985
      %v1318 = vadd.f32 %v484, %v1176
      %v1319 = vadd.f32 %v485, %v1178
      %v1320 = vadd.f32 %v486, %v987
      %v1321 = vadd.f32 %v487, %v989
      %v1322 = vadd.f32 %v488, %v1180
      %v1323 = vadd.f32 %v489, %v1182
      %v1324 = vadd.f32 %v490, %v993
      %v1325 = vadd.f32 %v491, %v995
      %v1326 = vadd.f32 %v492, %v1186
      %v1327 = vadd.f32 %v493, %v1188
      %v1328 = vadd.f32 %v494, %v997
      %v1329 = vadd.f32 %v495, %v999
      %v1330 = vadd.f32 %v496, %v1190
      %v1331 = vadd.f32 %v497, %v1192
      %v1332 = vadd.f32 %v498, %v1003
      %v1333 = vadd.f32 %v499, %v1005
      %v1334 = vadd.f32 %v500, %v1196
      %v1335 = vadd.f32 %v501, %v1198
      %v1336 = vadd.f32 %v502, %v1007
      %v1337 = vadd.f32 %v503, %v1009
      %v1338 = vadd.f32 %v504, %v1200
      %v1339 = vadd.f32 %v505, %v1202
      %v1340 = vadd.f32 %v506, %v1013
      %v1341 = vadd.f32 %v507, %v1015
      %v1342 = vadd.f32 %v508, %v1206
      %v1343 = vadd.f32 %v509, %v1208
      %v1344 = vadd.f32 %v510, %v1017
      %v1345 = vadd.f32 %v511, %v1019
      %v1346 = vadd.f32 %v512, %v1210
      %v1347 = vadd.f32 %v513, %v1212
      %v1348 = vadd.f32 %v514, %v1023
      %v1349 = vadd.f32 %v515, %v1025
      %v1350 = vadd.f32 %v516, %v1216
      %v1351 = vadd.f32 %v517, %v1218
      %v1352 = vadd.f32 %v518, %v1027
      %v1353 = vadd.f32 %v519, %v1029
      %v1354 = vadd.f32 %v520, %v1220
      %v1355 = vadd.f32 %v521, %v1222
      %v1356 = vadd.f32 %v522, %v1033
      %v1357 = vadd.f32 %v523, %v1035
      %v1358 = vadd.f32 %v524, %v1226
      %v1359 = vadd.f32 %v525, %v1228
      %v1360 = vadd.f32 %v526, %v1037
      %v1361 = vadd.f32 %v527, %v1039
      %v1362 = vadd.f32 %v528, %v1230
      %v1363 = vadd.f32 %v529, %v1232
      %v1364 = vadd.f32 %v530, %v1043
      %v1365 = vadd.f32 %v531, %v1045
      %v1366 = vadd.f32 %v532, %v1236
      %v1367 = vadd.f32 %v533, %v1238
      %v1368 = vadd.f32 %v534, %v1047
      %v1369 = vadd.f32 %v535, %v1049
      %v1370 = vadd.f32 %v536, %v1240
      %v1371 = vadd.f32 %v537, %v1242
      %1372 = vst [vmem:[#allocation2] sm:$0xff] %v1244
      %1373 = vst [vmem:[#allocation2 + $0x8] sm:$0xff] %v1245
      %1374 = vst [vmem:[#allocation2 + $0x10] sm:$0xff] %v1246
      %1375 = vst [vmem:[#allocation2 + $0x18] sm:$0xff] %v1247
      %1376 = vst [vmem:[#allocation2 + $0x20] sm:$0xff] %v1248
      %1377 = vst [vmem:[#allocation2 + $0x28] sm:$0xff] %v1249
      %1378 = vst [vmem:[#allocation2 + $0x30] sm:$0xff] %v1250
      %1379 = vst [vmem:[#allocation2 + $0x38] sm:$0xff] %v1251
      %1380 = vst [vmem:[#allocation2 + $0x40] sm:$0xff] %v1252
      %1381 = vst [vmem:[#allocation2 + $0x48] sm:$0xff] %v1253
      %1382 = vst [vmem:[#allocation2 + $0x50] sm:$0xff] %v1254
      %1383 = vst [vmem:[#allocation2 + $0x58] sm:$0xff] %v1255
      %1384 = vst [vmem:[#allocation2 + $0x60] sm:$0xff] %v1256
      %1385 = vst [vmem:[#allocation2 + $0x68] sm:$0xff] %v1257
      %1386 = vst [vmem:[#allocation2 + $0x70] sm:$0xff] %v1258
      %1387 = vst [vmem:[#allocation2 + $0x78] sm:$0xff] %v1259
      %1388 = vst [vmem:[#allocation2 + $0x80] sm:$0xff] %v1260
      %1389 = vst [vmem:[#allocation2 + $0x88] sm:$0xff] %v1261
      %1390 = vst [vmem:[#allocation2 + $0x90] sm:$0xff] %v1262
      %1391 = vst [vmem:[#allocation2 + $0x98] sm:$0xff] %v1263
      %1392 = vst [vmem:[#allocation2 + $0xa0] sm:$0xff] %v1264
      %1393 = vst [vmem:[#allocation2 + $0xa8] sm:$0xff] %v1265
      %1394 = vst [vmem:[#allocation2 + $0xb0] sm:$0xff] %v1266
      %1395 = vst [vmem:[#allocation2 + $0xb8] sm:$0xff] %v1267
      %1396 = vst [vmem:[#allocation2 + $0xc0] sm:$0xff] %v1268
      %1397 = vst [vmem:[#allocation2 + $0xc8] sm:$0xff] %v1269
      %1398 = vst [vmem:[#allocation2 + $0xd0] sm:$0xff] %v1270
      %1399 = vst [vmem:[#allocation2 + $0xd8] sm:$0xff] %v1271
      %1400 = vst [vmem:[#allocation2 + $0xe0] sm:$0xff] %v1272
      %1401 = vst [vmem:[#allocation2 + $0xe8] sm:$0xff] %v1273
      %1402 = vst [vmem:[#allocation2 + $0xf0] sm:$0xff] %v1274
      %1403 = vst [vmem:[#allocation2 + $0xf8] sm:$0xff] %v1275
      %1404 = vst [vmem:[#allocation2 + $0x100] sm:$0xff] %v1276
      %1405 = vst [vmem:[#allocation2 + $0x108] sm:$0xff] %v1277
      %1406 = vst [vmem:[#allocation2 + $0x110] sm:$0xff] %v1278
      %1407 = vst [vmem:[#allocation2 + $0x118] sm:$0xff] %v1279
      %1408 = vst [vmem:[#allocation2 + $0x120] sm:$0xff] %v1280
      %1409 = vst [vmem:[#allocation2 + $0x128] sm:$0xff] %v1281
      %1410 = vst [vmem:[#allocation2 + $0x130] sm:$0xff] %v1282
      %1411 = vst [vmem:[#allocation2 + $0x138] sm:$0xff] %v1283
      %1412 = vst [vmem:[#allocation2 + $0x140] sm:$0xff] %v1284
      %1413 = vst [vmem:[#allocation2 + $0x148] sm:$0xff] %v1285
      %1414 = vst [vmem:[#allocation2 + $0x150] sm:$0xff] %v1286
      %1415 = vst [vmem:[#allocation2 + $0x158] sm:$0xff] %v1287
      %1416 = vst [vmem:[#allocation2 + $0x160] sm:$0xff] %v1288
      %1417 = vst [vmem:[#allocation2 + $0x168] sm:$0xff] %v1289
      %1418 = vst [vmem:[#allocation2 + $0x170] sm:$0xff] %v1290
      %1419 = vst [vmem:[#allocation2 + $0x178] sm:$0xff] %v1291
      %1420 = vst [vmem:[#allocation2 + $0x180] sm:$0xff] %v1292
      %1421 = vst [vmem:[#allocation2 + $0x188] sm:$0xff] %v1293
      %1422 = vst [vmem:[#allocation2 + $0x190] sm:$0xff] %v1294
      %1423 = vst [vmem:[#allocation2 + $0x198] sm:$0xff] %v1295
      %1424 = vst [vmem:[#allocation2 + $0x1a0] sm:$0xff] %v1296
      %1425 = vst [vmem:[#allocation2 + $0x1a8] sm:$0xff] %v1297
      %1426 = vst [vmem:[#allocation2 + $0x1b0] sm:$0xff] %v1298
      %1427 = vst [vmem:[#allocation2 + $0x1b8] sm:$0xff] %v1299
      %1428 = vst [vmem:[#allocation2 + $0x1c0] sm:$0xff] %v1300
      %1429 = vst [vmem:[#allocation2 + $0x1c8] sm:$0xff] %v1301
      %1430 = vst [vmem:[#allocation2 + $0x1d0] sm:$0xff] %v1302
      %1431 = vst [vmem:[#allocation2 + $0x1d8] sm:$0xff] %v1303
      %1432 = vst [vmem:[#allocation2 + $0x1e0] sm:$0xff] %v1304
      %1433 = vst [vmem:[#allocation2 + $0x1e8] sm:$0xff] %v1305
      %1434 = vst [vmem:[#allocation2 + $0x1f0] sm:$0xff] %v1306
      %1435 = vst [vmem:[#allocation2 + $0x1f8] sm:$0xff] %v1307
      %1436 = vst [vmem:[#allocation2 + $0x200] sm:$0xff] %v1308
      %1437 = vst [vmem:[#allocation2 + $0x208] sm:$0xff] %v1309
      %1438 = vst [vmem:[#allocation2 + $0x210] sm:$0xff] %v1310
      %1439 = vst [vmem:[#allocation2 + $0x218] sm:$0xff] %v1311
      %1440 = vst [vmem:[#allocation2 + $0x220] sm:$0xff] %v1312
      %1441 = vst [vmem:[#allocation2 + $0x228] sm:$0xff] %v1313
      %1442 = vst [vmem:[#allocation2 + $0x230] sm:$0xff] %v1314
      %1443 = vst [vmem:[#allocation2 + $0x238] sm:$0xff] %v1315
      %1444 = vst [vmem:[#allocation2 + $0x240] sm:$0xff] %v1316
      %1445 = vst [vmem:[#allocation2 + $0x248] sm:$0xff] %v1317
      %1446 = vst [vmem:[#allocation2 + $0x250] sm:$0xff] %v1318
      %1447 = vst [vmem:[#allocation2 + $0x258] sm:$0xff] %v1319
      %1448 = vst [vmem:[#allocation2 + $0x260] sm:$0xff] %v1320
      %1449 = vst [vmem:[#allocation2 + $0x268] sm:$0xff] %v1321
      %1450 = vst [vmem:[#allocation2 + $0x270] sm:$0xff] %v1322
      %1451 = vst [vmem:[#allocation2 + $0x278] sm:$0xff] %v1323
      %1452 = vst [vmem:[#allocation2 + $0x280] sm:$0xff] %v1324
      %1453 = vst [vmem:[#allocation2 + $0x288] sm:$0xff] %v1325
      %1454 = vst [vmem:[#allocation2 + $0x290] sm:$0xff] %v1326
      %1455 = vst [vmem:[#allocation2 + $0x298] sm:$0xff] %v1327
      %1456 = vst [vmem:[#allocation2 + $0x2a0] sm:$0xff] %v1328
      %1457 = vst [vmem:[#allocation2 + $0x2a8] sm:$0xff] %v1329
      %1458 = vst [vmem:[#allocation2 + $0x2b0] sm:$0xff] %v1330
      %1459 = vst [vmem:[#allocation2 + $0x2b8] sm:$0xff] %v1331
      %1460 = vst [vmem:[#allocation2 + $0x2c0] sm:$0xff] %v1332
      %1461 = vst [vmem:[#allocation2 + $0x2c8] sm:$0xff] %v1333
      %1462 = vst [vmem:[#allocation2 + $0x2d0] sm:$0xff] %v1334
      %1463 = vst [vmem:[#allocation2 + $0x2d8] sm:$0xff] %v1335
      %1464 = vst [vmem:[#allocation2 + $0x2e0] sm:$0xff] %v1336
      %1465 = vst [vmem:[#allocation2 + $0x2e8] sm:$0xff] %v1337
      %1466 = vst [vmem:[#allocation2 + $0x2f0] sm:$0xff] %v1338
      %1467 = vst [vmem:[#allocation2 + $0x2f8] sm:$0xff] %v1339
      %1468 = vst [vmem:[#allocation2 + $0x300] sm:$0xff] %v1340
      %1469 = vst [vmem:[#allocation2 + $0x308] sm:$0xff] %v1341
      %1470 = vst [vmem:[#allocation2 + $0x310] sm:$0xff] %v1342
      %1471 = vst [vmem:[#allocation2 + $0x318] sm:$0xff] %v1343
      %1472 = vst [vmem:[#allocation2 + $0x320] sm:$0xff] %v1344
      %1473 = vst [vmem:[#allocation2 + $0x328] sm:$0xff] %v1345
      %1474 = vst [vmem:[#allocation2 + $0x330] sm:$0xff] %v1346
      %1475 = vst [vmem:[#allocation2 + $0x338] sm:$0xff] %v1347
      %1476 = vst [vmem:[#allocation2 + $0x340] sm:$0xff] %v1348
      %1477 = vst [vmem:[#allocation2 + $0x348] sm:$0xff] %v1349
      %1478 = vst [vmem:[#allocation2 + $0x350] sm:$0xff] %v1350
      %1479 = vst [vmem:[#allocation2 + $0x358] sm:$0xff] %v1351
      %1480 = vst [vmem:[#allocation2 + $0x360] sm:$0xff] %v1352
      %1481 = vst [vmem:[#allocation2 + $0x368] sm:$0xff] %v1353
      %1482 = vst [vmem:[#allocation2 + $0x370] sm:$0xff] %v1354
      %1483 = vst [vmem:[#allocation2 + $0x378] sm:$0xff] %v1355
      %1484 = vst [vmem:[#allocation2 + $0x380] sm:$0xff] %v1356
      %1485 = vst [vmem:[#allocation2 + $0x388] sm:$0xff] %v1357
      %1486 = vst [vmem:[#allocation2 + $0x390] sm:$0xff] %v1358
      %1487 = vst [vmem:[#allocation2 + $0x398] sm:$0xff] %v1359
      %1488 = vst [vmem:[#allocation2 + $0x3a0] sm:$0xff] %v1360
      %1489 = vst [vmem:[#allocation2 + $0x3a8] sm:$0xff] %v1361
      %1490 = vst [vmem:[#allocation2 + $0x3b0] sm:$0xff] %v1362
      %1491 = vst [vmem:[#allocation2 + $0x3b8] sm:$0xff] %v1363
      %1492 = vst [vmem:[#allocation2 + $0x3c0] sm:$0xff] %v1364
      %1493 = vst [vmem:[#allocation2 + $0x3c8] sm:$0xff] %v1365
      %1494 = vst [vmem:[#allocation2 + $0x3d0] sm:$0xff] %v1366
      %1495 = vst [vmem:[#allocation2 + $0x3d8] sm:$0xff] %v1367
      %1496 = vst [vmem:[#allocation2 + $0x3e0] sm:$0xff] %v1368
      %1497 = vst [vmem:[#allocation2 + $0x3e8] sm:$0xff] %v1369
      %1498 = vst [vmem:[#allocation2 + $0x3f0] sm:$0xff] %v1370
      %1499 = vst [vmem:[#allocation2 + $0x3f8] sm:$0xff] %v1371
      // Predicated region
      $region37: #{decoder_forward.6} parent=31 // pred_check
        %p1500 = pneg %p278
      $region38: #{decoder_forward.6} parent=31 // pred_check_branch
        %1502 = sbr.rel (%p1500) target = $region40
      $region39: #{decoder_forward.6} parent=31 // pred_region
        %v1503 = vld [vmem:[#allocation2] sm:$0xff]
        %v1504 = vld [vmem:[#allocation2 + $0x8] sm:$0xff]
        %v1505 = vld [vmem:[#allocation2 + $0x10] sm:$0xff]
        %v1506 = vld [vmem:[#allocation2 + $0x18] sm:$0xff]
        %v1507 = vld [vmem:[#allocation2 + $0x20] sm:$0xff]
        %v1508 = vld [vmem:[#allocation2 + $0x28] sm:$0xff]
        %v1509 = vld [vmem:[#allocation2 + $0x30] sm:$0xff]
        %v1510 = vld [vmem:[#allocation2 + $0x38] sm:$0xff]
        %v1511 = vld [vmem:[#allocation2 + $0x40] sm:$0xff]
        %v1512 = vld [vmem:[#allocation2 + $0x48] sm:$0xff]
        %v1513 = vld [vmem:[#allocation2 + $0x50] sm:$0xff]
        %v1514 = vld [vmem:[#allocation2 + $0x58] sm:$0xff]
        %v1515 = vld [vmem:[#allocation2 + $0x60] sm:$0xff]
        %v1516 = vld [vmem:[#allocation2 + $0x68] sm:$0xff]
        %v1517 = vld [vmem:[#allocation2 + $0x70] sm:$0xff]
        %v1518 = vld [vmem:[#allocation2 + $0x78] sm:$0xff]
        %v1519 = vld [vmem:[#allocation2 + $0x80] sm:$0xff]
        %v1520 = vld [vmem:[#allocation2 + $0x88] sm:$0xff]
        %v1521 = vld [vmem:[#allocation2 + $0x90] sm:$0xff]
        %v1522 = vld [vmem:[#allocation2 + $0x98] sm:$0xff]
        %v1523 = vld [vmem:[#allocation2 + $0xa0] sm:$0xff]
        %v1524 = vld [vmem:[#allocation2 + $0xa8] sm:$0xff]
        %v1525 = vld [vmem:[#allocation2 + $0xb0] sm:$0xff]
        %v1526 = vld [vmem:[#allocation2 + $0xb8] sm:$0xff]
        %v1527 = vld [vmem:[#allocation2 + $0xc0] sm:$0xff]
        %v1528 = vld [vmem:[#allocation2 + $0xc8] sm:$0xff]
        %v1529 = vld [vmem:[#allocation2 + $0xd0] sm:$0xff]
        %v1530 = vld [vmem:[#allocation2 + $0xd8] sm:$0xff]
        %v1531 = vld [vmem:[#allocation2 + $0xe0] sm:$0xff]
        %v1532 = vld [vmem:[#allocation2 + $0xe8] sm:$0xff]
        %v1533 = vld [vmem:[#allocation2 + $0xf0] sm:$0xff]
        %v1534 = vld [vmem:[#allocation2 + $0xf8] sm:$0xff]
        %v1535 = vld [vmem:[#allocation2 + $0x100] sm:$0xff]
        %v1536 = vld [vmem:[#allocation2 + $0x108] sm:$0xff]
        %v1537 = vld [vmem:[#allocation2 + $0x110] sm:$0xff]
        %v1538 = vld [vmem:[#allocation2 + $0x118] sm:$0xff]
        %v1539 = vld [vmem:[#allocation2 + $0x120] sm:$0xff]
        %v1540 = vld [vmem:[#allocation2 + $0x128] sm:$0xff]
        %v1541 = vld [vmem:[#allocation2 + $0x130] sm:$0xff]
        %v1542 = vld [vmem:[#allocation2 + $0x138] sm:$0xff]
        %v1543 = vld [vmem:[#allocation2 + $0x140] sm:$0xff]
        %v1544 = vld [vmem:[#allocation2 + $0x148] sm:$0xff]
        %v1545 = vld [vmem:[#allocation2 + $0x150] sm:$0xff]
        %v1546 = vld [vmem:[#allocation2 + $0x158] sm:$0xff]
        %v1547 = vld [vmem:[#allocation2 + $0x160] sm:$0xff]
        %v1548 = vld [vmem:[#allocation2 + $0x168] sm:$0xff]
        %v1549 = vld [vmem:[#allocation2 + $0x170] sm:$0xff]
        %v1550 = vld [vmem:[#allocation2 + $0x178] sm:$0xff]
        %v1551 = vld [vmem:[#allocation2 + $0x180] sm:$0xff]
        %v1552 = vld [vmem:[#allocation2 + $0x188] sm:$0xff]
        %v1553 = vld [vmem:[#allocation2 + $0x190] sm:$0xff]
        %v1554 = vld [vmem:[#allocation2 + $0x198] sm:$0xff]
        %v1555 = vld [vmem:[#allocation2 + $0x1a0] sm:$0xff]
        %v1556 = vld [vmem:[#allocation2 + $0x1a8] sm:$0xff]
        %v1557 = vld [vmem:[#allocation2 + $0x1b0] sm:$0xff]
        %v1558 = vld [vmem:[#allocation2 + $0x1b8] sm:$0xff]
        %v1559 = vld [vmem:[#allocation2 + $0x1c0] sm:$0xff]
        %v1560 = vld [vmem:[#allocation2 + $0x1c8] sm:$0xff]
        %v1561 = vld [vmem:[#allocation2 + $0x1d0] sm:$0xff]
        %v1562 = vld [vmem:[#allocation2 + $0x1d8] sm:$0xff]
        %v1563 = vld [vmem:[#allocation2 + $0x1e0] sm:$0xff]
        %v1564 = vld [vmem:[#allocation2 + $0x1e8] sm:$0xff]
        %v1565 = vld [vmem:[#allocation2 + $0x1f0] sm:$0xff]
        %v1566 = vld [vmem:[#allocation2 + $0x1f8] sm:$0xff]
        %v1567 = vld [vmem:[#allocation2 + $0x200] sm:$0xff]
        %v1568 = vld [vmem:[#allocation2 + $0x208] sm:$0xff]
        %v1569 = vld [vmem:[#allocation2 + $0x210] sm:$0xff]
        %v1570 = vld [vmem:[#allocation2 + $0x218] sm:$0xff]
        %v1571 = vld [vmem:[#allocation2 + $0x220] sm:$0xff]
        %v1572 = vld [vmem:[#allocation2 + $0x228] sm:$0xff]
        %v1573 = vld [vmem:[#allocation2 + $0x230] sm:$0xff]
        %v1574 = vld [vmem:[#allocation2 + $0x238] sm:$0xff]
        %v1575 = vld [vmem:[#allocation2 + $0x240] sm:$0xff]
        %v1576 = vld [vmem:[#allocation2 + $0x248] sm:$0xff]
        %v1577 = vld [vmem:[#allocation2 + $0x250] sm:$0xff]
        %v1578 = vld [vmem:[#allocation2 + $0x258] sm:$0xff]
        %v1579 = vld [vmem:[#allocation2 + $0x260] sm:$0xff]
        %v1580 = vld [vmem:[#allocation2 + $0x268] sm:$0xff]
        %v1581 = vld [vmem:[#allocation2 + $0x270] sm:$0xff]
        %v1582 = vld [vmem:[#allocation2 + $0x278] sm:$0xff]
        %v1583 = vld [vmem:[#allocation2 + $0x280] sm:$0xff]
        %v1584 = vld [vmem:[#allocation2 + $0x288] sm:$0xff]
        %v1585 = vld [vmem:[#allocation2 + $0x290] sm:$0xff]
        %v1586 = vld [vmem:[#allocation2 + $0x298] sm:$0xff]
        %v1587 = vld [vmem:[#allocation2 + $0x2a0] sm:$0xff]
        %v1588 = vld [vmem:[#allocation2 + $0x2a8] sm:$0xff]
        %v1589 = vld [vmem:[#allocation2 + $0x2b0] sm:$0xff]
        %v1590 = vld [vmem:[#allocation2 + $0x2b8] sm:$0xff]
        %v1591 = vld [vmem:[#allocation2 + $0x2c0] sm:$0xff]
        %v1592 = vld [vmem:[#allocation2 + $0x2c8] sm:$0xff]
        %v1593 = vld [vmem:[#allocation2 + $0x2d0] sm:$0xff]
        %v1594 = vld [vmem:[#allocation2 + $0x2d8] sm:$0xff]
        %v1595 = vld [vmem:[#allocation2 + $0x2e0] sm:$0xff]
        %v1596 = vld [vmem:[#allocation2 + $0x2e8] sm:$0xff]
        %v1597 = vld [vmem:[#allocation2 + $0x2f0] sm:$0xff]
        %v1598 = vld [vmem:[#allocation2 + $0x2f8] sm:$0xff]
        %v1599 = vld [vmem:[#allocation2 + $0x300] sm:$0xff]
        %v1600 = vld [vmem:[#allocation2 + $0x308] sm:$0xff]
        %v1601 = vld [vmem:[#allocation2 + $0x310] sm:$0xff]
        %v1602 = vld [vmem:[#allocation2 + $0x318] sm:$0xff]
        %v1603 = vld [vmem:[#allocation2 + $0x320] sm:$0xff]
        %v1604 = vld [vmem:[#allocation2 + $0x328] sm:$0xff]
        %v1605 = vld [vmem:[#allocation2 + $0x330] sm:$0xff]
        %v1606 = vld [vmem:[#allocation2 + $0x338] sm:$0xff]
        %v1607 = vld [vmem:[#allocation2 + $0x340] sm:$0xff]
        %v1608 = vld [vmem:[#allocation2 + $0x348] sm:$0xff]
        %v1609 = vld [vmem:[#allocation2 + $0x350] sm:$0xff]
        %v1610 = vld [vmem:[#allocation2 + $0x358] sm:$0xff]
        %v1611 = vld [vmem:[#allocation2 + $0x360] sm:$0xff]
        %v1612 = vld [vmem:[#allocation2 + $0x368] sm:$0xff]
        %v1613 = vld [vmem:[#allocation2 + $0x370] sm:$0xff]
        %v1614 = vld [vmem:[#allocation2 + $0x378] sm:$0xff]
        %v1615 = vld [vmem:[#allocation2 + $0x380] sm:$0xff]
        %v1616 = vld [vmem:[#allocation2 + $0x388] sm:$0xff]
        %v1617 = vld [vmem:[#allocation2 + $0x390] sm:$0xff]
        %v1618 = vld [vmem:[#allocation2 + $0x398] sm:$0xff]
        %v1619 = vld [vmem:[#allocation2 + $0x3a0] sm:$0xff]
        %v1620 = vld [vmem:[#allocation2 + $0x3a8] sm:$0xff]
        %v1621 = vld [vmem:[#allocation2 + $0x3b0] sm:$0xff]
        %v1622 = vld [vmem:[#allocation2 + $0x3b8] sm:$0xff]
        %v1623 = vld [vmem:[#allocation2 + $0x3c0] sm:$0xff]
        %v1624 = vld [vmem:[#allocation2 + $0x3c8] sm:$0xff]
        %v1625 = vld [vmem:[#allocation2 + $0x3d0] sm:$0xff]
        %v1626 = vld [vmem:[#allocation2 + $0x3d8] sm:$0xff]
        %v1627 = vld [vmem:[#allocation2 + $0x3e0] sm:$0xff]
        %v1628 = vld [vmem:[#allocation2 + $0x3e8] sm:$0xff]
        %v1629 = vld [vmem:[#allocation2 + $0x3f0] sm:$0xff]
        %v1630 = vld [vmem:[#allocation2 + $0x3f8] sm:$0xff]
        %v1631 = vld [vmem:[%s263] sm:$0xf]
        %v1633 = vlaneseq
        %v1634 = vshrl.u32 %v1633, 7
        %v1635 = vsub.s32 0, %v1634
        %v1636 = vrot.slane %v1631, %v1635
        %v1637 = vlaneseq
        %v1638 = vshrl.u32 %v1637, 7
        %v1639 = vsub.s32 1, %v1638
        %v1640 = vrot.slane %v1631, %v1639
        %v1641 = vlaneseq
        %v1642 = vshrl.u32 %v1641, 7
        %v1643 = vsub.s32 2, %v1642
        %v1644 = vrot.slane %v1631, %v1643
        %v1645 = vlaneseq
        %v1646 = vshrl.u32 %v1645, 7
        %v1647 = vsub.s32 3, %v1646
        %v1648 = vrot.slane %v1631, %v1647
        %v1653 = vadd.f32 %v1503, %v1636
        %v1654 = vadd.f32 %v1504, %v1640
        %v1655 = vadd.f32 %v1505, %v1644
        %v1656 = vadd.f32 %v1506, %v1648
        %v1657 = vadd.f32 %v1507, %v1636
        %v1658 = vadd.f32 %v1508, %v1640
        %v1659 = vadd.f32 %v1509, %v1644
        %v1660 = vadd.f32 %v1510, %v1648
        %v1661 = vadd.f32 %v1511, %v1636
        %v1662 = vadd.f32 %v1512, %v1640
        %v1663 = vadd.f32 %v1513, %v1644
        %v1664 = vadd.f32 %v1514, %v1648
        %v1665 = vadd.f32 %v1515, %v1636
        %v1666 = vadd.f32 %v1516, %v1640
        %v1667 = vadd.f32 %v1517, %v1644
        %v1668 = vadd.f32 %v1518, %v1648
        %v1669 = vadd.f32 %v1519, %v1636
        %v1670 = vadd.f32 %v1520, %v1640
        %v1671 = vadd.f32 %v1521, %v1644
        %v1672 = vadd.f32 %v1522, %v1648
        %v1673 = vadd.f32 %v1523, %v1636
        %v1674 = vadd.f32 %v1524, %v1640
        %v1675 = vadd.f32 %v1525, %v1644
        %v1676 = vadd.f32 %v1526, %v1648
        %v1677 = vadd.f32 %v1527, %v1636
        %v1678 = vadd.f32 %v1528, %v1640
        %v1679 = vadd.f32 %v1529, %v1644
        %v1680 = vadd.f32 %v1530, %v1648
        %v1681 = vadd.f32 %v1531, %v1636
        %v1682 = vadd.f32 %v1532, %v1640
        %v1683 = vadd.f32 %v1533, %v1644
        %v1684 = vadd.f32 %v1534, %v1648
        %v1685 = vadd.f32 %v1535, %v1636
        %v1686 = vadd.f32 %v1536, %v1640
        %v1687 = vadd.f32 %v1537, %v1644
        %v1688 = vadd.f32 %v1538, %v1648
        %v1689 = vadd.f32 %v1539, %v1636
        %v1690 = vadd.f32 %v1540, %v1640
        %v1691 = vadd.f32 %v1541, %v1644
        %v1692 = vadd.f32 %v1542, %v1648
        %v1693 = vadd.f32 %v1543, %v1636
        %v1694 = vadd.f32 %v1544, %v1640
        %v1695 = vadd.f32 %v1545, %v1644
        %v1696 = vadd.f32 %v1546, %v1648
        %v1697 = vadd.f32 %v1547, %v1636
        %v1698 = vadd.f32 %v1548, %v1640
        %v1699 = vadd.f32 %v1549, %v1644
        %v1700 = vadd.f32 %v1550, %v1648
        %v1701 = vadd.f32 %v1551, %v1636
        %v1702 = vadd.f32 %v1552, %v1640
        %v1703 = vadd.f32 %v1553, %v1644
        %v1704 = vadd.f32 %v1554, %v1648
        %v1705 = vadd.f32 %v1555, %v1636
        %v1706 = vadd.f32 %v1556, %v1640
        %v1707 = vadd.f32 %v1557, %v1644
        %v1708 = vadd.f32 %v1558, %v1648
        %v1709 = vadd.f32 %v1559, %v1636
        %v1710 = vadd.f32 %v1560, %v1640
        %v1711 = vadd.f32 %v1561, %v1644
        %v1712 = vadd.f32 %v1562, %v1648
        %v1713 = vadd.f32 %v1563, %v1636
        %v1714 = vadd.f32 %v1564, %v1640
        %v1715 = vadd.f32 %v1565, %v1644
        %v1716 = vadd.f32 %v1566, %v1648
        %v1717 = vadd.f32 %v1567, %v1636
        %v1718 = vadd.f32 %v1568, %v1640
        %v1719 = vadd.f32 %v1569, %v1644
        %v1720 = vadd.f32 %v1570, %v1648
        %v1721 = vadd.f32 %v1571, %v1636
        %v1722 = vadd.f32 %v1572, %v1640
        %v1723 = vadd.f32 %v1573, %v1644
        %v1724 = vadd.f32 %v1574, %v1648
        %v1725 = vadd.f32 %v1575, %v1636
        %v1726 = vadd.f32 %v1576, %v1640
        %v1727 = vadd.f32 %v1577, %v1644
        %v1728 = vadd.f32 %v1578, %v1648
        %v1729 = vadd.f32 %v1579, %v1636
        %v1730 = vadd.f32 %v1580, %v1640
        %v1731 = vadd.f32 %v1581, %v1644
        %v1732 = vadd.f32 %v1582, %v1648
        %v1733 = vadd.f32 %v1583, %v1636
        %v1734 = vadd.f32 %v1584, %v1640
        %v1735 = vadd.f32 %v1585, %v1644
        %v1736 = vadd.f32 %v1586, %v1648
        %v1737 = vadd.f32 %v1587, %v1636
        %v1738 = vadd.f32 %v1588, %v1640
        %v1739 = vadd.f32 %v1589, %v1644
        %v1740 = vadd.f32 %v1590, %v1648
        %v1741 = vadd.f32 %v1591, %v1636
        %v1742 = vadd.f32 %v1592, %v1640
        %v1743 = vadd.f32 %v1593, %v1644
        %v1744 = vadd.f32 %v1594, %v1648
        %v1745 = vadd.f32 %v1595, %v1636
        %v1746 = vadd.f32 %v1596, %v1640
        %v1747 = vadd.f32 %v1597, %v1644
        %v1748 = vadd.f32 %v1598, %v1648
        %v1749 = vadd.f32 %v1599, %v1636
        %v1750 = vadd.f32 %v1600, %v1640
        %v1751 = vadd.f32 %v1601, %v1644
        %v1752 = vadd.f32 %v1602, %v1648
        %v1753 = vadd.f32 %v1603, %v1636
        %v1754 = vadd.f32 %v1604, %v1640
        %v1755 = vadd.f32 %v1605, %v1644
        %v1756 = vadd.f32 %v1606, %v1648
        %v1757 = vadd.f32 %v1607, %v1636
        %v1758 = vadd.f32 %v1608, %v1640
        %v1759 = vadd.f32 %v1609, %v1644
        %v1760 = vadd.f32 %v1610, %v1648
        %v1761 = vadd.f32 %v1611, %v1636
        %v1762 = vadd.f32 %v1612, %v1640
        %v1763 = vadd.f32 %v1613, %v1644
        %v1764 = vadd.f32 %v1614, %v1648
        %v1765 = vadd.f32 %v1615, %v1636
        %v1766 = vadd.f32 %v1616, %v1640
        %v1767 = vadd.f32 %v1617, %v1644
        %v1768 = vadd.f32 %v1618, %v1648
        %v1769 = vadd.f32 %v1619, %v1636
        %v1770 = vadd.f32 %v1620, %v1640
        %v1771 = vadd.f32 %v1621, %v1644
        %v1772 = vadd.f32 %v1622, %v1648
        %v1773 = vadd.f32 %v1623, %v1636
        %v1774 = vadd.f32 %v1624, %v1640
        %v1775 = vadd.f32 %v1625, %v1644
        %v1776 = vadd.f32 %v1626, %v1648
        %v1777 = vadd.f32 %v1627, %v1636
        %v1778 = vadd.f32 %v1628, %v1640
        %v1779 = vadd.f32 %v1629, %v1644
        %v1780 = vadd.f32 %v1630, %v1648
        %v1781 = vmax.f32 %v1653, 0.0
        %v1782 = vmax.f32 %v1654, 0.0
        %v1783 = vmax.f32 %v1655, 0.0
        %v1784 = vmax.f32 %v1656, 0.0
        %v1785 = vmax.f32 %v1657, 0.0
        %v1786 = vmax.f32 %v1658, 0.0
        %v1787 = vmax.f32 %v1659, 0.0
        %v1788 = vmax.f32 %v1660, 0.0
        %v1789 = vmax.f32 %v1661, 0.0
        %v1790 = vmax.f32 %v1662, 0.0
        %v1791 = vmax.f32 %v1663, 0.0
        %v1792 = vmax.f32 %v1664, 0.0
        %v1793 = vmax.f32 %v1665, 0.0
        %v1794 = vmax.f32 %v1666, 0.0
        %v1795 = vmax.f32 %v1667, 0.0
        %v1796 = vmax.f32 %v1668, 0.0
        %v1797 = vmax.f32 %v1669, 0.0
        %v1798 = vmax.f32 %v1670, 0.0
        %v1799 = vmax.f32 %v1671, 0.0
        %v1800 = vmax.f32 %v1672, 0.0
        %v1801 = vmax.f32 %v1673, 0.0
        %v1802 = vmax.f32 %v1674, 0.0
        %v1803 = vmax.f32 %v1675, 0.0
        %v1804 = vmax.f32 %v1676, 0.0
        %v1805 = vmax.f32 %v1677, 0.0
        %v1806 = vmax.f32 %v1678, 0.0
        %v1807 = vmax.f32 %v1679, 0.0
        %v1808 = vmax.f32 %v1680, 0.0
        %v1809 = vmax.f32 %v1681, 0.0
        %v1810 = vmax.f32 %v1682, 0.0
        %v1811 = vmax.f32 %v1683, 0.0
        %v1812 = vmax.f32 %v1684, 0.0
        %v1813 = vmax.f32 %v1685, 0.0
        %v1814 = vmax.f32 %v1686, 0.0
        %v1815 = vmax.f32 %v1687, 0.0
        %v1816 = vmax.f32 %v1688, 0.0
        %v1817 = vmax.f32 %v1689, 0.0
        %v1818 = vmax.f32 %v1690, 0.0
        %v1819 = vmax.f32 %v1691, 0.0
        %v1820 = vmax.f32 %v1692, 0.0
        %v1821 = vmax.f32 %v1693, 0.0
        %v1822 = vmax.f32 %v1694, 0.0
        %v1823 = vmax.f32 %v1695, 0.0
        %v1824 = vmax.f32 %v1696, 0.0
        %v1825 = vmax.f32 %v1697, 0.0
        %v1826 = vmax.f32 %v1698, 0.0
        %v1827 = vmax.f32 %v1699, 0.0
        %v1828 = vmax.f32 %v1700, 0.0
        %v1829 = vmax.f32 %v1701, 0.0
        %v1830 = vmax.f32 %v1702, 0.0
        %v1831 = vmax.f32 %v1703, 0.0
        %v1832 = vmax.f32 %v1704, 0.0
        %v1833 = vmax.f32 %v1705, 0.0
        %v1834 = vmax.f32 %v1706, 0.0
        %v1835 = vmax.f32 %v1707, 0.0
        %v1836 = vmax.f32 %v1708, 0.0
        %v1837 = vmax.f32 %v1709, 0.0
        %v1838 = vmax.f32 %v1710, 0.0
        %v1839 = vmax.f32 %v1711, 0.0
        %v1840 = vmax.f32 %v1712, 0.0
        %v1841 = vmax.f32 %v1713, 0.0
        %v1842 = vmax.f32 %v1714, 0.0
        %v1843 = vmax.f32 %v1715, 0.0
        %v1844 = vmax.f32 %v1716, 0.0
        %v1845 = vmax.f32 %v1717, 0.0
        %v1846 = vmax.f32 %v1718, 0.0
        %v1847 = vmax.f32 %v1719, 0.0
        %v1848 = vmax.f32 %v1720, 0.0
        %v1849 = vmax.f32 %v1721, 0.0
        %v1850 = vmax.f32 %v1722, 0.0
        %v1851 = vmax.f32 %v1723, 0.0
        %v1852 = vmax.f32 %v1724, 0.0
        %v1853 = vmax.f32 %v1725, 0.0
        %v1854 = vmax.f32 %v1726, 0.0
        %v1855 = vmax.f32 %v1727, 0.0
        %v1856 = vmax.f32 %v1728, 0.0
        %v1857 = vmax.f32 %v1729, 0.0
        %v1858 = vmax.f32 %v1730, 0.0
        %v1859 = vmax.f32 %v1731, 0.0
        %v1860 = vmax.f32 %v1732, 0.0
        %v1861 = vmax.f32 %v1733, 0.0
        %v1862 = vmax.f32 %v1734, 0.0
        %v1863 = vmax.f32 %v1735, 0.0
        %v1864 = vmax.f32 %v1736, 0.0
        %v1865 = vmax.f32 %v1737, 0.0
        %v1866 = vmax.f32 %v1738, 0.0
        %v1867 = vmax.f32 %v1739, 0.0
        %v1868 = vmax.f32 %v1740, 0.0
        %v1869 = vmax.f32 %v1741, 0.0
        %v1870 = vmax.f32 %v1742, 0.0
        %v1871 = vmax.f32 %v1743, 0.0
        %v1872 = vmax.f32 %v1744, 0.0
        %v1873 = vmax.f32 %v1745, 0.0
        %v1874 = vmax.f32 %v1746, 0.0
        %v1875 = vmax.f32 %v1747, 0.0
        %v1876 = vmax.f32 %v1748, 0.0
        %v1877 = vmax.f32 %v1749, 0.0
        %v1878 = vmax.f32 %v1750, 0.0
        %v1879 = vmax.f32 %v1751, 0.0
        %v1880 = vmax.f32 %v1752, 0.0
        %v1881 = vmax.f32 %v1753, 0.0
        %v1882 = vmax.f32 %v1754, 0.0
        %v1883 = vmax.f32 %v1755, 0.0
        %v1884 = vmax.f32 %v1756, 0.0
        %v1885 = vmax.f32 %v1757, 0.0
        %v1886 = vmax.f32 %v1758, 0.0
        %v1887 = vmax.f32 %v1759, 0.0
        %v1888 = vmax.f32 %v1760, 0.0
        %v1889 = vmax.f32 %v1761, 0.0
        %v1890 = vmax.f32 %v1762, 0.0
        %v1891 = vmax.f32 %v1763, 0.0
        %v1892 = vmax.f32 %v1764, 0.0
        %v1893 = vmax.f32 %v1765, 0.0
        %v1894 = vmax.f32 %v1766, 0.0
        %v1895 = vmax.f32 %v1767, 0.0
        %v1896 = vmax.f32 %v1768, 0.0
        %v1897 = vmax.f32 %v1769, 0.0
        %v1898 = vmax.f32 %v1770, 0.0
        %v1899 = vmax.f32 %v1771, 0.0
        %v1900 = vmax.f32 %v1772, 0.0
        %v1901 = vmax.f32 %v1773, 0.0
        %v1902 = vmax.f32 %v1774, 0.0
        %v1903 = vmax.f32 %v1775, 0.0
        %v1904 = vmax.f32 %v1776, 0.0
        %v1905 = vmax.f32 %v1777, 0.0
        %v1906 = vmax.f32 %v1778, 0.0
        %v1907 = vmax.f32 %v1779, 0.0
        %v1908 = vmax.f32 %v1780, 0.0
        %v1909 = vpack.c.bf16 %v1785, %v1781
        %v1910 = vpack.c.bf16 %v1786, %v1782
        %v1911 = vpack.c.bf16 %v1787, %v1783
        %v1912 = vpack.c.bf16 %v1788, %v1784
        %v1913 = vpack.c.bf16 %v1793, %v1789
        %v1914 = vpack.c.bf16 %v1794, %v1790
        %v1915 = vpack.c.bf16 %v1795, %v1791
        %v1916 = vpack.c.bf16 %v1796, %v1792
        %v1917 = vpack.c.bf16 %v1801, %v1797
        %v1918 = vpack.c.bf16 %v1802, %v1798
        %v1919 = vpack.c.bf16 %v1803, %v1799
        %v1920 = vpack.c.bf16 %v1804, %v1800
        %v1921 = vpack.c.bf16 %v1809, %v1805
        %v1922 = vpack.c.bf16 %v1810, %v1806
        %v1923 = vpack.c.bf16 %v1811, %v1807
        %v1924 = vpack.c.bf16 %v1812, %v1808
        %v1925 = vpack.c.bf16 %v1817, %v1813
        %v1926 = vpack.c.bf16 %v1818, %v1814
        %v1927 = vpack.c.bf16 %v1819, %v1815
        %v1928 = vpack.c.bf16 %v1820, %v1816
        %v1929 = vpack.c.bf16 %v1825, %v1821
        %v1930 = vpack.c.bf16 %v1826, %v1822
        %v1931 = vpack.c.bf16 %v1827, %v1823
        %v1932 = vpack.c.bf16 %v1828, %v1824
        %v1933 = vpack.c.bf16 %v1833, %v1829
        %v1934 = vpack.c.bf16 %v1834, %v1830
        %v1935 = vpack.c.bf16 %v1835, %v1831
        %v1936 = vpack.c.bf16 %v1836, %v1832
        %v1937 = vpack.c.bf16 %v1841, %v1837
        %v1938 = vpack.c.bf16 %v1842, %v1838
        %v1939 = vpack.c.bf16 %v1843, %v1839
        %v1940 = vpack.c.bf16 %v1844, %v1840
        %v1941 = vpack.c.bf16 %v1849, %v1845
        %v1942 = vpack.c.bf16 %v1850, %v1846
        %v1943 = vpack.c.bf16 %v1851, %v1847
        %v1944 = vpack.c.bf16 %v1852, %v1848
        %v1945 = vpack.c.bf16 %v1857, %v1853
        %v1946 = vpack.c.bf16 %v1858, %v1854
        %v1947 = vpack.c.bf16 %v1859, %v1855
        %v1948 = vpack.c.bf16 %v1860, %v1856
        %v1949 = vpack.c.bf16 %v1865, %v1861
        %v1950 = vpack.c.bf16 %v1866, %v1862
        %v1951 = vpack.c.bf16 %v1867, %v1863
        %v1952 = vpack.c.bf16 %v1868, %v1864
        %v1953 = vpack.c.bf16 %v1873, %v1869
        %v1954 = vpack.c.bf16 %v1874, %v1870
        %v1955 = vpack.c.bf16 %v1875, %v1871
        %v1956 = vpack.c.bf16 %v1876, %v1872
        %v1957 = vpack.c.bf16 %v1881, %v1877
        %v1958 = vpack.c.bf16 %v1882, %v1878
        %v1959 = vpack.c.bf16 %v1883, %v1879
        %v1960 = vpack.c.bf16 %v1884, %v1880
        %v1961 = vpack.c.bf16 %v1889, %v1885
        %v1962 = vpack.c.bf16 %v1890, %v1886
        %v1963 = vpack.c.bf16 %v1891, %v1887
        %v1964 = vpack.c.bf16 %v1892, %v1888
        %v1965 = vpack.c.bf16 %v1897, %v1893
        %v1966 = vpack.c.bf16 %v1898, %v1894
        %v1967 = vpack.c.bf16 %v1899, %v1895
        %v1968 = vpack.c.bf16 %v1900, %v1896
        %v1969 = vpack.c.bf16 %v1905, %v1901
        %v1970 = vpack.c.bf16 %v1906, %v1902
        %v1971 = vpack.c.bf16 %v1907, %v1903
        %v1972 = vpack.c.bf16 %v1908, %v1904
        %v2037 = vunpack.c.l.b16 %v1909
        %v2038 = vunpack.c.l.b16 %v1910
        %v2039 = vunpack.c.l.b16 %v1911
        %v2040 = vunpack.c.l.b16 %v1912
        %v2041 = vunpack.c.h.b16 %v1909
        %v2042 = vunpack.c.h.b16 %v1910
        %v2043 = vunpack.c.h.b16 %v1911
        %v2044 = vunpack.c.h.b16 %v1912
        %v2045 = vunpack.c.l.b16 %v1913
        %v2046 = vunpack.c.l.b16 %v1914
        %v2047 = vunpack.c.l.b16 %v1915
        %v2048 = vunpack.c.l.b16 %v1916
        %v2049 = vunpack.c.h.b16 %v1913
        %v2050 = vunpack.c.h.b16 %v1914
        %v2051 = vunpack.c.h.b16 %v1915
        %v2052 = vunpack.c.h.b16 %v1916
        %v2053 = vunpack.c.l.b16 %v1917
        %v2054 = vunpack.c.l.b16 %v1918
        %v2055 = vunpack.c.l.b16 %v1919
        %v2056 = vunpack.c.l.b16 %v1920
        %v2057 = vunpack.c.h.b16 %v1917
        %v2058 = vunpack.c.h.b16 %v1918
        %v2059 = vunpack.c.h.b16 %v1919
        %v2060 = vunpack.c.h.b16 %v1920
        %v2061 = vunpack.c.l.b16 %v1921
        %v2062 = vunpack.c.l.b16 %v1922
        %v2063 = vunpack.c.l.b16 %v1923
        %v2064 = vunpack.c.l.b16 %v1924
        %v2065 = vunpack.c.h.b16 %v1921
        %v2066 = vunpack.c.h.b16 %v1922
        %v2067 = vunpack.c.h.b16 %v1923
        %v2068 = vunpack.c.h.b16 %v1924
        %v2069 = vunpack.c.l.b16 %v1925
        %v2070 = vunpack.c.l.b16 %v1926
        %v2071 = vunpack.c.l.b16 %v1927
        %v2072 = vunpack.c.l.b16 %v1928
        %v2073 = vunpack.c.h.b16 %v1925
        %v2074 = vunpack.c.h.b16 %v1926
        %v2075 = vunpack.c.h.b16 %v1927
        %v2076 = vunpack.c.h.b16 %v1928
        %v2077 = vunpack.c.l.b16 %v1929
        %v2078 = vunpack.c.l.b16 %v1930
        %v2079 = vunpack.c.l.b16 %v1931
        %v2080 = vunpack.c.l.b16 %v1932
        %v2081 = vunpack.c.h.b16 %v1929
        %v2082 = vunpack.c.h.b16 %v1930
        %v2083 = vunpack.c.h.b16 %v1931
        %v2084 = vunpack.c.h.b16 %v1932
        %v2085 = vunpack.c.l.b16 %v1933
        %v2086 = vunpack.c.l.b16 %v1934
        %v2087 = vunpack.c.l.b16 %v1935
        %v2088 = vunpack.c.l.b16 %v1936
        %v2089 = vunpack.c.h.b16 %v1933
        %v2090 = vunpack.c.h.b16 %v1934
        %v2091 = vunpack.c.h.b16 %v1935
        %v2092 = vunpack.c.h.b16 %v1936
        %v2093 = vunpack.c.l.b16 %v1937
        %v2094 = vunpack.c.l.b16 %v1938
        %v2095 = vunpack.c.l.b16 %v1939
        %v2096 = vunpack.c.l.b16 %v1940
        %v2097 = vunpack.c.h.b16 %v1937
        %v2098 = vunpack.c.h.b16 %v1938
        %v2099 = vunpack.c.h.b16 %v1939
        %v2100 = vunpack.c.h.b16 %v1940
        %v2101 = vunpack.c.l.b16 %v1941
        %v2102 = vunpack.c.l.b16 %v1942
        %v2103 = vunpack.c.l.b16 %v1943
        %v2104 = vunpack.c.l.b16 %v1944
        %v2105 = vunpack.c.h.b16 %v1941
        %v2106 = vunpack.c.h.b16 %v1942
        %v2107 = vunpack.c.h.b16 %v1943
        %v2108 = vunpack.c.h.b16 %v1944
        %v2109 = vunpack.c.l.b16 %v1945
        %v2110 = vunpack.c.l.b16 %v1946
        %v2111 = vunpack.c.l.b16 %v1947
        %v2112 = vunpack.c.l.b16 %v1948
        %v2113 = vunpack.c.h.b16 %v1945
        %v2114 = vunpack.c.h.b16 %v1946
        %v2115 = vunpack.c.h.b16 %v1947
        %v2116 = vunpack.c.h.b16 %v1948
        %v2117 = vunpack.c.l.b16 %v1949
        %v2118 = vunpack.c.l.b16 %v1950
        %v2119 = vunpack.c.l.b16 %v1951
        %v2120 = vunpack.c.l.b16 %v1952
        %v2121 = vunpack.c.h.b16 %v1949
        %v2122 = vunpack.c.h.b16 %v1950
        %v2123 = vunpack.c.h.b16 %v1951
        %v2124 = vunpack.c.h.b16 %v1952
        %v2125 = vunpack.c.l.b16 %v1953
        %v2126 = vunpack.c.l.b16 %v1954
        %v2127 = vunpack.c.l.b16 %v1955
        %v2128 = vunpack.c.l.b16 %v1956
        %v2129 = vunpack.c.h.b16 %v1953
        %v2130 = vunpack.c.h.b16 %v1954
        %v2131 = vunpack.c.h.b16 %v1955
        %v2132 = vunpack.c.h.b16 %v1956
        %v2133 = vunpack.c.l.b16 %v1957
        %v2134 = vunpack.c.l.b16 %v1958
        %v2135 = vunpack.c.l.b16 %v1959
        %v2136 = vunpack.c.l.b16 %v1960
        %v2137 = vunpack.c.h.b16 %v1957
        %v2138 = vunpack.c.h.b16 %v1958
        %v2139 = vunpack.c.h.b16 %v1959
        %v2140 = vunpack.c.h.b16 %v1960
        %v2141 = vunpack.c.l.b16 %v1961
        %v2142 = vunpack.c.l.b16 %v1962
        %v2143 = vunpack.c.l.b16 %v1963
        %v2144 = vunpack.c.l.b16 %v1964
        %v2145 = vunpack.c.h.b16 %v1961
        %v2146 = vunpack.c.h.b16 %v1962
        %v2147 = vunpack.c.h.b16 %v1963
        %v2148 = vunpack.c.h.b16 %v1964
        %v2149 = vunpack.c.l.b16 %v1965
        %v2150 = vunpack.c.l.b16 %v1966
        %v2151 = vunpack.c.l.b16 %v1967
        %v2152 = vunpack.c.l.b16 %v1968
        %v2153 = vunpack.c.h.b16 %v1965
        %v2154 = vunpack.c.h.b16 %v1966
        %v2155 = vunpack.c.h.b16 %v1967
        %v2156 = vunpack.c.h.b16 %v1968
        %v2157 = vunpack.c.l.b16 %v1969
        %v2158 = vunpack.c.l.b16 %v1970
        %v2159 = vunpack.c.l.b16 %v1971
        %v2160 = vunpack.c.l.b16 %v1972
        %v2161 = vunpack.c.h.b16 %v1969
        %v2162 = vunpack.c.h.b16 %v1970
        %v2163 = vunpack.c.h.b16 %v1971
        %v2164 = vunpack.c.h.b16 %v1972
        %v2165 = vpack.c.b16 %v2038, %v2037
        %v2166 = vpack.c.b16 %v2040, %v2039
        %v2167 = vpack.c.b16 %v2042, %v2041
        %v2168 = vpack.c.b16 %v2044, %v2043
        %v2169 = vpack.c.b16 %v2046, %v2045
        %v2170 = vpack.c.b16 %v2048, %v2047
        %v2171 = vpack.c.b16 %v2050, %v2049
        %v2172 = vpack.c.b16 %v2052, %v2051
        %v2173 = vpack.c.b16 %v2054, %v2053
        %v2174 = vpack.c.b16 %v2056, %v2055
        %v2175 = vpack.c.b16 %v2058, %v2057
        %v2176 = vpack.c.b16 %v2060, %v2059
        %v2177 = vpack.c.b16 %v2062, %v2061
        %v2178 = vpack.c.b16 %v2064, %v2063
        %v2179 = vpack.c.b16 %v2066, %v2065
        %v2180 = vpack.c.b16 %v2068, %v2067
        %v2181 = vpack.c.b16 %v2070, %v2069
        %v2182 = vpack.c.b16 %v2072, %v2071
        %v2183 = vpack.c.b16 %v2074, %v2073
        %v2184 = vpack.c.b16 %v2076, %v2075
        %v2185 = vpack.c.b16 %v2078, %v2077
        %v2186 = vpack.c.b16 %v2080, %v2079
        %v2187 = vpack.c.b16 %v2082, %v2081
        %v2188 = vpack.c.b16 %v2084, %v2083
        %v2189 = vpack.c.b16 %v2086, %v2085
        %v2190 = vpack.c.b16 %v2088, %v2087
        %v2191 = vpack.c.b16 %v2090, %v2089
        %v2192 = vpack.c.b16 %v2092, %v2091
        %v2193 = vpack.c.b16 %v2094, %v2093
        %v2194 = vpack.c.b16 %v2096, %v2095
        %v2195 = vpack.c.b16 %v2098, %v2097
        %v2196 = vpack.c.b16 %v2100, %v2099
        %v2197 = vpack.c.b16 %v2102, %v2101
        %v2198 = vpack.c.b16 %v2104, %v2103
        %v2199 = vpack.c.b16 %v2106, %v2105
        %v2200 = vpack.c.b16 %v2108, %v2107
        %v2201 = vpack.c.b16 %v2110, %v2109
        %v2202 = vpack.c.b16 %v2112, %v2111
        %v2203 = vpack.c.b16 %v2114, %v2113
        %v2204 = vpack.c.b16 %v2116, %v2115
        %v2205 = vpack.c.b16 %v2118, %v2117
        %v2206 = vpack.c.b16 %v2120, %v2119
        %v2207 = vpack.c.b16 %v2122, %v2121
        %v2208 = vpack.c.b16 %v2124, %v2123
        %v2209 = vpack.c.b16 %v2126, %v2125
        %v2210 = vpack.c.b16 %v2128, %v2127
        %v2211 = vpack.c.b16 %v2130, %v2129
        %v2212 = vpack.c.b16 %v2132, %v2131
        %v2213 = vpack.c.b16 %v2134, %v2133
        %v2214 = vpack.c.b16 %v2136, %v2135
        %v2215 = vpack.c.b16 %v2138, %v2137
        %v2216 = vpack.c.b16 %v2140, %v2139
        %v2217 = vpack.c.b16 %v2142, %v2141
        %v2218 = vpack.c.b16 %v2144, %v2143
        %v2219 = vpack.c.b16 %v2146, %v2145
        %v2220 = vpack.c.b16 %v2148, %v2147
        %v2221 = vpack.c.b16 %v2150, %v2149
        %v2222 = vpack.c.b16 %v2152, %v2151
        %v2223 = vpack.c.b16 %v2154, %v2153
        %v2224 = vpack.c.b16 %v2156, %v2155
        %v2225 = vpack.c.b16 %v2158, %v2157
        %v2226 = vpack.c.b16 %v2160, %v2159
        %v2227 = vpack.c.b16 %v2162, %v2161
        %v2228 = vpack.c.b16 %v2164, %v2163
        %2293 = vst [vmem:[%s274] sm:$0xff] %v2165
        %2294 = vst [vmem:[%s274 + $0x8] sm:$0xff] %v2166
        %2295 = vst [vmem:[%s274 + $0x10] sm:$0xff] %v2167
        %2296 = vst [vmem:[%s274 + $0x18] sm:$0xff] %v2168
        %2297 = vst [vmem:[%s274 + $0x20] sm:$0xff] %v2169
        %2298 = vst [vmem:[%s274 + $0x28] sm:$0xff] %v2170
        %2299 = vst [vmem:[%s274 + $0x30] sm:$0xff] %v2171
        %2300 = vst [vmem:[%s274 + $0x38] sm:$0xff] %v2172
        %2301 = vst [vmem:[%s274 + $0x40] sm:$0xff] %v2173
        %2302 = vst [vmem:[%s274 + $0x48] sm:$0xff] %v2174
        %2303 = vst [vmem:[%s274 + $0x50] sm:$0xff] %v2175
        %2304 = vst [vmem:[%s274 + $0x58] sm:$0xff] %v2176
        %2305 = vst [vmem:[%s274 + $0x60] sm:$0xff] %v2177
        %2306 = vst [vmem:[%s274 + $0x68] sm:$0xff] %v2178
        %2307 = vst [vmem:[%s274 + $0x70] sm:$0xff] %v2179
        %2308 = vst [vmem:[%s274 + $0x78] sm:$0xff] %v2180
        %2309 = vst [vmem:[%s274 + $0x80] sm:$0xff] %v2181
        %2310 = vst [vmem:[%s274 + $0x88] sm:$0xff] %v2182
        %2311 = vst [vmem:[%s274 + $0x90] sm:$0xff] %v2183
        %2312 = vst [vmem:[%s274 + $0x98] sm:$0xff] %v2184
        %2313 = vst [vmem:[%s274 + $0xa0] sm:$0xff] %v2185
        %2314 = vst [vmem:[%s274 + $0xa8] sm:$0xff] %v2186
        %2315 = vst [vmem:[%s274 + $0xb0] sm:$0xff] %v2187
        %2316 = vst [vmem:[%s274 + $0xb8] sm:$0xff] %v2188
        %2317 = vst [vmem:[%s274 + $0xc0] sm:$0xff] %v2189
        %2318 = vst [vmem:[%s274 + $0xc8] sm:$0xff] %v2190
        %2319 = vst [vmem:[%s274 + $0xd0] sm:$0xff] %v2191
        %2320 = vst [vmem:[%s274 + $0xd8] sm:$0xff] %v2192
        %2321 = vst [vmem:[%s274 + $0xe0] sm:$0xff] %v2193
        %2322 = vst [vmem:[%s274 + $0xe8] sm:$0xff] %v2194
        %2323 = vst [vmem:[%s274 + $0xf0] sm:$0xff] %v2195
        %2324 = vst [vmem:[%s274 + $0xf8] sm:$0xff] %v2196
        %2325 = vst [vmem:[%s274 + $0x100] sm:$0xff] %v2197
        %2326 = vst [vmem:[%s274 + $0x108] sm:$0xff] %v2198
        %2327 = vst [vmem:[%s274 + $0x110] sm:$0xff] %v2199
        %2328 = vst [vmem:[%s274 + $0x118] sm:$0xff] %v2200
        %2329 = vst [vmem:[%s274 + $0x120] sm:$0xff] %v2201
        %2330 = vst [vmem:[%s274 + $0x128] sm:$0xff] %v2202
        %2331 = vst [vmem:[%s274 + $0x130] sm:$0xff] %v2203
        %2332 = vst [vmem:[%s274 + $0x138] sm:$0xff] %v2204
        %2333 = vst [vmem:[%s274 + $0x140] sm:$0xff] %v2205
        %2334 = vst [vmem:[%s274 + $0x148] sm:$0xff] %v2206
        %2335 = vst [vmem:[%s274 + $0x150] sm:$0xff] %v2207
        %2336 = vst [vmem:[%s274 + $0x158] sm:$0xff] %v2208
        %2337 = vst [vmem:[%s274 + $0x160] sm:$0xff] %v2209
        %2338 = vst [vmem:[%s274 + $0x168] sm:$0xff] %v2210
        %2339 = vst [vmem:[%s274 + $0x170] sm:$0xff] %v2211
        %2340 = vst [vmem:[%s274 + $0x178] sm:$0xff] %v2212
        %2341 = vst [vmem:[%s274 + $0x180] sm:$0xff] %v2213
        %2342 = vst [vmem:[%s274 + $0x188] sm:$0xff] %v2214
        %2343 = vst [vmem:[%s274 + $0x190] sm:$0xff] %v2215
        %2344 = vst [vmem:[%s274 + $0x198] sm:$0xff] %v2216
        %2345 = vst [vmem:[%s274 + $0x1a0] sm:$0xff] %v2217
        %2346 = vst [vmem:[%s274 + $0x1a8] sm:$0xff] %v2218
        %2347 = vst [vmem:[%s274 + $0x1b0] sm:$0xff] %v2219
        %2348 = vst [vmem:[%s274 + $0x1b8] sm:$0xff] %v2220
        %2349 = vst [vmem:[%s274 + $0x1c0] sm:$0xff] %v2221
        %2350 = vst [vmem:[%s274 + $0x1c8] sm:$0xff] %v2222
        %2351 = vst [vmem:[%s274 + $0x1d0] sm:$0xff] %v2223
        %2352 = vst [vmem:[%s274 + $0x1d8] sm:$0xff] %v2224
        %2353 = vst [vmem:[%s274 + $0x1e0] sm:$0xff] %v2225
        %2354 = vst [vmem:[%s274 + $0x1e8] sm:$0xff] %v2226
        %2355 = vst [vmem:[%s274 + $0x1f0] sm:$0xff] %v2227
        %2356 = vst [vmem:[%s274 + $0x1f8] sm:$0xff] %v2228
      $region40: #{decoder_forward.6} parent=31 // pred_fallthru
        _
      %s2357 = smul.u32 32, %s19
      %s2358 = smul.u32 4, %s20
      %p2359 = scmp.lt.s32.totalorder %s2357, 127
      %s2360 = scalar_select %p2359, %s2357, 127
      %p2361 = scmp.lt.s32.totalorder %s2358, 3
      %s2362 = scalar_select %p2361, %s2358, 3
      %s2363 = smul.addr %s2360, 4
      %s2364 = sadd.s32 %s2362, %s2363
      %s2365 = smul.addr %s2364, 4
      %s2366 = scalar_lea.vmem %s3, %s2365
      // Predicated region
      $region41: #{decoder_forward.6} parent=31 // pred_check
        %p2367 = pneg %p135
      $region42: #{decoder_forward.6} parent=31 // pred_check_branch
        %2369 = sbr.rel (%p2367) target = $region44
      $region43: #{decoder_forward.6} parent=31 // pred_region
        %s2370 = smul.u32 32, %s19
        %s2371 = smul.u32 4, %s20
      $region44: #{decoder_forward.6} parent=31 // pred_fallthru
        _
    $region32: #{decoder_forward.6} parent=5 // pred_fallthru
      _
    %p2372 = scmp.le.s32.totalorder 2, %s9
    // Predicated region
    $region45: #{decoder_forward.6} parent=5 // pred_check
      %p2373 = pneg %p2372
    $region46: #{decoder_forward.6} parent=5 // pred_check_branch
      %2375 = sbr.rel (%p2373) target = $region48
    $region47: #{decoder_forward.6} parent=5 // pred_region
      %s2376 = ssub.s32 %s9, 2
      // Predicated region
      $region49: #{decoder_forward.6} parent=47 // pred_check
        %p2377 = pneg %p141
      $region50: #{decoder_forward.6} parent=47 // pred_check_branch
        %2379 = sbr.rel (%p2377) target = $region52
      $region51: #{decoder_forward.6} parent=47 // pred_region
        %s2380 = smul.u32 32, %s22
        %s2381 = smul.u32 4, %s23
        %p2382 = scmp.lt.s32.totalorder %s2380, 127
        %s2383 = scalar_select %p2382, %s2380, 127
        %p2384 = scmp.lt.s32.totalorder %s2381, 3
        %s2385 = scalar_select %p2384, %s2381, 3
        %s2386 = smul.addr %s2383, 4
        %s2387 = sadd.s32 %s2385, %s2386
        %s2388 = smul.addr %s2387, 4
        %s2389 = scalar_lea.vmem %s3, %s2388
      $region52: #{decoder_forward.6} parent=47 // pred_fallthru
        _
    $region48: #{decoder_forward.6} parent=5 // pred_fallthru
      _
  $region6: #{decoder_forward.6} parent=0 // loop_footer
    %s13 = sadd.s32 1, %s9
  $region7: #{decoder_forward.6} parent=0 // loop_footer_branch
    %8 = sbr.rel target = $region3
  $region8: #{decoder_forward.6} parent=0 // loop_exit
    _

// kernel: decoder_forward.5
$region0: #{decoder_forward.5}
  #allocation0 [shape = 'u32[]', space=smem, size = 0x4, offset = 0x4, fixed_abs, tag = 'smem constant byte address 0x4 - core index']
  #allocation1 [shape = 'u32[144,128]{1,0:T(1,128)}', space=vmem, size = 0x12000, scoped, tag = 'internal scratch']
  #allocation2 [shape = 'f32[8,2048]{1,0:T(8,128)}', space=vmem, size = 0x10000, scoped, tag = 'scratch operand']
  %s0 = inlined_call_operand.vmem [shape: bf16[8,1024], index: 0, kind: input, shape index: {}]
  %s1 = inlined_call_operand.hbm [shape: bf16[1024,65536], index: 1, kind: input, shape index: {}]
  %s2 = inlined_call_operand.hbm [shape: f32[1,65536], index: 2, kind: input, shape index: {}]
  %s3 = inlined_call_operand.vmem [shape: bf16[8,65536], index: 3, kind: output, shape index: {}]
  %s4 = sld [smem:[#allocation0]]
  $region61: #{decoder_forward.5} parent=0
    _
  %s6 = ssub.s32 1, %s4
  %s7 = scalar_select 0, %s6, %s4
  $region1: #{decoder_forward.5} parent=0
    #allocation3 [shape = 'u8[8388608]{0}', space=vmem, size = 0x800000, scoped, tag = 'input window, operand 1']
    #allocation4 [shape = 's32[2]{0}', space=sflag, size = 0x8, scoped, tag = 'scoped memory for decoder_forward.5']
    #allocation5 [shape = 'u8[16384]{0}', space=vmem, size = 0x4000, scoped, tag = 'input window, operand 2']
    #allocation6 [shape = 's32[2]{0}', space=sflag, size = 0x8, scoped, tag = 'scoped memory for decoder_forward.5']
    %8 = vsyncpa [#allocation4], 0
    %s9 = scalar_lea.sflag [#allocation4], 1
    %10 = vsyncpa %s9, 0
    %11 = vsyncpa [#allocation6], 0
    %s12 = scalar_lea.sflag [#allocation6], 1
    %13 = vsyncpa %s12, 0
    loop: start=0, step=1, limit=34
    $region2: #{decoder_forward.5} parent=1 // loop_pre_header
      _
    $region3: #{decoder_forward.5} parent=1 // loop_header
      %s15 = sphi 0, %s19
      %p16 = scmp.ge.s32.totalorder %s15, 34
      %s22 = sphi 0, %s41
      %s23 = sphi 0, %s37
      %s24 = sphi 0, %s33
      %s25 = sphi 0, %s22
      %s26 = sphi 0, %s23
      %s27 = sphi 0, %s24
      %s28 = sphi 0, %s25
      %s29 = sphi 0, %s26
      %s30 = sphi 0, %s27
      %s46 = sphi 0, %s48
      %s49 = sphi 0, %s46
      %s50 = sphi 0, %s49
      %s66 = sphi 0, %s50
      %s74 = sphi 0, %s76
      %s77 = sphi 0, %s74
      %s78 = sphi 0, %s77
      %s94 = sphi 0, %s78
      %s100 = sphi 0, %s102
      %s103 = sphi 0, %s100
      %s104 = sphi 0, %s103
      %s120 = sphi 0, %s104
      %s128 = sphi 0, %s130
      %s131 = sphi 0, %s128
      %s132 = sphi 0, %s131
      %s148 = sphi 0, %s132
    $region4: #{decoder_forward.5} parent=1 // loop_header_branch
      %18 = sbr.rel (%p16) target = $region8
    $region5: #{decoder_forward.5} parent=1 // loop_body
      %s20 = ssub.s32 %s15, 1
      %s21 = ssub.s32 %s15, 2
      %s31 = sadd.s32 1, %s24
      %p32 = scmp.ge.s32.totalorder %s31, 1
      %s33 = scalar_select %p32, 0, %s31
      %s34 = sadd.s32 1, %s23
      %s35 = scalar_select %p32, %s34, %s23
      %p36 = scmp.ge.s32.totalorder %s35, 32
      %s37 = scalar_select %p36, 0, %s35
      %s38 = sadd.s32 1, %s22
      %s39 = scalar_select %p36, %s38, %s22
      %p40 = scmp.ge.s32.totalorder %s39, 1
      %s41 = scalar_select %p40, 0, %s39
      %s42 = ssub.s32 %s22, %s41
      %s43 = ssub.s32 %s24, %s33
      %s44 = sor.u32 %s42, %s43
      %p45 = scmp.eq.s32.totalorder %s44, 0
      %s47 = sadd.s32 %s46, 1
      %s48 = scalar_select %p45, %s46, %s47
      %p51 = pneg %p45
      %p52 = scmp.eq.s32.totalorder %s15, 31
      %p53 = por %p51, %p52
      %p54 = scmp.ne.s32.totalorder %s46, %s49
      %p55 = scmp.eq.s32.totalorder %s15, 0
      %p56 = por %p54, %p55
      %p57 = scmp.ne.s32.totalorder %s46, %s49
      %p58 = scmp.eq.s32.totalorder %s20, 31
      %p59 = por %p57, %p58
      %p60 = scmp.ne.s32.totalorder %s49, %s50
      %p61 = scmp.eq.s32.totalorder %s20, 0
      %p62 = por %p60, %p61
      %p63 = scmp.ne.s32.totalorder %s49, %s50
      %p64 = scmp.eq.s32.totalorder %s21, 31
      %p65 = por %p63, %p64
      %p67 = scmp.ne.s32.totalorder %s50, %s66
      %p68 = scmp.eq.s32.totalorder %s21, 0
      %p69 = por %p67, %p68
      %s70 = ssub.s32 %s24, %s33
      %s71 = ssub.s32 %s23, %s37
      %s72 = sor.u32 %s70, %s71
      %p73 = scmp.eq.s32.totalorder %s72, 0
      %s75 = sadd.s32 %s74, 1
      %s76 = scalar_select %p73, %s74, %s75
      %p79 = pneg %p73
      %p80 = scmp.eq.s32.totalorder %s15, 31
      %p81 = por %p79, %p80
      %p82 = scmp.ne.s32.totalorder %s74, %s77
      %p83 = scmp.eq.s32.totalorder %s15, 0
      %p84 = por %p82, %p83
      %p85 = scmp.ne.s32.totalorder %s74, %s77
      %p86 = scmp.eq.s32.totalorder %s20, 31
      %p87 = por %p85, %p86
      %p88 = scmp.ne.s32.totalorder %s77, %s78
      %p89 = scmp.eq.s32.totalorder %s20, 0
      %p90 = por %p88, %p89
      %p91 = scmp.ne.s32.totalorder %s77, %s78
      %p92 = scmp.eq.s32.totalorder %s21, 31
      %p93 = por %p91, %p92
      %p95 = scmp.ne.s32.totalorder %s78, %s94
      %p96 = scmp.eq.s32.totalorder %s21, 0
      %p97 = por %p95, %p96
      %s98 = ssub.s32 %s23, %s37
      %p99 = scmp.eq.s32.totalorder %s98, 0
      %s101 = sadd.s32 %s100, 1
      %s102 = scalar_select %p99, %s100, %s101
      %p105 = pneg %p99
      %p106 = scmp.eq.s32.totalorder %s15, 31
      %p107 = por %p105, %p106
      %p108 = scmp.ne.s32.totalorder %s100, %s103
      %p109 = scmp.eq.s32.totalorder %s15, 0
      %p110 = por %p108, %p109
      %p111 = scmp.ne.s32.totalorder %s100, %s103
      %p112 = scmp.eq.s32.totalorder %s20, 31
      %p113 = por %p111, %p112
      %p114 = scmp.ne.s32.totalorder %s103, %s104
      %p115 = scmp.eq.s32.totalorder %s20, 0
      %p116 = por %p114, %p115
      %p117 = scmp.ne.s32.totalorder %s103, %s104
      %p118 = scmp.eq.s32.totalorder %s21, 31
      %p119 = por %p117, %p118
      %p121 = scmp.ne.s32.totalorder %s104, %s120
      %p122 = scmp.eq.s32.totalorder %s21, 0
      %p123 = por %p121, %p122
      %s124 = ssub.s32 %s22, %s41
      %s125 = ssub.s32 %s23, %s37
      %s126 = sor.u32 %s124, %s125
      %p127 = scmp.eq.s32.totalorder %s126, 0
      %s129 = sadd.s32 %s128, 1
      %s130 = scalar_select %p127, %s128, %s129
      %p133 = pneg %p127
      %p134 = scmp.eq.s32.totalorder %s15, 31
      %p135 = por %p133, %p134
      %p136 = scmp.ne.s32.totalorder %s128, %s131
      %p137 = scmp.eq.s32.totalorder %s15, 0
      %p138 = por %p136, %p137
      %p139 = scmp.ne.s32.totalorder %s128, %s131
      %p140 = scmp.eq.s32.totalorder %s20, 31
      %p141 = por %p139, %p140
      %p142 = scmp.ne.s32.totalorder %s131, %s132
      %p143 = scmp.eq.s32.totalorder %s20, 0
      %p144 = por %p142, %p143
      %p145 = scmp.ne.s32.totalorder %s131, %s132
      %p146 = scmp.eq.s32.totalorder %s21, 31
      %p147 = por %p145, %p146
      %p149 = scmp.ne.s32.totalorder %s132, %s148
      %p150 = scmp.eq.s32.totalorder %s21, 0
      %p151 = por %p149, %p150
      %p152 = scmp.le.s32.totalorder 1, %s15
      %p153 = scmp.lt.s32.totalorder %s15, 33
      %p154 = pnand %p152, %p153
      %p155 = pneg %p154
      // Predicated region
      $region9: #{decoder_forward.5} parent=5 // pred_check
        _
      $region10: #{decoder_forward.5} parent=5 // pred_check_branch
        %157 = sbr.rel (%p154) target = $region12
      $region11: #{decoder_forward.5} parent=5 // pred_region
        %s158 = ssub.s32 %s15, 1
        // Predicated region
        $region13: #{decoder_forward.5} parent=11 // pred_check
          %p159 = pneg %p62
        $region14: #{decoder_forward.5} parent=11 // pred_check_branch
          %161 = sbr.rel (%p159) target = $region16
        $region15: #{decoder_forward.5} parent=11 // pred_region
          %s162 = smul.u32 8, %s27
          %p163 = scmp.lt.s32.totalorder %s25, 0
          %s164 = scalar_select %p163, %s25, 0
          %p165 = scmp.lt.s32.totalorder %s162, 7
          %s166 = scalar_select %p165, %s162, 7
          %s167 = smul.addr %s164, 8
          %s168 = sadd.s32 %s166, %s167
          %s169 = smul.addr %s168, 4
          %s170 = scalar_lea.vmem %s0, %s169
          %s171 = smul.u32 8, %s27
        $region16: #{decoder_forward.5} parent=11 // pred_fallthru
          _
      $region12: #{decoder_forward.5} parent=5 // pred_fallthru
        _
      %p172 = scmp.lt.s32.totalorder %s15, 32
      // Predicated region
      $region17: #{decoder_forward.5} parent=5 // pred_check
        %p173 = pneg %p172
      $region18: #{decoder_forward.5} parent=5 // pred_check_branch
        %175 = sbr.rel (%p173) target = $region20
      $region19: #{decoder_forward.5} parent=5 // pred_region
        // Predicated region
        $region21: #{decoder_forward.5} parent=19 // pred_check
          %p176 = pneg %p84
        $region22: #{decoder_forward.5} parent=19 // pred_check_branch
          %178 = sbr.rel (%p176) target = $region24
        $region23: #{decoder_forward.5} parent=19 // pred_region
          %s179 = sand.u32 %s74, 1
          %s180 = scalar_lea.sflag [#allocation4], %s179
          %s181 = sand.u32 %s74, 1
          %s182 = smul.addr %s181, 8192
          %s183 = scalar_lea.vmem [#allocation3], %s182
          %s184 = smul.u32 128, %s24
          %s185 = smul.u32 16, %s23
          %s187 = ssub.s32 131072, 131072
          %188 = vsyncadd %s180, %s187
          %s189 = smul.addr %s184, 512
          %s190 = sadd.s32 %s185, %s189
          %s191 = smul.addr %s190, 64
          %s192 = scalar_lea.hbm %s1, %s191
          %s193 = sshll.u32 %s183, 4
          %s194 = int_to_ptr.vmem [resolvable:$true] %s193
          %199 = dma.hbm_to_vmem [thread:$0]  %s192, 131072, %s194, %s180, 32768, 1024, 64
        $region24: #{decoder_forward.5} parent=19 // pred_fallthru
          _
        // Predicated region
        $region25: #{decoder_forward.5} parent=19 // pred_check
          %p200 = pneg %p110
        $region26: #{decoder_forward.5} parent=19 // pred_check_branch
          %202 = sbr.rel (%p200) target = $region28
        $region27: #{decoder_forward.5} parent=19 // pred_region
          %s203 = sand.u32 %s100, 1
          %s204 = scalar_lea.sflag [#allocation6], %s203
          %s205 = sand.u32 %s100, 1
          %s206 = smul.addr %s205, 16
          %s207 = scalar_lea.vmem [#allocation5], %s206
          %s208 = smul.u32 16, %s23
          %s210 = ssub.s32 256, 256
          %211 = vsyncadd %s204, %s210
          %s212 = smul.addr %s208, 16
          %s213 = scalar_lea.hbm %s2, %s212
          %s215 = sshll.u32 %s207, 4
          %s216 = int_to_ptr.vmem [resolvable:$true] %s215
          %218 = dma.hbm_to_vmem [thread:$0]  %s213, 256, %s216, %s204
        $region28: #{decoder_forward.5} parent=19 // pred_fallthru
          _
      $region20: #{decoder_forward.5} parent=5 // pred_fallthru
        _
      %p219 = scmp.le.s32.totalorder 1, %s15
      %p220 = scmp.lt.s32.totalorder %s15, 33
      %p221 = pnand %p219, %p220
      %p222 = pneg %p221
      // Predicated region
      $region29: #{decoder_forward.5} parent=5 // pred_check
        _
      $region30: #{decoder_forward.5} parent=5 // pred_check_branch
        %224 = sbr.rel (%p221) target = $region32
      $region31: #{decoder_forward.5} parent=5 // pred_region
        %s225 = ssub.s32 %s15, 1
        %s226 = sand.u32 %s77, 1
        %s227 = scalar_lea.sflag [#allocation4], %s226
        %s228 = sand.u32 %s77, 1
        %s229 = smul.addr %s228, 8192
        %s230 = scalar_lea.vmem [#allocation3], %s229
        // Predicated region
        $region33: #{decoder_forward.5} parent=31 // pred_check
          %p231 = pneg %p90
        $region34: #{decoder_forward.5} parent=31 // pred_check_branch
          %233 = sbr.rel (%p231) target = $region36
        $region35: #{decoder_forward.5} parent=31 // pred_region
          %234 = dma.done %s227, 131072
        $region36: #{decoder_forward.5} parent=31 // pred_fallthru
          _
        %s235 = sand.u32 %s103, 1
        %s236 = scalar_lea.sflag [#allocation6], %s235
        %s237 = sand.u32 %s103, 1
        %s238 = smul.addr %s237, 16
        %s239 = scalar_lea.vmem [#allocation5], %s238
        // Predicated region
        $region37: #{decoder_forward.5} parent=31 // pred_check
          %p240 = pneg %p116
        $region38: #{decoder_forward.5} parent=31 // pred_check_branch
          %242 = sbr.rel (%p240) target = $region40
        $region39: #{decoder_forward.5} parent=31 // pred_region
          %243 = dma.done %s236, 256
        $region40: #{decoder_forward.5} parent=31 // pred_fallthru
          _
        %s244 = smul.u32 8, %s27
        %p245 = scmp.lt.s32.totalorder %s25, 0
        %s246 = scalar_select %p245, %s25, 0
        %p247 = scmp.lt.s32.totalorder %s244, 7
        %s248 = scalar_select %p247, %s244, 7
        %s249 = smul.addr %s246, 8
        %s250 = sadd.s32 %s248, %s249
        %s251 = smul.addr %s250, 4
        %s252 = scalar_lea.vmem %s0, %s251
        %p253 = pneg %p62
        %p254 = pneg %p59
        %s255 = sand.u32 %s77, 1
        %s256 = scalar_lea.sflag [#allocation4], %s255
        %s257 = sand.u32 %s77, 1
        %s258 = smul.addr %s257, 8192
        %s259 = scalar_lea.vmem [#allocation3], %s258
        %p260 = pneg %p90
        %p261 = pneg %p87
        %s262 = sand.u32 %s103, 1
        %s263 = scalar_lea.sflag [#allocation6], %s262
        %s264 = sand.u32 %s103, 1
        %s265 = smul.addr %s264, 16
        %s266 = scalar_lea.vmem [#allocation5], %s265
        %p267 = pneg %p116
        %p268 = pneg %p113
        %p269 = pneg %p144
        %p270 = pneg %p141
        %s271 = smul.u32 16, %s26
        %p272 = scmp.lt.s32.totalorder %s25, 0
        %s273 = scalar_select %p272, %s25, 0
        %p274 = scmp.lt.s32.totalorder %s271, 511
        %s275 = scalar_select %p274, %s271, 511
        %s276 = smul.addr %s273, 512
        %s277 = sadd.s32 %s275, %s276
        %s278 = smul.addr %s277, 4
        %s279 = scalar_lea.vmem %s3, %s278
        %s280 = smul.u32 8, %s27
        %p281 = scmp.lt.s32.totalorder %s25, 0
        %s282 = scalar_select %p281, %s25, 0
        %p283 = scmp.lt.s32.totalorder %s280, 7
        %s284 = scalar_select %p283, %s280, 7
        %s285 = smul.addr %s282, 8
        %s286 = sadd.s32 %s284, %s285
        %s287 = smul.addr %s286, 4
        %s288 = scalar_lea.vmem %s0, %s287
        %s289 = smul.u32 8, %s27
        %s290 = smul.u32 128, %s27
        %s291 = smul.u32 16, %s26
        %s292 = smul.u32 16, %s26
        %s293 = smul.u32 16, %s26
        %p294 = scmp.lt.s32.totalorder %s25, 0
        %s295 = scalar_select %p294, %s25, 0
        %p296 = scmp.lt.s32.totalorder %s293, 511
        %s297 = scalar_select %p296, %s293, 511
        %s298 = smul.addr %s295, 512
        %s299 = sadd.s32 %s297, %s298
        %s300 = smul.addr %s299, 4
        %s301 = scalar_lea.vmem %s3, %s300
        %s302 = smul.u32 16, %s26
        %p303 = scmp.eq.s32.totalorder %s27, 0
        // Predicated region
        $region41: #{decoder_forward.5} parent=31 // pred_check
          %p304 = pneg %p303
        $region42: #{decoder_forward.5} parent=31 // pred_check_branch
          %306 = sbr.rel (%p304) target = $region44
        $region43: #{decoder_forward.5} parent=31 // pred_region
          %307 = vst [vmem:[#allocation2] sm:$0xff] 0.0
          %308 = vst [vmem:[#allocation2 + $0x8] sm:$0xff] 0.0
          %309 = vst [vmem:[#allocation2 + $0x10] sm:$0xff] 0.0
          %310 = vst [vmem:[#allocation2 + $0x18] sm:$0xff] 0.0
          %311 = vst [vmem:[#allocation2 + $0x20] sm:$0xff] 0.0
          %312 = vst [vmem:[#allocation2 + $0x28] sm:$0xff] 0.0
          %313 = vst [vmem:[#allocation2 + $0x30] sm:$0xff] 0.0
          %314 = vst [vmem:[#allocation2 + $0x38] sm:$0xff] 0.0
          %315 = vst [vmem:[#allocation2 + $0x40] sm:$0xff] 0.0
          %316 = vst [vmem:[#allocation2 + $0x48] sm:$0xff] 0.0
          %317 = vst [vmem:[#allocation2 + $0x50] sm:$0xff] 0.0
          %318 = vst [vmem:[#allocation2 + $0x58] sm:$0xff] 0.0
          %319 = vst [vmem:[#allocation2 + $0x60] sm:$0xff] 0.0
          %320 = vst [vmem:[#allocation2 + $0x68] sm:$0xff] 0.0
          %321 = vst [vmem:[#allocation2 + $0x70] sm:$0xff] 0.0
          %322 = vst [vmem:[#allocation2 + $0x78] sm:$0xff] 0.0
        $region44: #{decoder_forward.5} parent=31 // pred_fallthru
          _
        %v323 = vld [vmem:[#allocation2] sm:$0xff]
        %v324 = vld [vmem:[#allocation2 + $0x8] sm:$0xff]
        %v325 = vld [vmem:[#allocation2 + $0x10] sm:$0xff]
        %v326 = vld [vmem:[#allocation2 + $0x18] sm:$0xff]
        %v327 = vld [vmem:[#allocation2 + $0x20] sm:$0xff]
        %v328 = vld [vmem:[#allocation2 + $0x28] sm:$0xff]
        %v329 = vld [vmem:[#allocation2 + $0x30] sm:$0xff]
        %v330 = vld [vmem:[#allocation2 + $0x38] sm:$0xff]
        %v331 = vld [vmem:[#allocation2 + $0x40] sm:$0xff]
        %v332 = vld [vmem:[#allocation2 + $0x48] sm:$0xff]
        %v333 = vld [vmem:[#allocation2 + $0x50] sm:$0xff]
        %v334 = vld [vmem:[#allocation2 + $0x58] sm:$0xff]
        %v335 = vld [vmem:[#allocation2 + $0x60] sm:$0xff]
        %v336 = vld [vmem:[#allocation2 + $0x68] sm:$0xff]
        %v337 = vld [vmem:[#allocation2 + $0x70] sm:$0xff]
        %v338 = vld [vmem:[#allocation2 + $0x78] sm:$0xff]
        %v339 = vld [vmem:[%s288] sm:$0xff]
        %v340 = vld [vmem:[%s288 + $0x8] sm:$0xff]
        %v341 = vld [vmem:[%s288 + $0x10] sm:$0xff]
        %v342 = vld [vmem:[%s288 + $0x18] sm:$0xff]
        %v343 = vld [vmem:[%s230] sm:$0xff]
        %v344 = vld [vmem:[%s230 + $0x8] sm:$0xff]
        %v345 = vld [vmem:[%s230 + $0x10] sm:$0xff]
        %v346 = vld [vmem:[%s230 + $0x18] sm:$0xff]
        %v347 = vld [vmem:[%s230 + $0x20] sm:$0xff]
        %v348 = vld [vmem:[%s230 + $0x28] sm:$0xff]
        %v349 = vld [vmem:[%s230 + $0x30] sm:$0xff]
        %v350 = vld [vmem:[%s230 + $0x38] sm:$0xff]
        %v351 = vld [vmem:[%s230 + $0x40] sm:$0xff]
        %v352 = vld [vmem:[%s230 + $0x48] sm:$0xff]
        %v353 = vld [vmem:[%s230 + $0x50] sm:$0xff]
        %v354 = vld [vmem:[%s230 + $0x58] sm:$0xff]
        %v355 = vld [vmem:[%s230 + $0x60] sm:$0xff]
        %v356 = vld [vmem:[%s230 + $0x68] sm:$0xff]
        %v357 = vld [vmem:[%s230 + $0x70] sm:$0xff]
        %v358 = vld [vmem:[%s230 + $0x78] sm:$0xff]
        %v359 = vld [vmem:[%s230 + $0x80] sm:$0xff]
        %v360 = vld [vmem:[%s230 + $0x88] sm:$0xff]
        %v361 = vld [vmem:[%s230 + $0x90] sm:$0xff]
        %v362 = vld [vmem:[%s230 + $0x98] sm:$0xff]
        %v363 = vld [vmem:[%s230 + $0xa0] sm:$0xff]
        %v364 = vld [vmem:[%s230 + $0xa8] sm:$0xff]
        %v365 = vld [vmem:[%s230 + $0xb0] sm:$0xff]
        %v366 = vld [vmem:[%s230 + $0xb8] sm:$0xff]
        %v367 = vld [vmem:[%s230 + $0xc0] sm:$0xff]
        %v368 = vld [vmem:[%s230 + $0xc8] sm:$0xff]
        %v369 = vld [vmem:[%s230 + $0xd0] sm:$0xff]
        %v370 = vld [vmem:[%s230 + $0xd8] sm:$0xff]
        %v371 = vld [vmem:[%s230 + $0xe0] sm:$0xff]
        %v372 = vld [vmem:[%s230 + $0xe8] sm:$0xff]
        %v373 = vld [vmem:[%s230 + $0xf0] sm:$0xff]
        %v374 = vld [vmem:[%s230 + $0xf8] sm:$0xff]
        %v375 = vld [vmem:[%s230 + $0x100] sm:$0xff]
        %v376 = vld [vmem:[%s230 + $0x108] sm:$0xff]
        %v377 = vld [vmem:[%s230 + $0x110] sm:$0xff]
        %v378 = vld [vmem:[%s230 + $0x118] sm:$0xff]
        %v379 = vld [vmem:[%s230 + $0x120] sm:$0xff]
        %v380 = vld [vmem:[%s230 + $0x128] sm:$0xff]
        %v381 = vld [vmem:[%s230 + $0x130] sm:$0xff]
        %v382 = vld [vmem:[%s230 + $0x138] sm:$0xff]
        %v383 = vld [vmem:[%s230 + $0x140] sm:$0xff]
        %v384 = vld [vmem:[%s230 + $0x148] sm:$0xff]
        %v385 = vld [vmem:[%s230 + $0x150] sm:$0xff]
        %v386 = vld [vmem:[%s230 + $0x158] sm:$0xff]
        %v387 = vld [vmem:[%s230 + $0x160] sm:$0xff]
        %v388 = vld [vmem:[%s230 + $0x168] sm:$0xff]
        %v389 = vld [vmem:[%s230 + $0x170] sm:$0xff]
        %v390 = vld [vmem:[%s230 + $0x178] sm:$0xff]
        %v391 = vld [vmem:[%s230 + $0x180] sm:$0xff]
        %v392 = vld [vmem:[%s230 + $0x188] sm:$0xff]
        %v393 = vld [vmem:[%s230 + $0x190] sm:$0xff]
        %v394 = vld [vmem:[%s230 + $0x198] sm:$0xff]
        %v395 = vld [vmem:[%s230 + $0x1a0] sm:$0xff]
        %v396 = vld [vmem:[%s230 + $0x1a8] sm:$0xff]
        %v397 = vld [vmem:[%s230 + $0x1b0] sm:$0xff]
        %v398 = vld [vmem:[%s230 + $0x1b8] sm:$0xff]
        %v399 = vld [vmem:[%s230 + $0x1c0] sm:$0xff]
        %v400 = vld [vmem:[%s230 + $0x1c8] sm:$0xff]
        %v401 = vld [vmem:[%s230 + $0x1d0] sm:$0xff]
        %v402 = vld [vmem:[%s230 + $0x1d8] sm:$0xff]
        %v403 = vld [vmem:[%s230 + $0x1e0] sm:$0xff]
        %v404 = vld [vmem:[%s230 + $0x1e8] sm:$0xff]
        %v405 = vld [vmem:[%s230 + $0x1f0] sm:$0xff]
        %v406 = vld [vmem:[%s230 + $0x1f8] sm:$0xff]
        %v407 = vld [vmem:[%s230 + $0x200] sm:$0xff]
        %v408 = vld [vmem:[%s230 + $0x208] sm:$0xff]
        %v409 = vld [vmem:[%s230 + $0x210] sm:$0xff]
        %v410 = vld [vmem:[%s230 + $0x218] sm:$0xff]
        %v411 = vld [vmem:[%s230 + $0x220] sm:$0xff]
        %v412 = vld [vmem:[%s230 + $0x228] sm:$0xff]
        %v413 = vld [vmem:[%s230 + $0x230] sm:$0xff]
        %v414 = vld [vmem:[%s230 + $0x238] sm:$0xff]
        %v415 = vld [vmem:[%s230 + $0x240] sm:$0xff]
        %v416 = vld [vmem:[%s230 + $0x248] sm:$0xff]
        %v417 = vld [vmem:[%s230 + $0x250] sm:$0xff]
        %v418 = vld [vmem:[%s230 + $0x258] sm:$0xff]
        %v419 = vld [vmem:[%s230 + $0x260] sm:$0xff]
        %v420 = vld [vmem:[%s230 + $0x268] sm:$0xff]
        %v421 = vld [vmem:[%s230 + $0x270] sm:$0xff]
        %v422 = vld [vmem:[%s230 + $0x278] sm:$0xff]
        %v423 = vld [vmem:[%s230 + $0x280] sm:$0xff]
        %v424 = vld [vmem:[%s230 + $0x288] sm:$0xff]
        %v425 = vld [vmem:[%s230 + $0x290] sm:$0xff]
        %v426 = vld [vmem:[%s230 + $0x298] sm:$0xff]
        %v427 = vld [vmem:[%s230 + $0x2a0] sm:$0xff]
        %v428 = vld [vmem:[%s230 + $0x2a8] sm:$0xff]
        %v429 = vld [vmem:[%s230 + $0x2b0] sm:$0xff]
        %v430 = vld [vmem:[%s230 + $0x2b8] sm:$0xff]
        %v431 = vld [vmem:[%s230 + $0x2c0] sm:$0xff]
        %v432 = vld [vmem:[%s230 + $0x2c8] sm:$0xff]
        %v433 = vld [vmem:[%s230 + $0x2d0] sm:$0xff]
        %v434 = vld [vmem:[%s230 + $0x2d8] sm:$0xff]
        %v435 = vld [vmem:[%s230 + $0x2e0] sm:$0xff]
        %v436 = vld [vmem:[%s230 + $0x2e8] sm:$0xff]
        %v437 = vld [vmem:[%s230 + $0x2f0] sm:$0xff]
        %v438 = vld [vmem:[%s230 + $0x2f8] sm:$0xff]
        %v439 = vld [vmem:[%s230 + $0x300] sm:$0xff]
        %v440 = vld [vmem:[%s230 + $0x308] sm:$0xff]
        %v441 = vld [vmem:[%s230 + $0x310] sm:$0xff]
        %v442 = vld [vmem:[%s230 + $0x318] sm:$0xff]
        %v443 = vld [vmem:[%s230 + $0x320] sm:$0xff]
        %v444 = vld [vmem:[%s230 + $0x328] sm:$0xff]
        %v445 = vld [vmem:[%s230 + $0x330] sm:$0xff]
        %v446 = vld [vmem:[%s230 + $0x338] sm:$0xff]
        %v447 = vld [vmem:[%s230 + $0x340] sm:$0xff]
        %v448 = vld [vmem:[%s230 + $0x348] sm:$0xff]
        %v449 = vld [vmem:[%s230 + $0x350] sm:$0xff]
        %v450 = vld [vmem:[%s230 + $0x358] sm:$0xff]
        %v451 = vld [vmem:[%s230 + $0x360] sm:$0xff]
        %v452 = vld [vmem:[%s230 + $0x368] sm:$0xff]
        %v453 = vld [vmem:[%s230 + $0x370] sm:$0xff]
        %v454 = vld [vmem:[%s230 + $0x378] sm:$0xff]
        %v455 = vld [vmem:[%s230 + $0x380] sm:$0xff]
        %v456 = vld [vmem:[%s230 + $0x388] sm:$0xff]
        %v457 = vld [vmem:[%s230 + $0x390] sm:$0xff]
        %v458 = vld [vmem:[%s230 + $0x398] sm:$0xff]
        %v459 = vld [vmem:[%s230 + $0x3a0] sm:$0xff]
        %v460 = vld [vmem:[%s230 + $0x3a8] sm:$0xff]
        %v461 = vld [vmem:[%s230 + $0x3b0] sm:$0xff]
        %v462 = vld [vmem:[%s230 + $0x3b8] sm:$0xff]
        %v463 = vld [vmem:[%s230 + $0x3c0] sm:$0xff]
        %v464 = vld [vmem:[%s230 + $0x3c8] sm:$0xff]
        %v465 = vld [vmem:[%s230 + $0x3d0] sm:$0xff]
        %v466 = vld [vmem:[%s230 + $0x3d8] sm:$0xff]
        %v467 = vld [vmem:[%s230 + $0x3e0] sm:$0xff]
        %v468 = vld [vmem:[%s230 + $0x3e8] sm:$0xff]
        %v469 = vld [vmem:[%s230 + $0x3f0] sm:$0xff]
        %v470 = vld [vmem:[%s230 + $0x3f8] sm:$0xff]
        %v471 = vld [vmem:[%s230 + $0x400] sm:$0xff]
        %v472 = vld [vmem:[%s230 + $0x408] sm:$0xff]
        %v473 = vld [vmem:[%s230 + $0x410] sm:$0xff]
        %v474 = vld [vmem:[%s230 + $0x418] sm:$0xff]
        %v475 = vld [vmem:[%s230 + $0x420] sm:$0xff]
        %v476 = vld [vmem:[%s230 + $0x428] sm:$0xff]
        %v477 = vld [vmem:[%s230 + $0x430] sm:$0xff]
        %v478 = vld [vmem:[%s230 + $0x438] sm:$0xff]
        %v479 = vld [vmem:[%s230 + $0x440] sm:$0xff]
        %v480 = vld [vmem:[%s230 + $0x448] sm:$0xff]
        %v481 = vld [vmem:[%s230 + $0x450] sm:$0xff]
        %v482 = vld [vmem:[%s230 + $0x458] sm:$0xff]
        %v483 = vld [vmem:[%s230 + $0x460] sm:$0xff]
        %v484 = vld [vmem:[%s230 + $0x468] sm:$0xff]
        %v485 = vld [vmem:[%s230 + $0x470] sm:$0xff]
        %v486 = vld [vmem:[%s230 + $0x478] sm:$0xff]
        %v487 = vld [vmem:[%s230 + $0x480] sm:$0xff]
        %v488 = vld [vmem:[%s230 + $0x488] sm:$0xff]
        %v489 = vld [vmem:[%s230 + $0x490] sm:$0xff]
        %v490 = vld [vmem:[%s230 + $0x498] sm:$0xff]
        %v491 = vld [vmem:[%s230 + $0x4a0] sm:$0xff]
        %v492 = vld [vmem:[%s230 + $0x4a8] sm:$0xff]
        %v493 = vld [vmem:[%s230 + $0x4b0] sm:$0xff]
        %v494 = vld [vmem:[%s230 + $0x4b8] sm:$0xff]
        %v495 = vld [vmem:[%s230 + $0x4c0] sm:$0xff]
        %v496 = vld [vmem:[%s230 + $0x4c8] sm:$0xff]
        %v497 = vld [vmem:[%s230 + $0x4d0] sm:$0xff]
        %v498 = vld [vmem:[%s230 + $0x4d8] sm:$0xff]
        %v499 = vld [vmem:[%s230 + $0x4e0] sm:$0xff]
        %v500 = vld [vmem:[%s230 + $0x4e8] sm:$0xff]
        %v501 = vld [vmem:[%s230 + $0x4f0] sm:$0xff]
        %v502 = vld [vmem:[%s230 + $0x4f8] sm:$0xff]
        %v503 = vld [vmem:[%s230 + $0x500] sm:$0xff]
        %v504 = vld [vmem:[%s230 + $0x508] sm:$0xff]
        %v505 = vld [vmem:[%s230 + $0x510] sm:$0xff]
        %v506 = vld [vmem:[%s230 + $0x518] sm:$0xff]
        %v507 = vld [vmem:[%s230 + $0x520] sm:$0xff]
        %v508 = vld [vmem:[%s230 + $0x528] sm:$0xff]
        %v509 = vld [vmem:[%s230 + $0x530] sm:$0xff]
        %v510 = vld [vmem:[%s230 + $0x538] sm:$0xff]
        %v511 = vld [vmem:[%s230 + $0x540] sm:$0xff]
        %v512 = vld [vmem:[%s230 + $0x548] sm:$0xff]
        %v513 = vld [vmem:[%s230 + $0x550] sm:$0xff]
        %v514 = vld [vmem:[%s230 + $0x558] sm:$0xff]
        %v515 = vld [vmem:[%s230 + $0x560] sm:$0xff]
        %v516 = vld [vmem:[%s230 + $0x568] sm:$0xff]
        %v517 = vld [vmem:[%s230 + $0x570] sm:$0xff]
        %v518 = vld [vmem:[%s230 + $0x578] sm:$0xff]
        %v519 = vld [vmem:[%s230 + $0x580] sm:$0xff]
        %v520 = vld [vmem:[%s230 + $0x588] sm:$0xff]
        %v521 = vld [vmem:[%s230 + $0x590] sm:$0xff]
        %v522 = vld [vmem:[%s230 + $0x598] sm:$0xff]
        %v523 = vld [vmem:[%s230 + $0x5a0] sm:$0xff]
        %v524 = vld [vmem:[%s230 + $0x5a8] sm:$0xff]
        %v525 = vld [vmem:[%s230 + $0x5b0] sm:$0xff]
        %v526 = vld [vmem:[%s230 + $0x5b8] sm:$0xff]
        %v527 = vld [vmem:[%s230 + $0x5c0] sm:$0xff]
        %v528 = vld [vmem:[%s230 + $0x5c8] sm:$0xff]
        %v529 = vld [vmem:[%s230 + $0x5d0] sm:$0xff]
        %v530 = vld [vmem:[%s230 + $0x5d8] sm:$0xff]
        %v531 = vld [vmem:[%s230 + $0x5e0] sm:$0xff]
        %v532 = vld [vmem:[%s230 + $0x5e8] sm:$0xff]
        %v533 = vld [vmem:[%s230 + $0x5f0] sm:$0xff]
        %v534 = vld [vmem:[%s230 + $0x5f8] sm:$0xff]
        %v535 = vld [vmem:[%s230 + $0x600] sm:$0xff]
        %v536 = vld [vmem:[%s230 + $0x608] sm:$0xff]
        %v537 = vld [vmem:[%s230 + $0x610] sm:$0xff]
        %v538 = vld [vmem:[%s230 + $0x618] sm:$0xff]
        %v539 = vld [vmem:[%s230 + $0x620] sm:$0xff]
        %v540 = vld [vmem:[%s230 + $0x628] sm:$0xff]
        %v541 = vld [vmem:[%s230 + $0x630] sm:$0xff]
        %v542 = vld [vmem:[%s230 + $0x638] sm:$0xff]
        %v543 = vld [vmem:[%s230 + $0x640] sm:$0xff]
        %v544 = vld [vmem:[%s230 + $0x648] sm:$0xff]
        %v545 = vld [vmem:[%s230 + $0x650] sm:$0xff]
        %v546 = vld [vmem:[%s230 + $0x658] sm:$0xff]
        %v547 = vld [vmem:[%s230 + $0x660] sm:$0xff]
        %v548 = vld [vmem:[%s230 + $0x668] sm:$0xff]
        %v549 = vld [vmem:[%s230 + $0x670] sm:$0xff]
        %v550 = vld [vmem:[%s230 + $0x678] sm:$0xff]
        %v551 = vld [vmem:[%s230 + $0x680] sm:$0xff]
        %v552 = vld [vmem:[%s230 + $0x688] sm:$0xff]
        %v553 = vld [vmem:[%s230 + $0x690] sm:$0xff]
        %v554 = vld [vmem:[%s230 + $0x698] sm:$0xff]
        %v555 = vld [vmem:[%s230 + $0x6a0] sm:$0xff]
        %v556 = vld [vmem:[%s230 + $0x6a8] sm:$0xff]
        %v557 = vld [vmem:[%s230 + $0x6b0] sm:$0xff]
        %v558 = vld [vmem:[%s230 + $0x6b8] sm:$0xff]
        %v559 = vld [vmem:[%s230 + $0x6c0] sm:$0xff]
        %v560 = vld [vmem:[%s230 + $0x6c8] sm:$0xff]
        %v561 = vld [vmem:[%s230 + $0x6d0] sm:$0xff]
        %v562 = vld [vmem:[%s230 + $0x6d8] sm:$0xff]
        %v563 = vld [vmem:[%s230 + $0x6e0] sm:$0xff]
        %v564 = vld [vmem:[%s230 + $0x6e8] sm:$0xff]
        %v565 = vld [vmem:[%s230 + $0x6f0] sm:$0xff]
        %v566 = vld [vmem:[%s230 + $0x6f8] sm:$0xff]
        %v567 = vld [vmem:[%s230 + $0x700] sm:$0xff]
        %v568 = vld [vmem:[%s230 + $0x708] sm:$0xff]
        %v569 = vld [vmem:[%s230 + $0x710] sm:$0xff]
        %v570 = vld [vmem:[%s230 + $0x718] sm:$0xff]
        %v571 = vld [vmem:[%s230 + $0x720] sm:$0xff]
        %v572 = vld [vmem:[%s230 + $0x728] sm:$0xff]
        %v573 = vld [vmem:[%s230 + $0x730] sm:$0xff]
        %v574 = vld [vmem:[%s230 + $0x738] sm:$0xff]
        %v575 = vld [vmem:[%s230 + $0x740] sm:$0xff]
        %v576 = vld [vmem:[%s230 + $0x748] sm:$0xff]
        %v577 = vld [vmem:[%s230 + $0x750] sm:$0xff]
        %v578 = vld [vmem:[%s230 + $0x758] sm:$0xff]
        %v579 = vld [vmem:[%s230 + $0x760] sm:$0xff]
        %v580 = vld [vmem:[%s230 + $0x768] sm:$0xff]
        %v581 = vld [vmem:[%s230 + $0x770] sm:$0xff]
        %v582 = vld [vmem:[%s230 + $0x778] sm:$0xff]
        %v583 = vld [vmem:[%s230 + $0x780] sm:$0xff]
        %v584 = vld [vmem:[%s230 + $0x788] sm:$0xff]
        %v585 = vld [vmem:[%s230 + $0x790] sm:$0xff]
        %v586 = vld [vmem:[%s230 + $0x798] sm:$0xff]
        %v587 = vld [vmem:[%s230 + $0x7a0] sm:$0xff]
        %v588 = vld [vmem:[%s230 + $0x7a8] sm:$0xff]
        %v589 = vld [vmem:[%s230 + $0x7b0] sm:$0xff]
        %v590 = vld [vmem:[%s230 + $0x7b8] sm:$0xff]
        %v591 = vld [vmem:[%s230 + $0x7c0] sm:$0xff]
        %v592 = vld [vmem:[%s230 + $0x7c8] sm:$0xff]
        %v593 = vld [vmem:[%s230 + $0x7d0] sm:$0xff]
        %v594 = vld [vmem:[%s230 + $0x7d8] sm:$0xff]
        %v595 = vld [vmem:[%s230 + $0x7e0] sm:$0xff]
        %v596 = vld [vmem:[%s230 + $0x7e8] sm:$0xff]
        %v597 = vld [vmem:[%s230 + $0x7f0] sm:$0xff]
        %v598 = vld [vmem:[%s230 + $0x7f8] sm:$0xff]
        %v599 = vld [vmem:[%s230 + $0x800] sm:$0xff]
        %v600 = vld [vmem:[%s230 + $0x808] sm:$0xff]
        %v601 = vld [vmem:[%s230 + $0x810] sm:$0xff]
        %v602 = vld [vmem:[%s230 + $0x818] sm:$0xff]
        %v603 = vld [vmem:[%s230 + $0x820] sm:$0xff]
        %v604 = vld [vmem:[%s230 + $0x828] sm:$0xff]
        %v605 = vld [vmem:[%s230 + $0x830] sm:$0xff]
        %v606 = vld [vmem:[%s230 + $0x838] sm:$0xff]
        %v607 = vld [vmem:[%s230 + $0x840] sm:$0xff]
        %v608 = vld [vmem:[%s230 + $0x848] sm:$0xff]
        %v609 = vld [vmem:[%s230 + $0x850] sm:$0xff]
        %v610 = vld [vmem:[%s230 + $0x858] sm:$0xff]
        %v611 = vld [vmem:[%s230 + $0x860] sm:$0xff]
        %v612 = vld [vmem:[%s230 + $0x868] sm:$0xff]
        %v613 = vld [vmem:[%s230 + $0x870] sm:$0xff]
        %v614 = vld [vmem:[%s230 + $0x878] sm:$0xff]
        %v615 = vld [vmem:[%s230 + $0x880] sm:$0xff]
        %v616 = vld [vmem:[%s230 + $0x888] sm:$0xff]
        %v617 = vld [vmem:[%s230 + $0x890] sm:$0xff]
        %v618 = vld [vmem:[%s230 + $0x898] sm:$0xff]
        %v619 = vld [vmem:[%s230 + $0x8a0] sm:$0xff]
        %v620 = vld [vmem:[%s230 + $0x8a8] sm:$0xff]
        %v621 = vld [vmem:[%s230 + $0x8b0] sm:$0xff]
        %v622 = vld [vmem:[%s230 + $0x8b8] sm:$0xff]
        %v623 = vld [vmem:[%s230 + $0x8c0] sm:$0xff]
        %v624 = vld [vmem:[%s230 + $0x8c8] sm:$0xff]
        %v625 = vld [vmem:[%s230 + $0x8d0] sm:$0xff]
        %v626 = vld [vmem:[%s230 + $0x8d8] sm:$0xff]
        %v627 = vld [vmem:[%s230 + $0x8e0] sm:$0xff]
        %v628 = vld [vmem:[%s230 + $0x8e8] sm:$0xff]
        %v629 = vld [vmem:[%s230 + $0x8f0] sm:$0xff]
        %v630 = vld [vmem:[%s230 + $0x8f8] sm:$0xff]
        %v631 = vld [vmem:[%s230 + $0x900] sm:$0xff]
        %v632 = vld [vmem:[%s230 + $0x908] sm:$0xff]
        %v633 = vld [vmem:[%s230 + $0x910] sm:$0xff]
        %v634 = vld [vmem:[%s230 + $0x918] sm:$0xff]
        %v635 = vld [vmem:[%s230 + $0x920] sm:$0xff]
        %v636 = vld [vmem:[%s230 + $0x928] sm:$0xff]
        %v637 = vld [vmem:[%s230 + $0x930] sm:$0xff]
        %v638 = vld [vmem:[%s230 + $0x938] sm:$0xff]
        %v639 = vld [vmem:[%s230 + $0x940] sm:$0xff]
        %v640 = vld [vmem:[%s230 + $0x948] sm:$0xff]
        %v641 = vld [vmem:[%s230 + $0x950] sm:$0xff]
        %v642 = vld [vmem:[%s230 + $0x958] sm:$0xff]
        %v643 = vld [vmem:[%s230 + $0x960] sm:$0xff]
        %v644 = vld [vmem:[%s230 + $0x968] sm:$0xff]
        %v645 = vld [vmem:[%s230 + $0x970] sm:$0xff]
        %v646 = vld [vmem:[%s230 + $0x978] sm:$0xff]
        %v647 = vld [vmem:[%s230 + $0x980] sm:$0xff]
        %v648 = vld [vmem:[%s230 + $0x988] sm:$0xff]
        %v649 = vld [vmem:[%s230 + $0x990] sm:$0xff]
        %v650 = vld [vmem:[%s230 + $0x998] sm:$0xff]
        %v651 = vld [vmem:[%s230 + $0x9a0] sm:$0xff]
        %v652 = vld [vmem:[%s230 + $0x9a8] sm:$0xff]
        %v653 = vld [vmem:[%s230 + $0x9b0] sm:$0xff]
        %v654 = vld [vmem:[%s230 + $0x9b8] sm:$0xff]
        %v655 = vld [vmem:[%s230 + $0x9c0] sm:$0xff]
        %v656 = vld [vmem:[%s230 + $0x9c8] sm:$0xff]
        %v657 = vld [vmem:[%s230 + $0x9d0] sm:$0xff]
        %v658 = vld [vmem:[%s230 + $0x9d8] sm:$0xff]
        %v659 = vld [vmem:[%s230 + $0x9e0] sm:$0xff]
        %v660 = vld [vmem:[%s230 + $0x9e8] sm:$0xff]
        %v661 = vld [vmem:[%s230 + $0x9f0] sm:$0xff]
        %v662 = vld [vmem:[%s230 + $0x9f8] sm:$0xff]
        %v663 = vld [vmem:[%s230 + $0xa00] sm:$0xff]
        %v664 = vld [vmem:[%s230 + $0xa08] sm:$0xff]
        %v665 = vld [vmem:[%s230 + $0xa10] sm:$0xff]
        %v666 = vld [vmem:[%s230 + $0xa18] sm:$0xff]
        %v667 = vld [vmem:[%s230 + $0xa20] sm:$0xff]
        %v668 = vld [vmem:[%s230 + $0xa28] sm:$0xff]
        %v669 = vld [vmem:[%s230 + $0xa30] sm:$0xff]
        %v670 = vld [vmem:[%s230 + $0xa38] sm:$0xff]
        %v671 = vld [vmem:[%s230 + $0xa40] sm:$0xff]
        %v672 = vld [vmem:[%s230 + $0xa48] sm:$0xff]
        %v673 = vld [vmem:[%s230 + $0xa50] sm:$0xff]
        %v674 = vld [vmem:[%s230 + $0xa58] sm:$0xff]
        %v675 = vld [vmem:[%s230 + $0xa60] sm:$0xff]
        %v676 = vld [vmem:[%s230 + $0xa68] sm:$0xff]
        %v677 = vld [vmem:[%s230 + $0xa70] sm:$0xff]
        %v678 = vld [vmem:[%s230 + $0xa78] sm:$0xff]
        %v679 = vld [vmem:[%s230 + $0xa80] sm:$0xff]
        %v680 = vld [vmem:[%s230 + $0xa88] sm:$0xff]
        %v681 = vld [vmem:[%s230 + $0xa90] sm:$0xff]
        %v682 = vld [vmem:[%s230 + $0xa98] sm:$0xff]
        %v683 = vld [vmem:[%s230 + $0xaa0] sm:$0xff]
        %v684 = vld [vmem:[%s230 + $0xaa8] sm:$0xff]
        %v685 = vld [vmem:[%s230 + $0xab0] sm:$0xff]
        %v686 = vld [vmem:[%s230 + $0xab8] sm:$0xff]
        %v687 = vld [vmem:[%s230 + $0xac0] sm:$0xff]
        %v688 = vld [vmem:[%s230 + $0xac8] sm:$0xff]
        %v689 = vld [vmem:[%s230 + $0xad0] sm:$0xff]
        %v690 = vld [vmem:[%s230 + $0xad8] sm:$0xff]
        %v691 = vld [vmem:[%s230 + $0xae0] sm:$0xff]
        %v692 = vld [vmem:[%s230 + $0xae8] sm:$0xff]
        %v693 = vld [vmem:[%s230 + $0xaf0] sm:$0xff]
        %v694 = vld [vmem:[%s230 + $0xaf8] sm:$0xff]
        %v695 = vld [vmem:[%s230 + $0xb00] sm:$0xff]
        %v696 = vld [vmem:[%s230 + $0xb08] sm:$0xff]
        %v697 = vld [vmem:[%s230 + $0xb10] sm:$0xff]
        %v698 = vld [vmem:[%s230 + $0xb18] sm:$0xff]
        %v699 = vld [vmem:[%s230 + $0xb20] sm:$0xff]
        %v700 = vld [vmem:[%s230 + $0xb28] sm:$0xff]
        %v701 = vld [vmem:[%s230 + $0xb30] sm:$0xff]
        %v702 = vld [vmem:[%s230 + $0xb38] sm:$0xff]
        %v703 = vld [vmem:[%s230 + $0xb40] sm:$0xff]
        %v704 = vld [vmem:[%s230 + $0xb48] sm:$0xff]
        %v705 = vld [vmem:[%s230 + $0xb50] sm:$0xff]
        %v706 = vld [vmem:[%s230 + $0xb58] sm:$0xff]
        %v707 = vld [vmem:[%s230 + $0xb60] sm:$0xff]
        %v708 = vld [vmem:[%s230 + $0xb68] sm:$0xff]
        %v709 = vld [vmem:[%s230 + $0xb70] sm:$0xff]
        %v710 = vld [vmem:[%s230 + $0xb78] sm:$0xff]
        %v711 = vld [vmem:[%s230 + $0xb80] sm:$0xff]
        %v712 = vld [vmem:[%s230 + $0xb88] sm:$0xff]
        %v713 = vld [vmem:[%s230 + $0xb90] sm:$0xff]
        %v714 = vld [vmem:[%s230 + $0xb98] sm:$0xff]
        %v715 = vld [vmem:[%s230 + $0xba0] sm:$0xff]
        %v716 = vld [vmem:[%s230 + $0xba8] sm:$0xff]
        %v717 = vld [vmem:[%s230 + $0xbb0] sm:$0xff]
        %v718 = vld [vmem:[%s230 + $0xbb8] sm:$0xff]
        %v719 = vld [vmem:[%s230 + $0xbc0] sm:$0xff]
        %v720 = vld [vmem:[%s230 + $0xbc8] sm:$0xff]
        %v721 = vld [vmem:[%s230 + $0xbd0] sm:$0xff]
        %v722 = vld [vmem:[%s230 + $0xbd8] sm:$0xff]
        %v723 = vld [vmem:[%s230 + $0xbe0] sm:$0xff]
        %v724 = vld [vmem:[%s230 + $0xbe8] sm:$0xff]
        %v725 = vld [vmem:[%s230 + $0xbf0] sm:$0xff]
        %v726 = vld [vmem:[%s230 + $0xbf8] sm:$0xff]
        %v727 = vld [vmem:[%s230 + $0xc00] sm:$0xff]
        %v728 = vld [vmem:[%s230 + $0xc08] sm:$0xff]
        %v729 = vld [vmem:[%s230 + $0xc10] sm:$0xff]
        %v730 = vld [vmem:[%s230 + $0xc18] sm:$0xff]
        %v731 = vld [vmem:[%s230 + $0xc20] sm:$0xff]
        %v732 = vld [vmem:[%s230 + $0xc28] sm:$0xff]
        %v733 = vld [vmem:[%s230 + $0xc30] sm:$0xff]
        %v734 = vld [vmem:[%s230 + $0xc38] sm:$0xff]
        %v735 = vld [vmem:[%s230 + $0xc40] sm:$0xff]
        %v736 = vld [vmem:[%s230 + $0xc48] sm:$0xff]
        %v737 = vld [vmem:[%s230 + $0xc50] sm:$0xff]
        %v738 = vld [vmem:[%s230 + $0xc58] sm:$0xff]
        %v739 = vld [vmem:[%s230 + $0xc60] sm:$0xff]
        %v740 = vld [vmem:[%s230 + $0xc68] sm:$0xff]
        %v741 = vld [vmem:[%s230 + $0xc70] sm:$0xff]
        %v742 = vld [vmem:[%s230 + $0xc78] sm:$0xff]
        %v743 = vld [vmem:[%s230 + $0xc80] sm:$0xff]
        %v744 = vld [vmem:[%s230 + $0xc88] sm:$0xff]
        %v745 = vld [vmem:[%s230 + $0xc90] sm:$0xff]
        %v746 = vld [vmem:[%s230 + $0xc98] sm:$0xff]
        %v747 = vld [vmem:[%s230 + $0xca0] sm:$0xff]
        %v748 = vld [vmem:[%s230 + $0xca8] sm:$0xff]
        %v749 = vld [vmem:[%s230 + $0xcb0] sm:$0xff]
        %v750 = vld [vmem:[%s230 + $0xcb8] sm:$0xff]
        %v751 = vld [vmem:[%s230 + $0xcc0] sm:$0xff]
        %v752 = vld [vmem:[%s230 + $0xcc8] sm:$0xff]
        %v753 = vld [vmem:[%s230 + $0xcd0] sm:$0xff]
        %v754 = vld [vmem:[%s230 + $0xcd8] sm:$0xff]
        %v755 = vld [vmem:[%s230 + $0xce0] sm:$0xff]
        %v756 = vld [vmem:[%s230 + $0xce8] sm:$0xff]
        %v757 = vld [vmem:[%s230 + $0xcf0] sm:$0xff]
        %v758 = vld [vmem:[%s230 + $0xcf8] sm:$0xff]
        %v759 = vld [vmem:[%s230 + $0xd00] sm:$0xff]
        %v760 = vld [vmem:[%s230 + $0xd08] sm:$0xff]
        %v761 = vld [vmem:[%s230 + $0xd10] sm:$0xff]
        %v762 = vld [vmem:[%s230 + $0xd18] sm:$0xff]
        %v763 = vld [vmem:[%s230 + $0xd20] sm:$0xff]
        %v764 = vld [vmem:[%s230 + $0xd28] sm:$0xff]
        %v765 = vld [vmem:[%s230 + $0xd30] sm:$0xff]
        %v766 = vld [vmem:[%s230 + $0xd38] sm:$0xff]
        %v767 = vld [vmem:[%s230 + $0xd40] sm:$0xff]
        %v768 = vld [vmem:[%s230 + $0xd48] sm:$0xff]
        %v769 = vld [vmem:[%s230 + $0xd50] sm:$0xff]
        %v770 = vld [vmem:[%s230 + $0xd58] sm:$0xff]
        %v771 = vld [vmem:[%s230 + $0xd60] sm:$0xff]
        %v772 = vld [vmem:[%s230 + $0xd68] sm:$0xff]
        %v773 = vld [vmem:[%s230 + $0xd70] sm:$0xff]
        %v774 = vld [vmem:[%s230 + $0xd78] sm:$0xff]
        %v775 = vld [vmem:[%s230 + $0xd80] sm:$0xff]
        %v776 = vld [vmem:[%s230 + $0xd88] sm:$0xff]
        %v777 = vld [vmem:[%s230 + $0xd90] sm:$0xff]
        %v778 = vld [vmem:[%s230 + $0xd98] sm:$0xff]
        %v779 = vld [vmem:[%s230 + $0xda0] sm:$0xff]
        %v780 = vld [vmem:[%s230 + $0xda8] sm:$0xff]
        %v781 = vld [vmem:[%s230 + $0xdb0] sm:$0xff]
        %v782 = vld [vmem:[%s230 + $0xdb8] sm:$0xff]
        %v783 = vld [vmem:[%s230 + $0xdc0] sm:$0xff]
        %v784 = vld [vmem:[%s230 + $0xdc8] sm:$0xff]
        %v785 = vld [vmem:[%s230 + $0xdd0] sm:$0xff]
        %v786 = vld [vmem:[%s230 + $0xdd8] sm:$0xff]
        %v787 = vld [vmem:[%s230 + $0xde0] sm:$0xff]
        %v788 = vld [vmem:[%s230 + $0xde8] sm:$0xff]
        %v789 = vld [vmem:[%s230 + $0xdf0] sm:$0xff]
        %v790 = vld [vmem:[%s230 + $0xdf8] sm:$0xff]
        %v791 = vld [vmem:[%s230 + $0xe00] sm:$0xff]
        %v792 = vld [vmem:[%s230 + $0xe08] sm:$0xff]
        %v793 = vld [vmem:[%s230 + $0xe10] sm:$0xff]
        %v794 = vld [vmem:[%s230 + $0xe18] sm:$0xff]
        %v795 = vld [vmem:[%s230 + $0xe20] sm:$0xff]
        %v796 = vld [vmem:[%s230 + $0xe28] sm:$0xff]
        %v797 = vld [vmem:[%s230 + $0xe30] sm:$0xff]
        %v798 = vld [vmem:[%s230 + $0xe38] sm:$0xff]
        %v799 = vld [vmem:[%s230 + $0xe40] sm:$0xff]
        %v800 = vld [vmem:[%s230 + $0xe48] sm:$0xff]
        %v801 = vld [vmem:[%s230 + $0xe50] sm:$0xff]
        %v802 = vld [vmem:[%s230 + $0xe58] sm:$0xff]
        %v803 = vld [vmem:[%s230 + $0xe60] sm:$0xff]
        %v804 = vld [vmem:[%s230 + $0xe68] sm:$0xff]
        %v805 = vld [vmem:[%s230 + $0xe70] sm:$0xff]
        %v806 = vld [vmem:[%s230 + $0xe78] sm:$0xff]
        %v807 = vld [vmem:[%s230 + $0xe80] sm:$0xff]
        %v808 = vld [vmem:[%s230 + $0xe88] sm:$0xff]
        %v809 = vld [vmem:[%s230 + $0xe90] sm:$0xff]
        %v810 = vld [vmem:[%s230 + $0xe98] sm:$0xff]
        %v811 = vld [vmem:[%s230 + $0xea0] sm:$0xff]
        %v812 = vld [vmem:[%s230 + $0xea8] sm:$0xff]
        %v813 = vld [vmem:[%s230 + $0xeb0] sm:$0xff]
        %v814 = vld [vmem:[%s230 + $0xeb8] sm:$0xff]
        %v815 = vld [vmem:[%s230 + $0xec0] sm:$0xff]
        %v816 = vld [vmem:[%s230 + $0xec8] sm:$0xff]
        %v817 = vld [vmem:[%s230 + $0xed0] sm:$0xff]
        %v818 = vld [vmem:[%s230 + $0xed8] sm:$0xff]
        %v819 = vld [vmem:[%s230 + $0xee0] sm:$0xff]
        %v820 = vld [vmem:[%s230 + $0xee8] sm:$0xff]
        %v821 = vld [vmem:[%s230 + $0xef0] sm:$0xff]
        %v822 = vld [vmem:[%s230 + $0xef8] sm:$0xff]
        %v823 = vld [vmem:[%s230 + $0xf00] sm:$0xff]
        %v824 = vld [vmem:[%s230 + $0xf08] sm:$0xff]
        %v825 = vld [vmem:[%s230 + $0xf10] sm:$0xff]
        %v826 = vld [vmem:[%s230 + $0xf18] sm:$0xff]
        %v827 = vld [vmem:[%s230 + $0xf20] sm:$0xff]
        %v828 = vld [vmem:[%s230 + $0xf28] sm:$0xff]
        %v829 = vld [vmem:[%s230 + $0xf30] sm:$0xff]
        %v830 = vld [vmem:[%s230 + $0xf38] sm:$0xff]
        %v831 = vld [vmem:[%s230 + $0xf40] sm:$0xff]
        %v832 = vld [vmem:[%s230 + $0xf48] sm:$0xff]
        %v833 = vld [vmem:[%s230 + $0xf50] sm:$0xff]
        %v834 = vld [vmem:[%s230 + $0xf58] sm:$0xff]
        %v835 = vld [vmem:[%s230 + $0xf60] sm:$0xff]
        %v836 = vld [vmem:[%s230 + $0xf68] sm:$0xff]
        %v837 = vld [vmem:[%s230 + $0xf70] sm:$0xff]
        %v838 = vld [vmem:[%s230 + $0xf78] sm:$0xff]
        %v839 = vld [vmem:[%s230 + $0xf80] sm:$0xff]
        %v840 = vld [vmem:[%s230 + $0xf88] sm:$0xff]
        %v841 = vld [vmem:[%s230 + $0xf90] sm:$0xff]
        %v842 = vld [vmem:[%s230 + $0xf98] sm:$0xff]
        %v843 = vld [vmem:[%s230 + $0xfa0] sm:$0xff]
        %v844 = vld [vmem:[%s230 + $0xfa8] sm:$0xff]
        %v845 = vld [vmem:[%s230 + $0xfb0] sm:$0xff]
        %v846 = vld [vmem:[%s230 + $0xfb8] sm:$0xff]
        %v847 = vld [vmem:[%s230 + $0xfc0] sm:$0xff]
        %v848 = vld [vmem:[%s230 + $0xfc8] sm:$0xff]
        %v849 = vld [vmem:[%s230 + $0xfd0] sm:$0xff]
        %v850 = vld [vmem:[%s230 + $0xfd8] sm:$0xff]
        %v851 = vld [vmem:[%s230 + $0xfe0] sm:$0xff]
        %v852 = vld [vmem:[%s230 + $0xfe8] sm:$0xff]
        %v853 = vld [vmem:[%s230 + $0xff0] sm:$0xff]
        %v854 = vld [vmem:[%s230 + $0xff8] sm:$0xff]
        %v855 = vld [vmem:[%s230 + $0x1000] sm:$0xff]
        %v856 = vld [vmem:[%s230 + $0x1008] sm:$0xff]
        %v857 = vld [vmem:[%s230 + $0x1010] sm:$0xff]
        %v858 = vld [vmem:[%s230 + $0x1018] sm:$0xff]
        %v859 = vld [vmem:[%s230 + $0x1020] sm:$0xff]
        %v860 = vld [vmem:[%s230 + $0x1028] sm:$0xff]
        %v861 = vld [vmem:[%s230 + $0x1030] sm:$0xff]
        %v862 = vld [vmem:[%s230 + $0x1038] sm:$0xff]
        %v863 = vld [vmem:[%s230 + $0x1040] sm:$0xff]
        %v864 = vld [vmem:[%s230 + $0x1048] sm:$0xff]
        %v865 = vld [vmem:[%s230 + $0x1050] sm:$0xff]
        %v866 = vld [vmem:[%s230 + $0x1058] sm:$0xff]
        %v867 = vld [vmem:[%s230 + $0x1060] sm:$0xff]
        %v868 = vld [vmem:[%s230 + $0x1068] sm:$0xff]
        %v869 = vld [vmem:[%s230 + $0x1070] sm:$0xff]
        %v870 = vld [vmem:[%s230 + $0x1078] sm:$0xff]
        %v871 = vld [vmem:[%s230 + $0x1080] sm:$0xff]
        %v872 = vld [vmem:[%s230 + $0x1088] sm:$0xff]
        %v873 = vld [vmem:[%s230 + $0x1090] sm:$0xff]
        %v874 = vld [vmem:[%s230 + $0x1098] sm:$0xff]
        %v875 = vld [vmem:[%s230 + $0x10a0] sm:$0xff]
        %v876 = vld [vmem:[%s230 + $0x10a8] sm:$0xff]
        %v877 = vld [vmem:[%s230 + $0x10b0] sm:$0xff]
        %v878 = vld [vmem:[%s230 + $0x10b8] sm:$0xff]
        %v879 = vld [vmem:[%s230 + $0x10c0] sm:$0xff]
        %v880 = vld [vmem:[%s230 + $0x10c8] sm:$0xff]
        %v881 = vld [vmem:[%s230 + $0x10d0] sm:$0xff]
        %v882 = vld [vmem:[%s230 + $0x10d8] sm:$0xff]
        %v883 = vld [vmem:[%s230 + $0x10e0] sm:$0xff]
        %v884 = vld [vmem:[%s230 + $0x10e8] sm:$0xff]
        %v885 = vld [vmem:[%s230 + $0x10f0] sm:$0xff]
        %v886 = vld [vmem:[%s230 + $0x10f8] sm:$0xff]
        %v887 = vld [vmem:[%s230 + $0x1100] sm:$0xff]
        %v888 = vld [vmem:[%s230 + $0x1108] sm:$0xff]
        %v889 = vld [vmem:[%s230 + $0x1110] sm:$0xff]
        %v890 = vld [vmem:[%s230 + $0x1118] sm:$0xff]
        %v891 = vld [vmem:[%s230 + $0x1120] sm:$0xff]
        %v892 = vld [vmem:[%s230 + $0x1128] sm:$0xff]
        %v893 = vld [vmem:[%s230 + $0x1130] sm:$0xff]
        %v894 = vld [vmem:[%s230 + $0x1138] sm:$0xff]
        %v895 = vld [vmem:[%s230 + $0x1140] sm:$0xff]
        %v896 = vld [vmem:[%s230 + $0x1148] sm:$0xff]
        %v897 = vld [vmem:[%s230 + $0x1150] sm:$0xff]
        %v898 = vld [vmem:[%s230 + $0x1158] sm:$0xff]
        %v899 = vld [vmem:[%s230 + $0x1160] sm:$0xff]
        %v900 = vld [vmem:[%s230 + $0x1168] sm:$0xff]
        %v901 = vld [vmem:[%s230 + $0x1170] sm:$0xff]
        %v902 = vld [vmem:[%s230 + $0x1178] sm:$0xff]
        %v903 = vld [vmem:[%s230 + $0x1180] sm:$0xff]
        %v904 = vld [vmem:[%s230 + $0x1188] sm:$0xff]
        %v905 = vld [vmem:[%s230 + $0x1190] sm:$0xff]
        %v906 = vld [vmem:[%s230 + $0x1198] sm:$0xff]
        %v907 = vld [vmem:[%s230 + $0x11a0] sm:$0xff]
        %v908 = vld [vmem:[%s230 + $0x11a8] sm:$0xff]
        %v909 = vld [vmem:[%s230 + $0x11b0] sm:$0xff]
        %v910 = vld [vmem:[%s230 + $0x11b8] sm:$0xff]
        %v911 = vld [vmem:[%s230 + $0x11c0] sm:$0xff]
        %v912 = vld [vmem:[%s230 + $0x11c8] sm:$0xff]
        %v913 = vld [vmem:[%s230 + $0x11d0] sm:$0xff]
        %v914 = vld [vmem:[%s230 + $0x11d8] sm:$0xff]
        %v915 = vld [vmem:[%s230 + $0x11e0] sm:$0xff]
        %v916 = vld [vmem:[%s230 + $0x11e8] sm:$0xff]
        %v917 = vld [vmem:[%s230 + $0x11f0] sm:$0xff]
        %v918 = vld [vmem:[%s230 + $0x11f8] sm:$0xff]
        %v919 = vld [vmem:[%s230 + $0x1200] sm:$0xff]
        %v920 = vld [vmem:[%s230 + $0x1208] sm:$0xff]
        %v921 = vld [vmem:[%s230 + $0x1210] sm:$0xff]
        %v922 = vld [vmem:[%s230 + $0x1218] sm:$0xff]
        %v923 = vld [vmem:[%s230 + $0x1220] sm:$0xff]
        %v924 = vld [vmem:[%s230 + $0x1228] sm:$0xff]
        %v925 = vld [vmem:[%s230 + $0x1230] sm:$0xff]
        %v926 = vld [vmem:[%s230 + $0x1238] sm:$0xff]
        %v927 = vld [vmem:[%s230 + $0x1240] sm:$0xff]
        %v928 = vld [vmem:[%s230 + $0x1248] sm:$0xff]
        %v929 = vld [vmem:[%s230 + $0x1250] sm:$0xff]
        %v930 = vld [vmem:[%s230 + $0x1258] sm:$0xff]
        %v931 = vld [vmem:[%s230 + $0x1260] sm:$0xff]
        %v932 = vld [vmem:[%s230 + $0x1268] sm:$0xff]
        %v933 = vld [vmem:[%s230 + $0x1270] sm:$0xff]
        %v934 = vld [vmem:[%s230 + $0x1278] sm:$0xff]
        %v935 = vld [vmem:[%s230 + $0x1280] sm:$0xff]
        %v936 = vld [vmem:[%s230 + $0x1288] sm:$0xff]
        %v937 = vld [vmem:[%s230 + $0x1290] sm:$0xff]
        %v938 = vld [vmem:[%s230 + $0x1298] sm:$0xff]
        %v939 = vld [vmem:[%s230 + $0x12a0] sm:$0xff]
        %v940 = vld [vmem:[%s230 + $0x12a8] sm:$0xff]
        %v941 = vld [vmem:[%s230 + $0x12b0] sm:$0xff]
        %v942 = vld [vmem:[%s230 + $0x12b8] sm:$0xff]
        %v943 = vld [vmem:[%s230 + $0x12c0] sm:$0xff]
        %v944 = vld [vmem:[%s230 + $0x12c8] sm:$0xff]
        %v945 = vld [vmem:[%s230 + $0x12d0] sm:$0xff]
        %v946 = vld [vmem:[%s230 + $0x12d8] sm:$0xff]
        %v947 = vld [vmem:[%s230 + $0x12e0] sm:$0xff]
        %v948 = vld [vmem:[%s230 + $0x12e8] sm:$0xff]
        %v949 = vld [vmem:[%s230 + $0x12f0] sm:$0xff]
        %v950 = vld [vmem:[%s230 + $0x12f8] sm:$0xff]
        %v951 = vld [vmem:[%s230 + $0x1300] sm:$0xff]
        %v952 = vld [vmem:[%s230 + $0x1308] sm:$0xff]
        %v953 = vld [vmem:[%s230 + $0x1310] sm:$0xff]
        %v954 = vld [vmem:[%s230 + $0x1318] sm:$0xff]
        %v955 = vld [vmem:[%s230 + $0x1320] sm:$0xff]
        %v956 = vld [vmem:[%s230 + $0x1328] sm:$0xff]
        %v957 = vld [vmem:[%s230 + $0x1330] sm:$0xff]
        %v958 = vld [vmem:[%s230 + $0x1338] sm:$0xff]
        %v959 = vld [vmem:[%s230 + $0x1340] sm:$0xff]
        %v960 = vld [vmem:[%s230 + $0x1348] sm:$0xff]
        %v961 = vld [vmem:[%s230 + $0x1350] sm:$0xff]
        %v962 = vld [vmem:[%s230 + $0x1358] sm:$0xff]
        %v963 = vld [vmem:[%s230 + $0x1360] sm:$0xff]
        %v964 = vld [vmem:[%s230 + $0x1368] sm:$0xff]
        %v965 = vld [vmem:[%s230 + $0x1370] sm:$0xff]
        %v966 = vld [vmem:[%s230 + $0x1378] sm:$0xff]
        %v967 = vld [vmem:[%s230 + $0x1380] sm:$0xff]
        %v968 = vld [vmem:[%s230 + $0x1388] sm:$0xff]
        %v969 = vld [vmem:[%s230 + $0x1390] sm:$0xff]
        %v970 = vld [vmem:[%s230 + $0x1398] sm:$0xff]
        %v971 = vld [vmem:[%s230 + $0x13a0] sm:$0xff]
        %v972 = vld [vmem:[%s230 + $0x13a8] sm:$0xff]
        %v973 = vld [vmem:[%s230 + $0x13b0] sm:$0xff]
        %v974 = vld [vmem:[%s230 + $0x13b8] sm:$0xff]
        %v975 = vld [vmem:[%s230 + $0x13c0] sm:$0xff]
        %v976 = vld [vmem:[%s230 + $0x13c8] sm:$0xff]
        %v977 = vld [vmem:[%s230 + $0x13d0] sm:$0xff]
        %v978 = vld [vmem:[%s230 + $0x13d8] sm:$0xff]
        %v979 = vld [vmem:[%s230 + $0x13e0] sm:$0xff]
        %v980 = vld [vmem:[%s230 + $0x13e8] sm:$0xff]
        %v981 = vld [vmem:[%s230 + $0x13f0] sm:$0xff]
        %v982 = vld [vmem:[%s230 + $0x13f8] sm:$0xff]
        %v983 = vld [vmem:[%s230 + $0x1400] sm:$0xff]
        %v984 = vld [vmem:[%s230 + $0x1408] sm:$0xff]
        %v985 = vld [vmem:[%s230 + $0x1410] sm:$0xff]
        %v986 = vld [vmem:[%s230 + $0x1418] sm:$0xff]
        %v987 = vld [vmem:[%s230 + $0x1420] sm:$0xff]
        %v988 = vld [vmem:[%s230 + $0x1428] sm:$0xff]
        %v989 = vld [vmem:[%s230 + $0x1430] sm:$0xff]
        %v990 = vld [vmem:[%s230 + $0x1438] sm:$0xff]
        %v991 = vld [vmem:[%s230 + $0x1440] sm:$0xff]
        %v992 = vld [vmem:[%s230 + $0x1448] sm:$0xff]
        %v993 = vld [vmem:[%s230 + $0x1450] sm:$0xff]
        %v994 = vld [vmem:[%s230 + $0x1458] sm:$0xff]
        %v995 = vld [vmem:[%s230 + $0x1460] sm:$0xff]
        %v996 = vld [vmem:[%s230 + $0x1468] sm:$0xff]
        %v997 = vld [vmem:[%s230 + $0x1470] sm:$0xff]
        %v998 = vld [vmem:[%s230 + $0x1478] sm:$0xff]
        %v999 = vld [vmem:[%s230 + $0x1480] sm:$0xff]
        %v1000 = vld [vmem:[%s230 + $0x1488] sm:$0xff]
        %v1001 = vld [vmem:[%s230 + $0x1490] sm:$0xff]
        %v1002 = vld [vmem:[%s230 + $0x1498] sm:$0xff]
        %v1003 = vld [vmem:[%s230 + $0x14a0] sm:$0xff]
        %v1004 = vld [vmem:[%s230 + $0x14a8] sm:$0xff]
        %v1005 = vld [vmem:[%s230 + $0x14b0] sm:$0xff]
        %v1006 = vld [vmem:[%s230 + $0x14b8] sm:$0xff]
        %v1007 = vld [vmem:[%s230 + $0x14c0] sm:$0xff]
        %v1008 = vld [vmem:[%s230 + $0x14c8] sm:$0xff]
        %v1009 = vld [vmem:[%s230 + $0x14d0] sm:$0xff]
        %v1010 = vld [vmem:[%s230 + $0x14d8] sm:$0xff]
        %v1011 = vld [vmem:[%s230 + $0x14e0] sm:$0xff]
        %v1012 = vld [vmem:[%s230 + $0x14e8] sm:$0xff]
        %v1013 = vld [vmem:[%s230 + $0x14f0] sm:$0xff]
        %v1014 = vld [vmem:[%s230 + $0x14f8] sm:$0xff]
        %v1015 = vld [vmem:[%s230 + $0x1500] sm:$0xff]
        %v1016 = vld [vmem:[%s230 + $0x1508] sm:$0xff]
        %v1017 = vld [vmem:[%s230 + $0x1510] sm:$0xff]
        %v1018 = vld [vmem:[%s230 + $0x1518] sm:$0xff]
        %v1019 = vld [vmem:[%s230 + $0x1520] sm:$0xff]
        %v1020 = vld [vmem:[%s230 + $0x1528] sm:$0xff]
        %v1021 = vld [vmem:[%s230 + $0x1530] sm:$0xff]
        %v1022 = vld [vmem:[%s230 + $0x1538] sm:$0xff]
        %v1023 = vld [vmem:[%s230 + $0x1540] sm:$0xff]
        %v1024 = vld [vmem:[%s230 + $0x1548] sm:$0xff]
        %v1025 = vld [vmem:[%s230 + $0x1550] sm:$0xff]
        %v1026 = vld [vmem:[%s230 + $0x1558] sm:$0xff]
        %v1027 = vld [vmem:[%s230 + $0x1560] sm:$0xff]
        %v1028 = vld [vmem:[%s230 + $0x1568] sm:$0xff]
        %v1029 = vld [vmem:[%s230 + $0x1570] sm:$0xff]
        %v1030 = vld [vmem:[%s230 + $0x1578] sm:$0xff]
        %v1031 = vld [vmem:[%s230 + $0x1580] sm:$0xff]
        %v1032 = vld [vmem:[%s230 + $0x1588] sm:$0xff]
        %v1033 = vld [vmem:[%s230 + $0x1590] sm:$0xff]
        %v1034 = vld [vmem:[%s230 + $0x1598] sm:$0xff]
        %v1035 = vld [vmem:[%s230 + $0x15a0] sm:$0xff]
        %v1036 = vld [vmem:[%s230 + $0x15a8] sm:$0xff]
        %v1037 = vld [vmem:[%s230 + $0x15b0] sm:$0xff]
        %v1038 = vld [vmem:[%s230 + $0x15b8] sm:$0xff]
        %v1039 = vld [vmem:[%s230 + $0x15c0] sm:$0xff]
        %v1040 = vld [vmem:[%s230 + $0x15c8] sm:$0xff]
        %v1041 = vld [vmem:[%s230 + $0x15d0] sm:$0xff]
        %v1042 = vld [vmem:[%s230 + $0x15d8] sm:$0xff]
        %v1043 = vld [vmem:[%s230 + $0x15e0] sm:$0xff]
        %v1044 = vld [vmem:[%s230 + $0x15e8] sm:$0xff]
        %v1045 = vld [vmem:[%s230 + $0x15f0] sm:$0xff]
        %v1046 = vld [vmem:[%s230 + $0x15f8] sm:$0xff]
        %v1047 = vld [vmem:[%s230 + $0x1600] sm:$0xff]
        %v1048 = vld [vmem:[%s230 + $0x1608] sm:$0xff]
        %v1049 = vld [vmem:[%s230 + $0x1610] sm:$0xff]
        %v1050 = vld [vmem:[%s230 + $0x1618] sm:$0xff]
        %v1051 = vld [vmem:[%s230 + $0x1620] sm:$0xff]
        %v1052 = vld [vmem:[%s230 + $0x1628] sm:$0xff]
        %v1053 = vld [vmem:[%s230 + $0x1630] sm:$0xff]
        %v1054 = vld [vmem:[%s230 + $0x1638] sm:$0xff]
        %v1055 = vld [vmem:[%s230 + $0x1640] sm:$0xff]
        %v1056 = vld [vmem:[%s230 + $0x1648] sm:$0xff]
        %v1057 = vld [vmem:[%s230 + $0x1650] sm:$0xff]
        %v1058 = vld [vmem:[%s230 + $0x1658] sm:$0xff]
        %v1059 = vld [vmem:[%s230 + $0x1660] sm:$0xff]
        %v1060 = vld [vmem:[%s230 + $0x1668] sm:$0xff]
        %v1061 = vld [vmem:[%s230 + $0x1670] sm:$0xff]
        %v1062 = vld [vmem:[%s230 + $0x1678] sm:$0xff]
        %v1063 = vld [vmem:[%s230 + $0x1680] sm:$0xff]
        %v1064 = vld [vmem:[%s230 + $0x1688] sm:$0xff]
        %v1065 = vld [vmem:[%s230 + $0x1690] sm:$0xff]
        %v1066 = vld [vmem:[%s230 + $0x1698] sm:$0xff]
        %v1067 = vld [vmem:[%s230 + $0x16a0] sm:$0xff]
        %v1068 = vld [vmem:[%s230 + $0x16a8] sm:$0xff]
        %v1069 = vld [vmem:[%s230 + $0x16b0] sm:$0xff]
        %v1070 = vld [vmem:[%s230 + $0x16b8] sm:$0xff]
        %v1071 = vld [vmem:[%s230 + $0x16c0] sm:$0xff]
        %v1072 = vld [vmem:[%s230 + $0x16c8] sm:$0xff]
        %v1073 = vld [vmem:[%s230 + $0x16d0] sm:$0xff]
        %v1074 = vld [vmem:[%s230 + $0x16d8] sm:$0xff]
        %v1075 = vld [vmem:[%s230 + $0x16e0] sm:$0xff]
        %v1076 = vld [vmem:[%s230 + $0x16e8] sm:$0xff]
        %v1077 = vld [vmem:[%s230 + $0x16f0] sm:$0xff]
        %v1078 = vld [vmem:[%s230 + $0x16f8] sm:$0xff]
        %v1079 = vld [vmem:[%s230 + $0x1700] sm:$0xff]
        %v1080 = vld [vmem:[%s230 + $0x1708] sm:$0xff]
        %v1081 = vld [vmem:[%s230 + $0x1710] sm:$0xff]
        %v1082 = vld [vmem:[%s230 + $0x1718] sm:$0xff]
        %v1083 = vld [vmem:[%s230 + $0x1720] sm:$0xff]
        %v1084 = vld [vmem:[%s230 + $0x1728] sm:$0xff]
        %v1085 = vld [vmem:[%s230 + $0x1730] sm:$0xff]
        %v1086 = vld [vmem:[%s230 + $0x1738] sm:$0xff]
        %v1087 = vld [vmem:[%s230 + $0x1740] sm:$0xff]
        %v1088 = vld [vmem:[%s230 + $0x1748] sm:$0xff]
        %v1089 = vld [vmem:[%s230 + $0x1750] sm:$0xff]
        %v1090 = vld [vmem:[%s230 + $0x1758] sm:$0xff]
        %v1091 = vld [vmem:[%s230 + $0x1760] sm:$0xff]
        %v1092 = vld [vmem:[%s230 + $0x1768] sm:$0xff]
        %v1093 = vld [vmem:[%s230 + $0x1770] sm:$0xff]
        %v1094 = vld [vmem:[%s230 + $0x1778] sm:$0xff]
        %v1095 = vld [vmem:[%s230 + $0x1780] sm:$0xff]
        %v1096 = vld [vmem:[%s230 + $0x1788] sm:$0xff]
        %v1097 = vld [vmem:[%s230 + $0x1790] sm:$0xff]
        %v1098 = vld [vmem:[%s230 + $0x1798] sm:$0xff]
        %v1099 = vld [vmem:[%s230 + $0x17a0] sm:$0xff]
        %v1100 = vld [vmem:[%s230 + $0x17a8] sm:$0xff]
        %v1101 = vld [vmem:[%s230 + $0x17b0] sm:$0xff]
        %v1102 = vld [vmem:[%s230 + $0x17b8] sm:$0xff]
        %v1103 = vld [vmem:[%s230 + $0x17c0] sm:$0xff]
        %v1104 = vld [vmem:[%s230 + $0x17c8] sm:$0xff]
        %v1105 = vld [vmem:[%s230 + $0x17d0] sm:$0xff]
        %v1106 = vld [vmem:[%s230 + $0x17d8] sm:$0xff]
        %v1107 = vld [vmem:[%s230 + $0x17e0] sm:$0xff]
        %v1108 = vld [vmem:[%s230 + $0x17e8] sm:$0xff]
        %v1109 = vld [vmem:[%s230 + $0x17f0] sm:$0xff]
        %v1110 = vld [vmem:[%s230 + $0x17f8] sm:$0xff]
        %v1111 = vld [vmem:[%s230 + $0x1800] sm:$0xff]
        %v1112 = vld [vmem:[%s230 + $0x1808] sm:$0xff]
        %v1113 = vld [vmem:[%s230 + $0x1810] sm:$0xff]
        %v1114 = vld [vmem:[%s230 + $0x1818] sm:$0xff]
        %v1115 = vld [vmem:[%s230 + $0x1820] sm:$0xff]
        %v1116 = vld [vmem:[%s230 + $0x1828] sm:$0xff]
        %v1117 = vld [vmem:[%s230 + $0x1830] sm:$0xff]
        %v1118 = vld [vmem:[%s230 + $0x1838] sm:$0xff]
        %v1119 = vld [vmem:[%s230 + $0x1840] sm:$0xff]
        %v1120 = vld [vmem:[%s230 + $0x1848] sm:$0xff]
        %v1121 = vld [vmem:[%s230 + $0x1850] sm:$0xff]
        %v1122 = vld [vmem:[%s230 + $0x1858] sm:$0xff]
        %v1123 = vld [vmem:[%s230 + $0x1860] sm:$0xff]
        %v1124 = vld [vmem:[%s230 + $0x1868] sm:$0xff]
        %v1125 = vld [vmem:[%s230 + $0x1870] sm:$0xff]
        %v1126 = vld [vmem:[%s230 + $0x1878] sm:$0xff]
        %v1127 = vld [vmem:[%s230 + $0x1880] sm:$0xff]
        %v1128 = vld [vmem:[%s230 + $0x1888] sm:$0xff]
        %v1129 = vld [vmem:[%s230 + $0x1890] sm:$0xff]
        %v1130 = vld [vmem:[%s230 + $0x1898] sm:$0xff]
        %v1131 = vld [vmem:[%s230 + $0x18a0] sm:$0xff]
        %v1132 = vld [vmem:[%s230 + $0x18a8] sm:$0xff]
        %v1133 = vld [vmem:[%s230 + $0x18b0] sm:$0xff]
        %v1134 = vld [vmem:[%s230 + $0x18b8] sm:$0xff]
        %v1135 = vld [vmem:[%s230 + $0x18c0] sm:$0xff]
        %v1136 = vld [vmem:[%s230 + $0x18c8] sm:$0xff]
        %v1137 = vld [vmem:[%s230 + $0x18d0] sm:$0xff]
        %v1138 = vld [vmem:[%s230 + $0x18d8] sm:$0xff]
        %v1139 = vld [vmem:[%s230 + $0x18e0] sm:$0xff]
        %v1140 = vld [vmem:[%s230 + $0x18e8] sm:$0xff]
        %v1141 = vld [vmem:[%s230 + $0x18f0] sm:$0xff]
        %v1142 = vld [vmem:[%s230 + $0x18f8] sm:$0xff]
        %v1143 = vld [vmem:[%s230 + $0x1900] sm:$0xff]
        %v1144 = vld [vmem:[%s230 + $0x1908] sm:$0xff]
        %v1145 = vld [vmem:[%s230 + $0x1910] sm:$0xff]
        %v1146 = vld [vmem:[%s230 + $0x1918] sm:$0xff]
        %v1147 = vld [vmem:[%s230 + $0x1920] sm:$0xff]
        %v1148 = vld [vmem:[%s230 + $0x1928] sm:$0xff]
        %v1149 = vld [vmem:[%s230 + $0x1930] sm:$0xff]
        %v1150 = vld [vmem:[%s230 + $0x1938] sm:$0xff]
        %v1151 = vld [vmem:[%s230 + $0x1940] sm:$0xff]
        %v1152 = vld [vmem:[%s230 + $0x1948] sm:$0xff]
        %v1153 = vld [vmem:[%s230 + $0x1950] sm:$0xff]
        %v1154 = vld [vmem:[%s230 + $0x1958] sm:$0xff]
        %v1155 = vld [vmem:[%s230 + $0x1960] sm:$0xff]
        %v1156 = vld [vmem:[%s230 + $0x1968] sm:$0xff]
        %v1157 = vld [vmem:[%s230 + $0x1970] sm:$0xff]
        %v1158 = vld [vmem:[%s230 + $0x1978] sm:$0xff]
        %v1159 = vld [vmem:[%s230 + $0x1980] sm:$0xff]
        %v1160 = vld [vmem:[%s230 + $0x1988] sm:$0xff]
        %v1161 = vld [vmem:[%s230 + $0x1990] sm:$0xff]
        %v1162 = vld [vmem:[%s230 + $0x1998] sm:$0xff]
        %v1163 = vld [vmem:[%s230 + $0x19a0] sm:$0xff]
        %v1164 = vld [vmem:[%s230 + $0x19a8] sm:$0xff]
        %v1165 = vld [vmem:[%s230 + $0x19b0] sm:$0xff]
        %v1166 = vld [vmem:[%s230 + $0x19b8] sm:$0xff]
        %v1167 = vld [vmem:[%s230 + $0x19c0] sm:$0xff]
        %v1168 = vld [vmem:[%s230 + $0x19c8] sm:$0xff]
        %v1169 = vld [vmem:[%s230 + $0x19d0] sm:$0xff]
        %v1170 = vld [vmem:[%s230 + $0x19d8] sm:$0xff]
        %v1171 = vld [vmem:[%s230 + $0x19e0] sm:$0xff]
        %v1172 = vld [vmem:[%s230 + $0x19e8] sm:$0xff]
        %v1173 = vld [vmem:[%s230 + $0x19f0] sm:$0xff]
        %v1174 = vld [vmem:[%s230 + $0x19f8] sm:$0xff]
        %v1175 = vld [vmem:[%s230 + $0x1a00] sm:$0xff]
        %v1176 = vld [vmem:[%s230 + $0x1a08] sm:$0xff]
        %v1177 = vld [vmem:[%s230 + $0x1a10] sm:$0xff]
        %v1178 = vld [vmem:[%s230 + $0x1a18] sm:$0xff]
        %v1179 = vld [vmem:[%s230 + $0x1a20] sm:$0xff]
        %v1180 = vld [vmem:[%s230 + $0x1a28] sm:$0xff]
        %v1181 = vld [vmem:[%s230 + $0x1a30] sm:$0xff]
        %v1182 = vld [vmem:[%s230 + $0x1a38] sm:$0xff]
        %v1183 = vld [vmem:[%s230 + $0x1a40] sm:$0xff]
        %v1184 = vld [vmem:[%s230 + $0x1a48] sm:$0xff]
        %v1185 = vld [vmem:[%s230 + $0x1a50] sm:$0xff]
        %v1186 = vld [vmem:[%s230 + $0x1a58] sm:$0xff]
        %v1187 = vld [vmem:[%s230 + $0x1a60] sm:$0xff]
        %v1188 = vld [vmem:[%s230 + $0x1a68] sm:$0xff]
        %v1189 = vld [vmem:[%s230 + $0x1a70] sm:$0xff]
        %v1190 = vld [vmem:[%s230 + $0x1a78] sm:$0xff]
        %v1191 = vld [vmem:[%s230 + $0x1a80] sm:$0xff]
        %v1192 = vld [vmem:[%s230 + $0x1a88] sm:$0xff]
        %v1193 = vld [vmem:[%s230 + $0x1a90] sm:$0xff]
        %v1194 = vld [vmem:[%s230 + $0x1a98] sm:$0xff]
        %v1195 = vld [vmem:[%s230 + $0x1aa0] sm:$0xff]
        %v1196 = vld [vmem:[%s230 + $0x1aa8] sm:$0xff]
        %v1197 = vld [vmem:[%s230 + $0x1ab0] sm:$0xff]
        %v1198 = vld [vmem:[%s230 + $0x1ab8] sm:$0xff]
        %v1199 = vld [vmem:[%s230 + $0x1ac0] sm:$0xff]
        %v1200 = vld [vmem:[%s230 + $0x1ac8] sm:$0xff]
        %v1201 = vld [vmem:[%s230 + $0x1ad0] sm:$0xff]
        %v1202 = vld [vmem:[%s230 + $0x1ad8] sm:$0xff]
        %v1203 = vld [vmem:[%s230 + $0x1ae0] sm:$0xff]
        %v1204 = vld [vmem:[%s230 + $0x1ae8] sm:$0xff]
        %v1205 = vld [vmem:[%s230 + $0x1af0] sm:$0xff]
        %v1206 = vld [vmem:[%s230 + $0x1af8] sm:$0xff]
        %v1207 = vld [vmem:[%s230 + $0x1b00] sm:$0xff]
        %v1208 = vld [vmem:[%s230 + $0x1b08] sm:$0xff]
        %v1209 = vld [vmem:[%s230 + $0x1b10] sm:$0xff]
        %v1210 = vld [vmem:[%s230 + $0x1b18] sm:$0xff]
        %v1211 = vld [vmem:[%s230 + $0x1b20] sm:$0xff]
        %v1212 = vld [vmem:[%s230 + $0x1b28] sm:$0xff]
        %v1213 = vld [vmem:[%s230 + $0x1b30] sm:$0xff]
        %v1214 = vld [vmem:[%s230 + $0x1b38] sm:$0xff]
        %v1215 = vld [vmem:[%s230 + $0x1b40] sm:$0xff]
        %v1216 = vld [vmem:[%s230 + $0x1b48] sm:$0xff]
        %v1217 = vld [vmem:[%s230 + $0x1b50] sm:$0xff]
        %v1218 = vld [vmem:[%s230 + $0x1b58] sm:$0xff]
        %v1219 = vld [vmem:[%s230 + $0x1b60] sm:$0xff]
        %v1220 = vld [vmem:[%s230 + $0x1b68] sm:$0xff]
        %v1221 = vld [vmem:[%s230 + $0x1b70] sm:$0xff]
        %v1222 = vld [vmem:[%s230 + $0x1b78] sm:$0xff]
        %v1223 = vld [vmem:[%s230 + $0x1b80] sm:$0xff]
        %v1224 = vld [vmem:[%s230 + $0x1b88] sm:$0xff]
        %v1225 = vld [vmem:[%s230 + $0x1b90] sm:$0xff]
        %v1226 = vld [vmem:[%s230 + $0x1b98] sm:$0xff]
        %v1227 = vld [vmem:[%s230 + $0x1ba0] sm:$0xff]
        %v1228 = vld [vmem:[%s230 + $0x1ba8] sm:$0xff]
        %v1229 = vld [vmem:[%s230 + $0x1bb0] sm:$0xff]
        %v1230 = vld [vmem:[%s230 + $0x1bb8] sm:$0xff]
        %v1231 = vld [vmem:[%s230 + $0x1bc0] sm:$0xff]
        %v1232 = vld [vmem:[%s230 + $0x1bc8] sm:$0xff]
        %v1233 = vld [vmem:[%s230 + $0x1bd0] sm:$0xff]
        %v1234 = vld [vmem:[%s230 + $0x1bd8] sm:$0xff]
        %v1235 = vld [vmem:[%s230 + $0x1be0] sm:$0xff]
        %v1236 = vld [vmem:[%s230 + $0x1be8] sm:$0xff]
        %v1237 = vld [vmem:[%s230 + $0x1bf0] sm:$0xff]
        %v1238 = vld [vmem:[%s230 + $0x1bf8] sm:$0xff]
        %v1239 = vld [vmem:[%s230 + $0x1c00] sm:$0xff]
        %v1240 = vld [vmem:[%s230 + $0x1c08] sm:$0xff]
        %v1241 = vld [vmem:[%s230 + $0x1c10] sm:$0xff]
        %v1242 = vld [vmem:[%s230 + $0x1c18] sm:$0xff]
        %v1243 = vld [vmem:[%s230 + $0x1c20] sm:$0xff]
        %v1244 = vld [vmem:[%s230 + $0x1c28] sm:$0xff]
        %v1245 = vld [vmem:[%s230 + $0x1c30] sm:$0xff]
        %v1246 = vld [vmem:[%s230 + $0x1c38] sm:$0xff]
        %v1247 = vld [vmem:[%s230 + $0x1c40] sm:$0xff]
        %v1248 = vld [vmem:[%s230 + $0x1c48] sm:$0xff]
        %v1249 = vld [vmem:[%s230 + $0x1c50] sm:$0xff]
        %v1250 = vld [vmem:[%s230 + $0x1c58] sm:$0xff]
        %v1251 = vld [vmem:[%s230 + $0x1c60] sm:$0xff]
        %v1252 = vld [vmem:[%s230 + $0x1c68] sm:$0xff]
        %v1253 = vld [vmem:[%s230 + $0x1c70] sm:$0xff]
        %v1254 = vld [vmem:[%s230 + $0x1c78] sm:$0xff]
        %v1255 = vld [vmem:[%s230 + $0x1c80] sm:$0xff]
        %v1256 = vld [vmem:[%s230 + $0x1c88] sm:$0xff]
        %v1257 = vld [vmem:[%s230 + $0x1c90] sm:$0xff]
        %v1258 = vld [vmem:[%s230 + $0x1c98] sm:$0xff]
        %v1259 = vld [vmem:[%s230 + $0x1ca0] sm:$0xff]
        %v1260 = vld [vmem:[%s230 + $0x1ca8] sm:$0xff]
        %v1261 = vld [vmem:[%s230 + $0x1cb0] sm:$0xff]
        %v1262 = vld [vmem:[%s230 + $0x1cb8] sm:$0xff]
        %v1263 = vld [vmem:[%s230 + $0x1cc0] sm:$0xff]
        %v1264 = vld [vmem:[%s230 + $0x1cc8] sm:$0xff]
        %v1265 = vld [vmem:[%s230 + $0x1cd0] sm:$0xff]
        %v1266 = vld [vmem:[%s230 + $0x1cd8] sm:$0xff]
        %v1267 = vld [vmem:[%s230 + $0x1ce0] sm:$0xff]
        %v1268 = vld [vmem:[%s230 + $0x1ce8] sm:$0xff]
        %v1269 = vld [vmem:[%s230 + $0x1cf0] sm:$0xff]
        %v1270 = vld [vmem:[%s230 + $0x1cf8] sm:$0xff]
        %v1271 = vld [vmem:[%s230 + $0x1d00] sm:$0xff]
        %v1272 = vld [vmem:[%s230 + $0x1d08] sm:$0xff]
        %v1273 = vld [vmem:[%s230 + $0x1d10] sm:$0xff]
        %v1274 = vld [vmem:[%s230 + $0x1d18] sm:$0xff]
        %v1275 = vld [vmem:[%s230 + $0x1d20] sm:$0xff]
        %v1276 = vld [vmem:[%s230 + $0x1d28] sm:$0xff]
        %v1277 = vld [vmem:[%s230 + $0x1d30] sm:$0xff]
        %v1278 = vld [vmem:[%s230 + $0x1d38] sm:$0xff]
        %v1279 = vld [vmem:[%s230 + $0x1d40] sm:$0xff]
        %v1280 = vld [vmem:[%s230 + $0x1d48] sm:$0xff]
        %v1281 = vld [vmem:[%s230 + $0x1d50] sm:$0xff]
        %v1282 = vld [vmem:[%s230 + $0x1d58] sm:$0xff]
        %v1283 = vld [vmem:[%s230 + $0x1d60] sm:$0xff]
        %v1284 = vld [vmem:[%s230 + $0x1d68] sm:$0xff]
        %v1285 = vld [vmem:[%s230 + $0x1d70] sm:$0xff]
        %v1286 = vld [vmem:[%s230 + $0x1d78] sm:$0xff]
        %v1287 = vld [vmem:[%s230 + $0x1d80] sm:$0xff]
        %v1288 = vld [vmem:[%s230 + $0x1d88] sm:$0xff]
        %v1289 = vld [vmem:[%s230 + $0x1d90] sm:$0xff]
        %v1290 = vld [vmem:[%s230 + $0x1d98] sm:$0xff]
        %v1291 = vld [vmem:[%s230 + $0x1da0] sm:$0xff]
        %v1292 = vld [vmem:[%s230 + $0x1da8] sm:$0xff]
        %v1293 = vld [vmem:[%s230 + $0x1db0] sm:$0xff]
        %v1294 = vld [vmem:[%s230 + $0x1db8] sm:$0xff]
        %v1295 = vld [vmem:[%s230 + $0x1dc0] sm:$0xff]
        %v1296 = vld [vmem:[%s230 + $0x1dc8] sm:$0xff]
        %v1297 = vld [vmem:[%s230 + $0x1dd0] sm:$0xff]
        %v1298 = vld [vmem:[%s230 + $0x1dd8] sm:$0xff]
        %v1299 = vld [vmem:[%s230 + $0x1de0] sm:$0xff]
        %v1300 = vld [vmem:[%s230 + $0x1de8] sm:$0xff]
        %v1301 = vld [vmem:[%s230 + $0x1df0] sm:$0xff]
        %v1302 = vld [vmem:[%s230 + $0x1df8] sm:$0xff]
        %v1303 = vld [vmem:[%s230 + $0x1e00] sm:$0xff]
        %v1304 = vld [vmem:[%s230 + $0x1e08] sm:$0xff]
        %v1305 = vld [vmem:[%s230 + $0x1e10] sm:$0xff]
        %v1306 = vld [vmem:[%s230 + $0x1e18] sm:$0xff]
        %v1307 = vld [vmem:[%s230 + $0x1e20] sm:$0xff]
        %v1308 = vld [vmem:[%s230 + $0x1e28] sm:$0xff]
        %v1309 = vld [vmem:[%s230 + $0x1e30] sm:$0xff]
        %v1310 = vld [vmem:[%s230 + $0x1e38] sm:$0xff]
        %v1311 = vld [vmem:[%s230 + $0x1e40] sm:$0xff]
        %v1312 = vld [vmem:[%s230 + $0x1e48] sm:$0xff]
        %v1313 = vld [vmem:[%s230 + $0x1e50] sm:$0xff]
        %v1314 = vld [vmem:[%s230 + $0x1e58] sm:$0xff]
        %v1315 = vld [vmem:[%s230 + $0x1e60] sm:$0xff]
        %v1316 = vld [vmem:[%s230 + $0x1e68] sm:$0xff]
        %v1317 = vld [vmem:[%s230 + $0x1e70] sm:$0xff]
        %v1318 = vld [vmem:[%s230 + $0x1e78] sm:$0xff]
        %v1319 = vld [vmem:[%s230 + $0x1e80] sm:$0xff]
        %v1320 = vld [vmem:[%s230 + $0x1e88] sm:$0xff]
        %v1321 = vld [vmem:[%s230 + $0x1e90] sm:$0xff]
        %v1322 = vld [vmem:[%s230 + $0x1e98] sm:$0xff]
        %v1323 = vld [vmem:[%s230 + $0x1ea0] sm:$0xff]
        %v1324 = vld [vmem:[%s230 + $0x1ea8] sm:$0xff]
        %v1325 = vld [vmem:[%s230 + $0x1eb0] sm:$0xff]
        %v1326 = vld [vmem:[%s230 + $0x1eb8] sm:$0xff]
        %v1327 = vld [vmem:[%s230 + $0x1ec0] sm:$0xff]
        %v1328 = vld [vmem:[%s230 + $0x1ec8] sm:$0xff]
        %v1329 = vld [vmem:[%s230 + $0x1ed0] sm:$0xff]
        %v1330 = vld [vmem:[%s230 + $0x1ed8] sm:$0xff]
        %v1331 = vld [vmem:[%s230 + $0x1ee0] sm:$0xff]
        %v1332 = vld [vmem:[%s230 + $0x1ee8] sm:$0xff]
        %v1333 = vld [vmem:[%s230 + $0x1ef0] sm:$0xff]
        %v1334 = vld [vmem:[%s230 + $0x1ef8] sm:$0xff]
        %v1335 = vld [vmem:[%s230 + $0x1f00] sm:$0xff]
        %v1336 = vld [vmem:[%s230 + $0x1f08] sm:$0xff]
        %v1337 = vld [vmem:[%s230 + $0x1f10] sm:$0xff]
        %v1338 = vld [vmem:[%s230 + $0x1f18] sm:$0xff]
        %v1339 = vld [vmem:[%s230 + $0x1f20] sm:$0xff]
        %v1340 = vld [vmem:[%s230 + $0x1f28] sm:$0xff]
        %v1341 = vld [vmem:[%s230 + $0x1f30] sm:$0xff]
        %v1342 = vld [vmem:[%s230 + $0x1f38] sm:$0xff]
        %v1343 = vld [vmem:[%s230 + $0x1f40] sm:$0xff]
        %v1344 = vld [vmem:[%s230 + $0x1f48] sm:$0xff]
        %v1345 = vld [vmem:[%s230 + $0x1f50] sm:$0xff]
        %v1346 = vld [vmem:[%s230 + $0x1f58] sm:$0xff]
        %v1347 = vld [vmem:[%s230 + $0x1f60] sm:$0xff]
        %v1348 = vld [vmem:[%s230 + $0x1f68] sm:$0xff]
        %v1349 = vld [vmem:[%s230 + $0x1f70] sm:$0xff]
        %v1350 = vld [vmem:[%s230 + $0x1f78] sm:$0xff]
        %v1351 = vld [vmem:[%s230 + $0x1f80] sm:$0xff]
        %v1352 = vld [vmem:[%s230 + $0x1f88] sm:$0xff]
        %v1353 = vld [vmem:[%s230 + $0x1f90] sm:$0xff]
        %v1354 = vld [vmem:[%s230 + $0x1f98] sm:$0xff]
        %v1355 = vld [vmem:[%s230 + $0x1fa0] sm:$0xff]
        %v1356 = vld [vmem:[%s230 + $0x1fa8] sm:$0xff]
        %v1357 = vld [vmem:[%s230 + $0x1fb0] sm:$0xff]
        %v1358 = vld [vmem:[%s230 + $0x1fb8] sm:$0xff]
        %v1359 = vld [vmem:[%s230 + $0x1fc0] sm:$0xff]
        %v1360 = vld [vmem:[%s230 + $0x1fc8] sm:$0xff]
        %v1361 = vld [vmem:[%s230 + $0x1fd0] sm:$0xff]
        %v1362 = vld [vmem:[%s230 + $0x1fd8] sm:$0xff]
        %v1363 = vld [vmem:[%s230 + $0x1fe0] sm:$0xff]
        %v1364 = vld [vmem:[%s230 + $0x1fe8] sm:$0xff]
        %v1365 = vld [vmem:[%s230 + $0x1ff0] sm:$0xff]
        %v1366 = vld [vmem:[%s230 + $0x1ff8] sm:$0xff]
        %v1371 = vunpack.c.l.b16 %v339
        %v1372 = vunpack.c.h.b16 %v339
        %v1373 = vunpack.c.l.b16 %v340
        %v1374 = vunpack.c.h.b16 %v340
        %v1375 = vunpack.c.l.b16 %v341
        %v1376 = vunpack.c.h.b16 %v341
        %v1377 = vunpack.c.l.b16 %v342
        %v1378 = vunpack.c.h.b16 %v342
        %v1379 = vpack.c.b16 %v1371, %v1371
        %v1380 = vpack.c.b16 %v1372, %v1372
        %v1381 = vpack.c.b16 %v1373, %v1373
        %v1382 = vpack.c.b16 %v1374, %v1374
        %v1383 = vpack.c.b16 %v1375, %v1375
        %v1384 = vpack.c.b16 %v1376, %v1376
        %v1385 = vpack.c.b16 %v1377, %v1377
        %v1386 = vpack.c.b16 %v1378, %v1378
        %v2419 = vunpack.c.l.b16 %v343
        %v2420 = vunpack.c.h.b16 %v343
        %v2421 = vunpack.c.l.b16 %v344
        %v2422 = vunpack.c.h.b16 %v344
        %v2423 = vunpack.c.l.b16 %v345
        %v2424 = vunpack.c.h.b16 %v345
        %v2425 = vunpack.c.l.b16 %v346
        %v2426 = vunpack.c.h.b16 %v346
        %v2427 = vunpack.c.l.b16 %v347
        %v2428 = vunpack.c.h.b16 %v347
        %v2429 = vunpack.c.l.b16 %v348
        %v2430 = vunpack.c.h.b16 %v348
        %v2431 = vunpack.c.l.b16 %v349
        %v2432 = vunpack.c.h.b16 %v349
        %v2433 = vunpack.c.l.b16 %v350
        %v2434 = vunpack.c.h.b16 %v350
        %v2435 = vunpack.c.l.b16 %v351
        %v2436 = vunpack.c.h.b16 %v351
        %v2437 = vunpack.c.l.b16 %v352
        %v2438 = vunpack.c.h.b16 %v352
        %v2439 = vunpack.c.l.b16 %v353
        %v2440 = vunpack.c.h.b16 %v353
        %v2441 = vunpack.c.l.b16 %v354
        %v2442 = vunpack.c.h.b16 %v354
        %v2443 = vunpack.c.l.b16 %v355
        %v2444 = vunpack.c.h.b16 %v355
        %v2445 = vunpack.c.l.b16 %v356
        %v2446 = vunpack.c.h.b16 %v356
        %v2447 = vunpack.c.l.b16 %v357
        %v2448 = vunpack.c.h.b16 %v357
        %v2449 = vunpack.c.l.b16 %v358
        %v2450 = vunpack.c.h.b16 %v358
        %v2451 = vunpack.c.l.b16 %v359
        %v2452 = vunpack.c.h.b16 %v359
        %v2453 = vunpack.c.l.b16 %v360
        %v2454 = vunpack.c.h.b16 %v360
        %v2455 = vunpack.c.l.b16 %v361
        %v2456 = vunpack.c.h.b16 %v361
        %v2457 = vunpack.c.l.b16 %v362
        %v2458 = vunpack.c.h.b16 %v362
        %v2459 = vunpack.c.l.b16 %v363
        %v2460 = vunpack.c.h.b16 %v363
        %v2461 = vunpack.c.l.b16 %v364
        %v2462 = vunpack.c.h.b16 %v364
        %v2463 = vunpack.c.l.b16 %v365
        %v2464 = vunpack.c.h.b16 %v365
        %v2465 = vunpack.c.l.b16 %v366
        %v2466 = vunpack.c.h.b16 %v366
        %v2467 = vunpack.c.l.b16 %v367
        %v2468 = vunpack.c.h.b16 %v367
        %v2469 = vunpack.c.l.b16 %v368
        %v2470 = vunpack.c.h.b16 %v368
        %v2471 = vunpack.c.l.b16 %v369
        %v2472 = vunpack.c.h.b16 %v369
        %v2473 = vunpack.c.l.b16 %v370
        %v2474 = vunpack.c.h.b16 %v370
        %v2475 = vunpack.c.l.b16 %v371
        %v2476 = vunpack.c.h.b16 %v371
        %v2477 = vunpack.c.l.b16 %v372
        %v2478 = vunpack.c.h.b16 %v372
        %v2479 = vunpack.c.l.b16 %v373
        %v2480 = vunpack.c.h.b16 %v373
        %v2481 = vunpack.c.l.b16 %v374
        %v2482 = vunpack.c.h.b16 %v374
        %v2483 = vunpack.c.l.b16 %v375
        %v2484 = vunpack.c.h.b16 %v375
        %v2485 = vunpack.c.l.b16 %v376
        %v2486 = vunpack.c.h.b16 %v376
        %v2487 = vunpack.c.l.b16 %v377
        %v2488 = vunpack.c.h.b16 %v377
        %v2489 = vunpack.c.l.b16 %v378
        %v2490 = vunpack.c.h.b16 %v378
        %v2491 = vunpack.c.l.b16 %v379
        %v2492 = vunpack.c.h.b16 %v379
        %v2493 = vunpack.c.l.b16 %v380
        %v2494 = vunpack.c.h.b16 %v380
        %v2495 = vunpack.c.l.b16 %v381
        %v2496 = vunpack.c.h.b16 %v381
        %v2497 = vunpack.c.l.b16 %v382
        %v2498 = vunpack.c.h.b16 %v382
        %v2499 = vunpack.c.l.b16 %v383
        %v2500 = vunpack.c.h.b16 %v383
        %v2501 = vunpack.c.l.b16 %v384
        %v2502 = vunpack.c.h.b16 %v384
        %v2503 = vunpack.c.l.b16 %v385
        %v2504 = vunpack.c.h.b16 %v385
        %v2505 = vunpack.c.l.b16 %v386
        %v2506 = vunpack.c.h.b16 %v386
        %v2507 = vunpack.c.l.b16 %v387
        %v2508 = vunpack.c.h.b16 %v387
        %v2509 = vunpack.c.l.b16 %v388
        %v2510 = vunpack.c.h.b16 %v388
        %v2511 = vunpack.c.l.b16 %v389
        %v2512 = vunpack.c.h.b16 %v389
        %v2513 = vunpack.c.l.b16 %v390
        %v2514 = vunpack.c.h.b16 %v390
        %v2515 = vunpack.c.l.b16 %v391
        %v2516 = vunpack.c.h.b16 %v391
        %v2517 = vunpack.c.l.b16 %v392
        %v2518 = vunpack.c.h.b16 %v392
        %v2519 = vunpack.c.l.b16 %v393
        %v2520 = vunpack.c.h.b16 %v393
        %v2521 = vunpack.c.l.b16 %v394
        %v2522 = vunpack.c.h.b16 %v394
        %v2523 = vunpack.c.l.b16 %v395
        %v2524 = vunpack.c.h.b16 %v395
        %v2525 = vunpack.c.l.b16 %v396
        %v2526 = vunpack.c.h.b16 %v396
        %v2527 = vunpack.c.l.b16 %v397
        %v2528 = vunpack.c.h.b16 %v397
        %v2529 = vunpack.c.l.b16 %v398
        %v2530 = vunpack.c.h.b16 %v398
        %v2531 = vunpack.c.l.b16 %v399
        %v2532 = vunpack.c.h.b16 %v399
        %v2533 = vunpack.c.l.b16 %v400
        %v2534 = vunpack.c.h.b16 %v400
        %v2535 = vunpack.c.l.b16 %v401
        %v2536 = vunpack.c.h.b16 %v401
        %v2537 = vunpack.c.l.b16 %v402
        %v2538 = vunpack.c.h.b16 %v402
        %v2539 = vunpack.c.l.b16 %v403
        %v2540 = vunpack.c.h.b16 %v403
        %v2541 = vunpack.c.l.b16 %v404
        %v2542 = vunpack.c.h.b16 %v404
        %v2543 = vunpack.c.l.b16 %v405
        %v2544 = vunpack.c.h.b16 %v405
        %v2545 = vunpack.c.l.b16 %v406
        %v2546 = vunpack.c.h.b16 %v406
        %v2547 = vunpack.c.l.b16 %v407
        %v2548 = vunpack.c.h.b16 %v407
        %v2549 = vunpack.c.l.b16 %v408
        %v2550 = vunpack.c.h.b16 %v408
        %v2551 = vunpack.c.l.b16 %v409
        %v2552 = vunpack.c.h.b16 %v409
        %v2553 = vunpack.c.l.b16 %v410
        %v2554 = vunpack.c.h.b16 %v410
        %v2555 = vunpack.c.l.b16 %v411
        %v2556 = vunpack.c.h.b16 %v411
        %v2557 = vunpack.c.l.b16 %v412
        %v2558 = vunpack.c.h.b16 %v412
        %v2559 = vunpack.c.l.b16 %v413
        %v2560 = vunpack.c.h.b16 %v413
        %v2561 = vunpack.c.l.b16 %v414
        %v2562 = vunpack.c.h.b16 %v414
        %v2563 = vunpack.c.l.b16 %v415
        %v2564 = vunpack.c.h.b16 %v415
        %v2565 = vunpack.c.l.b16 %v416
        %v2566 = vunpack.c.h.b16 %v416
        %v2567 = vunpack.c.l.b16 %v417
        %v2568 = vunpack.c.h.b16 %v417
        %v2569 = vunpack.c.l.b16 %v418
        %v2570 = vunpack.c.h.b16 %v418
        %v2571 = vunpack.c.l.b16 %v419
        %v2572 = vunpack.c.h.b16 %v419
        %v2573 = vunpack.c.l.b16 %v420
        %v2574 = vunpack.c.h.b16 %v420
        %v2575 = vunpack.c.l.b16 %v421
        %v2576 = vunpack.c.h.b16 %v421
        %v2577 = vunpack.c.l.b16 %v422
        %v2578 = vunpack.c.h.b16 %v422
        %v2579 = vunpack.c.l.b16 %v423
        %v2580 = vunpack.c.h.b16 %v423
        %v2581 = vunpack.c.l.b16 %v424
        %v2582 = vunpack.c.h.b16 %v424
        %v2583 = vunpack.c.l.b16 %v425
        %v2584 = vunpack.c.h.b16 %v425
        %v2585 = vunpack.c.l.b16 %v426
        %v2586 = vunpack.c.h.b16 %v426
        %v2587 = vunpack.c.l.b16 %v427
        %v2588 = vunpack.c.h.b16 %v427
        %v2589 = vunpack.c.l.b16 %v428
        %v2590 = vunpack.c.h.b16 %v428
        %v2591 = vunpack.c.l.b16 %v429
        %v2592 = vunpack.c.h.b16 %v429
        %v2593 = vunpack.c.l.b16 %v430
        %v2594 = vunpack.c.h.b16 %v430
        %v2595 = vunpack.c.l.b16 %v431
        %v2596 = vunpack.c.h.b16 %v431
        %v2597 = vunpack.c.l.b16 %v432
        %v2598 = vunpack.c.h.b16 %v432
        %v2599 = vunpack.c.l.b16 %v433
        %v2600 = vunpack.c.h.b16 %v433
        %v2601 = vunpack.c.l.b16 %v434
        %v2602 = vunpack.c.h.b16 %v434
        %v2603 = vunpack.c.l.b16 %v435
        %v2604 = vunpack.c.h.b16 %v435
        %v2605 = vunpack.c.l.b16 %v436
        %v2606 = vunpack.c.h.b16 %v436
        %v2607 = vunpack.c.l.b16 %v437
        %v2608 = vunpack.c.h.b16 %v437
        %v2609 = vunpack.c.l.b16 %v438
        %v2610 = vunpack.c.h.b16 %v438
        %v2611 = vunpack.c.l.b16 %v439
        %v2612 = vunpack.c.h.b16 %v439
        %v2613 = vunpack.c.l.b16 %v440
        %v2614 = vunpack.c.h.b16 %v440
        %v2615 = vunpack.c.l.b16 %v441
        %v2616 = vunpack.c.h.b16 %v441
        %v2617 = vunpack.c.l.b16 %v442
        %v2618 = vunpack.c.h.b16 %v442
        %v2619 = vunpack.c.l.b16 %v443
        %v2620 = vunpack.c.h.b16 %v443
        %v2621 = vunpack.c.l.b16 %v444
        %v2622 = vunpack.c.h.b16 %v444
        %v2623 = vunpack.c.l.b16 %v445
        %v2624 = vunpack.c.h.b16 %v445
        %v2625 = vunpack.c.l.b16 %v446
        %v2626 = vunpack.c.h.b16 %v446
        %v2627 = vunpack.c.l.b16 %v447
        %v2628 = vunpack.c.h.b16 %v447
        %v2629 = vunpack.c.l.b16 %v448
        %v2630 = vunpack.c.h.b16 %v448
        %v2631 = vunpack.c.l.b16 %v449
        %v2632 = vunpack.c.h.b16 %v449
        %v2633 = vunpack.c.l.b16 %v450
        %v2634 = vunpack.c.h.b16 %v450
        %v2635 = vunpack.c.l.b16 %v451
        %v2636 = vunpack.c.h.b16 %v451
        %v2637 = vunpack.c.l.b16 %v452
        %v2638 = vunpack.c.h.b16 %v452
        %v2639 = vunpack.c.l.b16 %v453
        %v2640 = vunpack.c.h.b16 %v453
        %v2641 = vunpack.c.l.b16 %v454
        %v2642 = vunpack.c.h.b16 %v454
        %v2643 = vunpack.c.l.b16 %v455
        %v2644 = vunpack.c.h.b16 %v455
        %v2645 = vunpack.c.l.b16 %v456
        %v2646 = vunpack.c.h.b16 %v456
        %v2647 = vunpack.c.l.b16 %v457
        %v2648 = vunpack.c.h.b16 %v457
        %v2649 = vunpack.c.l.b16 %v458
        %v2650 = vunpack.c.h.b16 %v458
        %v2651 = vunpack.c.l.b16 %v459
        %v2652 = vunpack.c.h.b16 %v459
        %v2653 = vunpack.c.l.b16 %v460
        %v2654 = vunpack.c.h.b16 %v460
        %v2655 = vunpack.c.l.b16 %v461
        %v2656 = vunpack.c.h.b16 %v461
        %v2657 = vunpack.c.l.b16 %v462
        %v2658 = vunpack.c.h.b16 %v462
        %v2659 = vunpack.c.l.b16 %v463
        %v2660 = vunpack.c.h.b16 %v463
        %v2661 = vunpack.c.l.b16 %v464
        %v2662 = vunpack.c.h.b16 %v464
        %v2663 = vunpack.c.l.b16 %v465
        %v2664 = vunpack.c.h.b16 %v465
        %v2665 = vunpack.c.l.b16 %v466
        %v2666 = vunpack.c.h.b16 %v466
        %v2667 = vunpack.c.l.b16 %v467
        %v2668 = vunpack.c.h.b16 %v467
        %v2669 = vunpack.c.l.b16 %v468
        %v2670 = vunpack.c.h.b16 %v468
        %v2671 = vunpack.c.l.b16 %v469
        %v2672 = vunpack.c.h.b16 %v469
        %v2673 = vunpack.c.l.b16 %v470
        %v2674 = vunpack.c.h.b16 %v470
        %v2675 = vunpack.c.l.b16 %v471
        %v2676 = vunpack.c.h.b16 %v471
        %v2677 = vunpack.c.l.b16 %v472
        %v2678 = vunpack.c.h.b16 %v472
        %v2679 = vunpack.c.l.b16 %v473
        %v2680 = vunpack.c.h.b16 %v473
        %v2681 = vunpack.c.l.b16 %v474
        %v2682 = vunpack.c.h.b16 %v474
        %v2683 = vunpack.c.l.b16 %v475
        %v2684 = vunpack.c.h.b16 %v475
        %v2685 = vunpack.c.l.b16 %v476
        %v2686 = vunpack.c.h.b16 %v476
        %v2687 = vunpack.c.l.b16 %v477
        %v2688 = vunpack.c.h.b16 %v477
        %v2689 = vunpack.c.l.b16 %v478
        %v2690 = vunpack.c.h.b16 %v478
        %v2691 = vunpack.c.l.b16 %v479
        %v2692 = vunpack.c.h.b16 %v479
        %v2693 = vunpack.c.l.b16 %v480
        %v2694 = vunpack.c.h.b16 %v480
        %v2695 = vunpack.c.l.b16 %v481
        %v2696 = vunpack.c.h.b16 %v481
        %v2697 = vunpack.c.l.b16 %v482
        %v2698 = vunpack.c.h.b16 %v482
        %v2699 = vunpack.c.l.b16 %v483
        %v2700 = vunpack.c.h.b16 %v483
        %v2701 = vunpack.c.l.b16 %v484
        %v2702 = vunpack.c.h.b16 %v484
        %v2703 = vunpack.c.l.b16 %v485
        %v2704 = vunpack.c.h.b16 %v485
        %v2705 = vunpack.c.l.b16 %v486
        %v2706 = vunpack.c.h.b16 %v486
        %v2707 = vunpack.c.l.b16 %v487
        %v2708 = vunpack.c.h.b16 %v487
        %v2709 = vunpack.c.l.b16 %v488
        %v2710 = vunpack.c.h.b16 %v488
        %v2711 = vunpack.c.l.b16 %v489
        %v2712 = vunpack.c.h.b16 %v489
        %v2713 = vunpack.c.l.b16 %v490
        %v2714 = vunpack.c.h.b16 %v490
        %v2715 = vunpack.c.l.b16 %v491
        %v2716 = vunpack.c.h.b16 %v491
        %v2717 = vunpack.c.l.b16 %v492
        %v2718 = vunpack.c.h.b16 %v492
        %v2719 = vunpack.c.l.b16 %v493
        %v2720 = vunpack.c.h.b16 %v493
        %v2721 = vunpack.c.l.b16 %v494
        %v2722 = vunpack.c.h.b16 %v494
        %v2723 = vunpack.c.l.b16 %v495
        %v2724 = vunpack.c.h.b16 %v495
        %v2725 = vunpack.c.l.b16 %v496
        %v2726 = vunpack.c.h.b16 %v496
        %v2727 = vunpack.c.l.b16 %v497
        %v2728 = vunpack.c.h.b16 %v497
        %v2729 = vunpack.c.l.b16 %v498
        %v2730 = vunpack.c.h.b16 %v498
        %v2731 = vunpack.c.l.b16 %v499
        %v2732 = vunpack.c.h.b16 %v499
        %v2733 = vunpack.c.l.b16 %v500
        %v2734 = vunpack.c.h.b16 %v500
        %v2735 = vunpack.c.l.b16 %v501
        %v2736 = vunpack.c.h.b16 %v501
        %v2737 = vunpack.c.l.b16 %v502
        %v2738 = vunpack.c.h.b16 %v502
        %v2739 = vunpack.c.l.b16 %v503
        %v2740 = vunpack.c.h.b16 %v503
        %v2741 = vunpack.c.l.b16 %v504
        %v2742 = vunpack.c.h.b16 %v504
        %v2743 = vunpack.c.l.b16 %v505
        %v2744 = vunpack.c.h.b16 %v505
        %v2745 = vunpack.c.l.b16 %v506
        %v2746 = vunpack.c.h.b16 %v506
        %v2747 = vunpack.c.l.b16 %v507
        %v2748 = vunpack.c.h.b16 %v507
        %v2749 = vunpack.c.l.b16 %v508
        %v2750 = vunpack.c.h.b16 %v508
        %v2751 = vunpack.c.l.b16 %v509
        %v2752 = vunpack.c.h.b16 %v509
        %v2753 = vunpack.c.l.b16 %v510
        %v2754 = vunpack.c.h.b16 %v510
        %v2755 = vunpack.c.l.b16 %v511
        %v2756 = vunpack.c.h.b16 %v511
        %v2757 = vunpack.c.l.b16 %v512
        %v2758 = vunpack.c.h.b16 %v512
        %v2759 = vunpack.c.l.b16 %v513
        %v2760 = vunpack.c.h.b16 %v513
        %v2761 = vunpack.c.l.b16 %v514
        %v2762 = vunpack.c.h.b16 %v514
        %v2763 = vunpack.c.l.b16 %v515
        %v2764 = vunpack.c.h.b16 %v515
        %v2765 = vunpack.c.l.b16 %v516
        %v2766 = vunpack.c.h.b16 %v516
        %v2767 = vunpack.c.l.b16 %v517
        %v2768 = vunpack.c.h.b16 %v517
        %v2769 = vunpack.c.l.b16 %v518
        %v2770 = vunpack.c.h.b16 %v518
        %v2771 = vunpack.c.l.b16 %v519
        %v2772 = vunpack.c.h.b16 %v519
        %v2773 = vunpack.c.l.b16 %v520
        %v2774 = vunpack.c.h.b16 %v520
        %v2775 = vunpack.c.l.b16 %v521
        %v2776 = vunpack.c.h.b16 %v521
        %v2777 = vunpack.c.l.b16 %v522
        %v2778 = vunpack.c.h.b16 %v522
        %v2779 = vunpack.c.l.b16 %v523
        %v2780 = vunpack.c.h.b16 %v523
        %v2781 = vunpack.c.l.b16 %v524
        %v2782 = vunpack.c.h.b16 %v524
        %v2783 = vunpack.c.l.b16 %v525
        %v2784 = vunpack.c.h.b16 %v525
        %v2785 = vunpack.c.l.b16 %v526
        %v2786 = vunpack.c.h.b16 %v526
        %v2787 = vunpack.c.l.b16 %v527
        %v2788 = vunpack.c.h.b16 %v527
        %v2789 = vunpack.c.l.b16 %v528
        %v2790 = vunpack.c.h.b16 %v528
        %v2791 = vunpack.c.l.b16 %v529
        %v2792 = vunpack.c.h.b16 %v529
        %v2793 = vunpack.c.l.b16 %v530
        %v2794 = vunpack.c.h.b16 %v530
        %v2795 = vunpack.c.l.b16 %v531
        %v2796 = vunpack.c.h.b16 %v531
        %v2797 = vunpack.c.l.b16 %v532
        %v2798 = vunpack.c.h.b16 %v532
        %v2799 = vunpack.c.l.b16 %v533
        %v2800 = vunpack.c.h.b16 %v533
        %v2801 = vunpack.c.l.b16 %v534
        %v2802 = vunpack.c.h.b16 %v534
        %v2803 = vunpack.c.l.b16 %v535
        %v2804 = vunpack.c.h.b16 %v535
        %v2805 = vunpack.c.l.b16 %v536
        %v2806 = vunpack.c.h.b16 %v536
        %v2807 = vunpack.c.l.b16 %v537
        %v2808 = vunpack.c.h.b16 %v537
        %v2809 = vunpack.c.l.b16 %v538
        %v2810 = vunpack.c.h.b16 %v538
        %v2811 = vunpack.c.l.b16 %v539
        %v2812 = vunpack.c.h.b16 %v539
        %v2813 = vunpack.c.l.b16 %v540
        %v2814 = vunpack.c.h.b16 %v540
        %v2815 = vunpack.c.l.b16 %v541
        %v2816 = vunpack.c.h.b16 %v541
        %v2817 = vunpack.c.l.b16 %v542
        %v2818 = vunpack.c.h.b16 %v542
        %v2819 = vunpack.c.l.b16 %v543
        %v2820 = vunpack.c.h.b16 %v543
        %v2821 = vunpack.c.l.b16 %v544
        %v2822 = vunpack.c.h.b16 %v544
        %v2823 = vunpack.c.l.b16 %v545
        %v2824 = vunpack.c.h.b16 %v545
        %v2825 = vunpack.c.l.b16 %v546
        %v2826 = vunpack.c.h.b16 %v546
        %v2827 = vunpack.c.l.b16 %v547
        %v2828 = vunpack.c.h.b16 %v547
        %v2829 = vunpack.c.l.b16 %v548
        %v2830 = vunpack.c.h.b16 %v548
        %v2831 = vunpack.c.l.b16 %v549
        %v2832 = vunpack.c.h.b16 %v549
        %v2833 = vunpack.c.l.b16 %v550
        %v2834 = vunpack.c.h.b16 %v550
        %v2835 = vunpack.c.l.b16 %v551
        %v2836 = vunpack.c.h.b16 %v551
        %v2837 = vunpack.c.l.b16 %v552
        %v2838 = vunpack.c.h.b16 %v552
        %v2839 = vunpack.c.l.b16 %v553
        %v2840 = vunpack.c.h.b16 %v553
        %v2841 = vunpack.c.l.b16 %v554
        %v2842 = vunpack.c.h.b16 %v554
        %v2843 = vunpack.c.l.b16 %v555
        %v2844 = vunpack.c.h.b16 %v555
        %v2845 = vunpack.c.l.b16 %v556
        %v2846 = vunpack.c.h.b16 %v556
        %v2847 = vunpack.c.l.b16 %v557
        %v2848 = vunpack.c.h.b16 %v557
        %v2849 = vunpack.c.l.b16 %v558
        %v2850 = vunpack.c.h.b16 %v558
        %v2851 = vunpack.c.l.b16 %v559
        %v2852 = vunpack.c.h.b16 %v559
        %v2853 = vunpack.c.l.b16 %v560
        %v2854 = vunpack.c.h.b16 %v560
        %v2855 = vunpack.c.l.b16 %v561
        %v2856 = vunpack.c.h.b16 %v561
        %v2857 = vunpack.c.l.b16 %v562
        %v2858 = vunpack.c.h.b16 %v562
        %v2859 = vunpack.c.l.b16 %v563
        %v2860 = vunpack.c.h.b16 %v563
        %v2861 = vunpack.c.l.b16 %v564
        %v2862 = vunpack.c.h.b16 %v564
        %v2863 = vunpack.c.l.b16 %v565
        %v2864 = vunpack.c.h.b16 %v565
        %v2865 = vunpack.c.l.b16 %v566
        %v2866 = vunpack.c.h.b16 %v566
        %v2867 = vunpack.c.l.b16 %v567
        %v2868 = vunpack.c.h.b16 %v567
        %v2869 = vunpack.c.l.b16 %v568
        %v2870 = vunpack.c.h.b16 %v568
        %v2871 = vunpack.c.l.b16 %v569
        %v2872 = vunpack.c.h.b16 %v569
        %v2873 = vunpack.c.l.b16 %v570
        %v2874 = vunpack.c.h.b16 %v570
        %v2875 = vunpack.c.l.b16 %v571
        %v2876 = vunpack.c.h.b16 %v571
        %v2877 = vunpack.c.l.b16 %v572
        %v2878 = vunpack.c.h.b16 %v572
        %v2879 = vunpack.c.l.b16 %v573
        %v2880 = vunpack.c.h.b16 %v573
        %v2881 = vunpack.c.l.b16 %v574
        %v2882 = vunpack.c.h.b16 %v574
        %v2883 = vunpack.c.l.b16 %v575
        %v2884 = vunpack.c.h.b16 %v575
        %v2885 = vunpack.c.l.b16 %v576
        %v2886 = vunpack.c.h.b16 %v576
        %v2887 = vunpack.c.l.b16 %v577
        %v2888 = vunpack.c.h.b16 %v577
        %v2889 = vunpack.c.l.b16 %v578
        %v2890 = vunpack.c.h.b16 %v578
        %v2891 = vunpack.c.l.b16 %v579
        %v2892 = vunpack.c.h.b16 %v579
        %v2893 = vunpack.c.l.b16 %v580
        %v2894 = vunpack.c.h.b16 %v580
        %v2895 = vunpack.c.l.b16 %v581
        %v2896 = vunpack.c.h.b16 %v581
        %v2897 = vunpack.c.l.b16 %v582
        %v2898 = vunpack.c.h.b16 %v582
        %v2899 = vunpack.c.l.b16 %v583
        %v2900 = vunpack.c.h.b16 %v583
        %v2901 = vunpack.c.l.b16 %v584
        %v2902 = vunpack.c.h.b16 %v584
        %v2903 = vunpack.c.l.b16 %v585
        %v2904 = vunpack.c.h.b16 %v585
        %v2905 = vunpack.c.l.b16 %v586
        %v2906 = vunpack.c.h.b16 %v586
        %v2907 = vunpack.c.l.b16 %v587
        %v2908 = vunpack.c.h.b16 %v587
        %v2909 = vunpack.c.l.b16 %v588
        %v2910 = vunpack.c.h.b16 %v588
        %v2911 = vunpack.c.l.b16 %v589
        %v2912 = vunpack.c.h.b16 %v589
        %v2913 = vunpack.c.l.b16 %v590
        %v2914 = vunpack.c.h.b16 %v590
        %v2915 = vunpack.c.l.b16 %v591
        %v2916 = vunpack.c.h.b16 %v591
        %v2917 = vunpack.c.l.b16 %v592
        %v2918 = vunpack.c.h.b16 %v592
        %v2919 = vunpack.c.l.b16 %v593
        %v2920 = vunpack.c.h.b16 %v593
        %v2921 = vunpack.c.l.b16 %v594
        %v2922 = vunpack.c.h.b16 %v594
        %v2923 = vunpack.c.l.b16 %v595
        %v2924 = vunpack.c.h.b16 %v595
        %v2925 = vunpack.c.l.b16 %v596
        %v2926 = vunpack.c.h.b16 %v596
        %v2927 = vunpack.c.l.b16 %v597
        %v2928 = vunpack.c.h.b16 %v597
        %v2929 = vunpack.c.l.b16 %v598
        %v2930 = vunpack.c.h.b16 %v598
        %v2931 = vunpack.c.l.b16 %v599
        %v2932 = vunpack.c.h.b16 %v599
        %v2933 = vunpack.c.l.b16 %v600
        %v2934 = vunpack.c.h.b16 %v600
        %v2935 = vunpack.c.l.b16 %v601
        %v2936 = vunpack.c.h.b16 %v601
        %v2937 = vunpack.c.l.b16 %v602
        %v2938 = vunpack.c.h.b16 %v602
        %v2939 = vunpack.c.l.b16 %v603
        %v2940 = vunpack.c.h.b16 %v603
        %v2941 = vunpack.c.l.b16 %v604
        %v2942 = vunpack.c.h.b16 %v604
        %v2943 = vunpack.c.l.b16 %v605
        %v2944 = vunpack.c.h.b16 %v605
        %v2945 = vunpack.c.l.b16 %v606
        %v2946 = vunpack.c.h.b16 %v606
        %v2947 = vunpack.c.l.b16 %v607
        %v2948 = vunpack.c.h.b16 %v607
        %v2949 = vunpack.c.l.b16 %v608
        %v2950 = vunpack.c.h.b16 %v608
        %v2951 = vunpack.c.l.b16 %v609
        %v2952 = vunpack.c.h.b16 %v609
        %v2953 = vunpack.c.l.b16 %v610
        %v2954 = vunpack.c.h.b16 %v610
        %v2955 = vunpack.c.l.b16 %v611
        %v2956 = vunpack.c.h.b16 %v611
        %v2957 = vunpack.c.l.b16 %v612
        %v2958 = vunpack.c.h.b16 %v612
        %v2959 = vunpack.c.l.b16 %v613
        %v2960 = vunpack.c.h.b16 %v613
        %v2961 = vunpack.c.l.b16 %v614
        %v2962 = vunpack.c.h.b16 %v614
        %v2963 = vunpack.c.l.b16 %v615
        %v2964 = vunpack.c.h.b16 %v615
        %v2965 = vunpack.c.l.b16 %v616
        %v2966 = vunpack.c.h.b16 %v616
        %v2967 = vunpack.c.l.b16 %v617
        %v2968 = vunpack.c.h.b16 %v617
        %v2969 = vunpack.c.l.b16 %v618
        %v2970 = vunpack.c.h.b16 %v618
        %v2971 = vunpack.c.l.b16 %v619
        %v2972 = vunpack.c.h.b16 %v619
        %v2973 = vunpack.c.l.b16 %v620
        %v2974 = vunpack.c.h.b16 %v620
        %v2975 = vunpack.c.l.b16 %v621
        %v2976 = vunpack.c.h.b16 %v621
        %v2977 = vunpack.c.l.b16 %v622
        %v2978 = vunpack.c.h.b16 %v622
        %v2979 = vunpack.c.l.b16 %v623
        %v2980 = vunpack.c.h.b16 %v623
        %v2981 = vunpack.c.l.b16 %v624
        %v2982 = vunpack.c.h.b16 %v624
        %v2983 = vunpack.c.l.b16 %v625
        %v2984 = vunpack.c.h.b16 %v625
        %v2985 = vunpack.c.l.b16 %v626
        %v2986 = vunpack.c.h.b16 %v626
        %v2987 = vunpack.c.l.b16 %v627
        %v2988 = vunpack.c.h.b16 %v627
        %v2989 = vunpack.c.l.b16 %v628
        %v2990 = vunpack.c.h.b16 %v628
        %v2991 = vunpack.c.l.b16 %v629
        %v2992 = vunpack.c.h.b16 %v629
        %v2993 = vunpack.c.l.b16 %v630
        %v2994 = vunpack.c.h.b16 %v630
        %v2995 = vunpack.c.l.b16 %v631
        %v2996 = vunpack.c.h.b16 %v631
        %v2997 = vunpack.c.l.b16 %v632
        %v2998 = vunpack.c.h.b16 %v632
        %v2999 = vunpack.c.l.b16 %v633
        %v3000 = vunpack.c.h.b16 %v633
        %v3001 = vunpack.c.l.b16 %v634
        %v3002 = vunpack.c.h.b16 %v634
        %v3003 = vunpack.c.l.b16 %v635
        %v3004 = vunpack.c.h.b16 %v635
        %v3005 = vunpack.c.l.b16 %v636
        %v3006 = vunpack.c.h.b16 %v636
        %v3007 = vunpack.c.l.b16 %v637
        %v3008 = vunpack.c.h.b16 %v637
        %v3009 = vunpack.c.l.b16 %v638
        %v3010 = vunpack.c.h.b16 %v638
        %v3011 = vunpack.c.l.b16 %v639
        %v3012 = vunpack.c.h.b16 %v639
        %v3013 = vunpack.c.l.b16 %v640
        %v3014 = vunpack.c.h.b16 %v640
        %v3015 = vunpack.c.l.b16 %v641
        %v3016 = vunpack.c.h.b16 %v641
        %v3017 = vunpack.c.l.b16 %v642
        %v3018 = vunpack.c.h.b16 %v642
        %v3019 = vunpack.c.l.b16 %v643
        %v3020 = vunpack.c.h.b16 %v643
        %v3021 = vunpack.c.l.b16 %v644
        %v3022 = vunpack.c.h.b16 %v644
        %v3023 = vunpack.c.l.b16 %v645
        %v3024 = vunpack.c.h.b16 %v645
        %v3025 = vunpack.c.l.b16 %v646
        %v3026 = vunpack.c.h.b16 %v646
        %v3027 = vunpack.c.l.b16 %v647
        %v3028 = vunpack.c.h.b16 %v647
        %v3029 = vunpack.c.l.b16 %v648
        %v3030 = vunpack.c.h.b16 %v648
        %v3031 = vunpack.c.l.b16 %v649
        %v3032 = vunpack.c.h.b16 %v649
        %v3033 = vunpack.c.l.b16 %v650
        %v3034 = vunpack.c.h.b16 %v650
        %v3035 = vunpack.c.l.b16 %v651
        %v3036 = vunpack.c.h.b16 %v651
        %v3037 = vunpack.c.l.b16 %v652
        %v3038 = vunpack.c.h.b16 %v652
        %v3039 = vunpack.c.l.b16 %v653
        %v3040 = vunpack.c.h.b16 %v653
        %v3041 = vunpack.c.l.b16 %v654
        %v3042 = vunpack.c.h.b16 %v654
        %v3043 = vunpack.c.l.b16 %v655
        %v3044 = vunpack.c.h.b16 %v655
        %v3045 = vunpack.c.l.b16 %v656
        %v3046 = vunpack.c.h.b16 %v656
        %v3047 = vunpack.c.l.b16 %v657
        %v3048 = vunpack.c.h.b16 %v657
        %v3049 = vunpack.c.l.b16 %v658
        %v3050 = vunpack.c.h.b16 %v658
        %v3051 = vunpack.c.l.b16 %v659
        %v3052 = vunpack.c.h.b16 %v659
        %v3053 = vunpack.c.l.b16 %v660
        %v3054 = vunpack.c.h.b16 %v660
        %v3055 = vunpack.c.l.b16 %v661
        %v3056 = vunpack.c.h.b16 %v661
        %v3057 = vunpack.c.l.b16 %v662
        %v3058 = vunpack.c.h.b16 %v662
        %v3059 = vunpack.c.l.b16 %v663
        %v3060 = vunpack.c.h.b16 %v663
        %v3061 = vunpack.c.l.b16 %v664
        %v3062 = vunpack.c.h.b16 %v664
        %v3063 = vunpack.c.l.b16 %v665
        %v3064 = vunpack.c.h.b16 %v665
        %v3065 = vunpack.c.l.b16 %v666
        %v3066 = vunpack.c.h.b16 %v666
        %v3067 = vunpack.c.l.b16 %v667
        %v3068 = vunpack.c.h.b16 %v667
        %v3069 = vunpack.c.l.b16 %v668
        %v3070 = vunpack.c.h.b16 %v668
        %v3071 = vunpack.c.l.b16 %v669
        %v3072 = vunpack.c.h.b16 %v669
        %v3073 = vunpack.c.l.b16 %v670
        %v3074 = vunpack.c.h.b16 %v670
        %v3075 = vunpack.c.l.b16 %v671
        %v3076 = vunpack.c.h.b16 %v671
        %v3077 = vunpack.c.l.b16 %v672
        %v3078 = vunpack.c.h.b16 %v672
        %v3079 = vunpack.c.l.b16 %v673
        %v3080 = vunpack.c.h.b16 %v673
        %v3081 = vunpack.c.l.b16 %v674
        %v3082 = vunpack.c.h.b16 %v674
        %v3083 = vunpack.c.l.b16 %v675
        %v3084 = vunpack.c.h.b16 %v675
        %v3085 = vunpack.c.l.b16 %v676
        %v3086 = vunpack.c.h.b16 %v676
        %v3087 = vunpack.c.l.b16 %v677
        %v3088 = vunpack.c.h.b16 %v677
        %v3089 = vunpack.c.l.b16 %v678
        %v3090 = vunpack.c.h.b16 %v678
        %v3091 = vunpack.c.l.b16 %v679
        %v3092 = vunpack.c.h.b16 %v679
        %v3093 = vunpack.c.l.b16 %v680
        %v3094 = vunpack.c.h.b16 %v680
        %v3095 = vunpack.c.l.b16 %v681
        %v3096 = vunpack.c.h.b16 %v681
        %v3097 = vunpack.c.l.b16 %v682
        %v3098 = vunpack.c.h.b16 %v682
        %v3099 = vunpack.c.l.b16 %v683
        %v3100 = vunpack.c.h.b16 %v683
        %v3101 = vunpack.c.l.b16 %v684
        %v3102 = vunpack.c.h.b16 %v684
        %v3103 = vunpack.c.l.b16 %v685
        %v3104 = vunpack.c.h.b16 %v685
        %v3105 = vunpack.c.l.b16 %v686
        %v3106 = vunpack.c.h.b16 %v686
        %v3107 = vunpack.c.l.b16 %v687
        %v3108 = vunpack.c.h.b16 %v687
        %v3109 = vunpack.c.l.b16 %v688
        %v3110 = vunpack.c.h.b16 %v688
        %v3111 = vunpack.c.l.b16 %v689
        %v3112 = vunpack.c.h.b16 %v689
        %v3113 = vunpack.c.l.b16 %v690
        %v3114 = vunpack.c.h.b16 %v690
        %v3115 = vunpack.c.l.b16 %v691
        %v3116 = vunpack.c.h.b16 %v691
        %v3117 = vunpack.c.l.b16 %v692
        %v3118 = vunpack.c.h.b16 %v692
        %v3119 = vunpack.c.l.b16 %v693
        %v3120 = vunpack.c.h.b16 %v693
        %v3121 = vunpack.c.l.b16 %v694
        %v3122 = vunpack.c.h.b16 %v694
        %v3123 = vunpack.c.l.b16 %v695
        %v3124 = vunpack.c.h.b16 %v695
        %v3125 = vunpack.c.l.b16 %v696
        %v3126 = vunpack.c.h.b16 %v696
        %v3127 = vunpack.c.l.b16 %v697
        %v3128 = vunpack.c.h.b16 %v697
        %v3129 = vunpack.c.l.b16 %v698
        %v3130 = vunpack.c.h.b16 %v698
        %v3131 = vunpack.c.l.b16 %v699
        %v3132 = vunpack.c.h.b16 %v699
        %v3133 = vunpack.c.l.b16 %v700
        %v3134 = vunpack.c.h.b16 %v700
        %v3135 = vunpack.c.l.b16 %v701
        %v3136 = vunpack.c.h.b16 %v701
        %v3137 = vunpack.c.l.b16 %v702
        %v3138 = vunpack.c.h.b16 %v702
        %v3139 = vunpack.c.l.b16 %v703
        %v3140 = vunpack.c.h.b16 %v703
        %v3141 = vunpack.c.l.b16 %v704
        %v3142 = vunpack.c.h.b16 %v704
        %v3143 = vunpack.c.l.b16 %v705
        %v3144 = vunpack.c.h.b16 %v705
        %v3145 = vunpack.c.l.b16 %v706
        %v3146 = vunpack.c.h.b16 %v706
        %v3147 = vunpack.c.l.b16 %v707
        %v3148 = vunpack.c.h.b16 %v707
        %v3149 = vunpack.c.l.b16 %v708
        %v3150 = vunpack.c.h.b16 %v708
        %v3151 = vunpack.c.l.b16 %v709
        %v3152 = vunpack.c.h.b16 %v709
        %v3153 = vunpack.c.l.b16 %v710
        %v3154 = vunpack.c.h.b16 %v710
        %v3155 = vunpack.c.l.b16 %v711
        %v3156 = vunpack.c.h.b16 %v711
        %v3157 = vunpack.c.l.b16 %v712
        %v3158 = vunpack.c.h.b16 %v712
        %v3159 = vunpack.c.l.b16 %v713
        %v3160 = vunpack.c.h.b16 %v713
        %v3161 = vunpack.c.l.b16 %v714
        %v3162 = vunpack.c.h.b16 %v714
        %v3163 = vunpack.c.l.b16 %v715
        %v3164 = vunpack.c.h.b16 %v715
        %v3165 = vunpack.c.l.b16 %v716
        %v3166 = vunpack.c.h.b16 %v716
        %v3167 = vunpack.c.l.b16 %v717
        %v3168 = vunpack.c.h.b16 %v717
        %v3169 = vunpack.c.l.b16 %v718
        %v3170 = vunpack.c.h.b16 %v718
        %v3171 = vunpack.c.l.b16 %v719
        %v3172 = vunpack.c.h.b16 %v719
        %v3173 = vunpack.c.l.b16 %v720
        %v3174 = vunpack.c.h.b16 %v720
        %v3175 = vunpack.c.l.b16 %v721
        %v3176 = vunpack.c.h.b16 %v721
        %v3177 = vunpack.c.l.b16 %v722
        %v3178 = vunpack.c.h.b16 %v722
        %v3179 = vunpack.c.l.b16 %v723
        %v3180 = vunpack.c.h.b16 %v723
        %v3181 = vunpack.c.l.b16 %v724
        %v3182 = vunpack.c.h.b16 %v724
        %v3183 = vunpack.c.l.b16 %v725
        %v3184 = vunpack.c.h.b16 %v725
        %v3185 = vunpack.c.l.b16 %v726
        %v3186 = vunpack.c.h.b16 %v726
        %v3187 = vunpack.c.l.b16 %v727
        %v3188 = vunpack.c.h.b16 %v727
        %v3189 = vunpack.c.l.b16 %v728
        %v3190 = vunpack.c.h.b16 %v728
        %v3191 = vunpack.c.l.b16 %v729
        %v3192 = vunpack.c.h.b16 %v729
        %v3193 = vunpack.c.l.b16 %v730
        %v3194 = vunpack.c.h.b16 %v730
        %v3195 = vunpack.c.l.b16 %v731
        %v3196 = vunpack.c.h.b16 %v731
        %v3197 = vunpack.c.l.b16 %v732
        %v3198 = vunpack.c.h.b16 %v732
        %v3199 = vunpack.c.l.b16 %v733
        %v3200 = vunpack.c.h.b16 %v733
        %v3201 = vunpack.c.l.b16 %v734
        %v3202 = vunpack.c.h.b16 %v734
        %v3203 = vunpack.c.l.b16 %v735
        %v3204 = vunpack.c.h.b16 %v735
        %v3205 = vunpack.c.l.b16 %v736
        %v3206 = vunpack.c.h.b16 %v736
        %v3207 = vunpack.c.l.b16 %v737
        %v3208 = vunpack.c.h.b16 %v737
        %v3209 = vunpack.c.l.b16 %v738
        %v3210 = vunpack.c.h.b16 %v738
        %v3211 = vunpack.c.l.b16 %v739
        %v3212 = vunpack.c.h.b16 %v739
        %v3213 = vunpack.c.l.b16 %v740
        %v3214 = vunpack.c.h.b16 %v740
        %v3215 = vunpack.c.l.b16 %v741
        %v3216 = vunpack.c.h.b16 %v741
        %v3217 = vunpack.c.l.b16 %v742
        %v3218 = vunpack.c.h.b16 %v742
        %v3219 = vunpack.c.l.b16 %v743
        %v3220 = vunpack.c.h.b16 %v743
        %v3221 = vunpack.c.l.b16 %v744
        %v3222 = vunpack.c.h.b16 %v744
        %v3223 = vunpack.c.l.b16 %v745
        %v3224 = vunpack.c.h.b16 %v745
        %v3225 = vunpack.c.l.b16 %v746
        %v3226 = vunpack.c.h.b16 %v746
        %v3227 = vunpack.c.l.b16 %v747
        %v3228 = vunpack.c.h.b16 %v747
        %v3229 = vunpack.c.l.b16 %v748
        %v3230 = vunpack.c.h.b16 %v748
        %v3231 = vunpack.c.l.b16 %v749
        %v3232 = vunpack.c.h.b16 %v749
        %v3233 = vunpack.c.l.b16 %v750
        %v3234 = vunpack.c.h.b16 %v750
        %v3235 = vunpack.c.l.b16 %v751
        %v3236 = vunpack.c.h.b16 %v751
        %v3237 = vunpack.c.l.b16 %v752
        %v3238 = vunpack.c.h.b16 %v752
        %v3239 = vunpack.c.l.b16 %v753
        %v3240 = vunpack.c.h.b16 %v753
        %v3241 = vunpack.c.l.b16 %v754
        %v3242 = vunpack.c.h.b16 %v754
        %v3243 = vunpack.c.l.b16 %v755
        %v3244 = vunpack.c.h.b16 %v755
        %v3245 = vunpack.c.l.b16 %v756
        %v3246 = vunpack.c.h.b16 %v756
        %v3247 = vunpack.c.l.b16 %v757
        %v3248 = vunpack.c.h.b16 %v757
        %v3249 = vunpack.c.l.b16 %v758
        %v3250 = vunpack.c.h.b16 %v758
        %v3251 = vunpack.c.l.b16 %v759
        %v3252 = vunpack.c.h.b16 %v759
        %v3253 = vunpack.c.l.b16 %v760
        %v3254 = vunpack.c.h.b16 %v760
        %v3255 = vunpack.c.l.b16 %v761
        %v3256 = vunpack.c.h.b16 %v761
        %v3257 = vunpack.c.l.b16 %v762
        %v3258 = vunpack.c.h.b16 %v762
        %v3259 = vunpack.c.l.b16 %v763
        %v3260 = vunpack.c.h.b16 %v763
        %v3261 = vunpack.c.l.b16 %v764
        %v3262 = vunpack.c.h.b16 %v764
        %v3263 = vunpack.c.l.b16 %v765
        %v3264 = vunpack.c.h.b16 %v765
        %v3265 = vunpack.c.l.b16 %v766
        %v3266 = vunpack.c.h.b16 %v766
        %v3267 = vunpack.c.l.b16 %v767
        %v3268 = vunpack.c.h.b16 %v767
        %v3269 = vunpack.c.l.b16 %v768
        %v3270 = vunpack.c.h.b16 %v768
        %v3271 = vunpack.c.l.b16 %v769
        %v3272 = vunpack.c.h.b16 %v769
        %v3273 = vunpack.c.l.b16 %v770
        %v3274 = vunpack.c.h.b16 %v770
        %v3275 = vunpack.c.l.b16 %v771
        %v3276 = vunpack.c.h.b16 %v771
        %v3277 = vunpack.c.l.b16 %v772
        %v3278 = vunpack.c.h.b16 %v772
        %v3279 = vunpack.c.l.b16 %v773
        %v3280 = vunpack.c.h.b16 %v773
        %v3281 = vunpack.c.l.b16 %v774
        %v3282 = vunpack.c.h.b16 %v774
        %v3283 = vunpack.c.l.b16 %v775
        %v3284 = vunpack.c.h.b16 %v775
        %v3285 = vunpack.c.l.b16 %v776
        %v3286 = vunpack.c.h.b16 %v776
        %v3287 = vunpack.c.l.b16 %v777
        %v3288 = vunpack.c.h.b16 %v777
        %v3289 = vunpack.c.l.b16 %v778
        %v3290 = vunpack.c.h.b16 %v778
        %v3291 = vunpack.c.l.b16 %v779
        %v3292 = vunpack.c.h.b16 %v779
        %v3293 = vunpack.c.l.b16 %v780
        %v3294 = vunpack.c.h.b16 %v780
        %v3295 = vunpack.c.l.b16 %v781
        %v3296 = vunpack.c.h.b16 %v781
        %v3297 = vunpack.c.l.b16 %v782
        %v3298 = vunpack.c.h.b16 %v782
        %v3299 = vunpack.c.l.b16 %v783
        %v3300 = vunpack.c.h.b16 %v783
        %v3301 = vunpack.c.l.b16 %v784
        %v3302 = vunpack.c.h.b16 %v784
        %v3303 = vunpack.c.l.b16 %v785
        %v3304 = vunpack.c.h.b16 %v785
        %v3305 = vunpack.c.l.b16 %v786
        %v3306 = vunpack.c.h.b16 %v786
        %v3307 = vunpack.c.l.b16 %v787
        %v3308 = vunpack.c.h.b16 %v787
        %v3309 = vunpack.c.l.b16 %v788
        %v3310 = vunpack.c.h.b16 %v788
        %v3311 = vunpack.c.l.b16 %v789
        %v3312 = vunpack.c.h.b16 %v789
        %v3313 = vunpack.c.l.b16 %v790
        %v3314 = vunpack.c.h.b16 %v790
        %v3315 = vunpack.c.l.b16 %v791
        %v3316 = vunpack.c.h.b16 %v791
        %v3317 = vunpack.c.l.b16 %v792
        %v3318 = vunpack.c.h.b16 %v792
        %v3319 = vunpack.c.l.b16 %v793
        %v3320 = vunpack.c.h.b16 %v793
        %v3321 = vunpack.c.l.b16 %v794
        %v3322 = vunpack.c.h.b16 %v794
        %v3323 = vunpack.c.l.b16 %v795
        %v3324 = vunpack.c.h.b16 %v795
        %v3325 = vunpack.c.l.b16 %v796
        %v3326 = vunpack.c.h.b16 %v796
        %v3327 = vunpack.c.l.b16 %v797
        %v3328 = vunpack.c.h.b16 %v797
        %v3329 = vunpack.c.l.b16 %v798
        %v3330 = vunpack.c.h.b16 %v798
        %v3331 = vunpack.c.l.b16 %v799
        %v3332 = vunpack.c.h.b16 %v799
        %v3333 = vunpack.c.l.b16 %v800
        %v3334 = vunpack.c.h.b16 %v800
        %v3335 = vunpack.c.l.b16 %v801
        %v3336 = vunpack.c.h.b16 %v801
        %v3337 = vunpack.c.l.b16 %v802
        %v3338 = vunpack.c.h.b16 %v802
        %v3339 = vunpack.c.l.b16 %v803
        %v3340 = vunpack.c.h.b16 %v803
        %v3341 = vunpack.c.l.b16 %v804
        %v3342 = vunpack.c.h.b16 %v804
        %v3343 = vunpack.c.l.b16 %v805
        %v3344 = vunpack.c.h.b16 %v805
        %v3345 = vunpack.c.l.b16 %v806
        %v3346 = vunpack.c.h.b16 %v806
        %v3347 = vunpack.c.l.b16 %v807
        %v3348 = vunpack.c.h.b16 %v807
        %v3349 = vunpack.c.l.b16 %v808
        %v3350 = vunpack.c.h.b16 %v808
        %v3351 = vunpack.c.l.b16 %v809
        %v3352 = vunpack.c.h.b16 %v809
        %v3353 = vunpack.c.l.b16 %v810
        %v3354 = vunpack.c.h.b16 %v810
        %v3355 = vunpack.c.l.b16 %v811
        %v3356 = vunpack.c.h.b16 %v811
        %v3357 = vunpack.c.l.b16 %v812
        %v3358 = vunpack.c.h.b16 %v812
        %v3359 = vunpack.c.l.b16 %v813
        %v3360 = vunpack.c.h.b16 %v813
        %v3361 = vunpack.c.l.b16 %v814
        %v3362 = vunpack.c.h.b16 %v814
        %v3363 = vunpack.c.l.b16 %v815
        %v3364 = vunpack.c.h.b16 %v815
        %v3365 = vunpack.c.l.b16 %v816
        %v3366 = vunpack.c.h.b16 %v816
        %v3367 = vunpack.c.l.b16 %v817
        %v3368 = vunpack.c.h.b16 %v817
        %v3369 = vunpack.c.l.b16 %v818
        %v3370 = vunpack.c.h.b16 %v818
        %v3371 = vunpack.c.l.b16 %v819
        %v3372 = vunpack.c.h.b16 %v819
        %v3373 = vunpack.c.l.b16 %v820
        %v3374 = vunpack.c.h.b16 %v820
        %v3375 = vunpack.c.l.b16 %v821
        %v3376 = vunpack.c.h.b16 %v821
        %v3377 = vunpack.c.l.b16 %v822
        %v3378 = vunpack.c.h.b16 %v822
        %v3379 = vunpack.c.l.b16 %v823
        %v3380 = vunpack.c.h.b16 %v823
        %v3381 = vunpack.c.l.b16 %v824
        %v3382 = vunpack.c.h.b16 %v824
        %v3383 = vunpack.c.l.b16 %v825
        %v3384 = vunpack.c.h.b16 %v825
        %v3385 = vunpack.c.l.b16 %v826
        %v3386 = vunpack.c.h.b16 %v826
        %v3387 = vunpack.c.l.b16 %v827
        %v3388 = vunpack.c.h.b16 %v827
        %v3389 = vunpack.c.l.b16 %v828
        %v3390 = vunpack.c.h.b16 %v828
        %v3391 = vunpack.c.l.b16 %v829
        %v3392 = vunpack.c.h.b16 %v829
        %v3393 = vunpack.c.l.b16 %v830
        %v3394 = vunpack.c.h.b16 %v830
        %v3395 = vunpack.c.l.b16 %v831
        %v3396 = vunpack.c.h.b16 %v831
        %v3397 = vunpack.c.l.b16 %v832
        %v3398 = vunpack.c.h.b16 %v832
        %v3399 = vunpack.c.l.b16 %v833
        %v3400 = vunpack.c.h.b16 %v833
        %v3401 = vunpack.c.l.b16 %v834
        %v3402 = vunpack.c.h.b16 %v834
        %v3403 = vunpack.c.l.b16 %v835
        %v3404 = vunpack.c.h.b16 %v835
        %v3405 = vunpack.c.l.b16 %v836
        %v3406 = vunpack.c.h.b16 %v836
        %v3407 = vunpack.c.l.b16 %v837
        %v3408 = vunpack.c.h.b16 %v837
        %v3409 = vunpack.c.l.b16 %v838
        %v3410 = vunpack.c.h.b16 %v838
        %v3411 = vunpack.c.l.b16 %v839
        %v3412 = vunpack.c.h.b16 %v839
        %v3413 = vunpack.c.l.b16 %v840
        %v3414 = vunpack.c.h.b16 %v840
        %v3415 = vunpack.c.l.b16 %v841
        %v3416 = vunpack.c.h.b16 %v841
        %v3417 = vunpack.c.l.b16 %v842
        %v3418 = vunpack.c.h.b16 %v842
        %v3419 = vunpack.c.l.b16 %v843
        %v3420 = vunpack.c.h.b16 %v843
        %v3421 = vunpack.c.l.b16 %v844
        %v3422 = vunpack.c.h.b16 %v844
        %v3423 = vunpack.c.l.b16 %v845
        %v3424 = vunpack.c.h.b16 %v845
        %v3425 = vunpack.c.l.b16 %v846
        %v3426 = vunpack.c.h.b16 %v846
        %v3427 = vunpack.c.l.b16 %v847
        %v3428 = vunpack.c.h.b16 %v847
        %v3429 = vunpack.c.l.b16 %v848
        %v3430 = vunpack.c.h.b16 %v848
        %v3431 = vunpack.c.l.b16 %v849
        %v3432 = vunpack.c.h.b16 %v849
        %v3433 = vunpack.c.l.b16 %v850
        %v3434 = vunpack.c.h.b16 %v850
        %v3435 = vunpack.c.l.b16 %v851
        %v3436 = vunpack.c.h.b16 %v851
        %v3437 = vunpack.c.l.b16 %v852
        %v3438 = vunpack.c.h.b16 %v852
        %v3439 = vunpack.c.l.b16 %v853
        %v3440 = vunpack.c.h.b16 %v853
        %v3441 = vunpack.c.l.b16 %v854
        %v3442 = vunpack.c.h.b16 %v854
        %v3443 = vunpack.c.l.b16 %v855
        %v3444 = vunpack.c.h.b16 %v855
        %v3445 = vunpack.c.l.b16 %v856
        %v3446 = vunpack.c.h.b16 %v856
        %v3447 = vunpack.c.l.b16 %v857
        %v3448 = vunpack.c.h.b16 %v857
        %v3449 = vunpack.c.l.b16 %v858
        %v3450 = vunpack.c.h.b16 %v858
        %v3451 = vunpack.c.l.b16 %v859
        %v3452 = vunpack.c.h.b16 %v859
        %v3453 = vunpack.c.l.b16 %v860
        %v3454 = vunpack.c.h.b16 %v860
        %v3455 = vunpack.c.l.b16 %v861
        %v3456 = vunpack.c.h.b16 %v861
        %v3457 = vunpack.c.l.b16 %v862
        %v3458 = vunpack.c.h.b16 %v862
        %v3459 = vunpack.c.l.b16 %v863
        %v3460 = vunpack.c.h.b16 %v863
        %v3461 = vunpack.c.l.b16 %v864
        %v3462 = vunpack.c.h.b16 %v864
        %v3463 = vunpack.c.l.b16 %v865
        %v3464 = vunpack.c.h.b16 %v865
        %v3465 = vunpack.c.l.b16 %v866
        %v3466 = vunpack.c.h.b16 %v866
        %v3467 = vunpack.c.l.b16 %v867
        %v3468 = vunpack.c.h.b16 %v867
        %v3469 = vunpack.c.l.b16 %v868
        %v3470 = vunpack.c.h.b16 %v868
        %v3471 = vunpack.c.l.b16 %v869
        %v3472 = vunpack.c.h.b16 %v869
        %v3473 = vunpack.c.l.b16 %v870
        %v3474 = vunpack.c.h.b16 %v870
        %v3475 = vunpack.c.l.b16 %v871
        %v3476 = vunpack.c.h.b16 %v871
        %v3477 = vunpack.c.l.b16 %v872
        %v3478 = vunpack.c.h.b16 %v872
        %v3479 = vunpack.c.l.b16 %v873
        %v3480 = vunpack.c.h.b16 %v873
        %v3481 = vunpack.c.l.b16 %v874
        %v3482 = vunpack.c.h.b16 %v874
        %v3483 = vunpack.c.l.b16 %v875
        %v3484 = vunpack.c.h.b16 %v875
        %v3485 = vunpack.c.l.b16 %v876
        %v3486 = vunpack.c.h.b16 %v876
        %v3487 = vunpack.c.l.b16 %v877
        %v3488 = vunpack.c.h.b16 %v877
        %v3489 = vunpack.c.l.b16 %v878
        %v3490 = vunpack.c.h.b16 %v878
        %v3491 = vunpack.c.l.b16 %v879
        %v3492 = vunpack.c.h.b16 %v879
        %v3493 = vunpack.c.l.b16 %v880
        %v3494 = vunpack.c.h.b16 %v880
        %v3495 = vunpack.c.l.b16 %v881
        %v3496 = vunpack.c.h.b16 %v881
        %v3497 = vunpack.c.l.b16 %v882
        %v3498 = vunpack.c.h.b16 %v882
        %v3499 = vunpack.c.l.b16 %v883
        %v3500 = vunpack.c.h.b16 %v883
        %v3501 = vunpack.c.l.b16 %v884
        %v3502 = vunpack.c.h.b16 %v884
        %v3503 = vunpack.c.l.b16 %v885
        %v3504 = vunpack.c.h.b16 %v885
        %v3505 = vunpack.c.l.b16 %v886
        %v3506 = vunpack.c.h.b16 %v886
        %v3507 = vunpack.c.l.b16 %v887
        %v3508 = vunpack.c.h.b16 %v887
        %v3509 = vunpack.c.l.b16 %v888
        %v3510 = vunpack.c.h.b16 %v888
        %v3511 = vunpack.c.l.b16 %v889
        %v3512 = vunpack.c.h.b16 %v889
        %v3513 = vunpack.c.l.b16 %v890
        %v3514 = vunpack.c.h.b16 %v890
        %v3515 = vunpack.c.l.b16 %v891
        %v3516 = vunpack.c.h.b16 %v891
        %v3517 = vunpack.c.l.b16 %v892
        %v3518 = vunpack.c.h.b16 %v892
        %v3519 = vunpack.c.l.b16 %v893
        %v3520 = vunpack.c.h.b16 %v893
        %v3521 = vunpack.c.l.b16 %v894
        %v3522 = vunpack.c.h.b16 %v894
        %v3523 = vunpack.c.l.b16 %v895
        %v3524 = vunpack.c.h.b16 %v895
        %v3525 = vunpack.c.l.b16 %v896
        %v3526 = vunpack.c.h.b16 %v896
        %v3527 = vunpack.c.l.b16 %v897
        %v3528 = vunpack.c.h.b16 %v897
        %v3529 = vunpack.c.l.b16 %v898
        %v3530 = vunpack.c.h.b16 %v898
        %v3531 = vunpack.c.l.b16 %v899
        %v3532 = vunpack.c.h.b16 %v899
        %v3533 = vunpack.c.l.b16 %v900
        %v3534 = vunpack.c.h.b16 %v900
        %v3535 = vunpack.c.l.b16 %v901
        %v3536 = vunpack.c.h.b16 %v901
        %v3537 = vunpack.c.l.b16 %v902
        %v3538 = vunpack.c.h.b16 %v902
        %v3539 = vunpack.c.l.b16 %v903
        %v3540 = vunpack.c.h.b16 %v903
        %v3541 = vunpack.c.l.b16 %v904
        %v3542 = vunpack.c.h.b16 %v904
        %v3543 = vunpack.c.l.b16 %v905
        %v3544 = vunpack.c.h.b16 %v905
        %v3545 = vunpack.c.l.b16 %v906
        %v3546 = vunpack.c.h.b16 %v906
        %v3547 = vunpack.c.l.b16 %v907
        %v3548 = vunpack.c.h.b16 %v907
        %v3549 = vunpack.c.l.b16 %v908
        %v3550 = vunpack.c.h.b16 %v908
        %v3551 = vunpack.c.l.b16 %v909
        %v3552 = vunpack.c.h.b16 %v909
        %v3553 = vunpack.c.l.b16 %v910
        %v3554 = vunpack.c.h.b16 %v910
        %v3555 = vunpack.c.l.b16 %v911
        %v3556 = vunpack.c.h.b16 %v911
        %v3557 = vunpack.c.l.b16 %v912
        %v3558 = vunpack.c.h.b16 %v912
        %v3559 = vunpack.c.l.b16 %v913
        %v3560 = vunpack.c.h.b16 %v913
        %v3561 = vunpack.c.l.b16 %v914
        %v3562 = vunpack.c.h.b16 %v914
        %v3563 = vunpack.c.l.b16 %v915
        %v3564 = vunpack.c.h.b16 %v915
        %v3565 = vunpack.c.l.b16 %v916
        %v3566 = vunpack.c.h.b16 %v916
        %v3567 = vunpack.c.l.b16 %v917
        %v3568 = vunpack.c.h.b16 %v917
        %v3569 = vunpack.c.l.b16 %v918
        %v3570 = vunpack.c.h.b16 %v918
        %v3571 = vunpack.c.l.b16 %v919
        %v3572 = vunpack.c.h.b16 %v919
        %v3573 = vunpack.c.l.b16 %v920
        %v3574 = vunpack.c.h.b16 %v920
        %v3575 = vunpack.c.l.b16 %v921
        %v3576 = vunpack.c.h.b16 %v921
        %v3577 = vunpack.c.l.b16 %v922
        %v3578 = vunpack.c.h.b16 %v922
        %v3579 = vunpack.c.l.b16 %v923
        %v3580 = vunpack.c.h.b16 %v923
        %v3581 = vunpack.c.l.b16 %v924
        %v3582 = vunpack.c.h.b16 %v924
        %v3583 = vunpack.c.l.b16 %v925
        %v3584 = vunpack.c.h.b16 %v925
        %v3585 = vunpack.c.l.b16 %v926
        %v3586 = vunpack.c.h.b16 %v926
        %v3587 = vunpack.c.l.b16 %v927
        %v3588 = vunpack.c.h.b16 %v927
        %v3589 = vunpack.c.l.b16 %v928
        %v3590 = vunpack.c.h.b16 %v928
        %v3591 = vunpack.c.l.b16 %v929
        %v3592 = vunpack.c.h.b16 %v929
        %v3593 = vunpack.c.l.b16 %v930
        %v3594 = vunpack.c.h.b16 %v930
        %v3595 = vunpack.c.l.b16 %v931
        %v3596 = vunpack.c.h.b16 %v931
        %v3597 = vunpack.c.l.b16 %v932
        %v3598 = vunpack.c.h.b16 %v932
        %v3599 = vunpack.c.l.b16 %v933
        %v3600 = vunpack.c.h.b16 %v933
        %v3601 = vunpack.c.l.b16 %v934
        %v3602 = vunpack.c.h.b16 %v934
        %v3603 = vunpack.c.l.b16 %v935
        %v3604 = vunpack.c.h.b16 %v935
        %v3605 = vunpack.c.l.b16 %v936
        %v3606 = vunpack.c.h.b16 %v936
        %v3607 = vunpack.c.l.b16 %v937
        %v3608 = vunpack.c.h.b16 %v937
        %v3609 = vunpack.c.l.b16 %v938
        %v3610 = vunpack.c.h.b16 %v938
        %v3611 = vunpack.c.l.b16 %v939
        %v3612 = vunpack.c.h.b16 %v939
        %v3613 = vunpack.c.l.b16 %v940
        %v3614 = vunpack.c.h.b16 %v940
        %v3615 = vunpack.c.l.b16 %v941
        %v3616 = vunpack.c.h.b16 %v941
        %v3617 = vunpack.c.l.b16 %v942
        %v3618 = vunpack.c.h.b16 %v942
        %v3619 = vunpack.c.l.b16 %v943
        %v3620 = vunpack.c.h.b16 %v943
        %v3621 = vunpack.c.l.b16 %v944
        %v3622 = vunpack.c.h.b16 %v944
        %v3623 = vunpack.c.l.b16 %v945
        %v3624 = vunpack.c.h.b16 %v945
        %v3625 = vunpack.c.l.b16 %v946
        %v3626 = vunpack.c.h.b16 %v946
        %v3627 = vunpack.c.l.b16 %v947
        %v3628 = vunpack.c.h.b16 %v947
        %v3629 = vunpack.c.l.b16 %v948
        %v3630 = vunpack.c.h.b16 %v948
        %v3631 = vunpack.c.l.b16 %v949
        %v3632 = vunpack.c.h.b16 %v949
        %v3633 = vunpack.c.l.b16 %v950
        %v3634 = vunpack.c.h.b16 %v950
        %v3635 = vunpack.c.l.b16 %v951
        %v3636 = vunpack.c.h.b16 %v951
        %v3637 = vunpack.c.l.b16 %v952
        %v3638 = vunpack.c.h.b16 %v952
        %v3639 = vunpack.c.l.b16 %v953
        %v3640 = vunpack.c.h.b16 %v953
        %v3641 = vunpack.c.l.b16 %v954
        %v3642 = vunpack.c.h.b16 %v954
        %v3643 = vunpack.c.l.b16 %v955
        %v3644 = vunpack.c.h.b16 %v955
        %v3645 = vunpack.c.l.b16 %v956
        %v3646 = vunpack.c.h.b16 %v956
        %v3647 = vunpack.c.l.b16 %v957
        %v3648 = vunpack.c.h.b16 %v957
        %v3649 = vunpack.c.l.b16 %v958
        %v3650 = vunpack.c.h.b16 %v958
        %v3651 = vunpack.c.l.b16 %v959
        %v3652 = vunpack.c.h.b16 %v959
        %v3653 = vunpack.c.l.b16 %v960
        %v3654 = vunpack.c.h.b16 %v960
        %v3655 = vunpack.c.l.b16 %v961
        %v3656 = vunpack.c.h.b16 %v961
        %v3657 = vunpack.c.l.b16 %v962
        %v3658 = vunpack.c.h.b16 %v962
        %v3659 = vunpack.c.l.b16 %v963
        %v3660 = vunpack.c.h.b16 %v963
        %v3661 = vunpack.c.l.b16 %v964
        %v3662 = vunpack.c.h.b16 %v964
        %v3663 = vunpack.c.l.b16 %v965
        %v3664 = vunpack.c.h.b16 %v965
        %v3665 = vunpack.c.l.b16 %v966
        %v3666 = vunpack.c.h.b16 %v966
        %v3667 = vunpack.c.l.b16 %v967
        %v3668 = vunpack.c.h.b16 %v967
        %v3669 = vunpack.c.l.b16 %v968
        %v3670 = vunpack.c.h.b16 %v968
        %v3671 = vunpack.c.l.b16 %v969
        %v3672 = vunpack.c.h.b16 %v969
        %v3673 = vunpack.c.l.b16 %v970
        %v3674 = vunpack.c.h.b16 %v970
        %v3675 = vunpack.c.l.b16 %v971
        %v3676 = vunpack.c.h.b16 %v971
        %v3677 = vunpack.c.l.b16 %v972
        %v3678 = vunpack.c.h.b16 %v972
        %v3679 = vunpack.c.l.b16 %v973
        %v3680 = vunpack.c.h.b16 %v973
        %v3681 = vunpack.c.l.b16 %v974
        %v3682 = vunpack.c.h.b16 %v974
        %v3683 = vunpack.c.l.b16 %v975
        %v3684 = vunpack.c.h.b16 %v975
        %v3685 = vunpack.c.l.b16 %v976
        %v3686 = vunpack.c.h.b16 %v976
        %v3687 = vunpack.c.l.b16 %v977
        %v3688 = vunpack.c.h.b16 %v977
        %v3689 = vunpack.c.l.b16 %v978
        %v3690 = vunpack.c.h.b16 %v978
        %v3691 = vunpack.c.l.b16 %v979
        %v3692 = vunpack.c.h.b16 %v979
        %v3693 = vunpack.c.l.b16 %v980
        %v3694 = vunpack.c.h.b16 %v980
        %v3695 = vunpack.c.l.b16 %v981
        %v3696 = vunpack.c.h.b16 %v981
        %v3697 = vunpack.c.l.b16 %v982
        %v3698 = vunpack.c.h.b16 %v982
        %v3699 = vunpack.c.l.b16 %v983
        %v3700 = vunpack.c.h.b16 %v983
        %v3701 = vunpack.c.l.b16 %v984
        %v3702 = vunpack.c.h.b16 %v984
        %v3703 = vunpack.c.l.b16 %v985
        %v3704 = vunpack.c.h.b16 %v985
        %v3705 = vunpack.c.l.b16 %v986
        %v3706 = vunpack.c.h.b16 %v986
        %v3707 = vunpack.c.l.b16 %v987
        %v3708 = vunpack.c.h.b16 %v987
        %v3709 = vunpack.c.l.b16 %v988
        %v3710 = vunpack.c.h.b16 %v988
        %v3711 = vunpack.c.l.b16 %v989
        %v3712 = vunpack.c.h.b16 %v989
        %v3713 = vunpack.c.l.b16 %v990
        %v3714 = vunpack.c.h.b16 %v990
        %v3715 = vunpack.c.l.b16 %v991
        %v3716 = vunpack.c.h.b16 %v991
        %v3717 = vunpack.c.l.b16 %v992
        %v3718 = vunpack.c.h.b16 %v992
        %v3719 = vunpack.c.l.b16 %v993
        %v3720 = vunpack.c.h.b16 %v993
        %v3721 = vunpack.c.l.b16 %v994
        %v3722 = vunpack.c.h.b16 %v994
        %v3723 = vunpack.c.l.b16 %v995
        %v3724 = vunpack.c.h.b16 %v995
        %v3725 = vunpack.c.l.b16 %v996
        %v3726 = vunpack.c.h.b16 %v996
        %v3727 = vunpack.c.l.b16 %v997
        %v3728 = vunpack.c.h.b16 %v997
        %v3729 = vunpack.c.l.b16 %v998
        %v3730 = vunpack.c.h.b16 %v998
        %v3731 = vunpack.c.l.b16 %v999
        %v3732 = vunpack.c.h.b16 %v999
        %v3733 = vunpack.c.l.b16 %v1000
        %v3734 = vunpack.c.h.b16 %v1000
        %v3735 = vunpack.c.l.b16 %v1001
        %v3736 = vunpack.c.h.b16 %v1001
        %v3737 = vunpack.c.l.b16 %v1002
        %v3738 = vunpack.c.h.b16 %v1002
        %v3739 = vunpack.c.l.b16 %v1003
        %v3740 = vunpack.c.h.b16 %v1003
        %v3741 = vunpack.c.l.b16 %v1004
        %v3742 = vunpack.c.h.b16 %v1004
        %v3743 = vunpack.c.l.b16 %v1005
        %v3744 = vunpack.c.h.b16 %v1005
        %v3745 = vunpack.c.l.b16 %v1006
        %v3746 = vunpack.c.h.b16 %v1006
        %v3747 = vunpack.c.l.b16 %v1007
        %v3748 = vunpack.c.h.b16 %v1007
        %v3749 = vunpack.c.l.b16 %v1008
        %v3750 = vunpack.c.h.b16 %v1008
        %v3751 = vunpack.c.l.b16 %v1009
        %v3752 = vunpack.c.h.b16 %v1009
        %v3753 = vunpack.c.l.b16 %v1010
        %v3754 = vunpack.c.h.b16 %v1010
        %v3755 = vunpack.c.l.b16 %v1011
        %v3756 = vunpack.c.h.b16 %v1011
        %v3757 = vunpack.c.l.b16 %v1012
        %v3758 = vunpack.c.h.b16 %v1012
        %v3759 = vunpack.c.l.b16 %v1013
        %v3760 = vunpack.c.h.b16 %v1013
        %v3761 = vunpack.c.l.b16 %v1014
        %v3762 = vunpack.c.h.b16 %v1014
        %v3763 = vunpack.c.l.b16 %v1015
        %v3764 = vunpack.c.h.b16 %v1015
        %v3765 = vunpack.c.l.b16 %v1016
        %v3766 = vunpack.c.h.b16 %v1016
        %v3767 = vunpack.c.l.b16 %v1017
        %v3768 = vunpack.c.h.b16 %v1017
        %v3769 = vunpack.c.l.b16 %v1018
        %v3770 = vunpack.c.h.b16 %v1018
        %v3771 = vunpack.c.l.b16 %v1019
        %v3772 = vunpack.c.h.b16 %v1019
        %v3773 = vunpack.c.l.b16 %v1020
        %v3774 = vunpack.c.h.b16 %v1020
        %v3775 = vunpack.c.l.b16 %v1021
        %v3776 = vunpack.c.h.b16 %v1021
        %v3777 = vunpack.c.l.b16 %v1022
        %v3778 = vunpack.c.h.b16 %v1022
        %v3779 = vunpack.c.l.b16 %v1023
        %v3780 = vunpack.c.h.b16 %v1023
        %v3781 = vunpack.c.l.b16 %v1024
        %v3782 = vunpack.c.h.b16 %v1024
        %v3783 = vunpack.c.l.b16 %v1025
        %v3784 = vunpack.c.h.b16 %v1025
        %v3785 = vunpack.c.l.b16 %v1026
        %v3786 = vunpack.c.h.b16 %v1026
        %v3787 = vunpack.c.l.b16 %v1027
        %v3788 = vunpack.c.h.b16 %v1027
        %v3789 = vunpack.c.l.b16 %v1028
        %v3790 = vunpack.c.h.b16 %v1028
        %v3791 = vunpack.c.l.b16 %v1029
        %v3792 = vunpack.c.h.b16 %v1029
        %v3793 = vunpack.c.l.b16 %v1030
        %v3794 = vunpack.c.h.b16 %v1030
        %v3795 = vunpack.c.l.b16 %v1031
        %v3796 = vunpack.c.h.b16 %v1031
        %v3797 = vunpack.c.l.b16 %v1032
        %v3798 = vunpack.c.h.b16 %v1032
        %v3799 = vunpack.c.l.b16 %v1033
        %v3800 = vunpack.c.h.b16 %v1033
        %v3801 = vunpack.c.l.b16 %v1034
        %v3802 = vunpack.c.h.b16 %v1034
        %v3803 = vunpack.c.l.b16 %v1035
        %v3804 = vunpack.c.h.b16 %v1035
        %v3805 = vunpack.c.l.b16 %v1036
        %v3806 = vunpack.c.h.b16 %v1036
        %v3807 = vunpack.c.l.b16 %v1037
        %v3808 = vunpack.c.h.b16 %v1037
        %v3809 = vunpack.c.l.b16 %v1038
        %v3810 = vunpack.c.h.b16 %v1038
        %v3811 = vunpack.c.l.b16 %v1039
        %v3812 = vunpack.c.h.b16 %v1039
        %v3813 = vunpack.c.l.b16 %v1040
        %v3814 = vunpack.c.h.b16 %v1040
        %v3815 = vunpack.c.l.b16 %v1041
        %v3816 = vunpack.c.h.b16 %v1041
        %v3817 = vunpack.c.l.b16 %v1042
        %v3818 = vunpack.c.h.b16 %v1042
        %v3819 = vunpack.c.l.b16 %v1043
        %v3820 = vunpack.c.h.b16 %v1043
        %v3821 = vunpack.c.l.b16 %v1044
        %v3822 = vunpack.c.h.b16 %v1044
        %v3823 = vunpack.c.l.b16 %v1045
        %v3824 = vunpack.c.h.b16 %v1045
        %v3825 = vunpack.c.l.b16 %v1046
        %v3826 = vunpack.c.h.b16 %v1046
        %v3827 = vunpack.c.l.b16 %v1047
        %v3828 = vunpack.c.h.b16 %v1047
        %v3829 = vunpack.c.l.b16 %v1048
        %v3830 = vunpack.c.h.b16 %v1048
        %v3831 = vunpack.c.l.b16 %v1049
        %v3832 = vunpack.c.h.b16 %v1049
        %v3833 = vunpack.c.l.b16 %v1050
        %v3834 = vunpack.c.h.b16 %v1050
        %v3835 = vunpack.c.l.b16 %v1051
        %v3836 = vunpack.c.h.b16 %v1051
        %v3837 = vunpack.c.l.b16 %v1052
        %v3838 = vunpack.c.h.b16 %v1052
        %v3839 = vunpack.c.l.b16 %v1053
        %v3840 = vunpack.c.h.b16 %v1053
        %v3841 = vunpack.c.l.b16 %v1054
        %v3842 = vunpack.c.h.b16 %v1054
        %v3843 = vunpack.c.l.b16 %v1055
        %v3844 = vunpack.c.h.b16 %v1055
        %v3845 = vunpack.c.l.b16 %v1056
        %v3846 = vunpack.c.h.b16 %v1056
        %v3847 = vunpack.c.l.b16 %v1057
        %v3848 = vunpack.c.h.b16 %v1057
        %v3849 = vunpack.c.l.b16 %v1058
        %v3850 = vunpack.c.h.b16 %v1058
        %v3851 = vunpack.c.l.b16 %v1059
        %v3852 = vunpack.c.h.b16 %v1059
        %v3853 = vunpack.c.l.b16 %v1060
        %v3854 = vunpack.c.h.b16 %v1060
        %v3855 = vunpack.c.l.b16 %v1061
        %v3856 = vunpack.c.h.b16 %v1061
        %v3857 = vunpack.c.l.b16 %v1062
        %v3858 = vunpack.c.h.b16 %v1062
        %v3859 = vunpack.c.l.b16 %v1063
        %v3860 = vunpack.c.h.b16 %v1063
        %v3861 = vunpack.c.l.b16 %v1064
        %v3862 = vunpack.c.h.b16 %v1064
        %v3863 = vunpack.c.l.b16 %v1065
        %v3864 = vunpack.c.h.b16 %v1065
        %v3865 = vunpack.c.l.b16 %v1066
        %v3866 = vunpack.c.h.b16 %v1066
        %v3867 = vunpack.c.l.b16 %v1067
        %v3868 = vunpack.c.h.b16 %v1067
        %v3869 = vunpack.c.l.b16 %v1068
        %v3870 = vunpack.c.h.b16 %v1068
        %v3871 = vunpack.c.l.b16 %v1069
        %v3872 = vunpack.c.h.b16 %v1069
        %v3873 = vunpack.c.l.b16 %v1070
        %v3874 = vunpack.c.h.b16 %v1070
        %v3875 = vunpack.c.l.b16 %v1071
        %v3876 = vunpack.c.h.b16 %v1071
        %v3877 = vunpack.c.l.b16 %v1072
        %v3878 = vunpack.c.h.b16 %v1072
        %v3879 = vunpack.c.l.b16 %v1073
        %v3880 = vunpack.c.h.b16 %v1073
        %v3881 = vunpack.c.l.b16 %v1074
        %v3882 = vunpack.c.h.b16 %v1074
        %v3883 = vunpack.c.l.b16 %v1075
        %v3884 = vunpack.c.h.b16 %v1075
        %v3885 = vunpack.c.l.b16 %v1076
        %v3886 = vunpack.c.h.b16 %v1076
        %v3887 = vunpack.c.l.b16 %v1077
        %v3888 = vunpack.c.h.b16 %v1077
        %v3889 = vunpack.c.l.b16 %v1078
        %v3890 = vunpack.c.h.b16 %v1078
        %v3891 = vunpack.c.l.b16 %v1079
        %v3892 = vunpack.c.h.b16 %v1079
        %v3893 = vunpack.c.l.b16 %v1080
        %v3894 = vunpack.c.h.b16 %v1080
        %v3895 = vunpack.c.l.b16 %v1081
        %v3896 = vunpack.c.h.b16 %v1081
        %v3897 = vunpack.c.l.b16 %v1082
        %v3898 = vunpack.c.h.b16 %v1082
        %v3899 = vunpack.c.l.b16 %v1083
        %v3900 = vunpack.c.h.b16 %v1083
        %v3901 = vunpack.c.l.b16 %v1084
        %v3902 = vunpack.c.h.b16 %v1084
        %v3903 = vunpack.c.l.b16 %v1085
        %v3904 = vunpack.c.h.b16 %v1085
        %v3905 = vunpack.c.l.b16 %v1086
        %v3906 = vunpack.c.h.b16 %v1086
        %v3907 = vunpack.c.l.b16 %v1087
        %v3908 = vunpack.c.h.b16 %v1087
        %v3909 = vunpack.c.l.b16 %v1088
        %v3910 = vunpack.c.h.b16 %v1088
        %v3911 = vunpack.c.l.b16 %v1089
        %v3912 = vunpack.c.h.b16 %v1089
        %v3913 = vunpack.c.l.b16 %v1090
        %v3914 = vunpack.c.h.b16 %v1090
        %v3915 = vunpack.c.l.b16 %v1091
        %v3916 = vunpack.c.h.b16 %v1091
        %v3917 = vunpack.c.l.b16 %v1092
        %v3918 = vunpack.c.h.b16 %v1092
        %v3919 = vunpack.c.l.b16 %v1093
        %v3920 = vunpack.c.h.b16 %v1093
        %v3921 = vunpack.c.l.b16 %v1094
        %v3922 = vunpack.c.h.b16 %v1094
        %v3923 = vunpack.c.l.b16 %v1095
        %v3924 = vunpack.c.h.b16 %v1095
        %v3925 = vunpack.c.l.b16 %v1096
        %v3926 = vunpack.c.h.b16 %v1096
        %v3927 = vunpack.c.l.b16 %v1097
        %v3928 = vunpack.c.h.b16 %v1097
        %v3929 = vunpack.c.l.b16 %v1098
        %v3930 = vunpack.c.h.b16 %v1098
        %v3931 = vunpack.c.l.b16 %v1099
        %v3932 = vunpack.c.h.b16 %v1099
        %v3933 = vunpack.c.l.b16 %v1100
        %v3934 = vunpack.c.h.b16 %v1100
        %v3935 = vunpack.c.l.b16 %v1101
        %v3936 = vunpack.c.h.b16 %v1101
        %v3937 = vunpack.c.l.b16 %v1102
        %v3938 = vunpack.c.h.b16 %v1102
        %v3939 = vunpack.c.l.b16 %v1103
        %v3940 = vunpack.c.h.b16 %v1103
        %v3941 = vunpack.c.l.b16 %v1104
        %v3942 = vunpack.c.h.b16 %v1104
        %v3943 = vunpack.c.l.b16 %v1105
        %v3944 = vunpack.c.h.b16 %v1105
        %v3945 = vunpack.c.l.b16 %v1106
        %v3946 = vunpack.c.h.b16 %v1106
        %v3947 = vunpack.c.l.b16 %v1107
        %v3948 = vunpack.c.h.b16 %v1107
        %v3949 = vunpack.c.l.b16 %v1108
        %v3950 = vunpack.c.h.b16 %v1108
        %v3951 = vunpack.c.l.b16 %v1109
        %v3952 = vunpack.c.h.b16 %v1109
        %v3953 = vunpack.c.l.b16 %v1110
        %v3954 = vunpack.c.h.b16 %v1110
        %v3955 = vunpack.c.l.b16 %v1111
        %v3956 = vunpack.c.h.b16 %v1111
        %v3957 = vunpack.c.l.b16 %v1112
        %v3958 = vunpack.c.h.b16 %v1112
        %v3959 = vunpack.c.l.b16 %v1113
        %v3960 = vunpack.c.h.b16 %v1113
        %v3961 = vunpack.c.l.b16 %v1114
        %v3962 = vunpack.c.h.b16 %v1114
        %v3963 = vunpack.c.l.b16 %v1115
        %v3964 = vunpack.c.h.b16 %v1115
        %v3965 = vunpack.c.l.b16 %v1116
        %v3966 = vunpack.c.h.b16 %v1116
        %v3967 = vunpack.c.l.b16 %v1117
        %v3968 = vunpack.c.h.b16 %v1117
        %v3969 = vunpack.c.l.b16 %v1118
        %v3970 = vunpack.c.h.b16 %v1118
        %v3971 = vunpack.c.l.b16 %v1119
        %v3972 = vunpack.c.h.b16 %v1119
        %v3973 = vunpack.c.l.b16 %v1120
        %v3974 = vunpack.c.h.b16 %v1120
        %v3975 = vunpack.c.l.b16 %v1121
        %v3976 = vunpack.c.h.b16 %v1121
        %v3977 = vunpack.c.l.b16 %v1122
        %v3978 = vunpack.c.h.b16 %v1122
        %v3979 = vunpack.c.l.b16 %v1123
        %v3980 = vunpack.c.h.b16 %v1123
        %v3981 = vunpack.c.l.b16 %v1124
        %v3982 = vunpack.c.h.b16 %v1124
        %v3983 = vunpack.c.l.b16 %v1125
        %v3984 = vunpack.c.h.b16 %v1125
        %v3985 = vunpack.c.l.b16 %v1126
        %v3986 = vunpack.c.h.b16 %v1126
        %v3987 = vunpack.c.l.b16 %v1127
        %v3988 = vunpack.c.h.b16 %v1127
        %v3989 = vunpack.c.l.b16 %v1128
        %v3990 = vunpack.c.h.b16 %v1128
        %v3991 = vunpack.c.l.b16 %v1129
        %v3992 = vunpack.c.h.b16 %v1129
        %v3993 = vunpack.c.l.b16 %v1130
        %v3994 = vunpack.c.h.b16 %v1130
        %v3995 = vunpack.c.l.b16 %v1131
        %v3996 = vunpack.c.h.b16 %v1131
        %v3997 = vunpack.c.l.b16 %v1132
        %v3998 = vunpack.c.h.b16 %v1132
        %v3999 = vunpack.c.l.b16 %v1133
        %v4000 = vunpack.c.h.b16 %v1133
        %v4001 = vunpack.c.l.b16 %v1134
        %v4002 = vunpack.c.h.b16 %v1134
        %v4003 = vunpack.c.l.b16 %v1135
        %v4004 = vunpack.c.h.b16 %v1135
        %v4005 = vunpack.c.l.b16 %v1136
        %v4006 = vunpack.c.h.b16 %v1136
        %v4007 = vunpack.c.l.b16 %v1137
        %v4008 = vunpack.c.h.b16 %v1137
        %v4009 = vunpack.c.l.b16 %v1138
        %v4010 = vunpack.c.h.b16 %v1138
        %v4011 = vunpack.c.l.b16 %v1139
        %v4012 = vunpack.c.h.b16 %v1139
        %v4013 = vunpack.c.l.b16 %v1140
        %v4014 = vunpack.c.h.b16 %v1140
        %v4015 = vunpack.c.l.b16 %v1141
        %v4016 = vunpack.c.h.b16 %v1141
        %v4017 = vunpack.c.l.b16 %v1142
        %v4018 = vunpack.c.h.b16 %v1142
        %v4019 = vunpack.c.l.b16 %v1143
        %v4020 = vunpack.c.h.b16 %v1143
        %v4021 = vunpack.c.l.b16 %v1144
        %v4022 = vunpack.c.h.b16 %v1144
        %v4023 = vunpack.c.l.b16 %v1145
        %v4024 = vunpack.c.h.b16 %v1145
        %v4025 = vunpack.c.l.b16 %v1146
        %v4026 = vunpack.c.h.b16 %v1146
        %v4027 = vunpack.c.l.b16 %v1147
        %v4028 = vunpack.c.h.b16 %v1147
        %v4029 = vunpack.c.l.b16 %v1148
        %v4030 = vunpack.c.h.b16 %v1148
        %v4031 = vunpack.c.l.b16 %v1149
        %v4032 = vunpack.c.h.b16 %v1149
        %v4033 = vunpack.c.l.b16 %v1150
        %v4034 = vunpack.c.h.b16 %v1150
        %v4035 = vunpack.c.l.b16 %v1151
        %v4036 = vunpack.c.h.b16 %v1151
        %v4037 = vunpack.c.l.b16 %v1152
        %v4038 = vunpack.c.h.b16 %v1152
        %v4039 = vunpack.c.l.b16 %v1153
        %v4040 = vunpack.c.h.b16 %v1153
        %v4041 = vunpack.c.l.b16 %v1154
        %v4042 = vunpack.c.h.b16 %v1154
        %v4043 = vunpack.c.l.b16 %v1155
        %v4044 = vunpack.c.h.b16 %v1155
        %v4045 = vunpack.c.l.b16 %v1156
        %v4046 = vunpack.c.h.b16 %v1156
        %v4047 = vunpack.c.l.b16 %v1157
        %v4048 = vunpack.c.h.b16 %v1157
        %v4049 = vunpack.c.l.b16 %v1158
        %v4050 = vunpack.c.h.b16 %v1158
        %v4051 = vunpack.c.l.b16 %v1159
        %v4052 = vunpack.c.h.b16 %v1159
        %v4053 = vunpack.c.l.b16 %v1160
        %v4054 = vunpack.c.h.b16 %v1160
        %v4055 = vunpack.c.l.b16 %v1161
        %v4056 = vunpack.c.h.b16 %v1161
        %v4057 = vunpack.c.l.b16 %v1162
        %v4058 = vunpack.c.h.b16 %v1162
        %v4059 = vunpack.c.l.b16 %v1163
        %v4060 = vunpack.c.h.b16 %v1163
        %v4061 = vunpack.c.l.b16 %v1164
        %v4062 = vunpack.c.h.b16 %v1164
        %v4063 = vunpack.c.l.b16 %v1165
        %v4064 = vunpack.c.h.b16 %v1165
        %v4065 = vunpack.c.l.b16 %v1166
        %v4066 = vunpack.c.h.b16 %v1166
        %v4067 = vunpack.c.l.b16 %v1167
        %v4068 = vunpack.c.h.b16 %v1167
        %v4069 = vunpack.c.l.b16 %v1168
        %v4070 = vunpack.c.h.b16 %v1168
        %v4071 = vunpack.c.l.b16 %v1169
        %v4072 = vunpack.c.h.b16 %v1169
        %v4073 = vunpack.c.l.b16 %v1170
        %v4074 = vunpack.c.h.b16 %v1170
        %v4075 = vunpack.c.l.b16 %v1171
        %v4076 = vunpack.c.h.b16 %v1171
        %v4077 = vunpack.c.l.b16 %v1172
        %v4078 = vunpack.c.h.b16 %v1172
        %v4079 = vunpack.c.l.b16 %v1173
        %v4080 = vunpack.c.h.b16 %v1173
        %v4081 = vunpack.c.l.b16 %v1174
        %v4082 = vunpack.c.h.b16 %v1174
        %v4083 = vunpack.c.l.b16 %v1175
        %v4084 = vunpack.c.h.b16 %v1175
        %v4085 = vunpack.c.l.b16 %v1176
        %v4086 = vunpack.c.h.b16 %v1176
        %v4087 = vunpack.c.l.b16 %v1177
        %v4088 = vunpack.c.h.b16 %v1177
        %v4089 = vunpack.c.l.b16 %v1178
        %v4090 = vunpack.c.h.b16 %v1178
        %v4091 = vunpack.c.l.b16 %v1179
        %v4092 = vunpack.c.h.b16 %v1179
        %v4093 = vunpack.c.l.b16 %v1180
        %v4094 = vunpack.c.h.b16 %v1180
        %v4095 = vunpack.c.l.b16 %v1181
        %v4096 = vunpack.c.h.b16 %v1181
        %v4097 = vunpack.c.l.b16 %v1182
        %v4098 = vunpack.c.h.b16 %v1182
        %v4099 = vunpack.c.l.b16 %v1183
        %v4100 = vunpack.c.h.b16 %v1183
        %v4101 = vunpack.c.l.b16 %v1184
        %v4102 = vunpack.c.h.b16 %v1184
        %v4103 = vunpack.c.l.b16 %v1185
        %v4104 = vunpack.c.h.b16 %v1185
        %v4105 = vunpack.c.l.b16 %v1186
        %v4106 = vunpack.c.h.b16 %v1186
        %v4107 = vunpack.c.l.b16 %v1187
        %v4108 = vunpack.c.h.b16 %v1187
        %v4109 = vunpack.c.l.b16 %v1188
        %v4110 = vunpack.c.h.b16 %v1188
        %v4111 = vunpack.c.l.b16 %v1189
        %v4112 = vunpack.c.h.b16 %v1189
        %v4113 = vunpack.c.l.b16 %v1190
        %v4114 = vunpack.c.h.b16 %v1190
        %v4115 = vunpack.c.l.b16 %v1191
        %v4116 = vunpack.c.h.b16 %v1191
        %v4117 = vunpack.c.l.b16 %v1192
        %v4118 = vunpack.c.h.b16 %v1192
        %v4119 = vunpack.c.l.b16 %v1193
        %v4120 = vunpack.c.h.b16 %v1193
        %v4121 = vunpack.c.l.b16 %v1194
        %v4122 = vunpack.c.h.b16 %v1194
        %v4123 = vunpack.c.l.b16 %v1195
        %v4124 = vunpack.c.h.b16 %v1195
        %v4125 = vunpack.c.l.b16 %v1196
        %v4126 = vunpack.c.h.b16 %v1196
        %v4127 = vunpack.c.l.b16 %v1197
        %v4128 = vunpack.c.h.b16 %v1197
        %v4129 = vunpack.c.l.b16 %v1198
        %v4130 = vunpack.c.h.b16 %v1198
        %v4131 = vunpack.c.l.b16 %v1199
        %v4132 = vunpack.c.h.b16 %v1199
        %v4133 = vunpack.c.l.b16 %v1200
        %v4134 = vunpack.c.h.b16 %v1200
        %v4135 = vunpack.c.l.b16 %v1201
        %v4136 = vunpack.c.h.b16 %v1201
        %v4137 = vunpack.c.l.b16 %v1202
        %v4138 = vunpack.c.h.b16 %v1202
        %v4139 = vunpack.c.l.b16 %v1203
        %v4140 = vunpack.c.h.b16 %v1203
        %v4141 = vunpack.c.l.b16 %v1204
        %v4142 = vunpack.c.h.b16 %v1204
        %v4143 = vunpack.c.l.b16 %v1205
        %v4144 = vunpack.c.h.b16 %v1205
        %v4145 = vunpack.c.l.b16 %v1206
        %v4146 = vunpack.c.h.b16 %v1206
        %v4147 = vunpack.c.l.b16 %v1207
        %v4148 = vunpack.c.h.b16 %v1207
        %v4149 = vunpack.c.l.b16 %v1208
        %v4150 = vunpack.c.h.b16 %v1208
        %v4151 = vunpack.c.l.b16 %v1209
        %v4152 = vunpack.c.h.b16 %v1209
        %v4153 = vunpack.c.l.b16 %v1210
        %v4154 = vunpack.c.h.b16 %v1210
        %v4155 = vunpack.c.l.b16 %v1211
        %v4156 = vunpack.c.h.b16 %v1211
        %v4157 = vunpack.c.l.b16 %v1212
        %v4158 = vunpack.c.h.b16 %v1212
        %v4159 = vunpack.c.l.b16 %v1213
        %v4160 = vunpack.c.h.b16 %v1213
        %v4161 = vunpack.c.l.b16 %v1214
        %v4162 = vunpack.c.h.b16 %v1214
        %v4163 = vunpack.c.l.b16 %v1215
        %v4164 = vunpack.c.h.b16 %v1215
        %v4165 = vunpack.c.l.b16 %v1216
        %v4166 = vunpack.c.h.b16 %v1216
        %v4167 = vunpack.c.l.b16 %v1217
        %v4168 = vunpack.c.h.b16 %v1217
        %v4169 = vunpack.c.l.b16 %v1218
        %v4170 = vunpack.c.h.b16 %v1218
        %v4171 = vunpack.c.l.b16 %v1219
        %v4172 = vunpack.c.h.b16 %v1219
        %v4173 = vunpack.c.l.b16 %v1220
        %v4174 = vunpack.c.h.b16 %v1220
        %v4175 = vunpack.c.l.b16 %v1221
        %v4176 = vunpack.c.h.b16 %v1221
        %v4177 = vunpack.c.l.b16 %v1222
        %v4178 = vunpack.c.h.b16 %v1222
        %v4179 = vunpack.c.l.b16 %v1223
        %v4180 = vunpack.c.h.b16 %v1223
        %v4181 = vunpack.c.l.b16 %v1224
        %v4182 = vunpack.c.h.b16 %v1224
        %v4183 = vunpack.c.l.b16 %v1225
        %v4184 = vunpack.c.h.b16 %v1225
        %v4185 = vunpack.c.l.b16 %v1226
        %v4186 = vunpack.c.h.b16 %v1226
        %v4187 = vunpack.c.l.b16 %v1227
        %v4188 = vunpack.c.h.b16 %v1227
        %v4189 = vunpack.c.l.b16 %v1228
        %v4190 = vunpack.c.h.b16 %v1228
        %v4191 = vunpack.c.l.b16 %v1229
        %v4192 = vunpack.c.h.b16 %v1229
        %v4193 = vunpack.c.l.b16 %v1230
        %v4194 = vunpack.c.h.b16 %v1230
        %v4195 = vunpack.c.l.b16 %v1231
        %v4196 = vunpack.c.h.b16 %v1231
        %v4197 = vunpack.c.l.b16 %v1232
        %v4198 = vunpack.c.h.b16 %v1232
        %v4199 = vunpack.c.l.b16 %v1233
        %v4200 = vunpack.c.h.b16 %v1233
        %v4201 = vunpack.c.l.b16 %v1234
        %v4202 = vunpack.c.h.b16 %v1234
        %v4203 = vunpack.c.l.b16 %v1235
        %v4204 = vunpack.c.h.b16 %v1235
        %v4205 = vunpack.c.l.b16 %v1236
        %v4206 = vunpack.c.h.b16 %v1236
        %v4207 = vunpack.c.l.b16 %v1237
        %v4208 = vunpack.c.h.b16 %v1237
        %v4209 = vunpack.c.l.b16 %v1238
        %v4210 = vunpack.c.h.b16 %v1238
        %v4211 = vunpack.c.l.b16 %v1239
        %v4212 = vunpack.c.h.b16 %v1239
        %v4213 = vunpack.c.l.b16 %v1240
        %v4214 = vunpack.c.h.b16 %v1240
        %v4215 = vunpack.c.l.b16 %v1241
        %v4216 = vunpack.c.h.b16 %v1241
        %v4217 = vunpack.c.l.b16 %v1242
        %v4218 = vunpack.c.h.b16 %v1242
        %v4219 = vunpack.c.l.b16 %v1243
        %v4220 = vunpack.c.h.b16 %v1243
        %v4221 = vunpack.c.l.b16 %v1244
        %v4222 = vunpack.c.h.b16 %v1244
        %v4223 = vunpack.c.l.b16 %v1245
        %v4224 = vunpack.c.h.b16 %v1245
        %v4225 = vunpack.c.l.b16 %v1246
        %v4226 = vunpack.c.h.b16 %v1246
        %v4227 = vunpack.c.l.b16 %v1247
        %v4228 = vunpack.c.h.b16 %v1247
        %v4229 = vunpack.c.l.b16 %v1248
        %v4230 = vunpack.c.h.b16 %v1248
        %v4231 = vunpack.c.l.b16 %v1249
        %v4232 = vunpack.c.h.b16 %v1249
        %v4233 = vunpack.c.l.b16 %v1250
        %v4234 = vunpack.c.h.b16 %v1250
        %v4235 = vunpack.c.l.b16 %v1251
        %v4236 = vunpack.c.h.b16 %v1251
        %v4237 = vunpack.c.l.b16 %v1252
        %v4238 = vunpack.c.h.b16 %v1252
        %v4239 = vunpack.c.l.b16 %v1253
        %v4240 = vunpack.c.h.b16 %v1253
        %v4241 = vunpack.c.l.b16 %v1254
        %v4242 = vunpack.c.h.b16 %v1254
        %v4243 = vunpack.c.l.b16 %v1255
        %v4244 = vunpack.c.h.b16 %v1255
        %v4245 = vunpack.c.l.b16 %v1256
        %v4246 = vunpack.c.h.b16 %v1256
        %v4247 = vunpack.c.l.b16 %v1257
        %v4248 = vunpack.c.h.b16 %v1257
        %v4249 = vunpack.c.l.b16 %v1258
        %v4250 = vunpack.c.h.b16 %v1258
        %v4251 = vunpack.c.l.b16 %v1259
        %v4252 = vunpack.c.h.b16 %v1259
        %v4253 = vunpack.c.l.b16 %v1260
        %v4254 = vunpack.c.h.b16 %v1260
        %v4255 = vunpack.c.l.b16 %v1261
        %v4256 = vunpack.c.h.b16 %v1261
        %v4257 = vunpack.c.l.b16 %v1262
        %v4258 = vunpack.c.h.b16 %v1262
        %v4259 = vunpack.c.l.b16 %v1263
        %v4260 = vunpack.c.h.b16 %v1263
        %v4261 = vunpack.c.l.b16 %v1264
        %v4262 = vunpack.c.h.b16 %v1264
        %v4263 = vunpack.c.l.b16 %v1265
        %v4264 = vunpack.c.h.b16 %v1265
        %v4265 = vunpack.c.l.b16 %v1266
        %v4266 = vunpack.c.h.b16 %v1266
        %v4267 = vunpack.c.l.b16 %v1267
        %v4268 = vunpack.c.h.b16 %v1267
        %v4269 = vunpack.c.l.b16 %v1268
        %v4270 = vunpack.c.h.b16 %v1268
        %v4271 = vunpack.c.l.b16 %v1269
        %v4272 = vunpack.c.h.b16 %v1269
        %v4273 = vunpack.c.l.b16 %v1270
        %v4274 = vunpack.c.h.b16 %v1270
        %v4275 = vunpack.c.l.b16 %v1271
        %v4276 = vunpack.c.h.b16 %v1271
        %v4277 = vunpack.c.l.b16 %v1272
        %v4278 = vunpack.c.h.b16 %v1272
        %v4279 = vunpack.c.l.b16 %v1273
        %v4280 = vunpack.c.h.b16 %v1273
        %v4281 = vunpack.c.l.b16 %v1274
        %v4282 = vunpack.c.h.b16 %v1274
        %v4283 = vunpack.c.l.b16 %v1275
        %v4284 = vunpack.c.h.b16 %v1275
        %v4285 = vunpack.c.l.b16 %v1276
        %v4286 = vunpack.c.h.b16 %v1276
        %v4287 = vunpack.c.l.b16 %v1277
        %v4288 = vunpack.c.h.b16 %v1277
        %v4289 = vunpack.c.l.b16 %v1278
        %v4290 = vunpack.c.h.b16 %v1278
        %v4291 = vunpack.c.l.b16 %v1279
        %v4292 = vunpack.c.h.b16 %v1279
        %v4293 = vunpack.c.l.b16 %v1280
        %v4294 = vunpack.c.h.b16 %v1280
        %v4295 = vunpack.c.l.b16 %v1281
        %v4296 = vunpack.c.h.b16 %v1281
        %v4297 = vunpack.c.l.b16 %v1282
        %v4298 = vunpack.c.h.b16 %v1282
        %v4299 = vunpack.c.l.b16 %v1283
        %v4300 = vunpack.c.h.b16 %v1283
        %v4301 = vunpack.c.l.b16 %v1284
        %v4302 = vunpack.c.h.b16 %v1284
        %v4303 = vunpack.c.l.b16 %v1285
        %v4304 = vunpack.c.h.b16 %v1285
        %v4305 = vunpack.c.l.b16 %v1286
        %v4306 = vunpack.c.h.b16 %v1286
        %v4307 = vunpack.c.l.b16 %v1287
        %v4308 = vunpack.c.h.b16 %v1287
        %v4309 = vunpack.c.l.b16 %v1288
        %v4310 = vunpack.c.h.b16 %v1288
        %v4311 = vunpack.c.l.b16 %v1289
        %v4312 = vunpack.c.h.b16 %v1289
        %v4313 = vunpack.c.l.b16 %v1290
        %v4314 = vunpack.c.h.b16 %v1290
        %v4315 = vunpack.c.l.b16 %v1291
        %v4316 = vunpack.c.h.b16 %v1291
        %v4317 = vunpack.c.l.b16 %v1292
        %v4318 = vunpack.c.h.b16 %v1292
        %v4319 = vunpack.c.l.b16 %v1293
        %v4320 = vunpack.c.h.b16 %v1293
        %v4321 = vunpack.c.l.b16 %v1294
        %v4322 = vunpack.c.h.b16 %v1294
        %v4323 = vunpack.c.l.b16 %v1295
        %v4324 = vunpack.c.h.b16 %v1295
        %v4325 = vunpack.c.l.b16 %v1296
        %v4326 = vunpack.c.h.b16 %v1296
        %v4327 = vunpack.c.l.b16 %v1297
        %v4328 = vunpack.c.h.b16 %v1297
        %v4329 = vunpack.c.l.b16 %v1298
        %v4330 = vunpack.c.h.b16 %v1298
        %v4331 = vunpack.c.l.b16 %v1299
        %v4332 = vunpack.c.h.b16 %v1299
        %v4333 = vunpack.c.l.b16 %v1300
        %v4334 = vunpack.c.h.b16 %v1300
        %v4335 = vunpack.c.l.b16 %v1301
        %v4336 = vunpack.c.h.b16 %v1301
        %v4337 = vunpack.c.l.b16 %v1302
        %v4338 = vunpack.c.h.b16 %v1302
        %v4339 = vunpack.c.l.b16 %v1303
        %v4340 = vunpack.c.h.b16 %v1303
        %v4341 = vunpack.c.l.b16 %v1304
        %v4342 = vunpack.c.h.b16 %v1304
        %v4343 = vunpack.c.l.b16 %v1305
        %v4344 = vunpack.c.h.b16 %v1305
        %v4345 = vunpack.c.l.b16 %v1306
        %v4346 = vunpack.c.h.b16 %v1306
        %v4347 = vunpack.c.l.b16 %v1307
        %v4348 = vunpack.c.h.b16 %v1307
        %v4349 = vunpack.c.l.b16 %v1308
        %v4350 = vunpack.c.h.b16 %v1308
        %v4351 = vunpack.c.l.b16 %v1309
        %v4352 = vunpack.c.h.b16 %v1309
        %v4353 = vunpack.c.l.b16 %v1310
        %v4354 = vunpack.c.h.b16 %v1310
        %v4355 = vunpack.c.l.b16 %v1311
        %v4356 = vunpack.c.h.b16 %v1311
        %v4357 = vunpack.c.l.b16 %v1312
        %v4358 = vunpack.c.h.b16 %v1312
        %v4359 = vunpack.c.l.b16 %v1313
        %v4360 = vunpack.c.h.b16 %v1313
        %v4361 = vunpack.c.l.b16 %v1314
        %v4362 = vunpack.c.h.b16 %v1314
        %v4363 = vunpack.c.l.b16 %v1315
        %v4364 = vunpack.c.h.b16 %v1315
        %v4365 = vunpack.c.l.b16 %v1316
        %v4366 = vunpack.c.h.b16 %v1316
        %v4367 = vunpack.c.l.b16 %v1317
        %v4368 = vunpack.c.h.b16 %v1317
        %v4369 = vunpack.c.l.b16 %v1318
        %v4370 = vunpack.c.h.b16 %v1318
        %v4371 = vunpack.c.l.b16 %v1319
        %v4372 = vunpack.c.h.b16 %v1319
        %v4373 = vunpack.c.l.b16 %v1320
        %v4374 = vunpack.c.h.b16 %v1320
        %v4375 = vunpack.c.l.b16 %v1321
        %v4376 = vunpack.c.h.b16 %v1321
        %v4377 = vunpack.c.l.b16 %v1322
        %v4378 = vunpack.c.h.b16 %v1322
        %v4379 = vunpack.c.l.b16 %v1323
        %v4380 = vunpack.c.h.b16 %v1323
        %v4381 = vunpack.c.l.b16 %v1324
        %v4382 = vunpack.c.h.b16 %v1324
        %v4383 = vunpack.c.l.b16 %v1325
        %v4384 = vunpack.c.h.b16 %v1325
        %v4385 = vunpack.c.l.b16 %v1326
        %v4386 = vunpack.c.h.b16 %v1326
        %v4387 = vunpack.c.l.b16 %v1327
        %v4388 = vunpack.c.h.b16 %v1327
        %v4389 = vunpack.c.l.b16 %v1328
        %v4390 = vunpack.c.h.b16 %v1328
        %v4391 = vunpack.c.l.b16 %v1329
        %v4392 = vunpack.c.h.b16 %v1329
        %v4393 = vunpack.c.l.b16 %v1330
        %v4394 = vunpack.c.h.b16 %v1330
        %v4395 = vunpack.c.l.b16 %v1331
        %v4396 = vunpack.c.h.b16 %v1331
        %v4397 = vunpack.c.l.b16 %v1332
        %v4398 = vunpack.c.h.b16 %v1332
        %v4399 = vunpack.c.l.b16 %v1333
        %v4400 = vunpack.c.h.b16 %v1333
        %v4401 = vunpack.c.l.b16 %v1334
        %v4402 = vunpack.c.h.b16 %v1334
        %v4403 = vunpack.c.l.b16 %v1335
        %v4404 = vunpack.c.h.b16 %v1335
        %v4405 = vunpack.c.l.b16 %v1336
        %v4406 = vunpack.c.h.b16 %v1336
        %v4407 = vunpack.c.l.b16 %v1337
        %v4408 = vunpack.c.h.b16 %v1337
        %v4409 = vunpack.c.l.b16 %v1338
        %v4410 = vunpack.c.h.b16 %v1338
        %v4411 = vunpack.c.l.b16 %v1339
        %v4412 = vunpack.c.h.b16 %v1339
        %v4413 = vunpack.c.l.b16 %v1340
        %v4414 = vunpack.c.h.b16 %v1340
        %v4415 = vunpack.c.l.b16 %v1341
        %v4416 = vunpack.c.h.b16 %v1341
        %v4417 = vunpack.c.l.b16 %v1342
        %v4418 = vunpack.c.h.b16 %v1342
        %v4419 = vunpack.c.l.b16 %v1343
        %v4420 = vunpack.c.h.b16 %v1343
        %v4421 = vunpack.c.l.b16 %v1344
        %v4422 = vunpack.c.h.b16 %v1344
        %v4423 = vunpack.c.l.b16 %v1345
        %v4424 = vunpack.c.h.b16 %v1345
        %v4425 = vunpack.c.l.b16 %v1346
        %v4426 = vunpack.c.h.b16 %v1346
        %v4427 = vunpack.c.l.b16 %v1347
        %v4428 = vunpack.c.h.b16 %v1347
        %v4429 = vunpack.c.l.b16 %v1348
        %v4430 = vunpack.c.h.b16 %v1348
        %v4431 = vunpack.c.l.b16 %v1349
        %v4432 = vunpack.c.h.b16 %v1349
        %v4433 = vunpack.c.l.b16 %v1350
        %v4434 = vunpack.c.h.b16 %v1350
        %v4435 = vunpack.c.l.b16 %v1351
        %v4436 = vunpack.c.h.b16 %v1351
        %v4437 = vunpack.c.l.b16 %v1352
        %v4438 = vunpack.c.h.b16 %v1352
        %v4439 = vunpack.c.l.b16 %v1353
        %v4440 = vunpack.c.h.b16 %v1353
        %v4441 = vunpack.c.l.b16 %v1354
        %v4442 = vunpack.c.h.b16 %v1354
        %v4443 = vunpack.c.l.b16 %v1355
        %v4444 = vunpack.c.h.b16 %v1355
        %v4445 = vunpack.c.l.b16 %v1356
        %v4446 = vunpack.c.h.b16 %v1356
        %v4447 = vunpack.c.l.b16 %v1357
        %v4448 = vunpack.c.h.b16 %v1357
        %v4449 = vunpack.c.l.b16 %v1358
        %v4450 = vunpack.c.h.b16 %v1358
        %v4451 = vunpack.c.l.b16 %v1359
        %v4452 = vunpack.c.h.b16 %v1359
        %v4453 = vunpack.c.l.b16 %v1360
        %v4454 = vunpack.c.h.b16 %v1360
        %v4455 = vunpack.c.l.b16 %v1361
        %v4456 = vunpack.c.h.b16 %v1361
        %v4457 = vunpack.c.l.b16 %v1362
        %v4458 = vunpack.c.h.b16 %v1362
        %v4459 = vunpack.c.l.b16 %v1363
        %v4460 = vunpack.c.h.b16 %v1363
        %v4461 = vunpack.c.l.b16 %v1364
        %v4462 = vunpack.c.h.b16 %v1364
        %v4463 = vunpack.c.l.b16 %v1365
        %v4464 = vunpack.c.h.b16 %v1365
        %v4465 = vunpack.c.l.b16 %v1366
        %v4466 = vunpack.c.h.b16 %v1366
        %v4467 = vpack.c.b16 %v2435, %v2419
        %v4468 = vpack.c.b16 %v2436, %v2420
        %v4469 = vpack.c.b16 %v2437, %v2421
        %v4470 = vpack.c.b16 %v2438, %v2422
        %v4471 = vpack.c.b16 %v2439, %v2423
        %v4472 = vpack.c.b16 %v2440, %v2424
        %v4473 = vpack.c.b16 %v2441, %v2425
        %v4474 = vpack.c.b16 %v2442, %v2426
        %v4475 = vpack.c.b16 %v2443, %v2427
        %v4476 = vpack.c.b16 %v2444, %v2428
        %v4477 = vpack.c.b16 %v2445, %v2429
        %v4478 = vpack.c.b16 %v2446, %v2430
        %v4479 = vpack.c.b16 %v2447, %v2431
        %v4480 = vpack.c.b16 %v2448, %v2432
        %v4481 = vpack.c.b16 %v2449, %v2433
        %v4482 = vpack.c.b16 %v2450, %v2434
        %v4483 = vpack.c.b16 %v2467, %v2451
        %v4484 = vpack.c.b16 %v2468, %v2452
        %v4485 = vpack.c.b16 %v2469, %v2453
        %v4486 = vpack.c.b16 %v2470, %v2454
        %v4487 = vpack.c.b16 %v2471, %v2455
        %v4488 = vpack.c.b16 %v2472, %v2456
        %v4489 = vpack.c.b16 %v2473, %v2457
        %v4490 = vpack.c.b16 %v2474, %v2458
        %v4491 = vpack.c.b16 %v2475, %v2459
        %v4492 = vpack.c.b16 %v2476, %v2460
        %v4493 = vpack.c.b16 %v2477, %v2461
        %v4494 = vpack.c.b16 %v2478, %v2462
        %v4495 = vpack.c.b16 %v2479, %v2463
        %v4496 = vpack.c.b16 %v2480, %v2464
        %v4497 = vpack.c.b16 %v2481, %v2465
        %v4498 = vpack.c.b16 %v2482, %v2466
        %v4499 = vpack.c.b16 %v2499, %v2483
        %v4500 = vpack.c.b16 %v2500, %v2484
        %v4501 = vpack.c.b16 %v2501, %v2485
        %v4502 = vpack.c.b16 %v2502, %v2486
        %v4503 = vpack.c.b16 %v2503, %v2487
        %v4504 = vpack.c.b16 %v2504, %v2488
        %v4505 = vpack.c.b16 %v2505, %v2489
        %v4506 = vpack.c.b16 %v2506, %v2490
        %v4507 = vpack.c.b16 %v2507, %v2491
        %v4508 = vpack.c.b16 %v2508, %v2492
        %v4509 = vpack.c.b16 %v2509, %v2493
        %v4510 = vpack.c.b16 %v2510, %v2494
        %v4511 = vpack.c.b16 %v2511, %v2495
        %v4512 = vpack.c.b16 %v2512, %v2496
        %v4513 = vpack.c.b16 %v2513, %v2497
        %v4514 = vpack.c.b16 %v2514, %v2498
        %v4515 = vpack.c.b16 %v2531, %v2515
        %v4516 = vpack.c.b16 %v2532, %v2516
        %v4517 = vpack.c.b16 %v2533, %v2517
        %v4518 = vpack.c.b16 %v2534, %v2518
        %v4519 = vpack.c.b16 %v2535, %v2519
        %v4520 = vpack.c.b16 %v2536, %v2520
        %v4521 = vpack.c.b16 %v2537, %v2521
        %v4522 = vpack.c.b16 %v2538, %v2522
        %v4523 = vpack.c.b16 %v2539, %v2523
        %v4524 = vpack.c.b16 %v2540, %v2524
        %v4525 = vpack.c.b16 %v2541, %v2525
        %v4526 = vpack.c.b16 %v2542, %v2526
        %v4527 = vpack.c.b16 %v2543, %v2527
        %v4528 = vpack.c.b16 %v2544, %v2528
        %v4529 = vpack.c.b16 %v2545, %v2529
        %v4530 = vpack.c.b16 %v2546, %v2530
        %v4531 = vpack.c.b16 %v2563, %v2547
        %v4532 = vpack.c.b16 %v2564, %v2548
        %v4533 = vpack.c.b16 %v2565, %v2549
        %v4534 = vpack.c.b16 %v2566, %v2550
        %v4535 = vpack.c.b16 %v2567, %v2551
        %v4536 = vpack.c.b16 %v2568, %v2552
        %v4537 = vpack.c.b16 %v2569, %v2553
        %v4538 = vpack.c.b16 %v2570, %v2554
        %v4539 = vpack.c.b16 %v2571, %v2555
        %v4540 = vpack.c.b16 %v2572, %v2556
        %v4541 = vpack.c.b16 %v2573, %v2557
        %v4542 = vpack.c.b16 %v2574, %v2558
        %v4543 = vpack.c.b16 %v2575, %v2559
        %v4544 = vpack.c.b16 %v2576, %v2560
        %v4545 = vpack.c.b16 %v2577, %v2561
        %v4546 = vpack.c.b16 %v2578, %v2562
        %v4547 = vpack.c.b16 %v2595, %v2579
        %v4548 = vpack.c.b16 %v2596, %v2580
        %v4549 = vpack.c.b16 %v2597, %v2581
        %v4550 = vpack.c.b16 %v2598, %v2582
        %v4551 = vpack.c.b16 %v2599, %v2583
        %v4552 = vpack.c.b16 %v2600, %v2584
        %v4553 = vpack.c.b16 %v2601, %v2585
        %v4554 = vpack.c.b16 %v2602, %v2586
        %v4555 = vpack.c.b16 %v2603, %v2587
        %v4556 = vpack.c.b16 %v2604, %v2588
        %v4557 = vpack.c.b16 %v2605, %v2589
        %v4558 = vpack.c.b16 %v2606, %v2590
        %v4559 = vpack.c.b16 %v2607, %v2591
        %v4560 = vpack.c.b16 %v2608, %v2592
        %v4561 = vpack.c.b16 %v2609, %v2593
        %v4562 = vpack.c.b16 %v2610, %v2594
        %v4563 = vpack.c.b16 %v2627, %v2611
        %v4564 = vpack.c.b16 %v2628, %v2612
        %v4565 = vpack.c.b16 %v2629, %v2613
        %v4566 = vpack.c.b16 %v2630, %v2614
        %v4567 = vpack.c.b16 %v2631, %v2615
        %v4568 = vpack.c.b16 %v2632, %v2616
        %v4569 = vpack.c.b16 %v2633, %v2617
        %v4570 = vpack.c.b16 %v2634, %v2618
        %v4571 = vpack.c.b16 %v2635, %v2619
        %v4572 = vpack.c.b16 %v2636, %v2620
        %v4573 = vpack.c.b16 %v2637, %v2621
        %v4574 = vpack.c.b16 %v2638, %v2622
        %v4575 = vpack.c.b16 %v2639, %v2623
        %v4576 = vpack.c.b16 %v2640, %v2624
        %v4577 = vpack.c.b16 %v2641, %v2625
        %v4578 = vpack.c.b16 %v2642, %v2626
        %v4579 = vpack.c.b16 %v2659, %v2643
        %v4580 = vpack.c.b16 %v2660, %v2644
        %v4581 = vpack.c.b16 %v2661, %v2645
        %v4582 = vpack.c.b16 %v2662, %v2646
        %v4583 = vpack.c.b16 %v2663, %v2647
        %v4584 = vpack.c.b16 %v2664, %v2648
        %v4585 = vpack.c.b16 %v2665, %v2649
        %v4586 = vpack.c.b16 %v2666, %v2650
        %v4587 = vpack.c.b16 %v2667, %v2651
        %v4588 = vpack.c.b16 %v2668, %v2652
        %v4589 = vpack.c.b16 %v2669, %v2653
        %v4590 = vpack.c.b16 %v2670, %v2654
        %v4591 = vpack.c.b16 %v2671, %v2655
        %v4592 = vpack.c.b16 %v2672, %v2656
        %v4593 = vpack.c.b16 %v2673, %v2657
        %v4594 = vpack.c.b16 %v2674, %v2658
        %v4595 = vpack.c.b16 %v2691, %v2675
        %v4596 = vpack.c.b16 %v2692, %v2676
        %v4597 = vpack.c.b16 %v2693, %v2677
        %v4598 = vpack.c.b16 %v2694, %v2678
        %v4599 = vpack.c.b16 %v2695, %v2679
        %v4600 = vpack.c.b16 %v2696, %v2680
        %v4601 = vpack.c.b16 %v2697, %v2681
        %v4602 = vpack.c.b16 %v2698, %v2682
        %v4603 = vpack.c.b16 %v2699, %v2683
        %v4604 = vpack.c.b16 %v2700, %v2684
        %v4605 = vpack.c.b16 %v2701, %v2685
        %v4606 = vpack.c.b16 %v2702, %v2686
        %v4607 = vpack.c.b16 %v2703, %v2687
        %v4608 = vpack.c.b16 %v2704, %v2688
        %v4609 = vpack.c.b16 %v2705, %v2689
        %v4610 = vpack.c.b16 %v2706, %v2690
        %v4611 = vpack.c.b16 %v2723, %v2707
        %v4612 = vpack.c.b16 %v2724, %v2708
        %v4613 = vpack.c.b16 %v2725, %v2709
        %v4614 = vpack.c.b16 %v2726, %v2710
        %v4615 = vpack.c.b16 %v2727, %v2711
        %v4616 = vpack.c.b16 %v2728, %v2712
        %v4617 = vpack.c.b16 %v2729, %v2713
        %v4618 = vpack.c.b16 %v2730, %v2714
        %v4619 = vpack.c.b16 %v2731, %v2715
        %v4620 = vpack.c.b16 %v2732, %v2716
        %v4621 = vpack.c.b16 %v2733, %v2717
        %v4622 = vpack.c.b16 %v2734, %v2718
        %v4623 = vpack.c.b16 %v2735, %v2719
        %v4624 = vpack.c.b16 %v2736, %v2720
        %v4625 = vpack.c.b16 %v2737, %v2721
        %v4626 = vpack.c.b16 %v2738, %v2722
        %v4627 = vpack.c.b16 %v2755, %v2739
        %v4628 = vpack.c.b16 %v2756, %v2740
        %v4629 = vpack.c.b16 %v2757, %v2741
        %v4630 = vpack.c.b16 %v2758, %v2742
        %v4631 = vpack.c.b16 %v2759, %v2743
        %v4632 = vpack.c.b16 %v2760, %v2744
        %v4633 = vpack.c.b16 %v2761, %v2745
        %v4634 = vpack.c.b16 %v2762, %v2746
        %v4635 = vpack.c.b16 %v2763, %v2747
        %v4636 = vpack.c.b16 %v2764, %v2748
        %v4637 = vpack.c.b16 %v2765, %v2749
        %v4638 = vpack.c.b16 %v2766, %v2750
        %v4639 = vpack.c.b16 %v2767, %v2751
        %v4640 = vpack.c.b16 %v2768, %v2752
        %v4641 = vpack.c.b16 %v2769, %v2753
        %v4642 = vpack.c.b16 %v2770, %v2754
        %v4643 = vpack.c.b16 %v2787, %v2771
        %v4644 = vpack.c.b16 %v2788, %v2772
        %v4645 = vpack.c.b16 %v2789, %v2773
        %v4646 = vpack.c.b16 %v2790, %v2774
        %v4647 = vpack.c.b16 %v2791, %v2775
        %v4648 = vpack.c.b16 %v2792, %v2776
        %v4649 = vpack.c.b16 %v2793, %v2777
        %v4650 = vpack.c.b16 %v2794, %v2778
        %v4651 = vpack.c.b16 %v2795, %v2779
        %v4652 = vpack.c.b16 %v2796, %v2780
        %v4653 = vpack.c.b16 %v2797, %v2781
        %v4654 = vpack.c.b16 %v2798, %v2782
        %v4655 = vpack.c.b16 %v2799, %v2783
        %v4656 = vpack.c.b16 %v2800, %v2784
        %v4657 = vpack.c.b16 %v2801, %v2785
        %v4658 = vpack.c.b16 %v2802, %v2786
        %v4659 = vpack.c.b16 %v2819, %v2803
        %v4660 = vpack.c.b16 %v2820, %v2804
        %v4661 = vpack.c.b16 %v2821, %v2805
        %v4662 = vpack.c.b16 %v2822, %v2806
        %v4663 = vpack.c.b16 %v2823, %v2807
        %v4664 = vpack.c.b16 %v2824, %v2808
        %v4665 = vpack.c.b16 %v2825, %v2809
        %v4666 = vpack.c.b16 %v2826, %v2810
        %v4667 = vpack.c.b16 %v2827, %v2811
        %v4668 = vpack.c.b16 %v2828, %v2812
        %v4669 = vpack.c.b16 %v2829, %v2813
        %v4670 = vpack.c.b16 %v2830, %v2814
        %v4671 = vpack.c.b16 %v2831, %v2815
        %v4672 = vpack.c.b16 %v2832, %v2816
        %v4673 = vpack.c.b16 %v2833, %v2817
        %v4674 = vpack.c.b16 %v2834, %v2818
        %v4675 = vpack.c.b16 %v2851, %v2835
        %v4676 = vpack.c.b16 %v2852, %v2836
        %v4677 = vpack.c.b16 %v2853, %v2837
        %v4678 = vpack.c.b16 %v2854, %v2838
        %v4679 = vpack.c.b16 %v2855, %v2839
        %v4680 = vpack.c.b16 %v2856, %v2840
        %v4681 = vpack.c.b16 %v2857, %v2841
        %v4682 = vpack.c.b16 %v2858, %v2842
        %v4683 = vpack.c.b16 %v2859, %v2843
        %v4684 = vpack.c.b16 %v2860, %v2844
        %v4685 = vpack.c.b16 %v2861, %v2845
        %v4686 = vpack.c.b16 %v2862, %v2846
        %v4687 = vpack.c.b16 %v2863, %v2847
        %v4688 = vpack.c.b16 %v2864, %v2848
        %v4689 = vpack.c.b16 %v2865, %v2849
        %v4690 = vpack.c.b16 %v2866, %v2850
        %v4691 = vpack.c.b16 %v2883, %v2867
        %v4692 = vpack.c.b16 %v2884, %v2868
        %v4693 = vpack.c.b16 %v2885, %v2869
        %v4694 = vpack.c.b16 %v2886, %v2870
        %v4695 = vpack.c.b16 %v2887, %v2871
        %v4696 = vpack.c.b16 %v2888, %v2872
        %v4697 = vpack.c.b16 %v2889, %v2873
        %v4698 = vpack.c.b16 %v2890, %v2874
        %v4699 = vpack.c.b16 %v2891, %v2875
        %v4700 = vpack.c.b16 %v2892, %v2876
        %v4701 = vpack.c.b16 %v2893, %v2877
        %v4702 = vpack.c.b16 %v2894, %v2878
        %v4703 = vpack.c.b16 %v2895, %v2879
        %v4704 = vpack.c.b16 %v2896, %v2880
        %v4705 = vpack.c.b16 %v2897, %v2881
        %v4706 = vpack.c.b16 %v2898, %v2882
        %v4707 = vpack.c.b16 %v2915, %v2899
        %v4708 = vpack.c.b16 %v2916, %v2900
        %v4709 = vpack.c.b16 %v2917, %v2901
        %v4710 = vpack.c.b16 %v2918, %v2902
        %v4711 = vpack.c.b16 %v2919, %v2903
        %v4712 = vpack.c.b16 %v2920, %v2904
        %v4713 = vpack.c.b16 %v2921, %v2905
        %v4714 = vpack.c.b16 %v2922, %v2906
        %v4715 = vpack.c.b16 %v2923, %v2907
        %v4716 = vpack.c.b16 %v2924, %v2908
        %v4717 = vpack.c.b16 %v2925, %v2909
        %v4718 = vpack.c.b16 %v2926, %v2910
        %v4719 = vpack.c.b16 %v2927, %v2911
        %v4720 = vpack.c.b16 %v2928, %v2912
        %v4721 = vpack.c.b16 %v2929, %v2913
        %v4722 = vpack.c.b16 %v2930, %v2914
        %v4723 = vpack.c.b16 %v2947, %v2931
        %v4724 = vpack.c.b16 %v2948, %v2932
        %v4725 = vpack.c.b16 %v2949, %v2933
        %v4726 = vpack.c.b16 %v2950, %v2934
        %v4727 = vpack.c.b16 %v2951, %v2935
        %v4728 = vpack.c.b16 %v2952, %v2936
        %v4729 = vpack.c.b16 %v2953, %v2937
        %v4730 = vpack.c.b16 %v2954, %v2938
        %v4731 = vpack.c.b16 %v2955, %v2939
        %v4732 = vpack.c.b16 %v2956, %v2940
        %v4733 = vpack.c.b16 %v2957, %v2941
        %v4734 = vpack.c.b16 %v2958, %v2942
        %v4735 = vpack.c.b16 %v2959, %v2943
        %v4736 = vpack.c.b16 %v2960, %v2944
        %v4737 = vpack.c.b16 %v2961, %v2945
        %v4738 = vpack.c.b16 %v2962, %v2946
        %v4739 = vpack.c.b16 %v2979, %v2963
        %v4740 = vpack.c.b16 %v2980, %v2964
        %v4741 = vpack.c.b16 %v2981, %v2965
        %v4742 = vpack.c.b16 %v2982, %v2966
        %v4743 = vpack.c.b16 %v2983, %v2967
        %v4744 = vpack.c.b16 %v2984, %v2968
        %v4745 = vpack.c.b16 %v2985, %v2969
        %v4746 = vpack.c.b16 %v2986, %v2970
        %v4747 = vpack.c.b16 %v2987, %v2971
        %v4748 = vpack.c.b16 %v2988, %v2972
        %v4749 = vpack.c.b16 %v2989, %v2973
        %v4750 = vpack.c.b16 %v2990, %v2974
        %v4751 = vpack.c.b16 %v2991, %v2975
        %v4752 = vpack.c.b16 %v2992, %v2976
        %v4753 = vpack.c.b16 %v2993, %v2977
        %v4754 = vpack.c.b16 %v2994, %v2978
        %v4755 = vpack.c.b16 %v3011, %v2995
        %v4756 = vpack.c.b16 %v3012, %v2996
        %v4757 = vpack.c.b16 %v3013, %v2997
        %v4758 = vpack.c.b16 %v3014, %v2998
        %v4759 = vpack.c.b16 %v3015, %v2999
        %v4760 = vpack.c.b16 %v3016, %v3000
        %v4761 = vpack.c.b16 %v3017, %v3001
        %v4762 = vpack.c.b16 %v3018, %v3002
        %v4763 = vpack.c.b16 %v3019, %v3003
        %v4764 = vpack.c.b16 %v3020, %v3004
        %v4765 = vpack.c.b16 %v3021, %v3005
        %v4766 = vpack.c.b16 %v3022, %v3006
        %v4767 = vpack.c.b16 %v3023, %v3007
        %v4768 = vpack.c.b16 %v3024, %v3008
        %v4769 = vpack.c.b16 %v3025, %v3009
        %v4770 = vpack.c.b16 %v3026, %v3010
        %v4771 = vpack.c.b16 %v3043, %v3027
        %v4772 = vpack.c.b16 %v3044, %v3028
        %v4773 = vpack.c.b16 %v3045, %v3029
        %v4774 = vpack.c.b16 %v3046, %v3030
        %v4775 = vpack.c.b16 %v3047, %v3031
        %v4776 = vpack.c.b16 %v3048, %v3032
        %v4777 = vpack.c.b16 %v3049, %v3033
        %v4778 = vpack.c.b16 %v3050, %v3034
        %v4779 = vpack.c.b16 %v3051, %v3035
        %v4780 = vpack.c.b16 %v3052, %v3036
        %v4781 = vpack.c.b16 %v3053, %v3037
        %v4782 = vpack.c.b16 %v3054, %v3038
        %v4783 = vpack.c.b16 %v3055, %v3039
        %v4784 = vpack.c.b16 %v3056, %v3040
        %v4785 = vpack.c.b16 %v3057, %v3041
        %v4786 = vpack.c.b16 %v3058, %v3042
        %v4787 = vpack.c.b16 %v3075, %v3059
        %v4788 = vpack.c.b16 %v3076, %v3060
        %v4789 = vpack.c.b16 %v3077, %v3061
        %v4790 = vpack.c.b16 %v3078, %v3062
        %v4791 = vpack.c.b16 %v3079, %v3063
        %v4792 = vpack.c.b16 %v3080, %v3064
        %v4793 = vpack.c.b16 %v3081, %v3065
        %v4794 = vpack.c.b16 %v3082, %v3066
        %v4795 = vpack.c.b16 %v3083, %v3067
        %v4796 = vpack.c.b16 %v3084, %v3068
        %v4797 = vpack.c.b16 %v3085, %v3069
        %v4798 = vpack.c.b16 %v3086, %v3070
        %v4799 = vpack.c.b16 %v3087, %v3071
        %v4800 = vpack.c.b16 %v3088, %v3072
        %v4801 = vpack.c.b16 %v3089, %v3073
        %v4802 = vpack.c.b16 %v3090, %v3074
        %v4803 = vpack.c.b16 %v3107, %v3091
        %v4804 = vpack.c.b16 %v3108, %v3092
        %v4805 = vpack.c.b16 %v3109, %v3093
        %v4806 = vpack.c.b16 %v3110, %v3094
        %v4807 = vpack.c.b16 %v3111, %v3095
        %v4808 = vpack.c.b16 %v3112, %v3096
        %v4809 = vpack.c.b16 %v3113, %v3097
        %v4810 = vpack.c.b16 %v3114, %v3098
        %v4811 = vpack.c.b16 %v3115, %v3099
        %v4812 = vpack.c.b16 %v3116, %v3100
        %v4813 = vpack.c.b16 %v3117, %v3101
        %v4814 = vpack.c.b16 %v3118, %v3102
        %v4815 = vpack.c.b16 %v3119, %v3103
        %v4816 = vpack.c.b16 %v3120, %v3104
        %v4817 = vpack.c.b16 %v3121, %v3105
        %v4818 = vpack.c.b16 %v3122, %v3106
        %v4819 = vpack.c.b16 %v3139, %v3123
        %v4820 = vpack.c.b16 %v3140, %v3124
        %v4821 = vpack.c.b16 %v3141, %v3125
        %v4822 = vpack.c.b16 %v3142, %v3126
        %v4823 = vpack.c.b16 %v3143, %v3127
        %v4824 = vpack.c.b16 %v3144, %v3128
        %v4825 = vpack.c.b16 %v3145, %v3129
        %v4826 = vpack.c.b16 %v3146, %v3130
        %v4827 = vpack.c.b16 %v3147, %v3131
        %v4828 = vpack.c.b16 %v3148, %v3132
        %v4829 = vpack.c.b16 %v3149, %v3133
        %v4830 = vpack.c.b16 %v3150, %v3134
        %v4831 = vpack.c.b16 %v3151, %v3135
        %v4832 = vpack.c.b16 %v3152, %v3136
        %v4833 = vpack.c.b16 %v3153, %v3137
        %v4834 = vpack.c.b16 %v3154, %v3138
        %v4835 = vpack.c.b16 %v3171, %v3155
        %v4836 = vpack.c.b16 %v3172, %v3156
        %v4837 = vpack.c.b16 %v3173, %v3157
        %v4838 = vpack.c.b16 %v3174, %v3158
        %v4839 = vpack.c.b16 %v3175, %v3159
        %v4840 = vpack.c.b16 %v3176, %v3160
        %v4841 = vpack.c.b16 %v3177, %v3161
        %v4842 = vpack.c.b16 %v3178, %v3162
        %v4843 = vpack.c.b16 %v3179, %v3163
        %v4844 = vpack.c.b16 %v3180, %v3164
        %v4845 = vpack.c.b16 %v3181, %v3165
        %v4846 = vpack.c.b16 %v3182, %v3166
        %v4847 = vpack.c.b16 %v3183, %v3167
        %v4848 = vpack.c.b16 %v3184, %v3168
        %v4849 = vpack.c.b16 %v3185, %v3169
        %v4850 = vpack.c.b16 %v3186, %v3170
        %v4851 = vpack.c.b16 %v3203, %v3187
        %v4852 = vpack.c.b16 %v3204, %v3188
        %v4853 = vpack.c.b16 %v3205, %v3189
        %v4854 = vpack.c.b16 %v3206, %v3190
        %v4855 = vpack.c.b16 %v3207, %v3191
        %v4856 = vpack.c.b16 %v3208, %v3192
        %v4857 = vpack.c.b16 %v3209, %v3193
        %v4858 = vpack.c.b16 %v3210, %v3194
        %v4859 = vpack.c.b16 %v3211, %v3195
        %v4860 = vpack.c.b16 %v3212, %v3196
        %v4861 = vpack.c.b16 %v3213, %v3197
        %v4862 = vpack.c.b16 %v3214, %v3198
        %v4863 = vpack.c.b16 %v3215, %v3199
        %v4864 = vpack.c.b16 %v3216, %v3200
        %v4865 = vpack.c.b16 %v3217, %v3201
        %v4866 = vpack.c.b16 %v3218, %v3202
        %v4867 = vpack.c.b16 %v3235, %v3219
        %v4868 = vpack.c.b16 %v3236, %v3220
        %v4869 = vpack.c.b16 %v3237, %v3221
        %v4870 = vpack.c.b16 %v3238, %v3222
        %v4871 = vpack.c.b16 %v3239, %v3223
        %v4872 = vpack.c.b16 %v3240, %v3224
        %v4873 = vpack.c.b16 %v3241, %v3225
        %v4874 = vpack.c.b16 %v3242, %v3226
        %v4875 = vpack.c.b16 %v3243, %v3227
        %v4876 = vpack.c.b16 %v3244, %v3228
        %v4877 = vpack.c.b16 %v3245, %v3229
        %v4878 = vpack.c.b16 %v3246, %v3230
        %v4879 = vpack.c.b16 %v3247, %v3231
        %v4880 = vpack.c.b16 %v3248, %v3232
        %v4881 = vpack.c.b16 %v3249, %v3233
        %v4882 = vpack.c.b16 %v3250, %v3234
        %v4883 = vpack.c.b16 %v3267, %v3251
        %v4884 = vpack.c.b16 %v3268, %v3252
        %v4885 = vpack.c.b16 %v3269, %v3253
        %v4886 = vpack.c.b16 %v3270, %v3254
        %v4887 = vpack.c.b16 %v3271, %v3255
        %v4888 = vpack.c.b16 %v3272, %v3256
        %v4889 = vpack.c.b16 %v3273, %v3257
        %v4890 = vpack.c.b16 %v3274, %v3258
        %v4891 = vpack.c.b16 %v3275, %v3259
        %v4892 = vpack.c.b16 %v3276, %v3260
        %v4893 = vpack.c.b16 %v3277, %v3261
        %v4894 = vpack.c.b16 %v3278, %v3262
        %v4895 = vpack.c.b16 %v3279, %v3263
        %v4896 = vpack.c.b16 %v3280, %v3264
        %v4897 = vpack.c.b16 %v3281, %v3265
        %v4898 = vpack.c.b16 %v3282, %v3266
        %v4899 = vpack.c.b16 %v3299, %v3283
        %v4900 = vpack.c.b16 %v3300, %v3284
        %v4901 = vpack.c.b16 %v3301, %v3285
        %v4902 = vpack.c.b16 %v3302, %v3286
        %v4903 = vpack.c.b16 %v3303, %v3287
        %v4904 = vpack.c.b16 %v3304, %v3288
        %v4905 = vpack.c.b16 %v3305, %v3289
        %v4906 = vpack.c.b16 %v3306, %v3290
        %v4907 = vpack.c.b16 %v3307, %v3291
        %v4908 = vpack.c.b16 %v3308, %v3292
        %v4909 = vpack.c.b16 %v3309, %v3293
        %v4910 = vpack.c.b16 %v3310, %v3294
        %v4911 = vpack.c.b16 %v3311, %v3295
        %v4912 = vpack.c.b16 %v3312, %v3296
        %v4913 = vpack.c.b16 %v3313, %v3297
        %v4914 = vpack.c.b16 %v3314, %v3298
        %v4915 = vpack.c.b16 %v3331, %v3315
        %v4916 = vpack.c.b16 %v3332, %v3316
        %v4917 = vpack.c.b16 %v3333, %v3317
        %v4918 = vpack.c.b16 %v3334, %v3318
        %v4919 = vpack.c.b16 %v3335, %v3319
        %v4920 = vpack.c.b16 %v3336, %v3320
        %v4921 = vpack.c.b16 %v3337, %v3321
        %v4922 = vpack.c.b16 %v3338, %v3322
        %v4923 = vpack.c.b16 %v3339, %v3323
        %v4924 = vpack.c.b16 %v3340, %v3324
        %v4925 = vpack.c.b16 %v3341, %v3325
        %v4926 = vpack.c.b16 %v3342, %v3326
        %v4927 = vpack.c.b16 %v3343, %v3327
        %v4928 = vpack.c.b16 %v3344, %v3328
        %v4929 = vpack.c.b16 %v3345, %v3329
        %v4930 = vpack.c.b16 %v3346, %v3330
        %v4931 = vpack.c.b16 %v3363, %v3347
        %v4932 = vpack.c.b16 %v3364, %v3348
        %v4933 = vpack.c.b16 %v3365, %v3349
        %v4934 = vpack.c.b16 %v3366, %v3350
        %v4935 = vpack.c.b16 %v3367, %v3351
        %v4936 = vpack.c.b16 %v3368, %v3352
        %v4937 = vpack.c.b16 %v3369, %v3353
        %v4938 = vpack.c.b16 %v3370, %v3354
        %v4939 = vpack.c.b16 %v3371, %v3355
        %v4940 = vpack.c.b16 %v3372, %v3356
        %v4941 = vpack.c.b16 %v3373, %v3357
        %v4942 = vpack.c.b16 %v3374, %v3358
        %v4943 = vpack.c.b16 %v3375, %v3359
        %v4944 = vpack.c.b16 %v3376, %v3360
        %v4945 = vpack.c.b16 %v3377, %v3361
        %v4946 = vpack.c.b16 %v3378, %v3362
        %v4947 = vpack.c.b16 %v3395, %v3379
        %v4948 = vpack.c.b16 %v3396, %v3380
        %v4949 = vpack.c.b16 %v3397, %v3381
        %v4950 = vpack.c.b16 %v3398, %v3382
        %v4951 = vpack.c.b16 %v3399, %v3383
        %v4952 = vpack.c.b16 %v3400, %v3384
        %v4953 = vpack.c.b16 %v3401, %v3385
        %v4954 = vpack.c.b16 %v3402, %v3386
        %v4955 = vpack.c.b16 %v3403, %v3387
        %v4956 = vpack.c.b16 %v3404, %v3388
        %v4957 = vpack.c.b16 %v3405, %v3389
        %v4958 = vpack.c.b16 %v3406, %v3390
        %v4959 = vpack.c.b16 %v3407, %v3391
        %v4960 = vpack.c.b16 %v3408, %v3392
        %v4961 = vpack.c.b16 %v3409, %v3393
        %v4962 = vpack.c.b16 %v3410, %v3394
        %v4963 = vpack.c.b16 %v3427, %v3411
        %v4964 = vpack.c.b16 %v3428, %v3412
        %v4965 = vpack.c.b16 %v3429, %v3413
        %v4966 = vpack.c.b16 %v3430, %v3414
        %v4967 = vpack.c.b16 %v3431, %v3415
        %v4968 = vpack.c.b16 %v3432, %v3416
        %v4969 = vpack.c.b16 %v3433, %v3417
        %v4970 = vpack.c.b16 %v3434, %v3418
        %v4971 = vpack.c.b16 %v3435, %v3419
        %v4972 = vpack.c.b16 %v3436, %v3420
        %v4973 = vpack.c.b16 %v3437, %v3421
        %v4974 = vpack.c.b16 %v3438, %v3422
        %v4975 = vpack.c.b16 %v3439, %v3423
        %v4976 = vpack.c.b16 %v3440, %v3424
        %v4977 = vpack.c.b16 %v3441, %v3425
        %v4978 = vpack.c.b16 %v3442, %v3426
        %v4979 = vpack.c.b16 %v3459, %v3443
        %v4980 = vpack.c.b16 %v3460, %v3444
        %v4981 = vpack.c.b16 %v3461, %v3445
        %v4982 = vpack.c.b16 %v3462, %v3446
        %v4983 = vpack.c.b16 %v3463, %v3447
        %v4984 = vpack.c.b16 %v3464, %v3448
        %v4985 = vpack.c.b16 %v3465, %v3449
        %v4986 = vpack.c.b16 %v3466, %v3450
        %v4987 = vpack.c.b16 %v3467, %v3451
        %v4988 = vpack.c.b16 %v3468, %v3452
        %v4989 = vpack.c.b16 %v3469, %v3453
        %v4990 = vpack.c.b16 %v3470, %v3454
        %v4991 = vpack.c.b16 %v3471, %v3455
        %v4992 = vpack.c.b16 %v3472, %v3456
        %v4993 = vpack.c.b16 %v3473, %v3457
        %v4994 = vpack.c.b16 %v3474, %v3458
        %v4995 = vpack.c.b16 %v3491, %v3475
        %v4996 = vpack.c.b16 %v3492, %v3476
        %v4997 = vpack.c.b16 %v3493, %v3477
        %v4998 = vpack.c.b16 %v3494, %v3478
        %v4999 = vpack.c.b16 %v3495, %v3479
        %v5000 = vpack.c.b16 %v3496, %v3480
        %v5001 = vpack.c.b16 %v3497, %v3481
        %v5002 = vpack.c.b16 %v3498, %v3482
        %v5003 = vpack.c.b16 %v3499, %v3483
        %v5004 = vpack.c.b16 %v3500, %v3484
        %v5005 = vpack.c.b16 %v3501, %v3485
        %v5006 = vpack.c.b16 %v3502, %v3486
        %v5007 = vpack.c.b16 %v3503, %v3487
        %v5008 = vpack.c.b16 %v3504, %v3488
        %v5009 = vpack.c.b16 %v3505, %v3489
        %v5010 = vpack.c.b16 %v3506, %v3490
        %v5011 = vpack.c.b16 %v3523, %v3507
        %v5012 = vpack.c.b16 %v3524, %v3508
        %v5013 = vpack.c.b16 %v3525, %v3509
        %v5014 = vpack.c.b16 %v3526, %v3510
        %v5015 = vpack.c.b16 %v3527, %v3511
        %v5016 = vpack.c.b16 %v3528, %v3512
        %v5017 = vpack.c.b16 %v3529, %v3513
        %v5018 = vpack.c.b16 %v3530, %v3514
        %v5019 = vpack.c.b16 %v3531, %v3515
        %v5020 = vpack.c.b16 %v3532, %v3516
        %v5021 = vpack.c.b16 %v3533, %v3517
        %v5022 = vpack.c.b16 %v3534, %v3518
        %v5023 = vpack.c.b16 %v3535, %v3519
        %v5024 = vpack.c.b16 %v3536, %v3520
        %v5025 = vpack.c.b16 %v3537, %v3521
        %v5026 = vpack.c.b16 %v3538, %v3522
        %v5027 = vpack.c.b16 %v3555, %v3539
        %v5028 = vpack.c.b16 %v3556, %v3540
        %v5029 = vpack.c.b16 %v3557, %v3541
        %v5030 = vpack.c.b16 %v3558, %v3542
        %v5031 = vpack.c.b16 %v3559, %v3543
        %v5032 = vpack.c.b16 %v3560, %v3544
        %v5033 = vpack.c.b16 %v3561, %v3545
        %v5034 = vpack.c.b16 %v3562, %v3546
        %v5035 = vpack.c.b16 %v3563, %v3547
        %v5036 = vpack.c.b16 %v3564, %v3548
        %v5037 = vpack.c.b16 %v3565, %v3549
        %v5038 = vpack.c.b16 %v3566, %v3550
        %v5039 = vpack.c.b16 %v3567, %v3551
        %v5040 = vpack.c.b16 %v3568, %v3552
        %v5041 = vpack.c.b16 %v3569, %v3553
        %v5042 = vpack.c.b16 %v3570, %v3554
        %v5043 = vpack.c.b16 %v3587, %v3571
        %v5044 = vpack.c.b16 %v3588, %v3572
        %v5045 = vpack.c.b16 %v3589, %v3573
        %v5046 = vpack.c.b16 %v3590, %v3574
        %v5047 = vpack.c.b16 %v3591, %v3575
        %v5048 = vpack.c.b16 %v3592, %v3576
        %v5049 = vpack.c.b16 %v3593, %v3577
        %v5050 = vpack.c.b16 %v3594, %v3578
        %v5051 = vpack.c.b16 %v3595, %v3579
        %v5052 = vpack.c.b16 %v3596, %v3580
        %v5053 = vpack.c.b16 %v3597, %v3581
        %v5054 = vpack.c.b16 %v3598, %v3582
        %v5055 = vpack.c.b16 %v3599, %v3583
        %v5056 = vpack.c.b16 %v3600, %v3584
        %v5057 = vpack.c.b16 %v3601, %v3585
        %v5058 = vpack.c.b16 %v3602, %v3586
        %v5059 = vpack.c.b16 %v3619, %v3603
        %v5060 = vpack.c.b16 %v3620, %v3604
        %v5061 = vpack.c.b16 %v3621, %v3605
        %v5062 = vpack.c.b16 %v3622, %v3606
        %v5063 = vpack.c.b16 %v3623, %v3607
        %v5064 = vpack.c.b16 %v3624, %v3608
        %v5065 = vpack.c.b16 %v3625, %v3609
        %v5066 = vpack.c.b16 %v3626, %v3610
        %v5067 = vpack.c.b16 %v3627, %v3611
        %v5068 = vpack.c.b16 %v3628, %v3612
        %v5069 = vpack.c.b16 %v3629, %v3613
        %v5070 = vpack.c.b16 %v3630, %v3614
        %v5071 = vpack.c.b16 %v3631, %v3615
        %v5072 = vpack.c.b16 %v3632, %v3616
        %v5073 = vpack.c.b16 %v3633, %v3617
        %v5074 = vpack.c.b16 %v3634, %v3618
        %v5075 = vpack.c.b16 %v3651, %v3635
        %v5076 = vpack.c.b16 %v3652, %v3636
        %v5077 = vpack.c.b16 %v3653, %v3637
        %v5078 = vpack.c.b16 %v3654, %v3638
        %v5079 = vpack.c.b16 %v3655, %v3639
        %v5080 = vpack.c.b16 %v3656, %v3640
        %v5081 = vpack.c.b16 %v3657, %v3641
        %v5082 = vpack.c.b16 %v3658, %v3642
        %v5083 = vpack.c.b16 %v3659, %v3643
        %v5084 = vpack.c.b16 %v3660, %v3644
        %v5085 = vpack.c.b16 %v3661, %v3645
        %v5086 = vpack.c.b16 %v3662, %v3646
        %v5087 = vpack.c.b16 %v3663, %v3647
        %v5088 = vpack.c.b16 %v3664, %v3648
        %v5089 = vpack.c.b16 %v3665, %v3649
        %v5090 = vpack.c.b16 %v3666, %v3650
        %v5091 = vpack.c.b16 %v3683, %v3667
        %v5092 = vpack.c.b16 %v3684, %v3668
        %v5093 = vpack.c.b16 %v3685, %v3669
        %v5094 = vpack.c.b16 %v3686, %v3670
        %v5095 = vpack.c.b16 %v3687, %v3671
        %v5096 = vpack.c.b16 %v3688, %v3672
        %v5097 = vpack.c.b16 %v3689, %v3673
        %v5098 = vpack.c.b16 %v3690, %v3674
        %v5099 = vpack.c.b16 %v3691, %v3675
        %v5100 = vpack.c.b16 %v3692, %v3676
        %v5101 = vpack.c.b16 %v3693, %v3677
        %v5102 = vpack.c.b16 %v3694, %v3678
        %v5103 = vpack.c.b16 %v3695, %v3679
        %v5104 = vpack.c.b16 %v3696, %v3680
        %v5105 = vpack.c.b16 %v3697, %v3681
        %v5106 = vpack.c.b16 %v3698, %v3682
        %v5107 = vpack.c.b16 %v3715, %v3699
        %v5108 = vpack.c.b16 %v3716, %v3700
        %v5109 = vpack.c.b16 %v3717, %v3701
        %v5110 = vpack.c.b16 %v3718, %v3702
        %v5111 = vpack.c.b16 %v3719, %v3703
        %v5112 = vpack.c.b16 %v3720, %v3704
        %v5113 = vpack.c.b16 %v3721, %v3705
        %v5114 = vpack.c.b16 %v3722, %v3706
        %v5115 = vpack.c.b16 %v3723, %v3707
        %v5116 = vpack.c.b16 %v3724, %v3708
        %v5117 = vpack.c.b16 %v3725, %v3709
        %v5118 = vpack.c.b16 %v3726, %v3710
        %v5119 = vpack.c.b16 %v3727, %v3711
        %v5120 = vpack.c.b16 %v3728, %v3712
        %v5121 = vpack.c.b16 %v3729, %v3713
        %v5122 = vpack.c.b16 %v3730, %v3714
        %v5123 = vpack.c.b16 %v3747, %v3731
        %v5124 = vpack.c.b16 %v3748, %v3732
        %v5125 = vpack.c.b16 %v3749, %v3733
        %v5126 = vpack.c.b16 %v3750, %v3734
        %v5127 = vpack.c.b16 %v3751, %v3735
        %v5128 = vpack.c.b16 %v3752, %v3736
        %v5129 = vpack.c.b16 %v3753, %v3737
        %v5130 = vpack.c.b16 %v3754, %v3738
        %v5131 = vpack.c.b16 %v3755, %v3739
        %v5132 = vpack.c.b16 %v3756, %v3740
        %v5133 = vpack.c.b16 %v3757, %v3741
        %v5134 = vpack.c.b16 %v3758, %v3742
        %v5135 = vpack.c.b16 %v3759, %v3743
        %v5136 = vpack.c.b16 %v3760, %v3744
        %v5137 = vpack.c.b16 %v3761, %v3745
        %v5138 = vpack.c.b16 %v3762, %v3746
        %v5139 = vpack.c.b16 %v3779, %v3763
        %v5140 = vpack.c.b16 %v3780, %v3764
        %v5141 = vpack.c.b16 %v3781, %v3765
        %v5142 = vpack.c.b16 %v3782, %v3766
        %v5143 = vpack.c.b16 %v3783, %v3767
        %v5144 = vpack.c.b16 %v3784, %v3768
        %v5145 = vpack.c.b16 %v3785, %v3769
        %v5146 = vpack.c.b16 %v3786, %v3770
        %v5147 = vpack.c.b16 %v3787, %v3771
        %v5148 = vpack.c.b16 %v3788, %v3772
        %v5149 = vpack.c.b16 %v3789, %v3773
        %v5150 = vpack.c.b16 %v3790, %v3774
        %v5151 = vpack.c.b16 %v3791, %v3775
        %v5152 = vpack.c.b16 %v3792, %v3776
        %v5153 = vpack.c.b16 %v3793, %v3777
        %v5154 = vpack.c.b16 %v3794, %v3778
        %v5155 = vpack.c.b16 %v3811, %v3795
        %v5156 = vpack.c.b16 %v3812, %v3796
        %v5157 = vpack.c.b16 %v3813, %v3797
        %v5158 = vpack.c.b16 %v3814, %v3798
        %v5159 = vpack.c.b16 %v3815, %v3799
        %v5160 = vpack.c.b16 %v3816, %v3800
        %v5161 = vpack.c.b16 %v3817, %v3801
        %v5162 = vpack.c.b16 %v3818, %v3802
        %v5163 = vpack.c.b16 %v3819, %v3803
        %v5164 = vpack.c.b16 %v3820, %v3804
        %v5165 = vpack.c.b16 %v3821, %v3805
        %v5166 = vpack.c.b16 %v3822, %v3806
        %v5167 = vpack.c.b16 %v3823, %v3807
        %v5168 = vpack.c.b16 %v3824, %v3808
        %v5169 = vpack.c.b16 %v3825, %v3809
        %v5170 = vpack.c.b16 %v3826, %v3810
        %v5171 = vpack.c.b16 %v3843, %v3827
        %v5172 = vpack.c.b16 %v3844, %v3828
        %v5173 = vpack.c.b16 %v3845, %v3829
        %v5174 = vpack.c.b16 %v3846, %v3830
        %v5175 = vpack.c.b16 %v3847, %v3831
        %v5176 = vpack.c.b16 %v3848, %v3832
        %v5177 = vpack.c.b16 %v3849, %v3833
        %v5178 = vpack.c.b16 %v3850, %v3834
        %v5179 = vpack.c.b16 %v3851, %v3835
        %v5180 = vpack.c.b16 %v3852, %v3836
        %v5181 = vpack.c.b16 %v3853, %v3837
        %v5182 = vpack.c.b16 %v3854, %v3838
        %v5183 = vpack.c.b16 %v3855, %v3839
        %v5184 = vpack.c.b16 %v3856, %v3840
        %v5185 = vpack.c.b16 %v3857, %v3841
        %v5186 = vpack.c.b16 %v3858, %v3842
        %v5187 = vpack.c.b16 %v3875, %v3859
        %v5188 = vpack.c.b16 %v3876, %v3860
        %v5189 = vpack.c.b16 %v3877, %v3861
        %v5190 = vpack.c.b16 %v3878, %v3862
        %v5191 = vpack.c.b16 %v3879, %v3863
        %v5192 = vpack.c.b16 %v3880, %v3864
        %v5193 = vpack.c.b16 %v3881, %v3865
        %v5194 = vpack.c.b16 %v3882, %v3866
        %v5195 = vpack.c.b16 %v3883, %v3867
        %v5196 = vpack.c.b16 %v3884, %v3868
        %v5197 = vpack.c.b16 %v3885, %v3869
        %v5198 = vpack.c.b16 %v3886, %v3870
        %v5199 = vpack.c.b16 %v3887, %v3871
        %v5200 = vpack.c.b16 %v3888, %v3872
        %v5201 = vpack.c.b16 %v3889, %v3873
        %v5202 = vpack.c.b16 %v3890, %v3874
        %v5203 = vpack.c.b16 %v3907, %v3891
        %v5204 = vpack.c.b16 %v3908, %v3892
        %v5205 = vpack.c.b16 %v3909, %v3893
        %v5206 = vpack.c.b16 %v3910, %v3894
        %v5207 = vpack.c.b16 %v3911, %v3895
        %v5208 = vpack.c.b16 %v3912, %v3896
        %v5209 = vpack.c.b16 %v3913, %v3897
        %v5210 = vpack.c.b16 %v3914, %v3898
        %v5211 = vpack.c.b16 %v3915, %v3899
        %v5212 = vpack.c.b16 %v3916, %v3900
        %v5213 = vpack.c.b16 %v3917, %v3901
        %v5214 = vpack.c.b16 %v3918, %v3902
        %v5215 = vpack.c.b16 %v3919, %v3903
        %v5216 = vpack.c.b16 %v3920, %v3904
        %v5217 = vpack.c.b16 %v3921, %v3905
        %v5218 = vpack.c.b16 %v3922, %v3906
        %v5219 = vpack.c.b16 %v3939, %v3923
        %v5220 = vpack.c.b16 %v3940, %v3924
        %v5221 = vpack.c.b16 %v3941, %v3925
        %v5222 = vpack.c.b16 %v3942, %v3926
        %v5223 = vpack.c.b16 %v3943, %v3927
        %v5224 = vpack.c.b16 %v3944, %v3928
        %v5225 = vpack.c.b16 %v3945, %v3929
        %v5226 = vpack.c.b16 %v3946, %v3930
        %v5227 = vpack.c.b16 %v3947, %v3931
        %v5228 = vpack.c.b16 %v3948, %v3932
        %v5229 = vpack.c.b16 %v3949, %v3933
        %v5230 = vpack.c.b16 %v3950, %v3934
        %v5231 = vpack.c.b16 %v3951, %v3935
        %v5232 = vpack.c.b16 %v3952, %v3936
        %v5233 = vpack.c.b16 %v3953, %v3937
        %v5234 = vpack.c.b16 %v3954, %v3938
        %v5235 = vpack.c.b16 %v3971, %v3955
        %v5236 = vpack.c.b16 %v3972, %v3956
        %v5237 = vpack.c.b16 %v3973, %v3957
        %v5238 = vpack.c.b16 %v3974, %v3958
        %v5239 = vpack.c.b16 %v3975, %v3959
        %v5240 = vpack.c.b16 %v3976, %v3960
        %v5241 = vpack.c.b16 %v3977, %v3961
        %v5242 = vpack.c.b16 %v3978, %v3962
        %v5243 = vpack.c.b16 %v3979, %v3963
        %v5244 = vpack.c.b16 %v3980, %v3964
        %v5245 = vpack.c.b16 %v3981, %v3965
        %v5246 = vpack.c.b16 %v3982, %v3966
        %v5247 = vpack.c.b16 %v3983, %v3967
        %v5248 = vpack.c.b16 %v3984, %v3968
        %v5249 = vpack.c.b16 %v3985, %v3969
        %v5250 = vpack.c.b16 %v3986, %v3970
        %v5251 = vpack.c.b16 %v4003, %v3987
        %v5252 = vpack.c.b16 %v4004, %v3988
        %v5253 = vpack.c.b16 %v4005, %v3989
        %v5254 = vpack.c.b16 %v4006, %v3990
        %v5255 = vpack.c.b16 %v4007, %v3991
        %v5256 = vpack.c.b16 %v4008, %v3992
        %v5257 = vpack.c.b16 %v4009, %v3993
        %v5258 = vpack.c.b16 %v4010, %v3994
        %v5259 = vpack.c.b16 %v4011, %v3995
        %v5260 = vpack.c.b16 %v4012, %v3996
        %v5261 = vpack.c.b16 %v4013, %v3997
        %v5262 = vpack.c.b16 %v4014, %v3998
        %v5263 = vpack.c.b16 %v4015, %v3999
        %v5264 = vpack.c.b16 %v4016, %v4000
        %v5265 = vpack.c.b16 %v4017, %v4001
        %v5266 = vpack.c.b16 %v4018, %v4002
        %v5267 = vpack.c.b16 %v4035, %v4019
        %v5268 = vpack.c.b16 %v4036, %v4020
        %v5269 = vpack.c.b16 %v4037, %v4021
        %v5270 = vpack.c.b16 %v4038, %v4022
        %v5271 = vpack.c.b16 %v4039, %v4023
        %v5272 = vpack.c.b16 %v4040, %v4024
        %v5273 = vpack.c.b16 %v4041, %v4025
        %v5274 = vpack.c.b16 %v4042, %v4026
        %v5275 = vpack.c.b16 %v4043, %v4027
        %v5276 = vpack.c.b16 %v4044, %v4028
        %v5277 = vpack.c.b16 %v4045, %v4029
        %v5278 = vpack.c.b16 %v4046, %v4030
        %v5279 = vpack.c.b16 %v4047, %v4031
        %v5280 = vpack.c.b16 %v4048, %v4032
        %v5281 = vpack.c.b16 %v4049, %v4033
        %v5282 = vpack.c.b16 %v4050, %v4034
        %v5283 = vpack.c.b16 %v4067, %v4051
        %v5284 = vpack.c.b16 %v4068, %v4052
        %v5285 = vpack.c.b16 %v4069, %v4053
        %v5286 = vpack.c.b16 %v4070, %v4054
        %v5287 = vpack.c.b16 %v4071, %v4055
        %v5288 = vpack.c.b16 %v4072, %v4056
        %v5289 = vpack.c.b16 %v4073, %v4057
        %v5290 = vpack.c.b16 %v4074, %v4058
        %v5291 = vpack.c.b16 %v4075, %v4059
        %v5292 = vpack.c.b16 %v4076, %v4060
        %v5293 = vpack.c.b16 %v4077, %v4061
        %v5294 = vpack.c.b16 %v4078, %v4062
        %v5295 = vpack.c.b16 %v4079, %v4063
        %v5296 = vpack.c.b16 %v4080, %v4064
        %v5297 = vpack.c.b16 %v4081, %v4065
        %v5298 = vpack.c.b16 %v4082, %v4066
        %v5299 = vpack.c.b16 %v4099, %v4083
        %v5300 = vpack.c.b16 %v4100, %v4084
        %v5301 = vpack.c.b16 %v4101, %v4085
        %v5302 = vpack.c.b16 %v4102, %v4086
        %v5303 = vpack.c.b16 %v4103, %v4087
        %v5304 = vpack.c.b16 %v4104, %v4088
        %v5305 = vpack.c.b16 %v4105, %v4089
        %v5306 = vpack.c.b16 %v4106, %v4090
        %v5307 = vpack.c.b16 %v4107, %v4091
        %v5308 = vpack.c.b16 %v4108, %v4092
        %v5309 = vpack.c.b16 %v4109, %v4093
        %v5310 = vpack.c.b16 %v4110, %v4094
        %v5311 = vpack.c.b16 %v4111, %v4095
        %v5312 = vpack.c.b16 %v4112, %v4096
        %v5313 = vpack.c.b16 %v4113, %v4097
        %v5314 = vpack.c.b16 %v4114, %v4098
        %v5315 = vpack.c.b16 %v4131, %v4115
        %v5316 = vpack.c.b16 %v4132, %v4116
        %v5317 = vpack.c.b16 %v4133, %v4117
        %v5318 = vpack.c.b16 %v4134, %v4118
        %v5319 = vpack.c.b16 %v4135, %v4119
        %v5320 = vpack.c.b16 %v4136, %v4120
        %v5321 = vpack.c.b16 %v4137, %v4121
        %v5322 = vpack.c.b16 %v4138, %v4122
        %v5323 = vpack.c.b16 %v4139, %v4123
        %v5324 = vpack.c.b16 %v4140, %v4124
        %v5325 = vpack.c.b16 %v4141, %v4125
        %v5326 = vpack.c.b16 %v4142, %v4126
        %v5327 = vpack.c.b16 %v4143, %v4127
        %v5328 = vpack.c.b16 %v4144, %v4128
        %v5329 = vpack.c.b16 %v4145, %v4129
        %v5330 = vpack.c.b16 %v4146, %v4130
        %v5331 = vpack.c.b16 %v4163, %v4147
        %v5332 = vpack.c.b16 %v4164, %v4148
        %v5333 = vpack.c.b16 %v4165, %v4149
        %v5334 = vpack.c.b16 %v4166, %v4150
        %v5335 = vpack.c.b16 %v4167, %v4151
        %v5336 = vpack.c.b16 %v4168, %v4152
        %v5337 = vpack.c.b16 %v4169, %v4153
        %v5338 = vpack.c.b16 %v4170, %v4154
        %v5339 = vpack.c.b16 %v4171, %v4155
        %v5340 = vpack.c.b16 %v4172, %v4156
        %v5341 = vpack.c.b16 %v4173, %v4157
        %v5342 = vpack.c.b16 %v4174, %v4158
        %v5343 = vpack.c.b16 %v4175, %v4159
        %v5344 = vpack.c.b16 %v4176, %v4160
        %v5345 = vpack.c.b16 %v4177, %v4161
        %v5346 = vpack.c.b16 %v4178, %v4162
        %v5347 = vpack.c.b16 %v4195, %v4179
        %v5348 = vpack.c.b16 %v4196, %v4180
        %v5349 = vpack.c.b16 %v4197, %v4181
        %v5350 = vpack.c.b16 %v4198, %v4182
        %v5351 = vpack.c.b16 %v4199, %v4183
        %v5352 = vpack.c.b16 %v4200, %v4184
        %v5353 = vpack.c.b16 %v4201, %v4185
        %v5354 = vpack.c.b16 %v4202, %v4186
        %v5355 = vpack.c.b16 %v4203, %v4187
        %v5356 = vpack.c.b16 %v4204, %v4188
        %v5357 = vpack.c.b16 %v4205, %v4189
        %v5358 = vpack.c.b16 %v4206, %v4190
        %v5359 = vpack.c.b16 %v4207, %v4191
        %v5360 = vpack.c.b16 %v4208, %v4192
        %v5361 = vpack.c.b16 %v4209, %v4193
        %v5362 = vpack.c.b16 %v4210, %v4194
        %v5363 = vpack.c.b16 %v4227, %v4211
        %v5364 = vpack.c.b16 %v4228, %v4212
        %v5365 = vpack.c.b16 %v4229, %v4213
        %v5366 = vpack.c.b16 %v4230, %v4214
        %v5367 = vpack.c.b16 %v4231, %v4215
        %v5368 = vpack.c.b16 %v4232, %v4216
        %v5369 = vpack.c.b16 %v4233, %v4217
        %v5370 = vpack.c.b16 %v4234, %v4218
        %v5371 = vpack.c.b16 %v4235, %v4219
        %v5372 = vpack.c.b16 %v4236, %v4220
        %v5373 = vpack.c.b16 %v4237, %v4221
        %v5374 = vpack.c.b16 %v4238, %v4222
        %v5375 = vpack.c.b16 %v4239, %v4223
        %v5376 = vpack.c.b16 %v4240, %v4224
        %v5377 = vpack.c.b16 %v4241, %v4225
        %v5378 = vpack.c.b16 %v4242, %v4226
        %v5379 = vpack.c.b16 %v4259, %v4243
        %v5380 = vpack.c.b16 %v4260, %v4244
        %v5381 = vpack.c.b16 %v4261, %v4245
        %v5382 = vpack.c.b16 %v4262, %v4246
        %v5383 = vpack.c.b16 %v4263, %v4247
        %v5384 = vpack.c.b16 %v4264, %v4248
        %v5385 = vpack.c.b16 %v4265, %v4249
        %v5386 = vpack.c.b16 %v4266, %v4250
        %v5387 = vpack.c.b16 %v4267, %v4251
        %v5388 = vpack.c.b16 %v4268, %v4252
        %v5389 = vpack.c.b16 %v4269, %v4253
        %v5390 = vpack.c.b16 %v4270, %v4254
        %v5391 = vpack.c.b16 %v4271, %v4255
        %v5392 = vpack.c.b16 %v4272, %v4256
        %v5393 = vpack.c.b16 %v4273, %v4257
        %v5394 = vpack.c.b16 %v4274, %v4258
        %v5395 = vpack.c.b16 %v4291, %v4275
        %v5396 = vpack.c.b16 %v4292, %v4276
        %v5397 = vpack.c.b16 %v4293, %v4277
        %v5398 = vpack.c.b16 %v4294, %v4278
        %v5399 = vpack.c.b16 %v4295, %v4279
        %v5400 = vpack.c.b16 %v4296, %v4280
        %v5401 = vpack.c.b16 %v4297, %v4281
        %v5402 = vpack.c.b16 %v4298, %v4282
        %v5403 = vpack.c.b16 %v4299, %v4283
        %v5404 = vpack.c.b16 %v4300, %v4284
        %v5405 = vpack.c.b16 %v4301, %v4285
        %v5406 = vpack.c.b16 %v4302, %v4286
        %v5407 = vpack.c.b16 %v4303, %v4287
        %v5408 = vpack.c.b16 %v4304, %v4288
        %v5409 = vpack.c.b16 %v4305, %v4289
        %v5410 = vpack.c.b16 %v4306, %v4290
        %v5411 = vpack.c.b16 %v4323, %v4307
        %v5412 = vpack.c.b16 %v4324, %v4308
        %v5413 = vpack.c.b16 %v4325, %v4309
        %v5414 = vpack.c.b16 %v4326, %v4310
        %v5415 = vpack.c.b16 %v4327, %v4311
        %v5416 = vpack.c.b16 %v4328, %v4312
        %v5417 = vpack.c.b16 %v4329, %v4313
        %v5418 = vpack.c.b16 %v4330, %v4314
        %v5419 = vpack.c.b16 %v4331, %v4315
        %v5420 = vpack.c.b16 %v4332, %v4316
        %v5421 = vpack.c.b16 %v4333, %v4317
        %v5422 = vpack.c.b16 %v4334, %v4318
        %v5423 = vpack.c.b16 %v4335, %v4319
        %v5424 = vpack.c.b16 %v4336, %v4320
        %v5425 = vpack.c.b16 %v4337, %v4321
        %v5426 = vpack.c.b16 %v4338, %v4322
        %v5427 = vpack.c.b16 %v4355, %v4339
        %v5428 = vpack.c.b16 %v4356, %v4340
        %v5429 = vpack.c.b16 %v4357, %v4341
        %v5430 = vpack.c.b16 %v4358, %v4342
        %v5431 = vpack.c.b16 %v4359, %v4343
        %v5432 = vpack.c.b16 %v4360, %v4344
        %v5433 = vpack.c.b16 %v4361, %v4345
        %v5434 = vpack.c.b16 %v4362, %v4346
        %v5435 = vpack.c.b16 %v4363, %v4347
        %v5436 = vpack.c.b16 %v4364, %v4348
        %v5437 = vpack.c.b16 %v4365, %v4349
        %v5438 = vpack.c.b16 %v4366, %v4350
        %v5439 = vpack.c.b16 %v4367, %v4351
        %v5440 = vpack.c.b16 %v4368, %v4352
        %v5441 = vpack.c.b16 %v4369, %v4353
        %v5442 = vpack.c.b16 %v4370, %v4354
        %v5443 = vpack.c.b16 %v4387, %v4371
        %v5444 = vpack.c.b16 %v4388, %v4372
        %v5445 = vpack.c.b16 %v4389, %v4373
        %v5446 = vpack.c.b16 %v4390, %v4374
        %v5447 = vpack.c.b16 %v4391, %v4375
        %v5448 = vpack.c.b16 %v4392, %v4376
        %v5449 = vpack.c.b16 %v4393, %v4377
        %v5450 = vpack.c.b16 %v4394, %v4378
        %v5451 = vpack.c.b16 %v4395, %v4379
        %v5452 = vpack.c.b16 %v4396, %v4380
        %v5453 = vpack.c.b16 %v4397, %v4381
        %v5454 = vpack.c.b16 %v4398, %v4382
        %v5455 = vpack.c.b16 %v4399, %v4383
        %v5456 = vpack.c.b16 %v4400, %v4384
        %v5457 = vpack.c.b16 %v4401, %v4385
        %v5458 = vpack.c.b16 %v4402, %v4386
        %v5459 = vpack.c.b16 %v4419, %v4403
        %v5460 = vpack.c.b16 %v4420, %v4404
        %v5461 = vpack.c.b16 %v4421, %v4405
        %v5462 = vpack.c.b16 %v4422, %v4406
        %v5463 = vpack.c.b16 %v4423, %v4407
        %v5464 = vpack.c.b16 %v4424, %v4408
        %v5465 = vpack.c.b16 %v4425, %v4409
        %v5466 = vpack.c.b16 %v4426, %v4410
        %v5467 = vpack.c.b16 %v4427, %v4411
        %v5468 = vpack.c.b16 %v4428, %v4412
        %v5469 = vpack.c.b16 %v4429, %v4413
        %v5470 = vpack.c.b16 %v4430, %v4414
        %v5471 = vpack.c.b16 %v4431, %v4415
        %v5472 = vpack.c.b16 %v4432, %v4416
        %v5473 = vpack.c.b16 %v4433, %v4417
        %v5474 = vpack.c.b16 %v4434, %v4418
        %v5475 = vpack.c.b16 %v4451, %v4435
        %v5476 = vpack.c.b16 %v4452, %v4436
        %v5477 = vpack.c.b16 %v4453, %v4437
        %v5478 = vpack.c.b16 %v4454, %v4438
        %v5479 = vpack.c.b16 %v4455, %v4439
        %v5480 = vpack.c.b16 %v4456, %v4440
        %v5481 = vpack.c.b16 %v4457, %v4441
        %v5482 = vpack.c.b16 %v4458, %v4442
        %v5483 = vpack.c.b16 %v4459, %v4443
        %v5484 = vpack.c.b16 %v4460, %v4444
        %v5485 = vpack.c.b16 %v4461, %v4445
        %v5486 = vpack.c.b16 %v4462, %v4446
        %v5487 = vpack.c.b16 %v4463, %v4447
        %v5488 = vpack.c.b16 %v4464, %v4448
        %v5489 = vpack.c.b16 %v4465, %v4449
        %v5490 = vpack.c.b16 %v4466, %v4450
        %6515 = vmatprep.subr.bf16.mxu0 %v4580
        %6516 = vmatpush1.bf16.msra.mxu0 %v4579
        %6517 = vmatprep.subr.bf16.mxu0 %v4564
        %6518 = vmatpush1.bf16.msra.mxu0 %v4563
        %6519 = vmatprep.subr.bf16.mxu0 %v4548
        %6520 = vmatpush1.bf16.msra.mxu0 %v4547
        %6521 = vmatprep.subr.bf16.mxu0 %v4532
        %6522 = vmatpush1.bf16.msra.mxu0 %v4531
        %6523 = vmatprep.subr.bf16.mxu0 %v4516
        %6524 = vmatpush1.bf16.msra.mxu0 %v4515
        %6525 = vmatprep.subr.bf16.mxu0 %v4500
        %6526 = vmatpush1.bf16.msra.mxu0 %v4499
        %6527 = vmatprep.subr.bf16.mxu0 %v4484
        %6528 = vmatpush1.bf16.msra.mxu0 %v4483
        %6529 = vmatprep.subr.bf16.mxu0 %v4468
        %6530 = vmatpush1.bf16.msra.mxu0 %v4467
        %6531 = vmatprep.subr.bf16.mxu0 %v4708
        %6532 = vmatpush2.bf16.msra.mxu0 %v4707
        %6533 = vmatprep.subr.bf16.mxu0 %v4692
        %6534 = vmatpush2.bf16.msra.mxu0 %v4691
        %6535 = vmatprep.subr.bf16.mxu0 %v4676
        %6536 = vmatpush2.bf16.msra.mxu0 %v4675
        %6537 = vmatprep.subr.bf16.mxu0 %v4660
        %6538 = vmatpush2.bf16.msra.mxu0 %v4659
        %6539 = vmatprep.subr.bf16.mxu0 %v4644
        %6540 = vmatpush2.bf16.msra.mxu0 %v4643
        %6541 = vmatprep.subr.bf16.mxu0 %v4628
        %6542 = vmatpush2.bf16.msra.mxu0 %v4627
        %6543 = vmatprep.subr.bf16.mxu0 %v4612
        %6544 = vmatpush2.bf16.msra.mxu0 %v4611
        %6545 = vmatprep.subr.bf16.mxu0 %v4596
        %6546 = vmatpush2.bf16.msra.mxu0 %v4595
        %6547 = vmatprep.mubr.bf16.mxu0 %v1380
        %6548 = vmatmul.mubr.bf16.gmra.mxu0 %v1379
        %v6549 = vpop.f32.mrf.mxu0
        %v6550 = vadd.f32 0.0, %v6549
        %v6551 = vpop.f32.mrf.mxu0
        %v6552 = vadd.f32 0.0, %v6551
        %v6553 = vpop.f32.mrf.mxu0
        %v6554 = vpop.f32.mrf.mxu0
        %6555 = vdwg.mxu0
        %6556 = vmatprep.subr.bf16.mxu0 %v4836
        %6557 = vmatpush1.bf16.msra.mxu0 %v4835
        %6558 = vmatprep.subr.bf16.mxu0 %v4820
        %6559 = vmatpush1.bf16.msra.mxu0 %v4819
        %6560 = vmatprep.subr.bf16.mxu0 %v4804
        %6561 = vmatpush1.bf16.msra.mxu0 %v4803
        %6562 = vmatprep.subr.bf16.mxu0 %v4788
        %6563 = vmatpush1.bf16.msra.mxu0 %v4787
        %6564 = vmatprep.subr.bf16.mxu0 %v4772
        %6565 = vmatpush1.bf16.msra.mxu0 %v4771
        %6566 = vmatprep.subr.bf16.mxu0 %v4756
        %6567 = vmatpush1.bf16.msra.mxu0 %v4755
        %6568 = vmatprep.subr.bf16.mxu0 %v4740
        %6569 = vmatpush1.bf16.msra.mxu0 %v4739
        %6570 = vmatprep.subr.bf16.mxu0 %v4724
        %6571 = vmatpush1.bf16.msra.mxu0 %v4723
        %6572 = vmatprep.subr.bf16.mxu0 %v4964
        %6573 = vmatpush2.bf16.msra.mxu0 %v4963
        %6574 = vmatprep.subr.bf16.mxu0 %v4948
        %6575 = vmatpush2.bf16.msra.mxu0 %v4947
        %6576 = vmatprep.subr.bf16.mxu0 %v4932
        %6577 = vmatpush2.bf16.msra.mxu0 %v4931
        %6578 = vmatprep.subr.bf16.mxu0 %v4916
        %6579 = vmatpush2.bf16.msra.mxu0 %v4915
        %6580 = vmatprep.subr.bf16.mxu0 %v4900
        %6581 = vmatpush2.bf16.msra.mxu0 %v4899
        %6582 = vmatprep.subr.bf16.mxu0 %v4884
        %6583 = vmatpush2.bf16.msra.mxu0 %v4883
        %6584 = vmatprep.subr.bf16.mxu0 %v4868
        %6585 = vmatpush2.bf16.msra.mxu0 %v4867
        %6586 = vmatprep.subr.bf16.mxu0 %v4852
        %6587 = vmatpush2.bf16.msra.mxu0 %v4851
        %6588 = vmatprep.mubr.bf16.mxu0 %v1382
        %6589 = vmatmul.mubr.bf16.gmra.mxu0 %v1381
        %v6590 = vpop.f32.mrf.mxu0
        %v6591 = vadd.f32 %v6550, %v6590
        %v6592 = vpop.f32.mrf.mxu0
        %v6593 = vadd.f32 %v6552, %v6592
        %v6594 = vpop.f32.mrf.mxu0
        %v6595 = vpop.f32.mrf.mxu0
        %6596 = vdwg.mxu0
        %6597 = vmatprep.subr.bf16.mxu0 %v5092
        %6598 = vmatpush1.bf16.msra.mxu0 %v5091
        %6599 = vmatprep.subr.bf16.mxu0 %v5076
        %6600 = vmatpush1.bf16.msra.mxu0 %v5075
        %6601 = vmatprep.subr.bf16.mxu0 %v5060
        %6602 = vmatpush1.bf16.msra.mxu0 %v5059
        %6603 = vmatprep.subr.bf16.mxu0 %v5044
        %6604 = vmatpush1.bf16.msra.mxu0 %v5043
        %6605 = vmatprep.subr.bf16.mxu0 %v5028
        %6606 = vmatpush1.bf16.msra.mxu0 %v5027
        %6607 = vmatprep.subr.bf16.mxu0 %v5012
        %6608 = vmatpush1.bf16.msra.mxu0 %v5011
        %6609 = vmatprep.subr.bf16.mxu0 %v4996
        %6610 = vmatpush1.bf16.msra.mxu0 %v4995
        %6611 = vmatprep.subr.bf16.mxu0 %v4980
        %6612 = vmatpush1.bf16.msra.mxu0 %v4979
        %6613 = vmatprep.subr.bf16.mxu0 %v5220
        %6614 = vmatpush2.bf16.msra.mxu0 %v5219
        %6615 = vmatprep.subr.bf16.mxu0 %v5204
        %6616 = vmatpush2.bf16.msra.mxu0 %v5203
        %6617 = vmatprep.subr.bf16.mxu0 %v5188
        %6618 = vmatpush2.bf16.msra.mxu0 %v5187
        %6619 = vmatprep.subr.bf16.mxu0 %v5172
        %6620 = vmatpush2.bf16.msra.mxu0 %v5171
        %6621 = vmatprep.subr.bf16.mxu0 %v5156
        %6622 = vmatpush2.bf16.msra.mxu0 %v5155
        %6623 = vmatprep.subr.bf16.mxu0 %v5140
        %6624 = vmatpush2.bf16.msra.mxu0 %v5139
        %6625 = vmatprep.subr.bf16.mxu0 %v5124
        %6626 = vmatpush2.bf16.msra.mxu0 %v5123
        %6627 = vmatprep.subr.bf16.mxu0 %v5108
        %6628 = vmatpush2.bf16.msra.mxu0 %v5107
        %6629 = vmatprep.mubr.bf16.mxu0 %v1384
        %6630 = vmatmul.mubr.bf16.gmra.mxu0 %v1383
        %v6631 = vpop.f32.mrf.mxu0
        %v6632 = vadd.f32 %v6591, %v6631
        %v6633 = vpop.f32.mrf.mxu0
        %v6634 = vadd.f32 %v6593, %v6633
        %v6635 = vpop.f32.mrf.mxu0
        %v6636 = vpop.f32.mrf.mxu0
        %6637 = vdwg.mxu0
        %6638 = vmatprep.subr.bf16.mxu0 %v5348
        %6639 = vmatpush1.bf16.msra.mxu0 %v5347
        %6640 = vmatprep.subr.bf16.mxu0 %v5332
        %6641 = vmatpush1.bf16.msra.mxu0 %v5331
        %6642 = vmatprep.subr.bf16.mxu0 %v5316
        %6643 = vmatpush1.bf16.msra.mxu0 %v5315
        %6644 = vmatprep.subr.bf16.mxu0 %v5300
        %6645 = vmatpush1.bf16.msra.mxu0 %v5299
        %6646 = vmatprep.subr.bf16.mxu0 %v5284
        %6647 = vmatpush1.bf16.msra.mxu0 %v5283
        %6648 = vmatprep.subr.bf16.mxu0 %v5268
        %6649 = vmatpush1.bf16.msra.mxu0 %v5267
        %6650 = vmatprep.subr.bf16.mxu0 %v5252
        %6651 = vmatpush1.bf16.msra.mxu0 %v5251
        %6652 = vmatprep.subr.bf16.mxu0 %v5236
        %6653 = vmatpush1.bf16.msra.mxu0 %v5235
        %6654 = vmatprep.subr.bf16.mxu0 %v5476
        %6655 = vmatpush2.bf16.msra.mxu0 %v5475
        %6656 = vmatprep.subr.bf16.mxu0 %v5460
        %6657 = vmatpush2.bf16.msra.mxu0 %v5459
        %6658 = vmatprep.subr.bf16.mxu0 %v5444
        %6659 = vmatpush2.bf16.msra.mxu0 %v5443
        %6660 = vmatprep.subr.bf16.mxu0 %v5428
        %6661 = vmatpush2.bf16.msra.mxu0 %v5427
        %6662 = vmatprep.subr.bf16.mxu0 %v5412
        %6663 = vmatpush2.bf16.msra.mxu0 %v5411
        %6664 = vmatprep.subr.bf16.mxu0 %v5396
        %6665 = vmatpush2.bf16.msra.mxu0 %v5395
        %6666 = vmatprep.subr.bf16.mxu0 %v5380
        %6667 = vmatpush2.bf16.msra.mxu0 %v5379
        %6668 = vmatprep.subr.bf16.mxu0 %v5364
        %6669 = vmatpush2.bf16.msra.mxu0 %v5363
        %6670 = vmatprep.mubr.bf16.mxu0 %v1386
        %6671 = vmatmul.mubr.bf16.gmra.mxu0 %v1385
        %v6672 = vpop.f32.mrf.mxu0
        %v6673 = vadd.f32 %v6632, %v6672
        %v6674 = vpop.f32.mrf.mxu0
        %v6675 = vadd.f32 %v6634, %v6674
        %v6676 = vpop.f32.mrf.mxu0
        %v6677 = vpop.f32.mrf.mxu0
        %6678 = vdwg.mxu0
        %6679 = vmatprep.subr.bf16.mxu0 %v4582
        %6680 = vmatpush1.bf16.msra.mxu0 %v4581
        %6681 = vmatprep.subr.bf16.mxu0 %v4566
        %6682 = vmatpush1.bf16.msra.mxu0 %v4565
        %6683 = vmatprep.subr.bf16.mxu0 %v4550
        %6684 = vmatpush1.bf16.msra.mxu0 %v4549
        %6685 = vmatprep.subr.bf16.mxu0 %v4534
        %6686 = vmatpush1.bf16.msra.mxu0 %v4533
        %6687 = vmatprep.subr.bf16.mxu0 %v4518
        %6688 = vmatpush1.bf16.msra.mxu0 %v4517
        %6689 = vmatprep.subr.bf16.mxu0 %v4502
        %6690 = vmatpush1.bf16.msra.mxu0 %v4501
        %6691 = vmatprep.subr.bf16.mxu0 %v4486
        %6692 = vmatpush1.bf16.msra.mxu0 %v4485
        %6693 = vmatprep.subr.bf16.mxu0 %v4470
        %6694 = vmatpush1.bf16.msra.mxu0 %v4469
        %6695 = vmatprep.subr.bf16.mxu0 %v4710
        %6696 = vmatpush2.bf16.msra.mxu0 %v4709
        %6697 = vmatprep.subr.bf16.mxu0 %v4694
        %6698 = vmatpush2.bf16.msra.mxu0 %v4693
        %6699 = vmatprep.subr.bf16.mxu0 %v4678
        %6700 = vmatpush2.bf16.msra.mxu0 %v4677
        %6701 = vmatprep.subr.bf16.mxu0 %v4662
        %6702 = vmatpush2.bf16.msra.mxu0 %v4661
        %6703 = vmatprep.subr.bf16.mxu0 %v4646
        %6704 = vmatpush2.bf16.msra.mxu0 %v4645
        %6705 = vmatprep.subr.bf16.mxu0 %v4630
        %6706 = vmatpush2.bf16.msra.mxu0 %v4629
        %6707 = vmatprep.subr.bf16.mxu0 %v4614
        %6708 = vmatpush2.bf16.msra.mxu0 %v4613
        %6709 = vmatprep.subr.bf16.mxu0 %v4598
        %6710 = vmatpush2.bf16.msra.mxu0 %v4597
        %6711 = vmatprep.mubr.bf16.mxu0 %v1380
        %6712 = vmatmul.mubr.bf16.gmra.mxu0 %v1379
        %v6713 = vpop.f32.mrf.mxu0
        %v6714 = vadd.f32 0.0, %v6713
        %v6715 = vpop.f32.mrf.mxu0
        %v6716 = vadd.f32 0.0, %v6715
        %v6717 = vpop.f32.mrf.mxu0
        %v6718 = vpop.f32.mrf.mxu0
        %6719 = vdwg.mxu0
        %6720 = vmatprep.subr.bf16.mxu0 %v4838
        %6721 = vmatpush1.bf16.msra.mxu0 %v4837
        %6722 = vmatprep.subr.bf16.mxu0 %v4822
        %6723 = vmatpush1.bf16.msra.mxu0 %v4821
        %6724 = vmatprep.subr.bf16.mxu0 %v4806
        %6725 = vmatpush1.bf16.msra.mxu0 %v4805
        %6726 = vmatprep.subr.bf16.mxu0 %v4790
        %6727 = vmatpush1.bf16.msra.mxu0 %v4789
        %6728 = vmatprep.subr.bf16.mxu0 %v4774
        %6729 = vmatpush1.bf16.msra.mxu0 %v4773
        %6730 = vmatprep.subr.bf16.mxu0 %v4758
        %6731 = vmatpush1.bf16.msra.mxu0 %v4757
        %6732 = vmatprep.subr.bf16.mxu0 %v4742
        %6733 = vmatpush1.bf16.msra.mxu0 %v4741
        %6734 = vmatprep.subr.bf16.mxu0 %v4726
        %6735 = vmatpush1.bf16.msra.mxu0 %v4725
        %6736 = vmatprep.subr.bf16.mxu0 %v4966
        %6737 = vmatpush2.bf16.msra.mxu0 %v4965
        %6738 = vmatprep.subr.bf16.mxu0 %v4950
        %6739 = vmatpush2.bf16.msra.mxu0 %v4949
        %6740 = vmatprep.subr.bf16.mxu0 %v4934
        %6741 = vmatpush2.bf16.msra.mxu0 %v4933
        %6742 = vmatprep.subr.bf16.mxu0 %v4918
        %6743 = vmatpush2.bf16.msra.mxu0 %v4917
        %6744 = vmatprep.subr.bf16.mxu0 %v4902
        %6745 = vmatpush2.bf16.msra.mxu0 %v4901
        %6746 = vmatprep.subr.bf16.mxu0 %v4886
        %6747 = vmatpush2.bf16.msra.mxu0 %v4885
        %6748 = vmatprep.subr.bf16.mxu0 %v4870
        %6749 = vmatpush2.bf16.msra.mxu0 %v4869
        %6750 = vmatprep.subr.bf16.mxu0 %v4854
        %6751 = vmatpush2.bf16.msra.mxu0 %v4853
        %6752 = vmatprep.mubr.bf16.mxu0 %v1382
        %6753 = vmatmul.mubr.bf16.gmra.mxu0 %v1381
        %v6754 = vpop.f32.mrf.mxu0
        %v6755 = vadd.f32 %v6714, %v6754
        %v6756 = vpop.f32.mrf.mxu0
        %v6757 = vadd.f32 %v6716, %v6756
        %v6758 = vpop.f32.mrf.mxu0
        %v6759 = vpop.f32.mrf.mxu0
        %6760 = vdwg.mxu0
        %6761 = vmatprep.subr.bf16.mxu0 %v5094
        %6762 = vmatpush1.bf16.msra.mxu0 %v5093
        %6763 = vmatprep.subr.bf16.mxu0 %v5078
        %6764 = vmatpush1.bf16.msra.mxu0 %v5077
        %6765 = vmatprep.subr.bf16.mxu0 %v5062
        %6766 = vmatpush1.bf16.msra.mxu0 %v5061
        %6767 = vmatprep.subr.bf16.mxu0 %v5046
        %6768 = vmatpush1.bf16.msra.mxu0 %v5045
        %6769 = vmatprep.subr.bf16.mxu0 %v5030
        %6770 = vmatpush1.bf16.msra.mxu0 %v5029
        %6771 = vmatprep.subr.bf16.mxu0 %v5014
        %6772 = vmatpush1.bf16.msra.mxu0 %v5013
        %6773 = vmatprep.subr.bf16.mxu0 %v4998
        %6774 = vmatpush1.bf16.msra.mxu0 %v4997
        %6775 = vmatprep.subr.bf16.mxu0 %v4982
        %6776 = vmatpush1.bf16.msra.mxu0 %v4981
        %6777 = vmatprep.subr.bf16.mxu0 %v5222
        %6778 = vmatpush2.bf16.msra.mxu0 %v5221
        %6779 = vmatprep.subr.bf16.mxu0 %v5206
        %6780 = vmatpush2.bf16.msra.mxu0 %v5205
        %6781 = vmatprep.subr.bf16.mxu0 %v5190
        %6782 = vmatpush2.bf16.msra.mxu0 %v5189
        %6783 = vmatprep.subr.bf16.mxu0 %v5174
        %6784 = vmatpush2.bf16.msra.mxu0 %v5173
        %6785 = vmatprep.subr.bf16.mxu0 %v5158
        %6786 = vmatpush2.bf16.msra.mxu0 %v5157
        %6787 = vmatprep.subr.bf16.mxu0 %v5142
        %6788 = vmatpush2.bf16.msra.mxu0 %v5141
        %6789 = vmatprep.subr.bf16.mxu0 %v5126
        %6790 = vmatpush2.bf16.msra.mxu0 %v5125
        %6791 = vmatprep.subr.bf16.mxu0 %v5110
        %6792 = vmatpush2.bf16.msra.mxu0 %v5109
        %6793 = vmatprep.mubr.bf16.mxu0 %v1384
        %6794 = vmatmul.mubr.bf16.gmra.mxu0 %v1383
        %v6795 = vpop.f32.mrf.mxu0
        %v6796 = vadd.f32 %v6755, %v6795
        %v6797 = vpop.f32.mrf.mxu0
        %v6798 = vadd.f32 %v6757, %v6797
        %v6799 = vpop.f32.mrf.mxu0
        %v6800 = vpop.f32.mrf.mxu0
        %6801 = vdwg.mxu0
        %6802 = vmatprep.subr.bf16.mxu0 %v5350
        %6803 = vmatpush1.bf16.msra.mxu0 %v5349
        %6804 = vmatprep.subr.bf16.mxu0 %v5334
        %6805 = vmatpush1.bf16.msra.mxu0 %v5333
        %6806 = vmatprep.subr.bf16.mxu0 %v5318
        %6807 = vmatpush1.bf16.msra.mxu0 %v5317
        %6808 = vmatprep.subr.bf16.mxu0 %v5302
        %6809 = vmatpush1.bf16.msra.mxu0 %v5301
        %6810 = vmatprep.subr.bf16.mxu0 %v5286
        %6811 = vmatpush1.bf16.msra.mxu0 %v5285
        %6812 = vmatprep.subr.bf16.mxu0 %v5270
        %6813 = vmatpush1.bf16.msra.mxu0 %v5269
        %6814 = vmatprep.subr.bf16.mxu0 %v5254
        %6815 = vmatpush1.bf16.msra.mxu0 %v5253
        %6816 = vmatprep.subr.bf16.mxu0 %v5238
        %6817 = vmatpush1.bf16.msra.mxu0 %v5237
        %6818 = vmatprep.subr.bf16.mxu0 %v5478
        %6819 = vmatpush2.bf16.msra.mxu0 %v5477
        %6820 = vmatprep.subr.bf16.mxu0 %v5462
        %6821 = vmatpush2.bf16.msra.mxu0 %v5461
        %6822 = vmatprep.subr.bf16.mxu0 %v5446
        %6823 = vmatpush2.bf16.msra.mxu0 %v5445
        %6824 = vmatprep.subr.bf16.mxu0 %v5430
        %6825 = vmatpush2.bf16.msra.mxu0 %v5429
        %6826 = vmatprep.subr.bf16.mxu0 %v5414
        %6827 = vmatpush2.bf16.msra.mxu0 %v5413
        %6828 = vmatprep.subr.bf16.mxu0 %v5398
        %6829 = vmatpush2.bf16.msra.mxu0 %v5397
        %6830 = vmatprep.subr.bf16.mxu0 %v5382
        %6831 = vmatpush2.bf16.msra.mxu0 %v5381
        %6832 = vmatprep.subr.bf16.mxu0 %v5366
        %6833 = vmatpush2.bf16.msra.mxu0 %v5365
        %6834 = vmatprep.mubr.bf16.mxu0 %v1386
        %6835 = vmatmul.mubr.bf16.gmra.mxu0 %v1385
        %v6836 = vpop.f32.mrf.mxu0
        %v6837 = vadd.f32 %v6796, %v6836
        %v6838 = vpop.f32.mrf.mxu0
        %v6839 = vadd.f32 %v6798, %v6838
        %v6840 = vpop.f32.mrf.mxu0
        %v6841 = vpop.f32.mrf.mxu0
        %6842 = vdwg.mxu0
        %6843 = vmatprep.subr.bf16.mxu0 %v4584
        %6844 = vmatpush1.bf16.msra.mxu0 %v4583
        %6845 = vmatprep.subr.bf16.mxu0 %v4568
        %6846 = vmatpush1.bf16.msra.mxu0 %v4567
        %6847 = vmatprep.subr.bf16.mxu0 %v4552
        %6848 = vmatpush1.bf16.msra.mxu0 %v4551
        %6849 = vmatprep.subr.bf16.mxu0 %v4536
        %6850 = vmatpush1.bf16.msra.mxu0 %v4535
        %6851 = vmatprep.subr.bf16.mxu0 %v4520
        %6852 = vmatpush1.bf16.msra.mxu0 %v4519
        %6853 = vmatprep.subr.bf16.mxu0 %v4504
        %6854 = vmatpush1.bf16.msra.mxu0 %v4503
        %6855 = vmatprep.subr.bf16.mxu0 %v4488
        %6856 = vmatpush1.bf16.msra.mxu0 %v4487
        %6857 = vmatprep.subr.bf16.mxu0 %v4472
        %6858 = vmatpush1.bf16.msra.mxu0 %v4471
        %6859 = vmatprep.subr.bf16.mxu0 %v4712
        %6860 = vmatpush2.bf16.msra.mxu0 %v4711
        %6861 = vmatprep.subr.bf16.mxu0 %v4696
        %6862 = vmatpush2.bf16.msra.mxu0 %v4695
        %6863 = vmatprep.subr.bf16.mxu0 %v4680
        %6864 = vmatpush2.bf16.msra.mxu0 %v4679
        %6865 = vmatprep.subr.bf16.mxu0 %v4664
        %6866 = vmatpush2.bf16.msra.mxu0 %v4663
        %6867 = vmatprep.subr.bf16.mxu0 %v4648
        %6868 = vmatpush2.bf16.msra.mxu0 %v4647
        %6869 = vmatprep.subr.bf16.mxu0 %v4632
        %6870 = vmatpush2.bf16.msra.mxu0 %v4631
        %6871 = vmatprep.subr.bf16.mxu0 %v4616
        %6872 = vmatpush2.bf16.msra.mxu0 %v4615
        %6873 = vmatprep.subr.bf16.mxu0 %v4600
        %6874 = vmatpush2.bf16.msra.mxu0 %v4599
        %6875 = vmatprep.mubr.bf16.mxu0 %v1380
        %6876 = vmatmul.mubr.bf16.gmra.mxu0 %v1379
        %v6877 = vpop.f32.mrf.mxu0
        %v6878 = vadd.f32 0.0, %v6877
        %v6879 = vpop.f32.mrf.mxu0
        %v6880 = vadd.f32 0.0, %v6879
        %v6881 = vpop.f32.mrf.mxu0
        %v6882 = vpop.f32.mrf.mxu0
        %6883 = vdwg.mxu0
        %6884 = vmatprep.subr.bf16.mxu0 %v4840
        %6885 = vmatpush1.bf16.msra.mxu0 %v4839
        %6886 = vmatprep.subr.bf16.mxu0 %v4824
        %6887 = vmatpush1.bf16.msra.mxu0 %v4823
        %6888 = vmatprep.subr.bf16.mxu0 %v4808
        %6889 = vmatpush1.bf16.msra.mxu0 %v4807
        %6890 = vmatprep.subr.bf16.mxu0 %v4792
        %6891 = vmatpush1.bf16.msra.mxu0 %v4791
        %6892 = vmatprep.subr.bf16.mxu0 %v4776
        %6893 = vmatpush1.bf16.msra.mxu0 %v4775
        %6894 = vmatprep.subr.bf16.mxu0 %v4760
        %6895 = vmatpush1.bf16.msra.mxu0 %v4759
        %6896 = vmatprep.subr.bf16.mxu0 %v4744
        %6897 = vmatpush1.bf16.msra.mxu0 %v4743
        %6898 = vmatprep.subr.bf16.mxu0 %v4728
        %6899 = vmatpush1.bf16.msra.mxu0 %v4727
        %6900 = vmatprep.subr.bf16.mxu0 %v4968
        %6901 = vmatpush2.bf16.msra.mxu0 %v4967
        %6902 = vmatprep.subr.bf16.mxu0 %v4952
        %6903 = vmatpush2.bf16.msra.mxu0 %v4951
        %6904 = vmatprep.subr.bf16.mxu0 %v4936
        %6905 = vmatpush2.bf16.msra.mxu0 %v4935
        %6906 = vmatprep.subr.bf16.mxu0 %v4920
        %6907 = vmatpush2.bf16.msra.mxu0 %v4919
        %6908 = vmatprep.subr.bf16.mxu0 %v4904
        %6909 = vmatpush2.bf16.msra.mxu0 %v4903
        %6910 = vmatprep.subr.bf16.mxu0 %v4888
        %6911 = vmatpush2.bf16.msra.mxu0 %v4887
        %6912 = vmatprep.subr.bf16.mxu0 %v4872
        %6913 = vmatpush2.bf16.msra.mxu0 %v4871
        %6914 = vmatprep.subr.bf16.mxu0 %v4856
        %6915 = vmatpush2.bf16.msra.mxu0 %v4855
        %6916 = vmatprep.mubr.bf16.mxu0 %v1382
        %6917 = vmatmul.mubr.bf16.gmra.mxu0 %v1381
        %v6918 = vpop.f32.mrf.mxu0
        %v6919 = vadd.f32 %v6878, %v6918
        %v6920 = vpop.f32.mrf.mxu0
        %v6921 = vadd.f32 %v6880, %v6920
        %v6922 = vpop.f32.mrf.mxu0
        %v6923 = vpop.f32.mrf.mxu0
        %6924 = vdwg.mxu0
        %6925 = vmatprep.subr.bf16.mxu0 %v5096
        %6926 = vmatpush1.bf16.msra.mxu0 %v5095
        %6927 = vmatprep.subr.bf16.mxu0 %v5080
        %6928 = vmatpush1.bf16.msra.mxu0 %v5079
        %6929 = vmatprep.subr.bf16.mxu0 %v5064
        %6930 = vmatpush1.bf16.msra.mxu0 %v5063
        %6931 = vmatprep.subr.bf16.mxu0 %v5048
        %6932 = vmatpush1.bf16.msra.mxu0 %v5047
        %6933 = vmatprep.subr.bf16.mxu0 %v5032
        %6934 = vmatpush1.bf16.msra.mxu0 %v5031
        %6935 = vmatprep.subr.bf16.mxu0 %v5016
        %6936 = vmatpush1.bf16.msra.mxu0 %v5015
        %6937 = vmatprep.subr.bf16.mxu0 %v5000
        %6938 = vmatpush1.bf16.msra.mxu0 %v4999
        %6939 = vmatprep.subr.bf16.mxu0 %v4984
        %6940 = vmatpush1.bf16.msra.mxu0 %v4983
        %6941 = vmatprep.subr.bf16.mxu0 %v5224
        %6942 = vmatpush2.bf16.msra.mxu0 %v5223
        %6943 = vmatprep.subr.bf16.mxu0 %v5208
        %6944 = vmatpush2.bf16.msra.mxu0 %v5207
        %6945 = vmatprep.subr.bf16.mxu0 %v5192
        %6946 = vmatpush2.bf16.msra.mxu0 %v5191
        %6947 = vmatprep.subr.bf16.mxu0 %v5176
        %6948 = vmatpush2.bf16.msra.mxu0 %v5175
        %6949 = vmatprep.subr.bf16.mxu0 %v5160
        %6950 = vmatpush2.bf16.msra.mxu0 %v5159
        %6951 = vmatprep.subr.bf16.mxu0 %v5144
        %6952 = vmatpush2.bf16.msra.mxu0 %v5143
        %6953 = vmatprep.subr.bf16.mxu0 %v5128
        %6954 = vmatpush2.bf16.msra.mxu0 %v5127
        %6955 = vmatprep.subr.bf16.mxu0 %v5112
        %6956 = vmatpush2.bf16.msra.mxu0 %v5111
        %6957 = vmatprep.mubr.bf16.mxu0 %v1384
        %6958 = vmatmul.mubr.bf16.gmra.mxu0 %v1383
        %v6959 = vpop.f32.mrf.mxu0
        %v6960 = vadd.f32 %v6919, %v6959
        %v6961 = vpop.f32.mrf.mxu0
        %v6962 = vadd.f32 %v6921, %v6961
        %v6963 = vpop.f32.mrf.mxu0
        %v6964 = vpop.f32.mrf.mxu0
        %6965 = vdwg.mxu0
        %6966 = vmatprep.subr.bf16.mxu0 %v5352
        %6967 = vmatpush1.bf16.msra.mxu0 %v5351
        %6968 = vmatprep.subr.bf16.mxu0 %v5336
        %6969 = vmatpush1.bf16.msra.mxu0 %v5335
        %6970 = vmatprep.subr.bf16.mxu0 %v5320
        %6971 = vmatpush1.bf16.msra.mxu0 %v5319
        %6972 = vmatprep.subr.bf16.mxu0 %v5304
        %6973 = vmatpush1.bf16.msra.mxu0 %v5303
        %6974 = vmatprep.subr.bf16.mxu0 %v5288
        %6975 = vmatpush1.bf16.msra.mxu0 %v5287
        %6976 = vmatprep.subr.bf16.mxu0 %v5272
        %6977 = vmatpush1.bf16.msra.mxu0 %v5271
        %6978 = vmatprep.subr.bf16.mxu0 %v5256
        %6979 = vmatpush1.bf16.msra.mxu0 %v5255
        %6980 = vmatprep.subr.bf16.mxu0 %v5240
        %6981 = vmatpush1.bf16.msra.mxu0 %v5239
        %6982 = vmatprep.subr.bf16.mxu0 %v5480
        %6983 = vmatpush2.bf16.msra.mxu0 %v5479
        %6984 = vmatprep.subr.bf16.mxu0 %v5464
        %6985 = vmatpush2.bf16.msra.mxu0 %v5463
        %6986 = vmatprep.subr.bf16.mxu0 %v5448
        %6987 = vmatpush2.bf16.msra.mxu0 %v5447
        %6988 = vmatprep.subr.bf16.mxu0 %v5432
        %6989 = vmatpush2.bf16.msra.mxu0 %v5431
        %6990 = vmatprep.subr.bf16.mxu0 %v5416
        %6991 = vmatpush2.bf16.msra.mxu0 %v5415
        %6992 = vmatprep.subr.bf16.mxu0 %v5400
        %6993 = vmatpush2.bf16.msra.mxu0 %v5399
        %6994 = vmatprep.subr.bf16.mxu0 %v5384
        %6995 = vmatpush2.bf16.msra.mxu0 %v5383
        %6996 = vmatprep.subr.bf16.mxu0 %v5368
        %6997 = vmatpush2.bf16.msra.mxu0 %v5367
        %6998 = vmatprep.mubr.bf16.mxu0 %v1386
        %6999 = vmatmul.mubr.bf16.gmra.mxu0 %v1385
        %v7000 = vpop.f32.mrf.mxu0
        %v7001 = vadd.f32 %v6960, %v7000
        %v7002 = vpop.f32.mrf.mxu0
        %v7003 = vadd.f32 %v6962, %v7002
        %v7004 = vpop.f32.mrf.mxu0
        %v7005 = vpop.f32.mrf.mxu0
        %7006 = vdwg.mxu0
        %7007 = vmatprep.subr.bf16.mxu0 %v4586
        %7008 = vmatpush1.bf16.msra.mxu0 %v4585
        %7009 = vmatprep.subr.bf16.mxu0 %v4570
        %7010 = vmatpush1.bf16.msra.mxu0 %v4569
        %7011 = vmatprep.subr.bf16.mxu0 %v4554
        %7012 = vmatpush1.bf16.msra.mxu0 %v4553
        %7013 = vmatprep.subr.bf16.mxu0 %v4538
        %7014 = vmatpush1.bf16.msra.mxu0 %v4537
        %7015 = vmatprep.subr.bf16.mxu0 %v4522
        %7016 = vmatpush1.bf16.msra.mxu0 %v4521
        %7017 = vmatprep.subr.bf16.mxu0 %v4506
        %7018 = vmatpush1.bf16.msra.mxu0 %v4505
        %7019 = vmatprep.subr.bf16.mxu0 %v4490
        %7020 = vmatpush1.bf16.msra.mxu0 %v4489
        %7021 = vmatprep.subr.bf16.mxu0 %v4474
        %7022 = vmatpush1.bf16.msra.mxu0 %v4473
        %7023 = vmatprep.subr.bf16.mxu0 %v4714
        %7024 = vmatpush2.bf16.msra.mxu0 %v4713
        %7025 = vmatprep.subr.bf16.mxu0 %v4698
        %7026 = vmatpush2.bf16.msra.mxu0 %v4697
        %7027 = vmatprep.subr.bf16.mxu0 %v4682
        %7028 = vmatpush2.bf16.msra.mxu0 %v4681
        %7029 = vmatprep.subr.bf16.mxu0 %v4666
        %7030 = vmatpush2.bf16.msra.mxu0 %v4665
        %7031 = vmatprep.subr.bf16.mxu0 %v4650
        %7032 = vmatpush2.bf16.msra.mxu0 %v4649
        %7033 = vmatprep.subr.bf16.mxu0 %v4634
        %7034 = vmatpush2.bf16.msra.mxu0 %v4633
        %7035 = vmatprep.subr.bf16.mxu0 %v4618
        %7036 = vmatpush2.bf16.msra.mxu0 %v4617
        %7037 = vmatprep.subr.bf16.mxu0 %v4602
        %7038 = vmatpush2.bf16.msra.mxu0 %v4601
        %7039 = vmatprep.mubr.bf16.mxu0 %v1380
        %7040 = vmatmul.mubr.bf16.gmra.mxu0 %v1379
        %v7041 = vpop.f32.mrf.mxu0
        %v7042 = vadd.f32 0.0, %v7041
        %v7043 = vpop.f32.mrf.mxu0
        %v7044 = vadd.f32 0.0, %v7043
        %v7045 = vpop.f32.mrf.mxu0
        %v7046 = vpop.f32.mrf.mxu0
        %7047 = vdwg.mxu0
        %7048 = vmatprep.subr.bf16.mxu0 %v4842
        %7049 = vmatpush1.bf16.msra.mxu0 %v4841
        %7050 = vmatprep.subr.bf16.mxu0 %v4826
        %7051 = vmatpush1.bf16.msra.mxu0 %v4825
        %7052 = vmatprep.subr.bf16.mxu0 %v4810
        %7053 = vmatpush1.bf16.msra.mxu0 %v4809
        %7054 = vmatprep.subr.bf16.mxu0 %v4794
        %7055 = vmatpush1.bf16.msra.mxu0 %v4793
        %7056 = vmatprep.subr.bf16.mxu0 %v4778
        %7057 = vmatpush1.bf16.msra.mxu0 %v4777
        %7058 = vmatprep.subr.bf16.mxu0 %v4762
        %7059 = vmatpush1.bf16.msra.mxu0 %v4761
        %7060 = vmatprep.subr.bf16.mxu0 %v4746
        %7061 = vmatpush1.bf16.msra.mxu0 %v4745
        %7062 = vmatprep.subr.bf16.mxu0 %v4730
        %7063 = vmatpush1.bf16.msra.mxu0 %v4729
        %7064 = vmatprep.subr.bf16.mxu0 %v4970
        %7065 = vmatpush2.bf16.msra.mxu0 %v4969
        %7066 = vmatprep.subr.bf16.mxu0 %v4954
        %7067 = vmatpush2.bf16.msra.mxu0 %v4953
        %7068 = vmatprep.subr.bf16.mxu0 %v4938
        %7069 = vmatpush2.bf16.msra.mxu0 %v4937
        %7070 = vmatprep.subr.bf16.mxu0 %v4922
        %7071 = vmatpush2.bf16.msra.mxu0 %v4921
        %7072 = vmatprep.subr.bf16.mxu0 %v4906
        %7073 = vmatpush2.bf16.msra.mxu0 %v4905
        %7074 = vmatprep.subr.bf16.mxu0 %v4890
        %7075 = vmatpush2.bf16.msra.mxu0 %v4889
        %7076 = vmatprep.subr.bf16.mxu0 %v4874
        %7077 = vmatpush2.bf16.msra.mxu0 %v4873
        %7078 = vmatprep.subr.bf16.mxu0 %v4858
        %7079 = vmatpush2.bf16.msra.mxu0 %v4857
        %7080 = vmatprep.mubr.bf16.mxu0 %v1382
        %7081 = vmatmul.mubr.bf16.gmra.mxu0 %v1381
        %v7082 = vpop.f32.mrf.mxu0
        %v7083 = vadd.f32 %v7042, %v7082
        %v7084 = vpop.f32.mrf.mxu0
        %v7085 = vadd.f32 %v7044, %v7084
        %v7086 = vpop.f32.mrf.mxu0
        %v7087 = vpop.f32.mrf.mxu0
        %7088 = vdwg.mxu0
        %7089 = vmatprep.subr.bf16.mxu0 %v5098
        %7090 = vmatpush1.bf16.msra.mxu0 %v5097
        %7091 = vmatprep.subr.bf16.mxu0 %v5082
        %7092 = vmatpush1.bf16.msra.mxu0 %v5081
        %7093 = vmatprep.subr.bf16.mxu0 %v5066
        %7094 = vmatpush1.bf16.msra.mxu0 %v5065
        %7095 = vmatprep.subr.bf16.mxu0 %v5050
        %7096 = vmatpush1.bf16.msra.mxu0 %v5049
        %7097 = vmatprep.subr.bf16.mxu0 %v5034
        %7098 = vmatpush1.bf16.msra.mxu0 %v5033
        %7099 = vmatprep.subr.bf16.mxu0 %v5018
        %7100 = vmatpush1.bf16.msra.mxu0 %v5017
        %7101 = vmatprep.subr.bf16.mxu0 %v5002
        %7102 = vmatpush1.bf16.msra.mxu0 %v5001
        %7103 = vmatprep.subr.bf16.mxu0 %v4986
        %7104 = vmatpush1.bf16.msra.mxu0 %v4985
        %7105 = vmatprep.subr.bf16.mxu0 %v5226
        %7106 = vmatpush2.bf16.msra.mxu0 %v5225
        %7107 = vmatprep.subr.bf16.mxu0 %v5210
        %7108 = vmatpush2.bf16.msra.mxu0 %v5209
        %7109 = vmatprep.subr.bf16.mxu0 %v5194
        %7110 = vmatpush2.bf16.msra.mxu0 %v5193
        %7111 = vmatprep.subr.bf16.mxu0 %v5178
        %7112 = vmatpush2.bf16.msra.mxu0 %v5177
        %7113 = vmatprep.subr.bf16.mxu0 %v5162
        %7114 = vmatpush2.bf16.msra.mxu0 %v5161
        %7115 = vmatprep.subr.bf16.mxu0 %v5146
        %7116 = vmatpush2.bf16.msra.mxu0 %v5145
        %7117 = vmatprep.subr.bf16.mxu0 %v5130
        %7118 = vmatpush2.bf16.msra.mxu0 %v5129
        %7119 = vmatprep.subr.bf16.mxu0 %v5114
        %7120 = vmatpush2.bf16.msra.mxu0 %v5113
        %7121 = vmatprep.mubr.bf16.mxu0 %v1384
        %7122 = vmatmul.mubr.bf16.gmra.mxu0 %v1383
        %v7123 = vpop.f32.mrf.mxu0
        %v7124 = vadd.f32 %v7083, %v7123
        %v7125 = vpop.f32.mrf.mxu0
        %v7126 = vadd.f32 %v7085, %v7125
        %v7127 = vpop.f32.mrf.mxu0
        %v7128 = vpop.f32.mrf.mxu0
        %7129 = vdwg.mxu0
        %7130 = vmatprep.subr.bf16.mxu0 %v5354
        %7131 = vmatpush1.bf16.msra.mxu0 %v5353
        %7132 = vmatprep.subr.bf16.mxu0 %v5338
        %7133 = vmatpush1.bf16.msra.mxu0 %v5337
        %7134 = vmatprep.subr.bf16.mxu0 %v5322
        %7135 = vmatpush1.bf16.msra.mxu0 %v5321
        %7136 = vmatprep.subr.bf16.mxu0 %v5306
        %7137 = vmatpush1.bf16.msra.mxu0 %v5305
        %7138 = vmatprep.subr.bf16.mxu0 %v5290
        %7139 = vmatpush1.bf16.msra.mxu0 %v5289
        %7140 = vmatprep.subr.bf16.mxu0 %v5274
        %7141 = vmatpush1.bf16.msra.mxu0 %v5273
        %7142 = vmatprep.subr.bf16.mxu0 %v5258
        %7143 = vmatpush1.bf16.msra.mxu0 %v5257
        %7144 = vmatprep.subr.bf16.mxu0 %v5242
        %7145 = vmatpush1.bf16.msra.mxu0 %v5241
        %7146 = vmatprep.subr.bf16.mxu0 %v5482
        %7147 = vmatpush2.bf16.msra.mxu0 %v5481
        %7148 = vmatprep.subr.bf16.mxu0 %v5466
        %7149 = vmatpush2.bf16.msra.mxu0 %v5465
        %7150 = vmatprep.subr.bf16.mxu0 %v5450
        %7151 = vmatpush2.bf16.msra.mxu0 %v5449
        %7152 = vmatprep.subr.bf16.mxu0 %v5434
        %7153 = vmatpush2.bf16.msra.mxu0 %v5433
        %7154 = vmatprep.subr.bf16.mxu0 %v5418
        %7155 = vmatpush2.bf16.msra.mxu0 %v5417
        %7156 = vmatprep.subr.bf16.mxu0 %v5402
        %7157 = vmatpush2.bf16.msra.mxu0 %v5401
        %7158 = vmatprep.subr.bf16.mxu0 %v5386
        %7159 = vmatpush2.bf16.msra.mxu0 %v5385
        %7160 = vmatprep.subr.bf16.mxu0 %v5370
        %7161 = vmatpush2.bf16.msra.mxu0 %v5369
        %7162 = vmatprep.mubr.bf16.mxu0 %v1386
        %7163 = vmatmul.mubr.bf16.gmra.mxu0 %v1385
        %v7164 = vpop.f32.mrf.mxu0
        %v7165 = vadd.f32 %v7124, %v7164
        %v7166 = vpop.f32.mrf.mxu0
        %v7167 = vadd.f32 %v7126, %v7166
        %v7168 = vpop.f32.mrf.mxu0
        %v7169 = vpop.f32.mrf.mxu0
        %7170 = vdwg.mxu0
        %7171 = vmatprep.subr.bf16.mxu0 %v4588
        %7172 = vmatpush1.bf16.msra.mxu0 %v4587
        %7173 = vmatprep.subr.bf16.mxu0 %v4572
        %7174 = vmatpush1.bf16.msra.mxu0 %v4571
        %7175 = vmatprep.subr.bf16.mxu0 %v4556
        %7176 = vmatpush1.bf16.msra.mxu0 %v4555
        %7177 = vmatprep.subr.bf16.mxu0 %v4540
        %7178 = vmatpush1.bf16.msra.mxu0 %v4539
        %7179 = vmatprep.subr.bf16.mxu0 %v4524
        %7180 = vmatpush1.bf16.msra.mxu0 %v4523
        %7181 = vmatprep.subr.bf16.mxu0 %v4508
        %7182 = vmatpush1.bf16.msra.mxu0 %v4507
        %7183 = vmatprep.subr.bf16.mxu0 %v4492
        %7184 = vmatpush1.bf16.msra.mxu0 %v4491
        %7185 = vmatprep.subr.bf16.mxu0 %v4476
        %7186 = vmatpush1.bf16.msra.mxu0 %v4475
        %7187 = vmatprep.subr.bf16.mxu0 %v4716
        %7188 = vmatpush2.bf16.msra.mxu0 %v4715
        %7189 = vmatprep.subr.bf16.mxu0 %v4700
        %7190 = vmatpush2.bf16.msra.mxu0 %v4699
        %7191 = vmatprep.subr.bf16.mxu0 %v4684
        %7192 = vmatpush2.bf16.msra.mxu0 %v4683
        %7193 = vmatprep.subr.bf16.mxu0 %v4668
        %7194 = vmatpush2.bf16.msra.mxu0 %v4667
        %7195 = vmatprep.subr.bf16.mxu0 %v4652
        %7196 = vmatpush2.bf16.msra.mxu0 %v4651
        %7197 = vmatprep.subr.bf16.mxu0 %v4636
        %7198 = vmatpush2.bf16.msra.mxu0 %v4635
        %7199 = vmatprep.subr.bf16.mxu0 %v4620
        %7200 = vmatpush2.bf16.msra.mxu0 %v4619
        %7201 = vmatprep.subr.bf16.mxu0 %v4604
        %7202 = vmatpush2.bf16.msra.mxu0 %v4603
        %7203 = vmatprep.mubr.bf16.mxu0 %v1380
        %7204 = vmatmul.mubr.bf16.gmra.mxu0 %v1379
        %v7205 = vpop.f32.mrf.mxu0
        %v7206 = vadd.f32 0.0, %v7205
        %v7207 = vpop.f32.mrf.mxu0
        %v7208 = vadd.f32 0.0, %v7207
        %v7209 = vpop.f32.mrf.mxu0
        %v7210 = vpop.f32.mrf.mxu0
        %7211 = vdwg.mxu0
        %7212 = vmatprep.subr.bf16.mxu0 %v4844
        %7213 = vmatpush1.bf16.msra.mxu0 %v4843
        %7214 = vmatprep.subr.bf16.mxu0 %v4828
        %7215 = vmatpush1.bf16.msra.mxu0 %v4827
        %7216 = vmatprep.subr.bf16.mxu0 %v4812
        %7217 = vmatpush1.bf16.msra.mxu0 %v4811
        %7218 = vmatprep.subr.bf16.mxu0 %v4796
        %7219 = vmatpush1.bf16.msra.mxu0 %v4795
        %7220 = vmatprep.subr.bf16.mxu0 %v4780
        %7221 = vmatpush1.bf16.msra.mxu0 %v4779
        %7222 = vmatprep.subr.bf16.mxu0 %v4764
        %7223 = vmatpush1.bf16.msra.mxu0 %v4763
        %7224 = vmatprep.subr.bf16.mxu0 %v4748
        %7225 = vmatpush1.bf16.msra.mxu0 %v4747
        %7226 = vmatprep.subr.bf16.mxu0 %v4732
        %7227 = vmatpush1.bf16.msra.mxu0 %v4731
        %7228 = vmatprep.subr.bf16.mxu0 %v4972
        %7229 = vmatpush2.bf16.msra.mxu0 %v4971
        %7230 = vmatprep.subr.bf16.mxu0 %v4956
        %7231 = vmatpush2.bf16.msra.mxu0 %v4955
        %7232 = vmatprep.subr.bf16.mxu0 %v4940
        %7233 = vmatpush2.bf16.msra.mxu0 %v4939
        %7234 = vmatprep.subr.bf16.mxu0 %v4924
        %7235 = vmatpush2.bf16.msra.mxu0 %v4923
        %7236 = vmatprep.subr.bf16.mxu0 %v4908
        %7237 = vmatpush2.bf16.msra.mxu0 %v4907
        %7238 = vmatprep.subr.bf16.mxu0 %v4892
        %7239 = vmatpush2.bf16.msra.mxu0 %v4891
        %7240 = vmatprep.subr.bf16.mxu0 %v4876
        %7241 = vmatpush2.bf16.msra.mxu0 %v4875
        %7242 = vmatprep.subr.bf16.mxu0 %v4860
        %7243 = vmatpush2.bf16.msra.mxu0 %v4859
        %7244 = vmatprep.mubr.bf16.mxu0 %v1382
        %7245 = vmatmul.mubr.bf16.gmra.mxu0 %v1381
        %v7246 = vpop.f32.mrf.mxu0
        %v7247 = vadd.f32 %v7206, %v7246
        %v7248 = vpop.f32.mrf.mxu0
        %v7249 = vadd.f32 %v7208, %v7248
        %v7250 = vpop.f32.mrf.mxu0
        %v7251 = vpop.f32.mrf.mxu0
        %7252 = vdwg.mxu0
        %7253 = vmatprep.subr.bf16.mxu0 %v5100
        %7254 = vmatpush1.bf16.msra.mxu0 %v5099
        %7255 = vmatprep.subr.bf16.mxu0 %v5084
        %7256 = vmatpush1.bf16.msra.mxu0 %v5083
        %7257 = vmatprep.subr.bf16.mxu0 %v5068
        %7258 = vmatpush1.bf16.msra.mxu0 %v5067
        %7259 = vmatprep.subr.bf16.mxu0 %v5052
        %7260 = vmatpush1.bf16.msra.mxu0 %v5051
        %7261 = vmatprep.subr.bf16.mxu0 %v5036
        %7262 = vmatpush1.bf16.msra.mxu0 %v5035
        %7263 = vmatprep.subr.bf16.mxu0 %v5020
        %7264 = vmatpush1.bf16.msra.mxu0 %v5019
        %7265 = vmatprep.subr.bf16.mxu0 %v5004
        %7266 = vmatpush1.bf16.msra.mxu0 %v5003
        %7267 = vmatprep.subr.bf16.mxu0 %v4988
        %7268 = vmatpush1.bf16.msra.mxu0 %v4987
        %7269 = vmatprep.subr.bf16.mxu0 %v5228
        %7270 = vmatpush2.bf16.msra.mxu0 %v5227
        %7271 = vmatprep.subr.bf16.mxu0 %v5212
        %7272 = vmatpush2.bf16.msra.mxu0 %v5211
        %7273 = vmatprep.subr.bf16.mxu0 %v5196
        %7274 = vmatpush2.bf16.msra.mxu0 %v5195
        %7275 = vmatprep.subr.bf16.mxu0 %v5180
        %7276 = vmatpush2.bf16.msra.mxu0 %v5179
        %7277 = vmatprep.subr.bf16.mxu0 %v5164
        %7278 = vmatpush2.bf16.msra.mxu0 %v5163
        %7279 = vmatprep.subr.bf16.mxu0 %v5148
        %7280 = vmatpush2.bf16.msra.mxu0 %v5147
        %7281 = vmatprep.subr.bf16.mxu0 %v5132
        %7282 = vmatpush2.bf16.msra.mxu0 %v5131
        %7283 = vmatprep.subr.bf16.mxu0 %v5116
        %7284 = vmatpush2.bf16.msra.mxu0 %v5115
        %7285 = vmatprep.mubr.bf16.mxu0 %v1384
        %7286 = vmatmul.mubr.bf16.gmra.mxu0 %v1383
        %v7287 = vpop.f32.mrf.mxu0
        %v7288 = vadd.f32 %v7247, %v7287
        %v7289 = vpop.f32.mrf.mxu0
        %v7290 = vadd.f32 %v7249, %v7289
        %v7291 = vpop.f32.mrf.mxu0
        %v7292 = vpop.f32.mrf.mxu0
        %7293 = vdwg.mxu0
        %7294 = vmatprep.subr.bf16.mxu0 %v5356
        %7295 = vmatpush1.bf16.msra.mxu0 %v5355
        %7296 = vmatprep.subr.bf16.mxu0 %v5340
        %7297 = vmatpush1.bf16.msra.mxu0 %v5339
        %7298 = vmatprep.subr.bf16.mxu0 %v5324
        %7299 = vmatpush1.bf16.msra.mxu0 %v5323
        %7300 = vmatprep.subr.bf16.mxu0 %v5308
        %7301 = vmatpush1.bf16.msra.mxu0 %v5307
        %7302 = vmatprep.subr.bf16.mxu0 %v5292
        %7303 = vmatpush1.bf16.msra.mxu0 %v5291
        %7304 = vmatprep.subr.bf16.mxu0 %v5276
        %7305 = vmatpush1.bf16.msra.mxu0 %v5275
        %7306 = vmatprep.subr.bf16.mxu0 %v5260
        %7307 = vmatpush1.bf16.msra.mxu0 %v5259
        %7308 = vmatprep.subr.bf16.mxu0 %v5244
        %7309 = vmatpush1.bf16.msra.mxu0 %v5243
        %7310 = vmatprep.subr.bf16.mxu0 %v5484
        %7311 = vmatpush2.bf16.msra.mxu0 %v5483
        %7312 = vmatprep.subr.bf16.mxu0 %v5468
        %7313 = vmatpush2.bf16.msra.mxu0 %v5467
        %7314 = vmatprep.subr.bf16.mxu0 %v5452
        %7315 = vmatpush2.bf16.msra.mxu0 %v5451
        %7316 = vmatprep.subr.bf16.mxu0 %v5436
        %7317 = vmatpush2.bf16.msra.mxu0 %v5435
        %7318 = vmatprep.subr.bf16.mxu0 %v5420
        %7319 = vmatpush2.bf16.msra.mxu0 %v5419
        %7320 = vmatprep.subr.bf16.mxu0 %v5404
        %7321 = vmatpush2.bf16.msra.mxu0 %v5403
        %7322 = vmatprep.subr.bf16.mxu0 %v5388
        %7323 = vmatpush2.bf16.msra.mxu0 %v5387
        %7324 = vmatprep.subr.bf16.mxu0 %v5372
        %7325 = vmatpush2.bf16.msra.mxu0 %v5371
        %7326 = vmatprep.mubr.bf16.mxu0 %v1386
        %7327 = vmatmul.mubr.bf16.gmra.mxu0 %v1385
        %v7328 = vpop.f32.mrf.mxu0
        %v7329 = vadd.f32 %v7288, %v7328
        %v7330 = vpop.f32.mrf.mxu0
        %v7331 = vadd.f32 %v7290, %v7330
        %v7332 = vpop.f32.mrf.mxu0
        %v7333 = vpop.f32.mrf.mxu0
        %7334 = vdwg.mxu0
        %7335 = vmatprep.subr.bf16.mxu0 %v4590
        %7336 = vmatpush1.bf16.msra.mxu0 %v4589
        %7337 = vmatprep.subr.bf16.mxu0 %v4574
        %7338 = vmatpush1.bf16.msra.mxu0 %v4573
        %7339 = vmatprep.subr.bf16.mxu0 %v4558
        %7340 = vmatpush1.bf16.msra.mxu0 %v4557
        %7341 = vmatprep.subr.bf16.mxu0 %v4542
        %7342 = vmatpush1.bf16.msra.mxu0 %v4541
        %7343 = vmatprep.subr.bf16.mxu0 %v4526
        %7344 = vmatpush1.bf16.msra.mxu0 %v4525
        %7345 = vmatprep.subr.bf16.mxu0 %v4510
        %7346 = vmatpush1.bf16.msra.mxu0 %v4509
        %7347 = vmatprep.subr.bf16.mxu0 %v4494
        %7348 = vmatpush1.bf16.msra.mxu0 %v4493
        %7349 = vmatprep.subr.bf16.mxu0 %v4478
        %7350 = vmatpush1.bf16.msra.mxu0 %v4477
        %7351 = vmatprep.subr.bf16.mxu0 %v4718
        %7352 = vmatpush2.bf16.msra.mxu0 %v4717
        %7353 = vmatprep.subr.bf16.mxu0 %v4702
        %7354 = vmatpush2.bf16.msra.mxu0 %v4701
        %7355 = vmatprep.subr.bf16.mxu0 %v4686
        %7356 = vmatpush2.bf16.msra.mxu0 %v4685
        %7357 = vmatprep.subr.bf16.mxu0 %v4670
        %7358 = vmatpush2.bf16.msra.mxu0 %v4669
        %7359 = vmatprep.subr.bf16.mxu0 %v4654
        %7360 = vmatpush2.bf16.msra.mxu0 %v4653
        %7361 = vmatprep.subr.bf16.mxu0 %v4638
        %7362 = vmatpush2.bf16.msra.mxu0 %v4637
        %7363 = vmatprep.subr.bf16.mxu0 %v4622
        %7364 = vmatpush2.bf16.msra.mxu0 %v4621
        %7365 = vmatprep.subr.bf16.mxu0 %v4606
        %7366 = vmatpush2.bf16.msra.mxu0 %v4605
        %7367 = vmatprep.mubr.bf16.mxu0 %v1380
        %7368 = vmatmul.mubr.bf16.gmra.mxu0 %v1379
        %v7369 = vpop.f32.mrf.mxu0
        %v7370 = vadd.f32 0.0, %v7369
        %v7371 = vpop.f32.mrf.mxu0
        %v7372 = vadd.f32 0.0, %v7371
        %v7373 = vpop.f32.mrf.mxu0
        %v7374 = vpop.f32.mrf.mxu0
        %7375 = vdwg.mxu0
        %7376 = vmatprep.subr.bf16.mxu0 %v4846
        %7377 = vmatpush1.bf16.msra.mxu0 %v4845
        %7378 = vmatprep.subr.bf16.mxu0 %v4830
        %7379 = vmatpush1.bf16.msra.mxu0 %v4829
        %7380 = vmatprep.subr.bf16.mxu0 %v4814
        %7381 = vmatpush1.bf16.msra.mxu0 %v4813
        %7382 = vmatprep.subr.bf16.mxu0 %v4798
        %7383 = vmatpush1.bf16.msra.mxu0 %v4797
        %7384 = vmatprep.subr.bf16.mxu0 %v4782
        %7385 = vmatpush1.bf16.msra.mxu0 %v4781
        %7386 = vmatprep.subr.bf16.mxu0 %v4766
        %7387 = vmatpush1.bf16.msra.mxu0 %v4765
        %7388 = vmatprep.subr.bf16.mxu0 %v4750
        %7389 = vmatpush1.bf16.msra.mxu0 %v4749
        %7390 = vmatprep.subr.bf16.mxu0 %v4734
        %7391 = vmatpush1.bf16.msra.mxu0 %v4733
        %7392 = vmatprep.subr.bf16.mxu0 %v4974
        %7393 = vmatpush2.bf16.msra.mxu0 %v4973
        %7394 = vmatprep.subr.bf16.mxu0 %v4958
        %7395 = vmatpush2.bf16.msra.mxu0 %v4957
        %7396 = vmatprep.subr.bf16.mxu0 %v4942
        %7397 = vmatpush2.bf16.msra.mxu0 %v4941
        %7398 = vmatprep.subr.bf16.mxu0 %v4926
        %7399 = vmatpush2.bf16.msra.mxu0 %v4925
        %7400 = vmatprep.subr.bf16.mxu0 %v4910
        %7401 = vmatpush2.bf16.msra.mxu0 %v4909
        %7402 = vmatprep.subr.bf16.mxu0 %v4894
        %7403 = vmatpush2.bf16.msra.mxu0 %v4893
        %7404 = vmatprep.subr.bf16.mxu0 %v4878
        %7405 = vmatpush2.bf16.msra.mxu0 %v4877
        %7406 = vmatprep.subr.bf16.mxu0 %v4862
        %7407 = vmatpush2.bf16.msra.mxu0 %v4861
        %7408 = vmatprep.mubr.bf16.mxu0 %v1382
        %7409 = vmatmul.mubr.bf16.gmra.mxu0 %v1381
        %v7410 = vpop.f32.mrf.mxu0
        %v7411 = vadd.f32 %v7370, %v7410
        %v7412 = vpop.f32.mrf.mxu0
        %v7413 = vadd.f32 %v7372, %v7412
        %v7414 = vpop.f32.mrf.mxu0
        %v7415 = vpop.f32.mrf.mxu0
        %7416 = vdwg.mxu0
        %7417 = vmatprep.subr.bf16.mxu0 %v5102
        %7418 = vmatpush1.bf16.msra.mxu0 %v5101
        %7419 = vmatprep.subr.bf16.mxu0 %v5086
        %7420 = vmatpush1.bf16.msra.mxu0 %v5085
        %7421 = vmatprep.subr.bf16.mxu0 %v5070
        %7422 = vmatpush1.bf16.msra.mxu0 %v5069
        %7423 = vmatprep.subr.bf16.mxu0 %v5054
        %7424 = vmatpush1.bf16.msra.mxu0 %v5053
        %7425 = vmatprep.subr.bf16.mxu0 %v5038
        %7426 = vmatpush1.bf16.msra.mxu0 %v5037
        %7427 = vmatprep.subr.bf16.mxu0 %v5022
        %7428 = vmatpush1.bf16.msra.mxu0 %v5021
        %7429 = vmatprep.subr.bf16.mxu0 %v5006
        %7430 = vmatpush1.bf16.msra.mxu0 %v5005
        %7431 = vmatprep.subr.bf16.mxu0 %v4990
        %7432 = vmatpush1.bf16.msra.mxu0 %v4989
        %7433 = vmatprep.subr.bf16.mxu0 %v5230
        %7434 = vmatpush2.bf16.msra.mxu0 %v5229
        %7435 = vmatprep.subr.bf16.mxu0 %v5214
        %7436 = vmatpush2.bf16.msra.mxu0 %v5213
        %7437 = vmatprep.subr.bf16.mxu0 %v5198
        %7438 = vmatpush2.bf16.msra.mxu0 %v5197
        %7439 = vmatprep.subr.bf16.mxu0 %v5182
        %7440 = vmatpush2.bf16.msra.mxu0 %v5181
        %7441 = vmatprep.subr.bf16.mxu0 %v5166
        %7442 = vmatpush2.bf16.msra.mxu0 %v5165
        %7443 = vmatprep.subr.bf16.mxu0 %v5150
        %7444 = vmatpush2.bf16.msra.mxu0 %v5149
        %7445 = vmatprep.subr.bf16.mxu0 %v5134
        %7446 = vmatpush2.bf16.msra.mxu0 %v5133
        %7447 = vmatprep.subr.bf16.mxu0 %v5118
        %7448 = vmatpush2.bf16.msra.mxu0 %v5117
        %7449 = vmatprep.mubr.bf16.mxu0 %v1384
        %7450 = vmatmul.mubr.bf16.gmra.mxu0 %v1383
        %v7451 = vpop.f32.mrf.mxu0
        %v7452 = vadd.f32 %v7411, %v7451
        %v7453 = vpop.f32.mrf.mxu0
        %v7454 = vadd.f32 %v7413, %v7453
        %v7455 = vpop.f32.mrf.mxu0
        %v7456 = vpop.f32.mrf.mxu0
        %7457 = vdwg.mxu0
        %7458 = vmatprep.subr.bf16.mxu0 %v5358
        %7459 = vmatpush1.bf16.msra.mxu0 %v5357
        %7460 = vmatprep.subr.bf16.mxu0 %v5342
        %7461 = vmatpush1.bf16.msra.mxu0 %v5341
        %7462 = vmatprep.subr.bf16.mxu0 %v5326
        %7463 = vmatpush1.bf16.msra.mxu0 %v5325
        %7464 = vmatprep.subr.bf16.mxu0 %v5310
        %7465 = vmatpush1.bf16.msra.mxu0 %v5309
        %7466 = vmatprep.subr.bf16.mxu0 %v5294
        %7467 = vmatpush1.bf16.msra.mxu0 %v5293
        %7468 = vmatprep.subr.bf16.mxu0 %v5278
        %7469 = vmatpush1.bf16.msra.mxu0 %v5277
        %7470 = vmatprep.subr.bf16.mxu0 %v5262
        %7471 = vmatpush1.bf16.msra.mxu0 %v5261
        %7472 = vmatprep.subr.bf16.mxu0 %v5246
        %7473 = vmatpush1.bf16.msra.mxu0 %v5245
        %7474 = vmatprep.subr.bf16.mxu0 %v5486
        %7475 = vmatpush2.bf16.msra.mxu0 %v5485
        %7476 = vmatprep.subr.bf16.mxu0 %v5470
        %7477 = vmatpush2.bf16.msra.mxu0 %v5469
        %7478 = vmatprep.subr.bf16.mxu0 %v5454
        %7479 = vmatpush2.bf16.msra.mxu0 %v5453
        %7480 = vmatprep.subr.bf16.mxu0 %v5438
        %7481 = vmatpush2.bf16.msra.mxu0 %v5437
        %7482 = vmatprep.subr.bf16.mxu0 %v5422
        %7483 = vmatpush2.bf16.msra.mxu0 %v5421
        %7484 = vmatprep.subr.bf16.mxu0 %v5406
        %7485 = vmatpush2.bf16.msra.mxu0 %v5405
        %7486 = vmatprep.subr.bf16.mxu0 %v5390
        %7487 = vmatpush2.bf16.msra.mxu0 %v5389
        %7488 = vmatprep.subr.bf16.mxu0 %v5374
        %7489 = vmatpush2.bf16.msra.mxu0 %v5373
        %7490 = vmatprep.mubr.bf16.mxu0 %v1386
        %7491 = vmatmul.mubr.bf16.gmra.mxu0 %v1385
        %v7492 = vpop.f32.mrf.mxu0
        %v7493 = vadd.f32 %v7452, %v7492
        %v7494 = vpop.f32.mrf.mxu0
        %v7495 = vadd.f32 %v7454, %v7494
        %v7496 = vpop.f32.mrf.mxu0
        %v7497 = vpop.f32.mrf.mxu0
        %7498 = vdwg.mxu0
        %7499 = vmatprep.subr.bf16.mxu0 %v4592
        %7500 = vmatpush1.bf16.msra.mxu0 %v4591
        %7501 = vmatprep.subr.bf16.mxu0 %v4576
        %7502 = vmatpush1.bf16.msra.mxu0 %v4575
        %7503 = vmatprep.subr.bf16.mxu0 %v4560
        %7504 = vmatpush1.bf16.msra.mxu0 %v4559
        %7505 = vmatprep.subr.bf16.mxu0 %v4544
        %7506 = vmatpush1.bf16.msra.mxu0 %v4543
        %7507 = vmatprep.subr.bf16.mxu0 %v4528
        %7508 = vmatpush1.bf16.msra.mxu0 %v4527
        %7509 = vmatprep.subr.bf16.mxu0 %v4512
        %7510 = vmatpush1.bf16.msra.mxu0 %v4511
        %7511 = vmatprep.subr.bf16.mxu0 %v4496
        %7512 = vmatpush1.bf16.msra.mxu0 %v4495
        %7513 = vmatprep.subr.bf16.mxu0 %v4480
        %7514 = vmatpush1.bf16.msra.mxu0 %v4479
        %7515 = vmatprep.subr.bf16.mxu0 %v4720
        %7516 = vmatpush2.bf16.msra.mxu0 %v4719
        %7517 = vmatprep.subr.bf16.mxu0 %v4704
        %7518 = vmatpush2.bf16.msra.mxu0 %v4703
        %7519 = vmatprep.subr.bf16.mxu0 %v4688
        %7520 = vmatpush2.bf16.msra.mxu0 %v4687
        %7521 = vmatprep.subr.bf16.mxu0 %v4672
        %7522 = vmatpush2.bf16.msra.mxu0 %v4671
        %7523 = vmatprep.subr.bf16.mxu0 %v4656
        %7524 = vmatpush2.bf16.msra.mxu0 %v4655
        %7525 = vmatprep.subr.bf16.mxu0 %v4640
        %7526 = vmatpush2.bf16.msra.mxu0 %v4639
        %7527 = vmatprep.subr.bf16.mxu0 %v4624
        %7528 = vmatpush2.bf16.msra.mxu0 %v4623
        %7529 = vmatprep.subr.bf16.mxu0 %v4608
        %7530 = vmatpush2.bf16.msra.mxu0 %v4607
        %7531 = vmatprep.mubr.bf16.mxu0 %v1380
        %7532 = vmatmul.mubr.bf16.gmra.mxu0 %v1379
        %v7533 = vpop.f32.mrf.mxu0
        %v7534 = vadd.f32 0.0, %v7533
        %v7535 = vpop.f32.mrf.mxu0
        %v7536 = vadd.f32 0.0, %v7535
        %v7537 = vpop.f32.mrf.mxu0
        %v7538 = vpop.f32.mrf.mxu0
        %7539 = vdwg.mxu0
        %7540 = vmatprep.subr.bf16.mxu0 %v4848
        %7541 = vmatpush1.bf16.msra.mxu0 %v4847
        %7542 = vmatprep.subr.bf16.mxu0 %v4832
        %7543 = vmatpush1.bf16.msra.mxu0 %v4831
        %7544 = vmatprep.subr.bf16.mxu0 %v4816
        %7545 = vmatpush1.bf16.msra.mxu0 %v4815
        %7546 = vmatprep.subr.bf16.mxu0 %v4800
        %7547 = vmatpush1.bf16.msra.mxu0 %v4799
        %7548 = vmatprep.subr.bf16.mxu0 %v4784
        %7549 = vmatpush1.bf16.msra.mxu0 %v4783
        %7550 = vmatprep.subr.bf16.mxu0 %v4768
        %7551 = vmatpush1.bf16.msra.mxu0 %v4767
        %7552 = vmatprep.subr.bf16.mxu0 %v4752
        %7553 = vmatpush1.bf16.msra.mxu0 %v4751
        %7554 = vmatprep.subr.bf16.mxu0 %v4736
        %7555 = vmatpush1.bf16.msra.mxu0 %v4735
        %7556 = vmatprep.subr.bf16.mxu0 %v4976
        %7557 = vmatpush2.bf16.msra.mxu0 %v4975
        %7558 = vmatprep.subr.bf16.mxu0 %v4960
        %7559 = vmatpush2.bf16.msra.mxu0 %v4959
        %7560 = vmatprep.subr.bf16.mxu0 %v4944
        %7561 = vmatpush2.bf16.msra.mxu0 %v4943
        %7562 = vmatprep.subr.bf16.mxu0 %v4928
        %7563 = vmatpush2.bf16.msra.mxu0 %v4927
        %7564 = vmatprep.subr.bf16.mxu0 %v4912
        %7565 = vmatpush2.bf16.msra.mxu0 %v4911
        %7566 = vmatprep.subr.bf16.mxu0 %v4896
        %7567 = vmatpush2.bf16.msra.mxu0 %v4895
        %7568 = vmatprep.subr.bf16.mxu0 %v4880
        %7569 = vmatpush2.bf16.msra.mxu0 %v4879
        %7570 = vmatprep.subr.bf16.mxu0 %v4864
        %7571 = vmatpush2.bf16.msra.mxu0 %v4863
        %7572 = vmatprep.mubr.bf16.mxu0 %v1382
        %7573 = vmatmul.mubr.bf16.gmra.mxu0 %v1381
        %v7574 = vpop.f32.mrf.mxu0
        %v7575 = vadd.f32 %v7534, %v7574
        %v7576 = vpop.f32.mrf.mxu0
        %v7577 = vadd.f32 %v7536, %v7576
        %v7578 = vpop.f32.mrf.mxu0
        %v7579 = vpop.f32.mrf.mxu0
        %7580 = vdwg.mxu0
        %7581 = vmatprep.subr.bf16.mxu0 %v5104
        %7582 = vmatpush1.bf16.msra.mxu0 %v5103
        %7583 = vmatprep.subr.bf16.mxu0 %v5088
        %7584 = vmatpush1.bf16.msra.mxu0 %v5087
        %7585 = vmatprep.subr.bf16.mxu0 %v5072
        %7586 = vmatpush1.bf16.msra.mxu0 %v5071
        %7587 = vmatprep.subr.bf16.mxu0 %v5056
        %7588 = vmatpush1.bf16.msra.mxu0 %v5055
        %7589 = vmatprep.subr.bf16.mxu0 %v5040
        %7590 = vmatpush1.bf16.msra.mxu0 %v5039
        %7591 = vmatprep.subr.bf16.mxu0 %v5024
        %7592 = vmatpush1.bf16.msra.mxu0 %v5023
        %7593 = vmatprep.subr.bf16.mxu0 %v5008
        %7594 = vmatpush1.bf16.msra.mxu0 %v5007
        %7595 = vmatprep.subr.bf16.mxu0 %v4992
        %7596 = vmatpush1.bf16.msra.mxu0 %v4991
        %7597 = vmatprep.subr.bf16.mxu0 %v5232
        %7598 = vmatpush2.bf16.msra.mxu0 %v5231
        %7599 = vmatprep.subr.bf16.mxu0 %v5216
        %7600 = vmatpush2.bf16.msra.mxu0 %v5215
        %7601 = vmatprep.subr.bf16.mxu0 %v5200
        %7602 = vmatpush2.bf16.msra.mxu0 %v5199
        %7603 = vmatprep.subr.bf16.mxu0 %v5184
        %7604 = vmatpush2.bf16.msra.mxu0 %v5183
        %7605 = vmatprep.subr.bf16.mxu0 %v5168
        %7606 = vmatpush2.bf16.msra.mxu0 %v5167
        %7607 = vmatprep.subr.bf16.mxu0 %v5152
        %7608 = vmatpush2.bf16.msra.mxu0 %v5151
        %7609 = vmatprep.subr.bf16.mxu0 %v5136
        %7610 = vmatpush2.bf16.msra.mxu0 %v5135
        %7611 = vmatprep.subr.bf16.mxu0 %v5120
        %7612 = vmatpush2.bf16.msra.mxu0 %v5119
        %7613 = vmatprep.mubr.bf16.mxu0 %v1384
        %7614 = vmatmul.mubr.bf16.gmra.mxu0 %v1383
        %v7615 = vpop.f32.mrf.mxu0
        %v7616 = vadd.f32 %v7575, %v7615
        %v7617 = vpop.f32.mrf.mxu0
        %v7618 = vadd.f32 %v7577, %v7617
        %v7619 = vpop.f32.mrf.mxu0
        %v7620 = vpop.f32.mrf.mxu0
        %7621 = vdwg.mxu0
        %7622 = vmatprep.subr.bf16.mxu0 %v5360
        %7623 = vmatpush1.bf16.msra.mxu0 %v5359
        %7624 = vmatprep.subr.bf16.mxu0 %v5344
        %7625 = vmatpush1.bf16.msra.mxu0 %v5343
        %7626 = vmatprep.subr.bf16.mxu0 %v5328
        %7627 = vmatpush1.bf16.msra.mxu0 %v5327
        %7628 = vmatprep.subr.bf16.mxu0 %v5312
        %7629 = vmatpush1.bf16.msra.mxu0 %v5311
        %7630 = vmatprep.subr.bf16.mxu0 %v5296
        %7631 = vmatpush1.bf16.msra.mxu0 %v5295
        %7632 = vmatprep.subr.bf16.mxu0 %v5280
        %7633 = vmatpush1.bf16.msra.mxu0 %v5279
        %7634 = vmatprep.subr.bf16.mxu0 %v5264
        %7635 = vmatpush1.bf16.msra.mxu0 %v5263
        %7636 = vmatprep.subr.bf16.mxu0 %v5248
        %7637 = vmatpush1.bf16.msra.mxu0 %v5247
        %7638 = vmatprep.subr.bf16.mxu0 %v5488
        %7639 = vmatpush2.bf16.msra.mxu0 %v5487
        %7640 = vmatprep.subr.bf16.mxu0 %v5472
        %7641 = vmatpush2.bf16.msra.mxu0 %v5471
        %7642 = vmatprep.subr.bf16.mxu0 %v5456
        %7643 = vmatpush2.bf16.msra.mxu0 %v5455
        %7644 = vmatprep.subr.bf16.mxu0 %v5440
        %7645 = vmatpush2.bf16.msra.mxu0 %v5439
        %7646 = vmatprep.subr.bf16.mxu0 %v5424
        %7647 = vmatpush2.bf16.msra.mxu0 %v5423
        %7648 = vmatprep.subr.bf16.mxu0 %v5408
        %7649 = vmatpush2.bf16.msra.mxu0 %v5407
        %7650 = vmatprep.subr.bf16.mxu0 %v5392
        %7651 = vmatpush2.bf16.msra.mxu0 %v5391
        %7652 = vmatprep.subr.bf16.mxu0 %v5376
        %7653 = vmatpush2.bf16.msra.mxu0 %v5375
        %7654 = vmatprep.mubr.bf16.mxu0 %v1386
        %7655 = vmatmul.mubr.bf16.gmra.mxu0 %v1385
        %v7656 = vpop.f32.mrf.mxu0
        %v7657 = vadd.f32 %v7616, %v7656
        %v7658 = vpop.f32.mrf.mxu0
        %v7659 = vadd.f32 %v7618, %v7658
        %v7660 = vpop.f32.mrf.mxu0
        %v7661 = vpop.f32.mrf.mxu0
        %7662 = vdwg.mxu0
        %7663 = vmatprep.subr.bf16.mxu0 %v4594
        %7664 = vmatpush1.bf16.msra.mxu0 %v4593
        %7665 = vmatprep.subr.bf16.mxu0 %v4578
        %7666 = vmatpush1.bf16.msra.mxu0 %v4577
        %7667 = vmatprep.subr.bf16.mxu0 %v4562
        %7668 = vmatpush1.bf16.msra.mxu0 %v4561
        %7669 = vmatprep.subr.bf16.mxu0 %v4546
        %7670 = vmatpush1.bf16.msra.mxu0 %v4545
        %7671 = vmatprep.subr.bf16.mxu0 %v4530
        %7672 = vmatpush1.bf16.msra.mxu0 %v4529
        %7673 = vmatprep.subr.bf16.mxu0 %v4514
        %7674 = vmatpush1.bf16.msra.mxu0 %v4513
        %7675 = vmatprep.subr.bf16.mxu0 %v4498
        %7676 = vmatpush1.bf16.msra.mxu0 %v4497
        %7677 = vmatprep.subr.bf16.mxu0 %v4482
        %7678 = vmatpush1.bf16.msra.mxu0 %v4481
        %7679 = vmatprep.subr.bf16.mxu0 %v4722
        %7680 = vmatpush2.bf16.msra.mxu0 %v4721
        %7681 = vmatprep.subr.bf16.mxu0 %v4706
        %7682 = vmatpush2.bf16.msra.mxu0 %v4705
        %7683 = vmatprep.subr.bf16.mxu0 %v4690
        %7684 = vmatpush2.bf16.msra.mxu0 %v4689
        %7685 = vmatprep.subr.bf16.mxu0 %v4674
        %7686 = vmatpush2.bf16.msra.mxu0 %v4673
        %7687 = vmatprep.subr.bf16.mxu0 %v4658
        %7688 = vmatpush2.bf16.msra.mxu0 %v4657
        %7689 = vmatprep.subr.bf16.mxu0 %v4642
        %7690 = vmatpush2.bf16.msra.mxu0 %v4641
        %7691 = vmatprep.subr.bf16.mxu0 %v4626
        %7692 = vmatpush2.bf16.msra.mxu0 %v4625
        %7693 = vmatprep.subr.bf16.mxu0 %v4610
        %7694 = vmatpush2.bf16.msra.mxu0 %v4609
        %7695 = vmatprep.mubr.bf16.mxu0 %v1380
        %7696 = vmatmul.mubr.bf16.gmra.mxu0 %v1379
        %v7697 = vpop.f32.mrf.mxu0
        %v7698 = vadd.f32 0.0, %v7697
        %v7699 = vpop.f32.mrf.mxu0
        %v7700 = vadd.f32 0.0, %v7699
        %v7701 = vpop.f32.mrf.mxu0
        %v7702 = vpop.f32.mrf.mxu0
        %7703 = vdwg.mxu0
        %7704 = vmatprep.subr.bf16.mxu0 %v4850
        %7705 = vmatpush1.bf16.msra.mxu0 %v4849
        %7706 = vmatprep.subr.bf16.mxu0 %v4834
        %7707 = vmatpush1.bf16.msra.mxu0 %v4833
        %7708 = vmatprep.subr.bf16.mxu0 %v4818
        %7709 = vmatpush1.bf16.msra.mxu0 %v4817
        %7710 = vmatprep.subr.bf16.mxu0 %v4802
        %7711 = vmatpush1.bf16.msra.mxu0 %v4801
        %7712 = vmatprep.subr.bf16.mxu0 %v4786
        %7713 = vmatpush1.bf16.msra.mxu0 %v4785
        %7714 = vmatprep.subr.bf16.mxu0 %v4770
        %7715 = vmatpush1.bf16.msra.mxu0 %v4769
        %7716 = vmatprep.subr.bf16.mxu0 %v4754
        %7717 = vmatpush1.bf16.msra.mxu0 %v4753
        %7718 = vmatprep.subr.bf16.mxu0 %v4738
        %7719 = vmatpush1.bf16.msra.mxu0 %v4737
        %7720 = vmatprep.subr.bf16.mxu0 %v4978
        %7721 = vmatpush2.bf16.msra.mxu0 %v4977
        %7722 = vmatprep.subr.bf16.mxu0 %v4962
        %7723 = vmatpush2.bf16.msra.mxu0 %v4961
        %7724 = vmatprep.subr.bf16.mxu0 %v4946
        %7725 = vmatpush2.bf16.msra.mxu0 %v4945
        %7726 = vmatprep.subr.bf16.mxu0 %v4930
        %7727 = vmatpush2.bf16.msra.mxu0 %v4929
        %7728 = vmatprep.subr.bf16.mxu0 %v4914
        %7729 = vmatpush2.bf16.msra.mxu0 %v4913
        %7730 = vmatprep.subr.bf16.mxu0 %v4898
        %7731 = vmatpush2.bf16.msra.mxu0 %v4897
        %7732 = vmatprep.subr.bf16.mxu0 %v4882
        %7733 = vmatpush2.bf16.msra.mxu0 %v4881
        %7734 = vmatprep.subr.bf16.mxu0 %v4866
        %7735 = vmatpush2.bf16.msra.mxu0 %v4865
        %7736 = vmatprep.mubr.bf16.mxu0 %v1382
        %7737 = vmatmul.mubr.bf16.gmra.mxu0 %v1381
        %v7738 = vpop.f32.mrf.mxu0
        %v7739 = vadd.f32 %v7698, %v7738
        %v7740 = vpop.f32.mrf.mxu0
        %v7741 = vadd.f32 %v7700, %v7740
        %v7742 = vpop.f32.mrf.mxu0
        %v7743 = vpop.f32.mrf.mxu0
        %7744 = vdwg.mxu0
        %7745 = vmatprep.subr.bf16.mxu0 %v5106
        %7746 = vmatpush1.bf16.msra.mxu0 %v5105
        %7747 = vmatprep.subr.bf16.mxu0 %v5090
        %7748 = vmatpush1.bf16.msra.mxu0 %v5089
        %7749 = vmatprep.subr.bf16.mxu0 %v5074
        %7750 = vmatpush1.bf16.msra.mxu0 %v5073
        %7751 = vmatprep.subr.bf16.mxu0 %v5058
        %7752 = vmatpush1.bf16.msra.mxu0 %v5057
        %7753 = vmatprep.subr.bf16.mxu0 %v5042
        %7754 = vmatpush1.bf16.msra.mxu0 %v5041
        %7755 = vmatprep.subr.bf16.mxu0 %v5026
        %7756 = vmatpush1.bf16.msra.mxu0 %v5025
        %7757 = vmatprep.subr.bf16.mxu0 %v5010
        %7758 = vmatpush1.bf16.msra.mxu0 %v5009
        %7759 = vmatprep.subr.bf16.mxu0 %v4994
        %7760 = vmatpush1.bf16.msra.mxu0 %v4993
        %7761 = vmatprep.subr.bf16.mxu0 %v5234
        %7762 = vmatpush2.bf16.msra.mxu0 %v5233
        %7763 = vmatprep.subr.bf16.mxu0 %v5218
        %7764 = vmatpush2.bf16.msra.mxu0 %v5217
        %7765 = vmatprep.subr.bf16.mxu0 %v5202
        %7766 = vmatpush2.bf16.msra.mxu0 %v5201
        %7767 = vmatprep.subr.bf16.mxu0 %v5186
        %7768 = vmatpush2.bf16.msra.mxu0 %v5185
        %7769 = vmatprep.subr.bf16.mxu0 %v5170
        %7770 = vmatpush2.bf16.msra.mxu0 %v5169
        %7771 = vmatprep.subr.bf16.mxu0 %v5154
        %7772 = vmatpush2.bf16.msra.mxu0 %v5153
        %7773 = vmatprep.subr.bf16.mxu0 %v5138
        %7774 = vmatpush2.bf16.msra.mxu0 %v5137
        %7775 = vmatprep.subr.bf16.mxu0 %v5122
        %7776 = vmatpush2.bf16.msra.mxu0 %v5121
        %7777 = vmatprep.mubr.bf16.mxu0 %v1384
        %7778 = vmatmul.mubr.bf16.gmra.mxu0 %v1383
        %v7779 = vpop.f32.mrf.mxu0
        %v7780 = vadd.f32 %v7739, %v7779
        %v7781 = vpop.f32.mrf.mxu0
        %v7782 = vadd.f32 %v7741, %v7781
        %v7783 = vpop.f32.mrf.mxu0
        %v7784 = vpop.f32.mrf.mxu0
        %7785 = vdwg.mxu0
        %7786 = vmatprep.subr.bf16.mxu0 %v5362
        %7787 = vmatpush1.bf16.msra.mxu0 %v5361
        %7788 = vmatprep.subr.bf16.mxu0 %v5346
        %7789 = vmatpush1.bf16.msra.mxu0 %v5345
        %7790 = vmatprep.subr.bf16.mxu0 %v5330
        %7791 = vmatpush1.bf16.msra.mxu0 %v5329
        %7792 = vmatprep.subr.bf16.mxu0 %v5314
        %7793 = vmatpush1.bf16.msra.mxu0 %v5313
        %7794 = vmatprep.subr.bf16.mxu0 %v5298
        %7795 = vmatpush1.bf16.msra.mxu0 %v5297
        %7796 = vmatprep.subr.bf16.mxu0 %v5282
        %7797 = vmatpush1.bf16.msra.mxu0 %v5281
        %7798 = vmatprep.subr.bf16.mxu0 %v5266
        %7799 = vmatpush1.bf16.msra.mxu0 %v5265
        %7800 = vmatprep.subr.bf16.mxu0 %v5250
        %7801 = vmatpush1.bf16.msra.mxu0 %v5249
        %7802 = vmatprep.subr.bf16.mxu0 %v5490
        %7803 = vmatpush2.bf16.msra.mxu0 %v5489
        %7804 = vmatprep.subr.bf16.mxu0 %v5474
        %7805 = vmatpush2.bf16.msra.mxu0 %v5473
        %7806 = vmatprep.subr.bf16.mxu0 %v5458
        %7807 = vmatpush2.bf16.msra.mxu0 %v5457
        %7808 = vmatprep.subr.bf16.mxu0 %v5442
        %7809 = vmatpush2.bf16.msra.mxu0 %v5441
        %7810 = vmatprep.subr.bf16.mxu0 %v5426
        %7811 = vmatpush2.bf16.msra.mxu0 %v5425
        %7812 = vmatprep.subr.bf16.mxu0 %v5410
        %7813 = vmatpush2.bf16.msra.mxu0 %v5409
        %7814 = vmatprep.subr.bf16.mxu0 %v5394
        %7815 = vmatpush2.bf16.msra.mxu0 %v5393
        %7816 = vmatprep.subr.bf16.mxu0 %v5378
        %7817 = vmatpush2.bf16.msra.mxu0 %v5377
        %7818 = vmatprep.mubr.bf16.mxu0 %v1386
        %7819 = vmatmul.mubr.bf16.gmra.mxu0 %v1385
        %v7820 = vpop.f32.mrf.mxu0
        %v7821 = vadd.f32 %v7780, %v7820
        %v7822 = vpop.f32.mrf.mxu0
        %v7823 = vadd.f32 %v7782, %v7822
        %v7824 = vpop.f32.mrf.mxu0
        %v7825 = vpop.f32.mrf.mxu0
        %7826 = vdwg.mxu0
        %v7827 = vadd.f32 %v323, %v6673
        %v7828 = vadd.f32 %v324, %v6675
        %v7829 = vadd.f32 %v325, %v6837
        %v7830 = vadd.f32 %v326, %v6839
        %v7831 = vadd.f32 %v327, %v7001
        %v7832 = vadd.f32 %v328, %v7003
        %v7833 = vadd.f32 %v329, %v7165
        %v7834 = vadd.f32 %v330, %v7167
        %v7835 = vadd.f32 %v331, %v7329
        %v7836 = vadd.f32 %v332, %v7331
        %v7837 = vadd.f32 %v333, %v7493
        %v7838 = vadd.f32 %v334, %v7495
        %v7839 = vadd.f32 %v335, %v7657
        %v7840 = vadd.f32 %v336, %v7659
        %v7841 = vadd.f32 %v337, %v7821
        %v7842 = vadd.f32 %v338, %v7823
        %7843 = vst [vmem:[#allocation2] sm:$0xff] %v7827
        %7844 = vst [vmem:[#allocation2 + $0x8] sm:$0xff] %v7828
        %7845 = vst [vmem:[#allocation2 + $0x10] sm:$0xff] %v7829
        %7846 = vst [vmem:[#allocation2 + $0x18] sm:$0xff] %v7830
        %7847 = vst [vmem:[#allocation2 + $0x20] sm:$0xff] %v7831
        %7848 = vst [vmem:[#allocation2 + $0x28] sm:$0xff] %v7832
        %7849 = vst [vmem:[#allocation2 + $0x30] sm:$0xff] %v7833
        %7850 = vst [vmem:[#allocation2 + $0x38] sm:$0xff] %v7834
        %7851 = vst [vmem:[#allocation2 + $0x40] sm:$0xff] %v7835
        %7852 = vst [vmem:[#allocation2 + $0x48] sm:$0xff] %v7836
        %7853 = vst [vmem:[#allocation2 + $0x50] sm:$0xff] %v7837
        %7854 = vst [vmem:[#allocation2 + $0x58] sm:$0xff] %v7838
        %7855 = vst [vmem:[#allocation2 + $0x60] sm:$0xff] %v7839
        %7856 = vst [vmem:[#allocation2 + $0x68] sm:$0xff] %v7840
        %7857 = vst [vmem:[#allocation2 + $0x70] sm:$0xff] %v7841
        %7858 = vst [vmem:[#allocation2 + $0x78] sm:$0xff] %v7842
        // Predicated region
        $region45: #{decoder_forward.5} parent=31 // pred_check
          %p7859 = pneg %p303
        $region46: #{decoder_forward.5} parent=31 // pred_check_branch
          %7861 = sbr.rel (%p7859) target = $region48
        $region47: #{decoder_forward.5} parent=31 // pred_region
          %v7862 = vld [vmem:[#allocation2] sm:$0xff]
          %v7863 = vld [vmem:[#allocation2 + $0x8] sm:$0xff]
          %v7864 = vld [vmem:[#allocation2 + $0x10] sm:$0xff]
          %v7865 = vld [vmem:[#allocation2 + $0x18] sm:$0xff]
          %v7866 = vld [vmem:[#allocation2 + $0x20] sm:$0xff]
          %v7867 = vld [vmem:[#allocation2 + $0x28] sm:$0xff]
          %v7868 = vld [vmem:[#allocation2 + $0x30] sm:$0xff]
          %v7869 = vld [vmem:[#allocation2 + $0x38] sm:$0xff]
          %v7870 = vld [vmem:[#allocation2 + $0x40] sm:$0xff]
          %v7871 = vld [vmem:[#allocation2 + $0x48] sm:$0xff]
          %v7872 = vld [vmem:[#allocation2 + $0x50] sm:$0xff]
          %v7873 = vld [vmem:[#allocation2 + $0x58] sm:$0xff]
          %v7874 = vld [vmem:[#allocation2 + $0x60] sm:$0xff]
          %v7875 = vld [vmem:[#allocation2 + $0x68] sm:$0xff]
          %v7876 = vld [vmem:[#allocation2 + $0x70] sm:$0xff]
          %v7877 = vld [vmem:[#allocation2 + $0x78] sm:$0xff]
          %v7878 = vld [vmem:[%s239] sm:$0xff]
          %v7879 = vld [vmem:[%s239 + $0x8] sm:$0xff]
          %v7882 = vlaneseq
          %v7883 = vshrl.u32 %v7882, 7
          %v7884 = vsub.s32 0, %v7883
          %v7885 = vrot.slane %v7878, %v7884
          %v7886 = vlaneseq
          %v7887 = vshrl.u32 %v7886, 7
          %v7888 = vsub.s32 1, %v7887
          %v7889 = vrot.slane %v7878, %v7888
          %v7890 = vlaneseq
          %v7891 = vshrl.u32 %v7890, 7
          %v7892 = vsub.s32 2, %v7891
          %v7893 = vrot.slane %v7878, %v7892
          %v7894 = vlaneseq
          %v7895 = vshrl.u32 %v7894, 7
          %v7896 = vsub.s32 3, %v7895
          %v7897 = vrot.slane %v7878, %v7896
          %v7898 = vlaneseq
          %v7899 = vshrl.u32 %v7898, 7
          %v7900 = vsub.s32 4, %v7899
          %v7901 = vrot.slane %v7878, %v7900
          %v7902 = vlaneseq
          %v7903 = vshrl.u32 %v7902, 7
          %v7904 = vsub.s32 5, %v7903
          %v7905 = vrot.slane %v7878, %v7904
          %v7906 = vlaneseq
          %v7907 = vshrl.u32 %v7906, 7
          %v7908 = vsub.s32 6, %v7907
          %v7909 = vrot.slane %v7878, %v7908
          %v7910 = vlaneseq
          %v7911 = vshrl.u32 %v7910, 7
          %v7912 = vsub.s32 7, %v7911
          %v7913 = vrot.slane %v7878, %v7912
          %v7914 = vlaneseq
          %v7915 = vshrl.u32 %v7914, 7
          %v7916 = vsub.s32 0, %v7915
          %v7917 = vrot.slane %v7879, %v7916
          %v7918 = vlaneseq
          %v7919 = vshrl.u32 %v7918, 7
          %v7920 = vsub.s32 1, %v7919
          %v7921 = vrot.slane %v7879, %v7920
          %v7922 = vlaneseq
          %v7923 = vshrl.u32 %v7922, 7
          %v7924 = vsub.s32 2, %v7923
          %v7925 = vrot.slane %v7879, %v7924
          %v7926 = vlaneseq
          %v7927 = vshrl.u32 %v7926, 7
          %v7928 = vsub.s32 3, %v7927
          %v7929 = vrot.slane %v7879, %v7928
          %v7930 = vlaneseq
          %v7931 = vshrl.u32 %v7930, 7
          %v7932 = vsub.s32 4, %v7931
          %v7933 = vrot.slane %v7879, %v7932
          %v7934 = vlaneseq
          %v7935 = vshrl.u32 %v7934, 7
          %v7936 = vsub.s32 5, %v7935
          %v7937 = vrot.slane %v7879, %v7936
          %v7938 = vlaneseq
          %v7939 = vshrl.u32 %v7938, 7
          %v7940 = vsub.s32 6, %v7939
          %v7941 = vrot.slane %v7879, %v7940
          %v7942 = vlaneseq
          %v7943 = vshrl.u32 %v7942, 7
          %v7944 = vsub.s32 7, %v7943
          %v7945 = vrot.slane %v7879, %v7944
          %v7962 = vadd.f32 %v7862, %v7885
          %v7963 = vadd.f32 %v7863, %v7889
          %v7964 = vadd.f32 %v7864, %v7893
          %v7965 = vadd.f32 %v7865, %v7897
          %v7966 = vadd.f32 %v7866, %v7901
          %v7967 = vadd.f32 %v7867, %v7905
          %v7968 = vadd.f32 %v7868, %v7909
          %v7969 = vadd.f32 %v7869, %v7913
          %v7970 = vadd.f32 %v7870, %v7917
          %v7971 = vadd.f32 %v7871, %v7921
          %v7972 = vadd.f32 %v7872, %v7925
          %v7973 = vadd.f32 %v7873, %v7929
          %v7974 = vadd.f32 %v7874, %v7933
          %v7975 = vadd.f32 %v7875, %v7937
          %v7976 = vadd.f32 %v7876, %v7941
          %v7977 = vadd.f32 %v7877, %v7945
          %v7978 = vmax.f32 %v7962, 0.0
          %v7979 = vmax.f32 %v7963, 0.0
          %v7980 = vmax.f32 %v7964, 0.0
          %v7981 = vmax.f32 %v7965, 0.0
          %v7982 = vmax.f32 %v7966, 0.0
          %v7983 = vmax.f32 %v7967, 0.0
          %v7984 = vmax.f32 %v7968, 0.0
          %v7985 = vmax.f32 %v7969, 0.0
          %v7986 = vmax.f32 %v7970, 0.0
          %v7987 = vmax.f32 %v7971, 0.0
          %v7988 = vmax.f32 %v7972, 0.0
          %v7989 = vmax.f32 %v7973, 0.0
          %v7990 = vmax.f32 %v7974, 0.0
          %v7991 = vmax.f32 %v7975, 0.0
          %v7992 = vmax.f32 %v7976, 0.0
          %v7993 = vmax.f32 %v7977, 0.0
          %v7994 = vpack.c.bf16 %v7978, %v7978
          %v7995 = vpack.c.bf16 %v7979, %v7979
          %v7996 = vpack.c.bf16 %v7980, %v7980
          %v7997 = vpack.c.bf16 %v7981, %v7981
          %v7998 = vpack.c.bf16 %v7982, %v7982
          %v7999 = vpack.c.bf16 %v7983, %v7983
          %v8000 = vpack.c.bf16 %v7984, %v7984
          %v8001 = vpack.c.bf16 %v7985, %v7985
          %v8002 = vpack.c.bf16 %v7986, %v7986
          %v8003 = vpack.c.bf16 %v7987, %v7987
          %v8004 = vpack.c.bf16 %v7988, %v7988
          %v8005 = vpack.c.bf16 %v7989, %v7989
          %v8006 = vpack.c.bf16 %v7990, %v7990
          %v8007 = vpack.c.bf16 %v7991, %v7991
          %v8008 = vpack.c.bf16 %v7992, %v7992
          %v8009 = vpack.c.bf16 %v7993, %v7993
          %v8026 = vunpack.c.l.b16 %v7994
          %v8027 = vunpack.c.l.b16 %v7995
          %v8028 = vunpack.c.l.b16 %v7996
          %v8029 = vunpack.c.l.b16 %v7997
          %v8030 = vunpack.c.l.b16 %v7998
          %v8031 = vunpack.c.l.b16 %v7999
          %v8032 = vunpack.c.l.b16 %v8000
          %v8033 = vunpack.c.l.b16 %v8001
          %v8034 = vunpack.c.l.b16 %v8002
          %v8035 = vunpack.c.l.b16 %v8003
          %v8036 = vunpack.c.l.b16 %v8004
          %v8037 = vunpack.c.l.b16 %v8005
          %v8038 = vunpack.c.l.b16 %v8006
          %v8039 = vunpack.c.l.b16 %v8007
          %v8040 = vunpack.c.l.b16 %v8008
          %v8041 = vunpack.c.l.b16 %v8009
          %v8042 = vpack.c.b16 %v8027, %v8026
          %v8043 = vpack.c.b16 %v8029, %v8028
          %v8044 = vpack.c.b16 %v8031, %v8030
          %v8045 = vpack.c.b16 %v8033, %v8032
          %v8046 = vpack.c.b16 %v8035, %v8034
          %v8047 = vpack.c.b16 %v8037, %v8036
          %v8048 = vpack.c.b16 %v8039, %v8038
          %v8049 = vpack.c.b16 %v8041, %v8040
          %8058 = vst [vmem:[%s301] sm:$0xff] %v8042
          %8059 = vst [vmem:[%s301 + $0x8] sm:$0xff] %v8043
          %8060 = vst [vmem:[%s301 + $0x10] sm:$0xff] %v8044
          %8061 = vst [vmem:[%s301 + $0x18] sm:$0xff] %v8045
          %8062 = vst [vmem:[%s301 + $0x20] sm:$0xff] %v8046
          %8063 = vst [vmem:[%s301 + $0x28] sm:$0xff] %v8047
          %8064 = vst [vmem:[%s301 + $0x30] sm:$0xff] %v8048
          %8065 = vst [vmem:[%s301 + $0x38] sm:$0xff] %v8049
        $region48: #{decoder_forward.5} parent=31 // pred_fallthru
          _
        %s8066 = smul.u32 16, %s26
        %p8067 = scmp.lt.s32.totalorder %s25, 0
        %s8068 = scalar_select %p8067, %s25, 0
        %p8069 = scmp.lt.s32.totalorder %s8066, 511
        %s8070 = scalar_select %p8069, %s8066, 511
        %s8071 = smul.addr %s8068, 512
        %s8072 = sadd.s32 %s8070, %s8071
        %s8073 = smul.addr %s8072, 4
        %s8074 = scalar_lea.vmem %s3, %s8073
        // Predicated region
        $region49: #{decoder_forward.5} parent=31 // pred_check
          %p8075 = pneg %p141
        $region50: #{decoder_forward.5} parent=31 // pred_check_branch
          %8077 = sbr.rel (%p8075) target = $region52
        $region51: #{decoder_forward.5} parent=31 // pred_region
          %s8078 = smul.u32 16, %s26
        $region52: #{decoder_forward.5} parent=31 // pred_fallthru
          _
      $region32: #{decoder_forward.5} parent=5 // pred_fallthru
        _
      %p8079 = scmp.le.s32.totalorder 2, %s15
      // Predicated region
      $region53: #{decoder_forward.5} parent=5 // pred_check
        %p8080 = pneg %p8079
      $region54: #{decoder_forward.5} parent=5 // pred_check_branch
        %8082 = sbr.rel (%p8080) target = $region56
      $region55: #{decoder_forward.5} parent=5 // pred_region
        %s8083 = ssub.s32 %s15, 2
        // Predicated region
        $region57: #{decoder_forward.5} parent=55 // pred_check
          %p8084 = pneg %p147
        $region58: #{decoder_forward.5} parent=55 // pred_check_branch
          %8086 = sbr.rel (%p8084) target = $region60
        $region59: #{decoder_forward.5} parent=55 // pred_region
          %s8087 = smul.u32 16, %s29
          %p8088 = scmp.lt.s32.totalorder %s28, 0
          %s8089 = scalar_select %p8088, %s28, 0
          %p8090 = scmp.lt.s32.totalorder %s8087, 511
          %s8091 = scalar_select %p8090, %s8087, 511
          %s8092 = smul.addr %s8089, 512
          %s8093 = sadd.s32 %s8091, %s8092
          %s8094 = smul.addr %s8093, 4
          %s8095 = scalar_lea.vmem %s3, %s8094
        $region60: #{decoder_forward.5} parent=55 // pred_fallthru
          _
      $region56: #{decoder_forward.5} parent=5 // pred_fallthru
        _
    $region6: #{decoder_forward.5} parent=1 // loop_footer
      %s19 = sadd.s32 1, %s15
    $region7: #{decoder_forward.5} parent=1 // loop_footer_branch
      %14 = sbr.rel target = $region3
    $region8: #{decoder_forward.5} parent=1 // loop_exit
      _
    %8096 = vsyncpa [#allocation4], 1
    %s8097 = scalar_lea.sflag [#allocation4], 1
    %8098 = vsyncpa %s8097, 1
    %8099 = vsyncpa [#allocation6], 1
    %s8100 = scalar_lea.sflag [#allocation6], 1
    %8101 = vsyncpa %s8100, 1

// kernel: decoder_forward.7
$region0: #{decoder_forward.7}
  #allocation0 [shape = 'u32[]', space=smem, size = 0x4, offset = 0x4, fixed_abs, tag = 'smem constant byte address 0x4 - core index']
  #allocation1 [shape = 'u32[144,128]{1,0:T(1,128)}', space=vmem, size = 0x12000, scoped, tag = 'internal scratch']
  #allocation2 [shape = 'f32[256,128]{1,0:T(8,128)}', space=vmem, size = 0x20000, scoped, tag = 'scratch operand']
  %s0 = inlined_call_operand.vmem [shape: bf16[8192,64], index: 0, kind: input, shape index: {}]
  %s1 = inlined_call_operand.vmem [shape: bf16[64,128], index: 1, kind: input, shape index: {}]
  %s2 = inlined_call_operand.vmem [shape: f32[1,128], index: 2, kind: input, shape index: {}]
  %s3 = inlined_call_operand.vmem [shape: f32[8192,128], index: 3, kind: output, shape index: {}]
  %s4 = sld [smem:[#allocation0]]
  $region53: #{decoder_forward.7} parent=0
    _
  %s6 = ssub.s32 1, %s4
  %s7 = scalar_select 0, %s6, %s4
  loop: start=0, step=1, limit=34
  $region2: #{decoder_forward.7} parent=0 // loop_pre_header
    _
  $region3: #{decoder_forward.7} parent=0 // loop_header
    %s9 = sphi 0, %s13
    %p10 = scmp.ge.s32.totalorder %s9, 34
    %s16 = sphi 0, %s35
    %s17 = sphi 0, %s31
    %s18 = sphi 0, %s27
    %s19 = sphi 0, %s16
    %s20 = sphi 0, %s17
    %s21 = sphi 0, %s18
    %s22 = sphi 0, %s19
    %s23 = sphi 0, %s20
    %s24 = sphi 0, %s21
    %s40 = sphi 0, %s42
    %s43 = sphi 0, %s40
    %s44 = sphi 0, %s43
    %s60 = sphi 0, %s44
    %s68 = sphi 0, %s70
    %s71 = sphi 0, %s68
    %s72 = sphi 0, %s71
    %s88 = sphi 0, %s72
    %s94 = sphi 0, %s96
    %s97 = sphi 0, %s94
    %s98 = sphi 0, %s97
    %s114 = sphi 0, %s98
    %s122 = sphi 0, %s124
    %s125 = sphi 0, %s122
    %s126 = sphi 0, %s125
    %s142 = sphi 0, %s126
  $region4: #{decoder_forward.7} parent=0 // loop_header_branch
    %12 = sbr.rel (%p10) target = $region8
  $region5: #{decoder_forward.7} parent=0 // loop_body
    %s14 = ssub.s32 %s9, 1
    %s15 = ssub.s32 %s9, 2
    %s25 = sadd.s32 1, %s18
    %p26 = scmp.ge.s32.totalorder %s25, 1
    %s27 = scalar_select %p26, 0, %s25
    %s28 = sadd.s32 1, %s17
    %s29 = scalar_select %p26, %s28, %s17
    %p30 = scmp.ge.s32.totalorder %s29, 1
    %s31 = scalar_select %p30, 0, %s29
    %s32 = sadd.s32 1, %s16
    %s33 = scalar_select %p30, %s32, %s16
    %p34 = scmp.ge.s32.totalorder %s33, 32
    %s35 = scalar_select %p34, 0, %s33
    %s36 = ssub.s32 %s16, %s35
    %s37 = ssub.s32 %s18, %s27
    %s38 = sor.u32 %s36, %s37
    %p39 = scmp.eq.s32.totalorder %s38, 0
    %s41 = sadd.s32 %s40, 1
    %s42 = scalar_select %p39, %s40, %s41
    %p45 = pneg %p39
    %p46 = scmp.eq.s32.totalorder %s9, 31
    %p47 = por %p45, %p46
    %p48 = scmp.ne.s32.totalorder %s40, %s43
    %p49 = scmp.eq.s32.totalorder %s9, 0
    %p50 = por %p48, %p49
    %p51 = scmp.ne.s32.totalorder %s40, %s43
    %p52 = scmp.eq.s32.totalorder %s14, 31
    %p53 = por %p51, %p52
    %p54 = scmp.ne.s32.totalorder %s43, %s44
    %p55 = scmp.eq.s32.totalorder %s14, 0
    %p56 = por %p54, %p55
    %p57 = scmp.ne.s32.totalorder %s43, %s44
    %p58 = scmp.eq.s32.totalorder %s15, 31
    %p59 = por %p57, %p58
    %p61 = scmp.ne.s32.totalorder %s44, %s60
    %p62 = scmp.eq.s32.totalorder %s15, 0
    %p63 = por %p61, %p62
    %s64 = ssub.s32 %s18, %s27
    %s65 = ssub.s32 %s17, %s31
    %s66 = sor.u32 %s64, %s65
    %p67 = scmp.eq.s32.totalorder %s66, 0
    %s69 = sadd.s32 %s68, 1
    %s70 = scalar_select %p67, %s68, %s69
    %p73 = pneg %p67
    %p74 = scmp.eq.s32.totalorder %s9, 31
    %p75 = por %p73, %p74
    %p76 = scmp.ne.s32.totalorder %s68, %s71
    %p77 = scmp.eq.s32.totalorder %s9, 0
    %p78 = por %p76, %p77
    %p79 = scmp.ne.s32.totalorder %s68, %s71
    %p80 = scmp.eq.s32.totalorder %s14, 31
    %p81 = por %p79, %p80
    %p82 = scmp.ne.s32.totalorder %s71, %s72
    %p83 = scmp.eq.s32.totalorder %s14, 0
    %p84 = por %p82, %p83
    %p85 = scmp.ne.s32.totalorder %s71, %s72
    %p86 = scmp.eq.s32.totalorder %s15, 31
    %p87 = por %p85, %p86
    %p89 = scmp.ne.s32.totalorder %s72, %s88
    %p90 = scmp.eq.s32.totalorder %s15, 0
    %p91 = por %p89, %p90
    %s92 = ssub.s32 %s17, %s31
    %p93 = scmp.eq.s32.totalorder %s92, 0
    %s95 = sadd.s32 %s94, 1
    %s96 = scalar_select %p93, %s94, %s95
    %p99 = pneg %p93
    %p100 = scmp.eq.s32.totalorder %s9, 31
    %p101 = por %p99, %p100
    %p102 = scmp.ne.s32.totalorder %s94, %s97
    %p103 = scmp.eq.s32.totalorder %s9, 0
    %p104 = por %p102, %p103
    %p105 = scmp.ne.s32.totalorder %s94, %s97
    %p106 = scmp.eq.s32.totalorder %s14, 31
    %p107 = por %p105, %p106
    %p108 = scmp.ne.s32.totalorder %s97, %s98
    %p109 = scmp.eq.s32.totalorder %s14, 0
    %p110 = por %p108, %p109
    %p111 = scmp.ne.s32.totalorder %s97, %s98
    %p112 = scmp.eq.s32.totalorder %s15, 31
    %p113 = por %p111, %p112
    %p115 = scmp.ne.s32.totalorder %s98, %s114
    %p116 = scmp.eq.s32.totalorder %s15, 0
    %p117 = por %p115, %p116
    %s118 = ssub.s32 %s16, %s35
    %s119 = ssub.s32 %s17, %s31
    %s120 = sor.u32 %s118, %s119
    %p121 = scmp.eq.s32.totalorder %s120, 0
    %s123 = sadd.s32 %s122, 1
    %s124 = scalar_select %p121, %s122, %s123
    %p127 = pneg %p121
    %p128 = scmp.eq.s32.totalorder %s9, 31
    %p129 = por %p127, %p128
    %p130 = scmp.ne.s32.totalorder %s122, %s125
    %p131 = scmp.eq.s32.totalorder %s9, 0
    %p132 = por %p130, %p131
    %p133 = scmp.ne.s32.totalorder %s122, %s125
    %p134 = scmp.eq.s32.totalorder %s14, 31
    %p135 = por %p133, %p134
    %p136 = scmp.ne.s32.totalorder %s125, %s126
    %p137 = scmp.eq.s32.totalorder %s14, 0
    %p138 = por %p136, %p137
    %p139 = scmp.ne.s32.totalorder %s125, %s126
    %p140 = scmp.eq.s32.totalorder %s15, 31
    %p141 = por %p139, %p140
    %p143 = scmp.ne.s32.totalorder %s126, %s142
    %p144 = scmp.eq.s32.totalorder %s15, 0
    %p145 = por %p143, %p144
    %p146 = scmp.le.s32.totalorder 1, %s9
    %p147 = scmp.lt.s32.totalorder %s9, 33
    %p148 = pnand %p146, %p147
    %p149 = pneg %p148
    // Predicated region
    $region9: #{decoder_forward.7} parent=5 // pred_check
      _
    $region10: #{decoder_forward.7} parent=5 // pred_check_branch
      %151 = sbr.rel (%p148) target = $region12
    $region11: #{decoder_forward.7} parent=5 // pred_region
      %s152 = ssub.s32 %s9, 1
      // Predicated region
      $region13: #{decoder_forward.7} parent=11 // pred_check
        %p153 = pneg %p84
      $region14: #{decoder_forward.7} parent=11 // pred_check_branch
        %155 = sbr.rel (%p153) target = $region16
      $region15: #{decoder_forward.7} parent=11 // pred_region
        %s156 = smul.u32 8, %s21
        %p157 = scmp.lt.s32.totalorder %s156, 7
        %s158 = scalar_select %p157, %s156, 7
        %p159 = scmp.lt.s32.totalorder %s20, 0
        %s160 = scalar_select %p159, %s20, 0
        %s161 = sadd.s32 %s160, %s158
        %s162 = smul.addr %s161, 4
        %s163 = scalar_lea.vmem %s1, %s162
        %s164 = smul.u32 8, %s21
      $region16: #{decoder_forward.7} parent=11 // pred_fallthru
        _
      // Predicated region
      $region17: #{decoder_forward.7} parent=11 // pred_check
        %p165 = pneg %p110
      $region18: #{decoder_forward.7} parent=11 // pred_check_branch
        %167 = sbr.rel (%p165) target = $region20
      $region19: #{decoder_forward.7} parent=11 // pred_region
        %p168 = scmp.lt.s32.totalorder %s20, 0
        %s169 = scalar_select %p168, %s20, 0
        %s170 = scalar_lea.vmem %s2, %s169
      $region20: #{decoder_forward.7} parent=11 // pred_fallthru
        _
    $region12: #{decoder_forward.7} parent=5 // pred_fallthru
      _
    %p171 = scmp.lt.s32.totalorder %s9, 32
    // Predicated region
    $region21: #{decoder_forward.7} parent=5 // pred_check
      %p172 = pneg %p171
    $region22: #{decoder_forward.7} parent=5 // pred_check_branch
      %174 = sbr.rel (%p172) target = $region24
    $region23: #{decoder_forward.7} parent=5 // pred_region
      // Predicated region
      $region25: #{decoder_forward.7} parent=23 // pred_check
        %p175 = pneg %p50
      $region26: #{decoder_forward.7} parent=23 // pred_check_branch
        %177 = sbr.rel (%p175) target = $region28
      $region27: #{decoder_forward.7} parent=23 // pred_region
        %s178 = smul.u32 32, %s16
        %p179 = scmp.lt.s32.totalorder %s178, 1023
        %s180 = scalar_select %p179, %s178, 1023
        %p181 = scmp.lt.s32.totalorder %s18, 0
        %s182 = scalar_select %p181, %s18, 0
        %s183 = sadd.s32 %s182, %s180
        %s184 = smul.addr %s183, 4
        %s185 = scalar_lea.vmem %s0, %s184
        %s186 = smul.u32 32, %s16
      $region28: #{decoder_forward.7} parent=23 // pred_fallthru
        _
    $region24: #{decoder_forward.7} parent=5 // pred_fallthru
      _
    %p187 = scmp.le.s32.totalorder 1, %s9
    %p188 = scmp.lt.s32.totalorder %s9, 33
    %p189 = pnand %p187, %p188
    %p190 = pneg %p189
    // Predicated region
    $region29: #{decoder_forward.7} parent=5 // pred_check
      _
    $region30: #{decoder_forward.7} parent=5 // pred_check_branch
      %192 = sbr.rel (%p189) target = $region32
    $region31: #{decoder_forward.7} parent=5 // pred_region
      %s193 = ssub.s32 %s9, 1
      %s194 = smul.u32 32, %s19
      %p195 = scmp.lt.s32.totalorder %s194, 1023
      %s196 = scalar_select %p195, %s194, 1023
      %p197 = scmp.lt.s32.totalorder %s21, 0
      %s198 = scalar_select %p197, %s21, 0
      %s199 = sadd.s32 %s198, %s196
      %s200 = smul.addr %s199, 4
      %s201 = scalar_lea.vmem %s0, %s200
      %p202 = pneg %p56
      %p203 = pneg %p53
      %s204 = smul.u32 8, %s21
      %p205 = scmp.lt.s32.totalorder %s204, 7
      %s206 = scalar_select %p205, %s204, 7
      %p207 = scmp.lt.s32.totalorder %s20, 0
      %s208 = scalar_select %p207, %s20, 0
      %s209 = sadd.s32 %s208, %s206
      %s210 = smul.addr %s209, 4
      %s211 = scalar_lea.vmem %s1, %s210
      %p212 = pneg %p84
      %p213 = pneg %p81
      %p214 = scmp.lt.s32.totalorder %s20, 0
      %s215 = scalar_select %p214, %s20, 0
      %s216 = scalar_lea.vmem %s2, %s215
      %p217 = pneg %p110
      %p218 = pneg %p107
      %p219 = pneg %p138
      %p220 = pneg %p135
      %s221 = smul.u32 32, %s19
      %p222 = scmp.lt.s32.totalorder %s221, 1023
      %s223 = scalar_select %p222, %s221, 1023
      %p224 = scmp.lt.s32.totalorder %s20, 0
      %s225 = scalar_select %p224, %s20, 0
      %s226 = sadd.s32 %s225, %s223
      %s227 = smul.addr %s226, 8
      %s228 = scalar_lea.vmem %s3, %s227
      %s229 = smul.u32 32, %s19
      %p230 = scmp.lt.s32.totalorder %s229, 1023
      %s231 = scalar_select %p230, %s229, 1023
      %p232 = scmp.lt.s32.totalorder %s21, 0
      %s233 = scalar_select %p232, %s21, 0
      %s234 = sadd.s32 %s233, %s231
      %s235 = smul.addr %s234, 4
      %s236 = scalar_lea.vmem %s0, %s235
      %s237 = smul.u32 32, %s19
      %s238 = smul.u32 8, %s21
      %p239 = scmp.lt.s32.totalorder %s238, 7
      %s240 = scalar_select %p239, %s238, 7
      %p241 = scmp.lt.s32.totalorder %s20, 0
      %s242 = scalar_select %p241, %s20, 0
      %s243 = sadd.s32 %s242, %s240
      %s244 = smul.addr %s243, 4
      %s245 = scalar_lea.vmem %s1, %s244
      %s246 = smul.u32 8, %s21
      %p247 = scmp.lt.s32.totalorder %s20, 0
      %s248 = scalar_select %p247, %s20, 0
      %s249 = scalar_lea.vmem %s2, %s248
      %s250 = smul.u32 32, %s19
      %p251 = scmp.lt.s32.totalorder %s250, 1023
      %s252 = scalar_select %p251, %s250, 1023
      %p253 = scmp.lt.s32.totalorder %s20, 0
      %s254 = scalar_select %p253, %s20, 0
      %s255 = sadd.s32 %s254, %s252
      %s256 = smul.addr %s255, 8
      %s257 = scalar_lea.vmem %s3, %s256
      %s258 = smul.u32 32, %s19
      %p260 = scmp.eq.s32.totalorder %s21, 0
      // Predicated region
      $region33: #{decoder_forward.7} parent=31 // pred_check
        %p261 = pneg %p260
      $region34: #{decoder_forward.7} parent=31 // pred_check_branch
        %263 = sbr.rel (%p261) target = $region36
      $region35: #{decoder_forward.7} parent=31 // pred_region
        %264 = vst [vmem:[#allocation2] sm:$0xff] 0.0
        %265 = vst [vmem:[#allocation2 + $0x8] sm:$0xff] 0.0
        %266 = vst [vmem:[#allocation2 + $0x10] sm:$0xff] 0.0
        %267 = vst [vmem:[#allocation2 + $0x18] sm:$0xff] 0.0
        %268 = vst [vmem:[#allocation2 + $0x20] sm:$0xff] 0.0
        %269 = vst [vmem:[#allocation2 + $0x28] sm:$0xff] 0.0
        %270 = vst [vmem:[#allocation2 + $0x30] sm:$0xff] 0.0
        %271 = vst [vmem:[#allocation2 + $0x38] sm:$0xff] 0.0
        %272 = vst [vmem:[#allocation2 + $0x40] sm:$0xff] 0.0
        %273 = vst [vmem:[#allocation2 + $0x48] sm:$0xff] 0.0
        %274 = vst [vmem:[#allocation2 + $0x50] sm:$0xff] 0.0
        %275 = vst [vmem:[#allocation2 + $0x58] sm:$0xff] 0.0
        %276 = vst [vmem:[#allocation2 + $0x60] sm:$0xff] 0.0
        %277 = vst [vmem:[#allocation2 + $0x68] sm:$0xff] 0.0
        %278 = vst [vmem:[#allocation2 + $0x70] sm:$0xff] 0.0
        %279 = vst [vmem:[#allocation2 + $0x78] sm:$0xff] 0.0
        %280 = vst [vmem:[#allocation2 + $0x80] sm:$0xff] 0.0
        %281 = vst [vmem:[#allocation2 + $0x88] sm:$0xff] 0.0
        %282 = vst [vmem:[#allocation2 + $0x90] sm:$0xff] 0.0
        %283 = vst [vmem:[#allocation2 + $0x98] sm:$0xff] 0.0
        %284 = vst [vmem:[#allocation2 + $0xa0] sm:$0xff] 0.0
        %285 = vst [vmem:[#allocation2 + $0xa8] sm:$0xff] 0.0
        %286 = vst [vmem:[#allocation2 + $0xb0] sm:$0xff] 0.0
        %287 = vst [vmem:[#allocation2 + $0xb8] sm:$0xff] 0.0
        %288 = vst [vmem:[#allocation2 + $0xc0] sm:$0xff] 0.0
        %289 = vst [vmem:[#allocation2 + $0xc8] sm:$0xff] 0.0
        %290 = vst [vmem:[#allocation2 + $0xd0] sm:$0xff] 0.0
        %291 = vst [vmem:[#allocation2 + $0xd8] sm:$0xff] 0.0
        %292 = vst [vmem:[#allocation2 + $0xe0] sm:$0xff] 0.0
        %293 = vst [vmem:[#allocation2 + $0xe8] sm:$0xff] 0.0
        %294 = vst [vmem:[#allocation2 + $0xf0] sm:$0xff] 0.0
        %295 = vst [vmem:[#allocation2 + $0xf8] sm:$0xff] 0.0
      $region36: #{decoder_forward.7} parent=31 // pred_fallthru
        _
      %v296 = vld [vmem:[#allocation2] sm:$0xff]
      %v297 = vld [vmem:[#allocation2 + $0x8] sm:$0xff]
      %v298 = vld [vmem:[#allocation2 + $0x10] sm:$0xff]
      %v299 = vld [vmem:[#allocation2 + $0x18] sm:$0xff]
      %v300 = vld [vmem:[#allocation2 + $0x20] sm:$0xff]
      %v301 = vld [vmem:[#allocation2 + $0x28] sm:$0xff]
      %v302 = vld [vmem:[#allocation2 + $0x30] sm:$0xff]
      %v303 = vld [vmem:[#allocation2 + $0x38] sm:$0xff]
      %v304 = vld [vmem:[#allocation2 + $0x40] sm:$0xff]
      %v305 = vld [vmem:[#allocation2 + $0x48] sm:$0xff]
      %v306 = vld [vmem:[#allocation2 + $0x50] sm:$0xff]
      %v307 = vld [vmem:[#allocation2 + $0x58] sm:$0xff]
      %v308 = vld [vmem:[#allocation2 + $0x60] sm:$0xff]
      %v309 = vld [vmem:[#allocation2 + $0x68] sm:$0xff]
      %v310 = vld [vmem:[#allocation2 + $0x70] sm:$0xff]
      %v311 = vld [vmem:[#allocation2 + $0x78] sm:$0xff]
      %v312 = vld [vmem:[#allocation2 + $0x80] sm:$0xff]
      %v313 = vld [vmem:[#allocation2 + $0x88] sm:$0xff]
      %v314 = vld [vmem:[#allocation2 + $0x90] sm:$0xff]
      %v315 = vld [vmem:[#allocation2 + $0x98] sm:$0xff]
      %v316 = vld [vmem:[#allocation2 + $0xa0] sm:$0xff]
      %v317 = vld [vmem:[#allocation2 + $0xa8] sm:$0xff]
      %v318 = vld [vmem:[#allocation2 + $0xb0] sm:$0xff]
      %v319 = vld [vmem:[#allocation2 + $0xb8] sm:$0xff]
      %v320 = vld [vmem:[#allocation2 + $0xc0] sm:$0xff]
      %v321 = vld [vmem:[#allocation2 + $0xc8] sm:$0xff]
      %v322 = vld [vmem:[#allocation2 + $0xd0] sm:$0xff]
      %v323 = vld [vmem:[#allocation2 + $0xd8] sm:$0xff]
      %v324 = vld [vmem:[#allocation2 + $0xe0] sm:$0xff]
      %v325 = vld [vmem:[#allocation2 + $0xe8] sm:$0xff]
      %v326 = vld [vmem:[#allocation2 + $0xf0] sm:$0xff]
      %v327 = vld [vmem:[#allocation2 + $0xf8] sm:$0xff]
      %v328 = vld [vmem:[%s236] sm:$0xf]
      %v329 = vld [vmem:[%s236 + $0x4] sm:$0xf]
      %v330 = vld [vmem:[%s236 + $0x8] sm:$0xf]
      %v331 = vld [vmem:[%s236 + $0xc] sm:$0xf]
      %v332 = vld [vmem:[%s236 + $0x10] sm:$0xf]
      %v333 = vld [vmem:[%s236 + $0x14] sm:$0xf]
      %v334 = vld [vmem:[%s236 + $0x18] sm:$0xf]
      %v335 = vld [vmem:[%s236 + $0x1c] sm:$0xf]
      %v336 = vld [vmem:[%s236 + $0x20] sm:$0xf]
      %v337 = vld [vmem:[%s236 + $0x24] sm:$0xf]
      %v338 = vld [vmem:[%s236 + $0x28] sm:$0xf]
      %v339 = vld [vmem:[%s236 + $0x2c] sm:$0xf]
      %v340 = vld [vmem:[%s236 + $0x30] sm:$0xf]
      %v341 = vld [vmem:[%s236 + $0x34] sm:$0xf]
      %v342 = vld [vmem:[%s236 + $0x38] sm:$0xf]
      %v343 = vld [vmem:[%s236 + $0x3c] sm:$0xf]
      %v344 = vld [vmem:[%s236 + $0x40] sm:$0xf]
      %v345 = vld [vmem:[%s236 + $0x44] sm:$0xf]
      %v346 = vld [vmem:[%s236 + $0x48] sm:$0xf]
      %v347 = vld [vmem:[%s236 + $0x4c] sm:$0xf]
      %v348 = vld [vmem:[%s236 + $0x50] sm:$0xf]
      %v349 = vld [vmem:[%s236 + $0x54] sm:$0xf]
      %v350 = vld [vmem:[%s236 + $0x58] sm:$0xf]
      %v351 = vld [vmem:[%s236 + $0x5c] sm:$0xf]
      %v352 = vld [vmem:[%s236 + $0x60] sm:$0xf]
      %v353 = vld [vmem:[%s236 + $0x64] sm:$0xf]
      %v354 = vld [vmem:[%s236 + $0x68] sm:$0xf]
      %v355 = vld [vmem:[%s236 + $0x6c] sm:$0xf]
      %v356 = vld [vmem:[%s236 + $0x70] sm:$0xf]
      %v357 = vld [vmem:[%s236 + $0x74] sm:$0xf]
      %v358 = vld [vmem:[%s236 + $0x78] sm:$0xf]
      %v359 = vld [vmem:[%s236 + $0x7c] sm:$0xf]
      %v360 = vld [vmem:[%s245] sm:$0xf]
      %v361 = vld [vmem:[%s245 + $0x4] sm:$0xf]
      %v362 = vld [vmem:[%s245 + $0x8] sm:$0xf]
      %v363 = vld [vmem:[%s245 + $0xc] sm:$0xf]
      %v364 = vld [vmem:[%s245 + $0x10] sm:$0xf]
      %v365 = vld [vmem:[%s245 + $0x14] sm:$0xf]
      %v366 = vld [vmem:[%s245 + $0x18] sm:$0xf]
      %v367 = vld [vmem:[%s245 + $0x1c] sm:$0xf]
      %v400 = vunpack.c.l.b16 %v328
      %v401 = vunpack.c.l.b16 %v329
      %v402 = vunpack.c.l.b16 %v330
      %v403 = vunpack.c.l.b16 %v331
      %v404 = vunpack.c.l.b16 %v332
      %v405 = vunpack.c.l.b16 %v333
      %v406 = vunpack.c.l.b16 %v334
      %v407 = vunpack.c.l.b16 %v335
      %v408 = vunpack.c.l.b16 %v336
      %v409 = vunpack.c.l.b16 %v337
      %v410 = vunpack.c.l.b16 %v338
      %v411 = vunpack.c.l.b16 %v339
      %v412 = vunpack.c.l.b16 %v340
      %v413 = vunpack.c.l.b16 %v341
      %v414 = vunpack.c.l.b16 %v342
      %v415 = vunpack.c.l.b16 %v343
      %v416 = vunpack.c.l.b16 %v344
      %v417 = vunpack.c.l.b16 %v345
      %v418 = vunpack.c.l.b16 %v346
      %v419 = vunpack.c.l.b16 %v347
      %v420 = vunpack.c.l.b16 %v348
      %v421 = vunpack.c.l.b16 %v349
      %v422 = vunpack.c.l.b16 %v350
      %v423 = vunpack.c.l.b16 %v351
      %v424 = vunpack.c.l.b16 %v352
      %v425 = vunpack.c.l.b16 %v353
      %v426 = vunpack.c.l.b16 %v354
      %v427 = vunpack.c.l.b16 %v355
      %v428 = vunpack.c.l.b16 %v356
      %v429 = vunpack.c.l.b16 %v357
      %v430 = vunpack.c.l.b16 %v358
      %v431 = vunpack.c.l.b16 %v359
      %v432 = vpack.c.b16 %v401, %v400
      %v433 = vpack.c.b16 %v403, %v402
      %v434 = vpack.c.b16 %v405, %v404
      %v435 = vpack.c.b16 %v407, %v406
      %v436 = vpack.c.b16 %v409, %v408
      %v437 = vpack.c.b16 %v411, %v410
      %v438 = vpack.c.b16 %v413, %v412
      %v439 = vpack.c.b16 %v415, %v414
      %v440 = vpack.c.b16 %v417, %v416
      %v441 = vpack.c.b16 %v419, %v418
      %v442 = vpack.c.b16 %v421, %v420
      %v443 = vpack.c.b16 %v423, %v422
      %v444 = vpack.c.b16 %v425, %v424
      %v445 = vpack.c.b16 %v427, %v426
      %v446 = vpack.c.b16 %v429, %v428
      %v447 = vpack.c.b16 %v431, %v430
      %v456 = vunpack.c.l.b16 %v360
      %v457 = vunpack.c.l.b16 %v361
      %v458 = vunpack.c.l.b16 %v362
      %v459 = vunpack.c.l.b16 %v363
      %v460 = vunpack.c.l.b16 %v364
      %v461 = vunpack.c.l.b16 %v365
      %v462 = vunpack.c.l.b16 %v366
      %v463 = vunpack.c.l.b16 %v367
      %v464 = vpack.c.b16 %v457, %v456
      %v465 = vpack.c.b16 %v459, %v458
      %v466 = vpack.c.b16 %v461, %v460
      %v467 = vpack.c.b16 %v463, %v462
      %vm472 = vcmask 523264
      %v474 = vsel %vm472, %v432, 0
      %v477 = vsel %vm472, %v433, 0
      %v480 = vsel %vm472, %v434, 0
      %v483 = vsel %vm472, %v435, 0
      %v486 = vsel %vm472, %v436, 0
      %v489 = vsel %vm472, %v437, 0
      %v492 = vsel %vm472, %v438, 0
      %v495 = vsel %vm472, %v439, 0
      %v498 = vsel %vm472, %v440, 0
      %v501 = vsel %vm472, %v441, 0
      %v504 = vsel %vm472, %v442, 0
      %v507 = vsel %vm472, %v443, 0
      %v510 = vsel %vm472, %v444, 0
      %v513 = vsel %vm472, %v445, 0
      %v516 = vsel %vm472, %v446, 0
      %v519 = vsel %vm472, %v447, 0
      %521 = vmatprep.subr.bf16.mxu0 0
      %522 = vmatpush1.bf16.msra.mxu0 0
      %523 = vmatprep.subr.bf16.mxu0 0
      %524 = vmatpush1.bf16.msra.mxu0 0
      %525 = vmatprep.subr.bf16.mxu0 0
      %526 = vmatpush1.bf16.msra.mxu0 0
      %527 = vmatprep.subr.bf16.mxu0 0
      %528 = vmatpush1.bf16.msra.mxu0 0
      %529 = vmatprep.subr.bf16.mxu0 0
      %530 = vmatpush1.bf16.msra.mxu0 %v467
      %531 = vmatprep.subr.bf16.mxu0 0
      %532 = vmatpush1.bf16.msra.mxu0 %v466
      %533 = vmatprep.subr.bf16.mxu0 0
      %534 = vmatpush1.bf16.msra.mxu0 %v465
      %535 = vmatprep.subr.bf16.mxu0 0
      %536 = vmatpush1.bf16.msra.mxu0 %v464
      %537 = vmatprep.subr.bf16.mxu0 0
      %538 = vmatpush2.bf16.msra.mxu0 0
      %539 = vmatprep.subr.bf16.mxu0 0
      %540 = vmatpush2.bf16.msra.mxu0 0
      %541 = vmatprep.subr.bf16.mxu0 0
      %542 = vmatpush2.bf16.msra.mxu0 0
      %543 = vmatprep.subr.bf16.mxu0 0
      %544 = vmatpush2.bf16.msra.mxu0 0
      %545 = vmatprep.subr.bf16.mxu0 0
      %546 = vmatpush2.bf16.msra.mxu0 0
      %547 = vmatprep.subr.bf16.mxu0 0
      %548 = vmatpush2.bf16.msra.mxu0 0
      %549 = vmatprep.subr.bf16.mxu0 0
      %550 = vmatpush2.bf16.msra.mxu0 0
      %551 = vmatprep.subr.bf16.mxu0 0
      %552 = vmatpush2.bf16.msra.mxu0 0
      %553 = vmatprep.mubr.bf16.mxu0 0
      %554 = vmatmul.mubr.bf16.gmra.mxu0 %v474
      %v555 = vpop.f32.mrf.mxu0
      %v556 = vadd.f32 0.0, %v555
      %v557 = vpop.f32.mrf.mxu0
      %v558 = vpop.f32.mrf.mxu0
      %v559 = vadd.f32 0.0, %v558
      %v560 = vpop.f32.mrf.mxu0
      %561 = vmatprep.mubr.bf16.mxu0 0
      %562 = vmatmul.mubr.bf16.gmra.mxu0 %v477
      %v563 = vpop.f32.mrf.mxu0
      %v564 = vadd.f32 0.0, %v563
      %v565 = vpop.f32.mrf.mxu0
      %v566 = vpop.f32.mrf.mxu0
      %v567 = vadd.f32 0.0, %v566
      %v568 = vpop.f32.mrf.mxu0
      %569 = vmatprep.mubr.bf16.mxu0 0
      %570 = vmatmul.mubr.bf16.gmra.mxu0 %v480
      %v571 = vpop.f32.mrf.mxu0
      %v572 = vadd.f32 0.0, %v571
      %v573 = vpop.f32.mrf.mxu0
      %v574 = vpop.f32.mrf.mxu0
      %v575 = vadd.f32 0.0, %v574
      %v576 = vpop.f32.mrf.mxu0
      %577 = vmatprep.mubr.bf16.mxu0 0
      %578 = vmatmul.mubr.bf16.gmra.mxu0 %v483
      %v579 = vpop.f32.mrf.mxu0
      %v580 = vadd.f32 0.0, %v579
      %v581 = vpop.f32.mrf.mxu0
      %v582 = vpop.f32.mrf.mxu0
      %v583 = vadd.f32 0.0, %v582
      %v584 = vpop.f32.mrf.mxu0
      %585 = vmatprep.mubr.bf16.mxu0 0
      %586 = vmatmul.mubr.bf16.gmra.mxu0 %v486
      %v587 = vpop.f32.mrf.mxu0
      %v588 = vadd.f32 0.0, %v587
      %v589 = vpop.f32.mrf.mxu0
      %v590 = vpop.f32.mrf.mxu0
      %v591 = vadd.f32 0.0, %v590
      %v592 = vpop.f32.mrf.mxu0
      %593 = vmatprep.mubr.bf16.mxu0 0
      %594 = vmatmul.mubr.bf16.gmra.mxu0 %v489
      %v595 = vpop.f32.mrf.mxu0
      %v596 = vadd.f32 0.0, %v595
      %v597 = vpop.f32.mrf.mxu0
      %v598 = vpop.f32.mrf.mxu0
      %v599 = vadd.f32 0.0, %v598
      %v600 = vpop.f32.mrf.mxu0
      %601 = vmatprep.mubr.bf16.mxu0 0
      %602 = vmatmul.mubr.bf16.gmra.mxu0 %v492
      %v603 = vpop.f32.mrf.mxu0
      %v604 = vadd.f32 0.0, %v603
      %v605 = vpop.f32.mrf.mxu0
      %v606 = vpop.f32.mrf.mxu0
      %v607 = vadd.f32 0.0, %v606
      %v608 = vpop.f32.mrf.mxu0
      %609 = vmatprep.mubr.bf16.mxu0 0
      %610 = vmatmul.mubr.bf16.gmra.mxu0 %v495
      %v611 = vpop.f32.mrf.mxu0
      %v612 = vadd.f32 0.0, %v611
      %v613 = vpop.f32.mrf.mxu0
      %v614 = vpop.f32.mrf.mxu0
      %v615 = vadd.f32 0.0, %v614
      %v616 = vpop.f32.mrf.mxu0
      %617 = vmatprep.mubr.bf16.mxu0 0
      %618 = vmatmul.mubr.bf16.gmra.mxu0 %v498
      %v619 = vpop.f32.mrf.mxu0
      %v620 = vadd.f32 0.0, %v619
      %v621 = vpop.f32.mrf.mxu0
      %v622 = vpop.f32.mrf.mxu0
      %v623 = vadd.f32 0.0, %v622
      %v624 = vpop.f32.mrf.mxu0
      %625 = vmatprep.mubr.bf16.mxu0 0
      %626 = vmatmul.mubr.bf16.gmra.mxu0 %v501
      %v627 = vpop.f32.mrf.mxu0
      %v628 = vadd.f32 0.0, %v627
      %v629 = vpop.f32.mrf.mxu0
      %v630 = vpop.f32.mrf.mxu0
      %v631 = vadd.f32 0.0, %v630
      %v632 = vpop.f32.mrf.mxu0
      %633 = vmatprep.mubr.bf16.mxu0 0
      %634 = vmatmul.mubr.bf16.gmra.mxu0 %v504
      %v635 = vpop.f32.mrf.mxu0
      %v636 = vadd.f32 0.0, %v635
      %v637 = vpop.f32.mrf.mxu0
      %v638 = vpop.f32.mrf.mxu0
      %v639 = vadd.f32 0.0, %v638
      %v640 = vpop.f32.mrf.mxu0
      %641 = vmatprep.mubr.bf16.mxu0 0
      %642 = vmatmul.mubr.bf16.gmra.mxu0 %v507
      %v643 = vpop.f32.mrf.mxu0
      %v644 = vadd.f32 0.0, %v643
      %v645 = vpop.f32.mrf.mxu0
      %v646 = vpop.f32.mrf.mxu0
      %v647 = vadd.f32 0.0, %v646
      %v648 = vpop.f32.mrf.mxu0
      %649 = vmatprep.mubr.bf16.mxu0 0
      %650 = vmatmul.mubr.bf16.gmra.mxu0 %v510
      %v651 = vpop.f32.mrf.mxu0
      %v652 = vadd.f32 0.0, %v651
      %v653 = vpop.f32.mrf.mxu0
      %v654 = vpop.f32.mrf.mxu0
      %v655 = vadd.f32 0.0, %v654
      %v656 = vpop.f32.mrf.mxu0
      %657 = vmatprep.mubr.bf16.mxu0 0
      %658 = vmatmul.mubr.bf16.gmra.mxu0 %v513
      %v659 = vpop.f32.mrf.mxu0
      %v660 = vadd.f32 0.0, %v659
      %v661 = vpop.f32.mrf.mxu0
      %v662 = vpop.f32.mrf.mxu0
      %v663 = vadd.f32 0.0, %v662
      %v664 = vpop.f32.mrf.mxu0
      %665 = vmatprep.mubr.bf16.mxu0 0
      %666 = vmatmul.mubr.bf16.gmra.mxu0 %v516
      %v667 = vpop.f32.mrf.mxu0
      %v668 = vadd.f32 0.0, %v667
      %v669 = vpop.f32.mrf.mxu0
      %v670 = vpop.f32.mrf.mxu0
      %v671 = vadd.f32 0.0, %v670
      %v672 = vpop.f32.mrf.mxu0
      %673 = vmatprep.mubr.bf16.mxu0 0
      %674 = vmatmul.mubr.bf16.gmra.mxu0 %v519
      %v675 = vpop.f32.mrf.mxu0
      %v676 = vadd.f32 0.0, %v675
      %v677 = vpop.f32.mrf.mxu0
      %v678 = vpop.f32.mrf.mxu0
      %v679 = vadd.f32 0.0, %v678
      %v680 = vpop.f32.mrf.mxu0
      %681 = vdwg.mxu0
      %v682 = vadd.f32 %v296, %v556
      %v683 = vadd.f32 %v297, %v559
      %v684 = vadd.f32 %v298, %v564
      %v685 = vadd.f32 %v299, %v567
      %v686 = vadd.f32 %v300, %v572
      %v687 = vadd.f32 %v301, %v575
      %v688 = vadd.f32 %v302, %v580
      %v689 = vadd.f32 %v303, %v583
      %v690 = vadd.f32 %v304, %v588
      %v691 = vadd.f32 %v305, %v591
      %v692 = vadd.f32 %v306, %v596
      %v693 = vadd.f32 %v307, %v599
      %v694 = vadd.f32 %v308, %v604
      %v695 = vadd.f32 %v309, %v607
      %v696 = vadd.f32 %v310, %v612
      %v697 = vadd.f32 %v311, %v615
      %v698 = vadd.f32 %v312, %v620
      %v699 = vadd.f32 %v313, %v623
      %v700 = vadd.f32 %v314, %v628
      %v701 = vadd.f32 %v315, %v631
      %v702 = vadd.f32 %v316, %v636
      %v703 = vadd.f32 %v317, %v639
      %v704 = vadd.f32 %v318, %v644
      %v705 = vadd.f32 %v319, %v647
      %v706 = vadd.f32 %v320, %v652
      %v707 = vadd.f32 %v321, %v655
      %v708 = vadd.f32 %v322, %v660
      %v709 = vadd.f32 %v323, %v663
      %v710 = vadd.f32 %v324, %v668
      %v711 = vadd.f32 %v325, %v671
      %v712 = vadd.f32 %v326, %v676
      %v713 = vadd.f32 %v327, %v679
      %714 = vst [vmem:[#allocation2] sm:$0xff] %v682
      %715 = vst [vmem:[#allocation2 + $0x8] sm:$0xff] %v683
      %716 = vst [vmem:[#allocation2 + $0x10] sm:$0xff] %v684
      %717 = vst [vmem:[#allocation2 + $0x18] sm:$0xff] %v685
      %718 = vst [vmem:[#allocation2 + $0x20] sm:$0xff] %v686
      %719 = vst [vmem:[#allocation2 + $0x28] sm:$0xff] %v687
      %720 = vst [vmem:[#allocation2 + $0x30] sm:$0xff] %v688
      %721 = vst [vmem:[#allocation2 + $0x38] sm:$0xff] %v689
      %722 = vst [vmem:[#allocation2 + $0x40] sm:$0xff] %v690
      %723 = vst [vmem:[#allocation2 + $0x48] sm:$0xff] %v691
      %724 = vst [vmem:[#allocation2 + $0x50] sm:$0xff] %v692
      %725 = vst [vmem:[#allocation2 + $0x58] sm:$0xff] %v693
      %726 = vst [vmem:[#allocation2 + $0x60] sm:$0xff] %v694
      %727 = vst [vmem:[#allocation2 + $0x68] sm:$0xff] %v695
      %728 = vst [vmem:[#allocation2 + $0x70] sm:$0xff] %v696
      %729 = vst [vmem:[#allocation2 + $0x78] sm:$0xff] %v697
      %730 = vst [vmem:[#allocation2 + $0x80] sm:$0xff] %v698
      %731 = vst [vmem:[#allocation2 + $0x88] sm:$0xff] %v699
      %732 = vst [vmem:[#allocation2 + $0x90] sm:$0xff] %v700
      %733 = vst [vmem:[#allocation2 + $0x98] sm:$0xff] %v701
      %734 = vst [vmem:[#allocation2 + $0xa0] sm:$0xff] %v702
      %735 = vst [vmem:[#allocation2 + $0xa8] sm:$0xff] %v703
      %736 = vst [vmem:[#allocation2 + $0xb0] sm:$0xff] %v704
      %737 = vst [vmem:[#allocation2 + $0xb8] sm:$0xff] %v705
      %738 = vst [vmem:[#allocation2 + $0xc0] sm:$0xff] %v706
      %739 = vst [vmem:[#allocation2 + $0xc8] sm:$0xff] %v707
      %740 = vst [vmem:[#allocation2 + $0xd0] sm:$0xff] %v708
      %741 = vst [vmem:[#allocation2 + $0xd8] sm:$0xff] %v709
      %742 = vst [vmem:[#allocation2 + $0xe0] sm:$0xff] %v710
      %743 = vst [vmem:[#allocation2 + $0xe8] sm:$0xff] %v711
      %744 = vst [vmem:[#allocation2 + $0xf0] sm:$0xff] %v712
      %745 = vst [vmem:[#allocation2 + $0xf8] sm:$0xff] %v713
      // Predicated region
      $region37: #{decoder_forward.7} parent=31 // pred_check
        %p746 = pneg %p260
      $region38: #{decoder_forward.7} parent=31 // pred_check_branch
        %748 = sbr.rel (%p746) target = $region40
      $region39: #{decoder_forward.7} parent=31 // pred_region
        %v749 = vld [vmem:[#allocation2] sm:$0xff]
        %v750 = vld [vmem:[#allocation2 + $0x8] sm:$0xff]
        %v751 = vld [vmem:[#allocation2 + $0x10] sm:$0xff]
        %v752 = vld [vmem:[#allocation2 + $0x18] sm:$0xff]
        %v753 = vld [vmem:[#allocation2 + $0x20] sm:$0xff]
        %v754 = vld [vmem:[#allocation2 + $0x28] sm:$0xff]
        %v755 = vld [vmem:[#allocation2 + $0x30] sm:$0xff]
        %v756 = vld [vmem:[#allocation2 + $0x38] sm:$0xff]
        %v757 = vld [vmem:[#allocation2 + $0x40] sm:$0xff]
        %v758 = vld [vmem:[#allocation2 + $0x48] sm:$0xff]
        %v759 = vld [vmem:[#allocation2 + $0x50] sm:$0xff]
        %v760 = vld [vmem:[#allocation2 + $0x58] sm:$0xff]
        %v761 = vld [vmem:[#allocation2 + $0x60] sm:$0xff]
        %v762 = vld [vmem:[#allocation2 + $0x68] sm:$0xff]
        %v763 = vld [vmem:[#allocation2 + $0x70] sm:$0xff]
        %v764 = vld [vmem:[#allocation2 + $0x78] sm:$0xff]
        %v765 = vld [vmem:[#allocation2 + $0x80] sm:$0xff]
        %v766 = vld [vmem:[#allocation2 + $0x88] sm:$0xff]
        %v767 = vld [vmem:[#allocation2 + $0x90] sm:$0xff]
        %v768 = vld [vmem:[#allocation2 + $0x98] sm:$0xff]
        %v769 = vld [vmem:[#allocation2 + $0xa0] sm:$0xff]
        %v770 = vld [vmem:[#allocation2 + $0xa8] sm:$0xff]
        %v771 = vld [vmem:[#allocation2 + $0xb0] sm:$0xff]
        %v772 = vld [vmem:[#allocation2 + $0xb8] sm:$0xff]
        %v773 = vld [vmem:[#allocation2 + $0xc0] sm:$0xff]
        %v774 = vld [vmem:[#allocation2 + $0xc8] sm:$0xff]
        %v775 = vld [vmem:[#allocation2 + $0xd0] sm:$0xff]
        %v776 = vld [vmem:[#allocation2 + $0xd8] sm:$0xff]
        %v777 = vld [vmem:[#allocation2 + $0xe0] sm:$0xff]
        %v778 = vld [vmem:[#allocation2 + $0xe8] sm:$0xff]
        %v779 = vld [vmem:[#allocation2 + $0xf0] sm:$0xff]
        %v780 = vld [vmem:[#allocation2 + $0xf8] sm:$0xff]
        %v781 = vld [vmem:[%s249] sm:$0x1]
        %v783 = vlaneseq
        %v784 = vshrl.u32 %v783, 7
        %v785 = vsub.s32 0, %v784
        %v786 = vrot.slane %v781, %v785
        %v788 = vadd.f32 %v749, %v786
        %v789 = vadd.f32 %v750, %v786
        %v790 = vadd.f32 %v751, %v786
        %v791 = vadd.f32 %v752, %v786
        %v792 = vadd.f32 %v753, %v786
        %v793 = vadd.f32 %v754, %v786
        %v794 = vadd.f32 %v755, %v786
        %v795 = vadd.f32 %v756, %v786
        %v796 = vadd.f32 %v757, %v786
        %v797 = vadd.f32 %v758, %v786
        %v798 = vadd.f32 %v759, %v786
        %v799 = vadd.f32 %v760, %v786
        %v800 = vadd.f32 %v761, %v786
        %v801 = vadd.f32 %v762, %v786
        %v802 = vadd.f32 %v763, %v786
        %v803 = vadd.f32 %v764, %v786
        %v804 = vadd.f32 %v765, %v786
        %v805 = vadd.f32 %v766, %v786
        %v806 = vadd.f32 %v767, %v786
        %v807 = vadd.f32 %v768, %v786
        %v808 = vadd.f32 %v769, %v786
        %v809 = vadd.f32 %v770, %v786
        %v810 = vadd.f32 %v771, %v786
        %v811 = vadd.f32 %v772, %v786
        %v812 = vadd.f32 %v773, %v786
        %v813 = vadd.f32 %v774, %v786
        %v814 = vadd.f32 %v775, %v786
        %v815 = vadd.f32 %v776, %v786
        %v816 = vadd.f32 %v777, %v786
        %v817 = vadd.f32 %v778, %v786
        %v818 = vadd.f32 %v779, %v786
        %v819 = vadd.f32 %v780, %v786
        %v820 = vxor.u32 %v788, 2147483648
        %v821 = vxor.u32 %v789, 2147483648
        %v822 = vxor.u32 %v790, 2147483648
        %v823 = vxor.u32 %v791, 2147483648
        %v824 = vxor.u32 %v792, 2147483648
        %v825 = vxor.u32 %v793, 2147483648
        %v826 = vxor.u32 %v794, 2147483648
        %v827 = vxor.u32 %v795, 2147483648
        %v828 = vxor.u32 %v796, 2147483648
        %v829 = vxor.u32 %v797, 2147483648
        %v830 = vxor.u32 %v798, 2147483648
        %v831 = vxor.u32 %v799, 2147483648
        %v832 = vxor.u32 %v800, 2147483648
        %v833 = vxor.u32 %v801, 2147483648
        %v834 = vxor.u32 %v802, 2147483648
        %v835 = vxor.u32 %v803, 2147483648
        %v836 = vxor.u32 %v804, 2147483648
        %v837 = vxor.u32 %v805, 2147483648
        %v838 = vxor.u32 %v806, 2147483648
        %v839 = vxor.u32 %v807, 2147483648
        %v840 = vxor.u32 %v808, 2147483648
        %v841 = vxor.u32 %v809, 2147483648
        %v842 = vxor.u32 %v810, 2147483648
        %v843 = vxor.u32 %v811, 2147483648
        %v844 = vxor.u32 %v812, 2147483648
        %v845 = vxor.u32 %v813, 2147483648
        %v846 = vxor.u32 %v814, 2147483648
        %v847 = vxor.u32 %v815, 2147483648
        %v848 = vxor.u32 %v816, 2147483648
        %v849 = vxor.u32 %v817, 2147483648
        %v850 = vxor.u32 %v818, 2147483648
        %v851 = vxor.u32 %v819, 2147483648
        %v852 = vmul.f32 %v820, 1.442695
        %v853 = vpow.pop %v852
        %v854 = vmul.f32 %v821, 1.442695
        %v855 = vpow.pop %v854
        %v856 = vmul.f32 %v822, 1.442695
        %v857 = vpow.pop %v856
        %v858 = vmul.f32 %v823, 1.442695
        %v859 = vpow.pop %v858
        %v860 = vmul.f32 %v824, 1.442695
        %v861 = vpow.pop %v860
        %v862 = vmul.f32 %v825, 1.442695
        %v863 = vpow.pop %v862
        %v864 = vmul.f32 %v826, 1.442695
        %v865 = vpow.pop %v864
        %v866 = vmul.f32 %v827, 1.442695
        %v867 = vpow.pop %v866
        %v868 = vmul.f32 %v828, 1.442695
        %v869 = vpow.pop %v868
        %v870 = vmul.f32 %v829, 1.442695
        %v871 = vpow.pop %v870
        %v872 = vmul.f32 %v830, 1.442695
        %v873 = vpow.pop %v872
        %v874 = vmul.f32 %v831, 1.442695
        %v875 = vpow.pop %v874
        %v876 = vmul.f32 %v832, 1.442695
        %v877 = vpow.pop %v876
        %v878 = vmul.f32 %v833, 1.442695
        %v879 = vpow.pop %v878
        %v880 = vmul.f32 %v834, 1.442695
        %v881 = vpow.pop %v880
        %v882 = vmul.f32 %v835, 1.442695
        %v883 = vpow.pop %v882
        %v884 = vmul.f32 %v836, 1.442695
        %v885 = vpow.pop %v884
        %v886 = vmul.f32 %v837, 1.442695
        %v887 = vpow.pop %v886
        %v888 = vmul.f32 %v838, 1.442695
        %v889 = vpow.pop %v888
        %v890 = vmul.f32 %v839, 1.442695
        %v891 = vpow.pop %v890
        %v892 = vmul.f32 %v840, 1.442695
        %v893 = vpow.pop %v892
        %v894 = vmul.f32 %v841, 1.442695
        %v895 = vpow.pop %v894
        %v896 = vmul.f32 %v842, 1.442695
        %v897 = vpow.pop %v896
        %v898 = vmul.f32 %v843, 1.442695
        %v899 = vpow.pop %v898
        %v900 = vmul.f32 %v844, 1.442695
        %v901 = vpow.pop %v900
        %v902 = vmul.f32 %v845, 1.442695
        %v903 = vpow.pop %v902
        %v904 = vmul.f32 %v846, 1.442695
        %v905 = vpow.pop %v904
        %v906 = vmul.f32 %v847, 1.442695
        %v907 = vpow.pop %v906
        %v908 = vmul.f32 %v848, 1.442695
        %v909 = vpow.pop %v908
        %v910 = vmul.f32 %v849, 1.442695
        %v911 = vpow.pop %v910
        %v912 = vmul.f32 %v850, 1.442695
        %v913 = vpow.pop %v912
        %v914 = vmul.f32 %v851, 1.442695
        %v915 = vpow.pop %v914
        %v916 = vadd.f32 %v853, 1.0
        %v917 = vadd.f32 %v855, 1.0
        %v918 = vadd.f32 %v857, 1.0
        %v919 = vadd.f32 %v859, 1.0
        %v920 = vadd.f32 %v861, 1.0
        %v921 = vadd.f32 %v863, 1.0
        %v922 = vadd.f32 %v865, 1.0
        %v923 = vadd.f32 %v867, 1.0
        %v924 = vadd.f32 %v869, 1.0
        %v925 = vadd.f32 %v871, 1.0
        %v926 = vadd.f32 %v873, 1.0
        %v927 = vadd.f32 %v875, 1.0
        %v928 = vadd.f32 %v877, 1.0
        %v929 = vadd.f32 %v879, 1.0
        %v930 = vadd.f32 %v881, 1.0
        %v931 = vadd.f32 %v883, 1.0
        %v932 = vadd.f32 %v885, 1.0
        %v933 = vadd.f32 %v887, 1.0
        %v934 = vadd.f32 %v889, 1.0
        %v935 = vadd.f32 %v891, 1.0
        %v936 = vadd.f32 %v893, 1.0
        %v937 = vadd.f32 %v895, 1.0
        %v938 = vadd.f32 %v897, 1.0
        %v939 = vadd.f32 %v899, 1.0
        %v940 = vadd.f32 %v901, 1.0
        %v941 = vadd.f32 %v903, 1.0
        %v942 = vadd.f32 %v905, 1.0
        %v943 = vadd.f32 %v907, 1.0
        %v944 = vadd.f32 %v909, 1.0
        %v945 = vadd.f32 %v911, 1.0
        %v946 = vadd.f32 %v913, 1.0
        %v947 = vadd.f32 %v915, 1.0
        %v948 = vrcp.pop %v916
        %v949 = vmul.f32 1.0, %v948
        %v950 = vrcp.pop %v917
        %v951 = vmul.f32 1.0, %v950
        %v952 = vrcp.pop %v918
        %v953 = vmul.f32 1.0, %v952
        %v954 = vrcp.pop %v919
        %v955 = vmul.f32 1.0, %v954
        %v956 = vrcp.pop %v920
        %v957 = vmul.f32 1.0, %v956
        %v958 = vrcp.pop %v921
        %v959 = vmul.f32 1.0, %v958
        %v960 = vrcp.pop %v922
        %v961 = vmul.f32 1.0, %v960
        %v962 = vrcp.pop %v923
        %v963 = vmul.f32 1.0, %v962
        %v964 = vrcp.pop %v924
        %v965 = vmul.f32 1.0, %v964
        %v966 = vrcp.pop %v925
        %v967 = vmul.f32 1.0, %v966
        %v968 = vrcp.pop %v926
        %v969 = vmul.f32 1.0, %v968
        %v970 = vrcp.pop %v927
        %v971 = vmul.f32 1.0, %v970
        %v972 = vrcp.pop %v928
        %v973 = vmul.f32 1.0, %v972
        %v974 = vrcp.pop %v929
        %v975 = vmul.f32 1.0, %v974
        %v976 = vrcp.pop %v930
        %v977 = vmul.f32 1.0, %v976
        %v978 = vrcp.pop %v931
        %v979 = vmul.f32 1.0, %v978
        %v980 = vrcp.pop %v932
        %v981 = vmul.f32 1.0, %v980
        %v982 = vrcp.pop %v933
        %v983 = vmul.f32 1.0, %v982
        %v984 = vrcp.pop %v934
        %v985 = vmul.f32 1.0, %v984
        %v986 = vrcp.pop %v935
        %v987 = vmul.f32 1.0, %v986
        %v988 = vrcp.pop %v936
        %v989 = vmul.f32 1.0, %v988
        %v990 = vrcp.pop %v937
        %v991 = vmul.f32 1.0, %v990
        %v992 = vrcp.pop %v938
        %v993 = vmul.f32 1.0, %v992
        %v994 = vrcp.pop %v939
        %v995 = vmul.f32 1.0, %v994
        %v996 = vrcp.pop %v940
        %v997 = vmul.f32 1.0, %v996
        %v998 = vrcp.pop %v941
        %v999 = vmul.f32 1.0, %v998
        %v1000 = vrcp.pop %v942
        %v1001 = vmul.f32 1.0, %v1000
        %v1002 = vrcp.pop %v943
        %v1003 = vmul.f32 1.0, %v1002
        %v1004 = vrcp.pop %v944
        %v1005 = vmul.f32 1.0, %v1004
        %v1006 = vrcp.pop %v945
        %v1007 = vmul.f32 1.0, %v1006
        %v1008 = vrcp.pop %v946
        %v1009 = vmul.f32 1.0, %v1008
        %v1010 = vrcp.pop %v947
        %v1011 = vmul.f32 1.0, %v1010
        %1012 = vst [vmem:[%s257] sm:$0xff] %v949
        %1013 = vst [vmem:[%s257 + $0x8] sm:$0xff] %v951
        %1014 = vst [vmem:[%s257 + $0x10] sm:$0xff] %v953
        %1015 = vst [vmem:[%s257 + $0x18] sm:$0xff] %v955
        %1016 = vst [vmem:[%s257 + $0x20] sm:$0xff] %v957
        %1017 = vst [vmem:[%s257 + $0x28] sm:$0xff] %v959
        %1018 = vst [vmem:[%s257 + $0x30] sm:$0xff] %v961
        %1019 = vst [vmem:[%s257 + $0x38] sm:$0xff] %v963
        %1020 = vst [vmem:[%s257 + $0x40] sm:$0xff] %v965
        %1021 = vst [vmem:[%s257 + $0x48] sm:$0xff] %v967
        %1022 = vst [vmem:[%s257 + $0x50] sm:$0xff] %v969
        %1023 = vst [vmem:[%s257 + $0x58] sm:$0xff] %v971
        %1024 = vst [vmem:[%s257 + $0x60] sm:$0xff] %v973
        %1025 = vst [vmem:[%s257 + $0x68] sm:$0xff] %v975
        %1026 = vst [vmem:[%s257 + $0x70] sm:$0xff] %v977
        %1027 = vst [vmem:[%s257 + $0x78] sm:$0xff] %v979
        %1028 = vst [vmem:[%s257 + $0x80] sm:$0xff] %v981
        %1029 = vst [vmem:[%s257 + $0x88] sm:$0xff] %v983
        %1030 = vst [vmem:[%s257 + $0x90] sm:$0xff] %v985
        %1031 = vst [vmem:[%s257 + $0x98] sm:$0xff] %v987
        %1032 = vst [vmem:[%s257 + $0xa0] sm:$0xff] %v989
        %1033 = vst [vmem:[%s257 + $0xa8] sm:$0xff] %v991
        %1034 = vst [vmem:[%s257 + $0xb0] sm:$0xff] %v993
        %1035 = vst [vmem:[%s257 + $0xb8] sm:$0xff] %v995
        %1036 = vst [vmem:[%s257 + $0xc0] sm:$0xff] %v997
        %1037 = vst [vmem:[%s257 + $0xc8] sm:$0xff] %v999
        %1038 = vst [vmem:[%s257 + $0xd0] sm:$0xff] %v1001
        %1039 = vst [vmem:[%s257 + $0xd8] sm:$0xff] %v1003
        %1040 = vst [vmem:[%s257 + $0xe0] sm:$0xff] %v1005
        %1041 = vst [vmem:[%s257 + $0xe8] sm:$0xff] %v1007
        %1042 = vst [vmem:[%s257 + $0xf0] sm:$0xff] %v1009
        %1043 = vst [vmem:[%s257 + $0xf8] sm:$0xff] %v1011
      $region40: #{decoder_forward.7} parent=31 // pred_fallthru
        _
      %s1044 = smul.u32 32, %s19
      %p1045 = scmp.lt.s32.totalorder %s1044, 1023
      %s1046 = scalar_select %p1045, %s1044, 1023
      %p1047 = scmp.lt.s32.totalorder %s20, 0
      %s1048 = scalar_select %p1047, %s20, 0
      %s1049 = sadd.s32 %s1048, %s1046
      %s1050 = smul.addr %s1049, 8
      %s1051 = scalar_lea.vmem %s3, %s1050
      // Predicated region
      $region41: #{decoder_forward.7} parent=31 // pred_check
        %p1052 = pneg %p135
      $region42: #{decoder_forward.7} parent=31 // pred_check_branch
        %1054 = sbr.rel (%p1052) target = $region44
      $region43: #{decoder_forward.7} parent=31 // pred_region
        %s1055 = smul.u32 32, %s19
      $region44: #{decoder_forward.7} parent=31 // pred_fallthru
        _
    $region32: #{decoder_forward.7} parent=5 // pred_fallthru
      _
    %p1056 = scmp.le.s32.totalorder 2, %s9
    // Predicated region
    $region45: #{decoder_forward.7} parent=5 // pred_check
      %p1057 = pneg %p1056
    $region46: #{decoder_forward.7} parent=5 // pred_check_branch
      %1059 = sbr.rel (%p1057) target = $region48
    $region47: #{decoder_forward.7} parent=5 // pred_region
      %s1060 = ssub.s32 %s9, 2
      // Predicated region
      $region49: #{decoder_forward.7} parent=47 // pred_check
        %p1061 = pneg %p141
      $region50: #{decoder_forward.7} parent=47 // pred_check_branch
        %1063 = sbr.rel (%p1061) target = $region52
      $region51: #{decoder_forward.7} parent=47 // pred_region
        %s1064 = smul.u32 32, %s22
        %p1065 = scmp.lt.s32.totalorder %s1064, 1023
        %s1066 = scalar_select %p1065, %s1064, 1023
        %p1067 = scmp.lt.s32.totalorder %s23, 0
        %s1068 = scalar_select %p1067, %s23, 0
        %s1069 = sadd.s32 %s1068, %s1066
        %s1070 = smul.addr %s1069, 8
        %s1071 = scalar_lea.vmem %s3, %s1070
      $region52: #{decoder_forward.7} parent=47 // pred_fallthru
        _
    $region48: #{decoder_forward.7} parent=5 // pred_fallthru
      _
  $region6: #{decoder_forward.7} parent=0 // loop_footer
    %s13 = sadd.s32 1, %s9
  $region7: #{decoder_forward.7} parent=0 // loop_footer_branch
    %8 = sbr.rel target = $region3
  $region8: #{decoder_forward.7} parent=0 // loop_exit
    _

</llo_original>
